<compile_context>
chip_gen: v6e
topology: v6e:2x2x1
jax: 0.10.0
libtpu: 0.0.40
codegen_flags: <defaults>
</compile_context>

<pallas_src>
import functools

import numpy as np
import jax
import jax.numpy as jnp
from jax.experimental import pallas as pl
from jax.experimental.pallas import tpu as pltpu


C = 64  # hidden width fixed by the model


# --------------------------------------------------------------------------
# Fused kernel: one batch element per grid step, everything stays in VMEM.
# --------------------------------------------------------------------------

def _spafcn_kernel(x_ref, w1t_ref, b1_ref,
                   w2t_ref, b2_ref, m2_ref,
                   w3t_ref, b3_ref, m3_ref,
                   p2t_ref, u2t_ref, u3pt_ref,
                   wct_ref, bct_ref,
                   o_ref,
                   buf2_ref, buf3_ref,
                   *, H, W):
    f32, bf16 = jnp.float32, jnp.bfloat16
    H2, W2 = H + 1, W + 1                  # spatial size after avgpool(2,s1,p1)
    P1, P2 = H * W, H2 * W2
    OFF2, OFF3 = 2 * W + 2, 2 * W2 + 2     # flat halo width = max |tap shift|

    def fill_padded(buf_ref, val_f32, off, P):
        # Halo-only zeroing (review item): interior is fully overwritten every
        # grid step, so only the two border strips are cleared.  Not gated on
        # program_id so it stays correct under megacore "parallel".
        buf_ref[:, 0:off] = jnp.zeros((C, off), bf16)
        buf_ref[:, off + P:off + P + off] = jnp.zeros((C, off), bf16)
        buf_ref[:, off:off + P] = val_f32.astype(bf16)

    def dilated3x3_relu(buf_ref, wt_ref, b_ref, m_ref, Wi, off, P):
        # 3x3 conv, dilation 2, padding 2 as nine (C,C)@(C,P) MXU matmuls.
        # Taps are lane-shifted slices of the zero-padded flat line; the two
        # precomputed 0/1 masks zero the pixels whose +-2 horizontal neighbour
        # wrapped across an image-row boundary (vertical OOB lands in the
        # zero halo automatically).
        acc = jnp.zeros((C, P), f32)
        for kh in range(3):
            for kw in range(3):
                dh, dw = 2 * (kh - 1), 2 * (kw - 1)
                start = off + dh * Wi + dw
                tap = buf_ref[:, start:start + P]              # (C, P) bf16
                if dw < 0:
                    tap = tap * m_ref[0:1, :]
                elif dw > 0:
                    tap = tap * m_ref[1:2, :]
                acc = acc + jnp.dot(wt_ref[kh * 3 + kw], tap,
                                    preferred_element_type=f32)
        return jnp.maximum(acc + b_ref[...], 0.0)              # (C, P) f32

    # ---- conv1 (1x1) + relu, transposed form: (C,Cin)@(Cin,P1) -------------
    # (K=8 wastes MXU contraction width but is negligible at this size.)
    c1 = jnp.dot(w1t_ref[...], x_ref[0], preferred_element_type=f32) + b1_ref[...]
    c1 = jnp.maximum(c1, 0.0)                                  # (C, P1)

    # ---- conv2 (3x3, dil 2, pad 2) + relu -----------------------------------
    fill_padded(buf2_ref, c1, OFF2, P1)
    y2 = dilated3x3_relu(buf2_ref, w2t_ref, b2_ref, m2_ref, W, OFF2, P1)

    # ---- avgpool(2, s=1, p=1) as one lane-dense matmul ----------------------
    c2 = jnp.dot(y2, p2t_ref[...], preferred_element_type=f32)         # (C, P2)

    # ---- conv3 (3x3, dil 2, pad 2) + relu -----------------------------------
    fill_padded(buf3_ref, c2, OFF3, P2)
    y3 = dilated3x3_relu(buf3_ref, w3t_ref, b3_ref, m3_ref, W2, OFF3, P2)

    # ---- conv1 + up(pool(conv2)) + up(pool(conv3)) --------------------------
    # u3pt already contains (bilinear_up @ pool3), so pool3 never materializes.
    s = c1
    s = s + jnp.dot(c2, u2t_ref[...], preferred_element_type=f32)
    s = s + jnp.dot(y3, u3pt_ref[...], preferred_element_type=f32)      # (C, P1)

    # ---- 1x1 classifier, output stays channels-major (= NCHW) ---------------
    out = jnp.dot(wct_ref[...], s, preferred_element_type=f32) + bct_ref[...]
    o_ref[0] = out.astype(o_ref.dtype)                                   # (Kr, P1)


# --------------------------------------------------------------------------
# Small host-side constant builders (numpy, computed once per shape)
# --------------------------------------------------------------------------

def _axis_weights(dst, src):
    """align_corners=True bilinear interpolation matrix (dst, src)."""
    A = np.zeros((dst, src), dtype=np.float32)
    if dst == 1 or src == 1:
        A[:, 0] = 1.0
        return A
    scale = (src - 1) / (dst - 1)
    for i in range(dst):
        s = i * scale
        i0 = min(int(np.floor(s)), src - 1)
        i1 = min(i0 + 1, src - 1)
        f = s - i0
        A[i, i0] += 1.0 - f
        A[i, i1] += f
    return A


def _pool_axis(n):
    """AvgPool2d(k=2, s=1, p=1, count_include_pad=True), one axis: (n+1, n)."""
    A = np.zeros((n + 1, n), dtype=np.float32)
    for o in range(n + 1):
        for i in (o - 1, o):
            if 0 <= i < n:
                A[o, i] = 0.5
    return A


def _wrap_masks(Hs, Ws):
    """Row-wrap masks for the +-2 horizontal taps in flat (h*Ws+w) indexing."""
    w = np.arange(Hs * Ws) % Ws
    return np.stack([(w >= 2), (w < Ws - 2)]).astype(np.float32)   # (2, Hs*Ws)


# --------------------------------------------------------------------------
# Parameters (matches PyTorch Conv2d default init distribution)
# --------------------------------------------------------------------------

def init_params(key, num_features, num_classes):
    ks = jax.random.split(key, 8)

    def u(k, shape, fan_in):
        bound = 1.0 / np.sqrt(fan_in)
        return jax.random.uniform(k, shape, jnp.float32, -bound, bound)

    return {
        'w1': u(ks[0], (num_features, C), num_features),
        'b1': u(ks[1], (C,), num_features),
        'w2': u(ks[2], (3, 3, C, C), 9 * C),   # HWIO
        'b2': u(ks[3], (C,), 9 * C),
        'w3': u(ks[4], (3, 3, C, C), 9 * C),
        'b3': u(ks[5], (C,), 9 * C),
        'wc': u(ks[6], (C, num_classes), C),
        'bc': u(ks[7], (num_classes,), C),
    }


# --------------------------------------------------------------------------
# Wrapper: NCHW in / NCHW out, one fused pallas_call
# --------------------------------------------------------------------------

def spafcn_forward(x_nchw, params):
    N, Cin, H, W = x_nchw.shape
    ncls = params['wc'].shape[1]
    Kr = ((ncls + 7) // 8) * 8               # sublane-pad classes (9 -> 16)
    H2, W2 = H + 1, W + 1
    H3, W3 = H2 + 1, W2 + 1
    P1, P2 = H * W, H2 * W2
    OFF2, OFF3 = 2 * W + 2, 2 * W2 + 2

    f32, bf16 = jnp.float32, jnp.bfloat16

    # native NCHW, lane-dense (last dim = H*W): no wrapper transpose
    x = x_nchw.reshape(N, Cin, P1).astype(f32)

    # transposed ("weight stationary") weights; conv weights per 3x3 tap
    w1t = params['w1'].T.astype(f32)                                    # (C, Cin)
    b1 = params['b1'].reshape(C, 1).astype(f32)
    w2t = jnp.transpose(params['w2'], (0, 1, 3, 2)).reshape(9, C, C).astype(bf16)
    b2 = params['b2'].reshape(C, 1).astype(f32)
    w3t = jnp.transpose(params['w3'], (0, 1, 3, 2)).reshape(9, C, C).astype(bf16)
    b3 = params['b3'].reshape(C, 1).astype(f32)
    wct = jnp.zeros((Kr, C), f32).at[:ncls].set(params['wc'].T.astype(f32))
    bct = jnp.zeros((Kr, 1), f32).at[:ncls, 0].set(params['bc'].astype(f32))

    m2 = jnp.asarray(_wrap_masks(H, W), dtype=bf16)                     # (2, P1)
    m3 = jnp.asarray(_wrap_masks(H2, W2), dtype=bf16)                   # (2, P2)

    # pixel-flat pool / bilinear matrices (transposed for the CHW layout)
    pool2 = np.kron(_pool_axis(H), _pool_axis(W))                       # (P2, P1)
    pool3 = np.kron(_pool_axis(H2), _pool_axis(W2))                     # (P3, P2)
    up2 = np.kron(_axis_weights(H, H2), _axis_weights(W, W2))           # (P1, P2)
    up3 = np.kron(_axis_weights(H, H3), _axis_weights(W, W3))           # (P1, P3)
    p2t = jnp.asarray(pool2.T)                                          # (P1, P2)
    u2t = jnp.asarray(up2.T)                                            # (P2, P1)
    u3pt = jnp.asarray((up3 @ pool3).T)                                 # (P2, P1)

    kernel = functools.partial(_spafcn_kernel, H=H, W=W)
    c2d = lambda n: (0, 0)
    c3d = lambda n: (0, 0, 0)

    flops = 2 * N * (P1 * Cin * C + 9 * P1 * C * C + 9 * P2 * C * C
                     + 3 * C * P1 * P2 + Kr * C * P1)
    bytes_acc = int(4 * (x.size + N * Kr * P1 + 3 * P1 * P2 + w1t.size
                         + b1.size + b2.size + b3.size + wct.size + bct.size)
                    + 2 * (w2t.size + w3t.size + m2.size + m3.size))

    out = pl.pallas_call(
        kernel,
        out_shape=jax.ShapeDtypeStruct((N, Kr, P1), jnp.float32),
        grid=(N,),
        in_specs=[
            pl.BlockSpec((1, Cin, P1), lambda n: (n, 0, 0)),   # x (CHW, lane-dense)
            pl.BlockSpec((C, Cin), c2d),                       # w1^T
            pl.BlockSpec((C, 1), c2d),                         # b1
            pl.BlockSpec((9, C, C), c3d),                      # w2^T per tap (bf16)
            pl.BlockSpec((C, 1), c2d),                         # b2
            pl.BlockSpec((2, P1), c2d),                        # horiz wrap masks
            pl.BlockSpec((9, C, C), c3d),                      # w3^T per tap (bf16)
            pl.BlockSpec((C, 1), c2d),                         # b3
            pl.BlockSpec((2, P2), c2d),                        # horiz wrap masks
            pl.BlockSpec((P1, P2), c2d),                       # pool2^T
            pl.BlockSpec((P2, P1), c2d),                       # up2^T
            pl.BlockSpec((P2, P1), c2d),                       # (up3 @ pool3)^T
            pl.BlockSpec((Kr, C), c2d),                        # wc^T (sublane pad)
            pl.BlockSpec((Kr, 1), c2d),                        # bc
        ],
        out_specs=pl.BlockSpec((1, Kr, P1), lambda n: (n, 0, 0)),
        scratch_shapes=[
            # bf16 zero-halo-padded conv-input lines (review: bf16 scratch)
            pltpu.VMEM((C, P1 + 2 * OFF2), jnp.bfloat16),
            pltpu.VMEM((C, P2 + 2 * OFF3), jnp.bfloat16),
        ],
        compiler_params=pltpu.CompilerParams(
            dimension_semantics=("parallel",),
            vmem_limit_bytes=32 * 1024 * 1024),   # explicit budget (fits all gens)
        cost_estimate=pl.CostEstimate(
            flops=int(flops), transcendentals=0, bytes_accessed=bytes_acc),
    )(x, w1t, b1, w2t, b2, m2, w3t, b3, m3, p2t, u2t, u3pt, wct, bct)

    # output is already channels-major: just drop the class padding
    return out[:, :ncls, :].reshape(N, ncls, H, W)


# --------------------------------------------------------------------------
# Pure-JAX reference (independent: dense conv / reduce_window / kron upsample)
# --------------------------------------------------------------------------

def reference_forward(x_nchw, p):
    x = jnp.transpose(x_nchw, (0, 2, 3, 1)).astype(jnp.float32)
    N, H, W, _ = x.shape

    def conv(z, w, b, dil, pad):
        y = jax.lax.conv_general_dilated(
            z, w, window_strides=(1, 1),
            padding=((pad, pad), (pad, pad)),
            rhs_dilation=(dil, dil),
            dimension_numbers=('NHWC', 'HWIO', 'NHWC'))
        return y + b

    def pool(z):
        s = jax.lax.reduce_window(z, 0.0, jax.lax.add,
                                  (1, 2, 2, 1), (1, 1, 1, 1),
                                  ((0, 0), (1, 1), (1, 1), (0, 0)))
        return s * 0.25

    def upsample(z, Ho, Wo):
        n, hs, ws, c = z.shape
        M = jnp.asarray(np.kron(_axis_weights(Ho, hs), _axis_weights(Wo, ws)))
        return jnp.einsum('os,nsc->noc', M,
                          z.reshape(n, hs * ws, c)).reshape(n, Ho, Wo, c)

    c1 = jax.nn.relu(conv(x, p['w1'].reshape(1, 1, *p['w1'].shape), p['b1'], 1, 0))
    c2 = pool(jax.nn.relu(conv(c1, p['w2'], p['b2'], 2, 2)))
    c3 = pool(jax.nn.relu(conv(c2, p['w3'], p['b3'], 2, 2)))
    s = c1 + upsample(c2, H, W) + upsample(c3, H, W)
    out = conv(s, p['wc'].reshape(1, 1, *p['wc'].shape), p['bc'], 1, 0)
    return jnp.transpose(out, (0, 3, 1, 2))


# --------------------------------------------------------------------------

if __name__ == "__main__":
    key = jax.random.PRNGKey(0)
    k_x, k_p = jax.random.split(key)

    N, num_features, H, W = 2, 8, 16, 16
    num_classes = 9

    x = jax.random.normal(k_x, (N, num_features, H, W), jnp.float32)
    params = init_params(k_p, num_features, num_classes)

    out = jax.block_until_ready(spafcn_forward(x, params))
    assert out.shape == (N, num_classes, H, W), out.shape

    ref = jax.block_until_ready(reference_forward(x, params))
    err = float(jnp.max(jnp.abs(out - ref)))
    scale = float(jnp.max(jnp.abs(ref)))
    # tolerance accounts for the bf16 operands of the dilated-conv matmuls
    assert err <= 5e-2 * max(scale, 1.0), f"max abs error {err} (ref scale {scale})"

    print("KERNEL_OK")
</pallas_src>

<mosaic_0001>
module attributes {stable_mosaic.version = 11 : i64} {
  func.func @_spafcn_kernel(%arg0: i32, %arg1: memref<1x8x256xf32, #tpu.memory_space<vmem>>, %arg2: memref<64x8xf32, #tpu.memory_space<vmem>>, %arg3: memref<64x1xf32, #tpu.memory_space<vmem>>, %arg4: memref<9x64x64xbf16, #tpu.memory_space<vmem>>, %arg5: memref<64x1xf32, #tpu.memory_space<vmem>>, %arg6: memref<2x256xbf16, #tpu.memory_space<vmem>>, %arg7: memref<9x64x64xbf16, #tpu.memory_space<vmem>>, %arg8: memref<64x1xf32, #tpu.memory_space<vmem>>, %arg9: memref<2x289xbf16, #tpu.memory_space<vmem>>, %arg10: memref<256x289xf32, #tpu.memory_space<vmem>>, %arg11: memref<289x256xf32, #tpu.memory_space<vmem>>, %arg12: memref<289x256xf32, #tpu.memory_space<vmem>>, %arg13: memref<16x64xf32, #tpu.memory_space<vmem>>, %arg14: memref<16x1xf32, #tpu.memory_space<vmem>>, %arg15: memref<1x16x256xf32, #tpu.memory_space<vmem>>, %arg16: memref<64x324xbf16, #tpu.memory_space<vmem>>, %arg17: memref<64x361xbf16, #tpu.memory_space<vmem>>) attributes {dimension_semantics = [#tpu.dimension_semantics<parallel>], iteration_bounds = array<i64: 2>, scalar_prefetch = 0 : i64, scratch_operands = 2 : i64, tpu.core_type = #tpu.core_type<tc>, window_params = [{transform_indices = @transform_0, window_bounds = array<i64: 1, 8, 256>}, {pipeline_mode = #tpu.pipeline_mode<synchronous>, transform_indices = @transform_1, window_bounds = array<i64: 64, 8>}, {pipeline_mode = #tpu.pipeline_mode<synchronous>, transform_indices = @transform_2, window_bounds = array<i64: 64, 1>}, {pipeline_mode = #tpu.pipeline_mode<synchronous>, transform_indices = @transform_3, window_bounds = array<i64: 9, 64, 64>}, {pipeline_mode = #tpu.pipeline_mode<synchronous>, transform_indices = @transform_4, window_bounds = array<i64: 64, 1>}, {pipeline_mode = #tpu.pipeline_mode<synchronous>, transform_indices = @transform_5, window_bounds = array<i64: 2, 256>}, {pipeline_mode = #tpu.pipeline_mode<synchronous>, transform_indices = @transform_6, window_bounds = array<i64: 9, 64, 64>}, {pipeline_mode = #tpu.pipeline_mode<synchronous>, transform_indices = @transform_7, window_bounds = array<i64: 64, 1>}, {pipeline_mode = #tpu.pipeline_mode<synchronous>, transform_indices = @transform_8, window_bounds = array<i64: 2, 289>}, {pipeline_mode = #tpu.pipeline_mode<synchronous>, transform_indices = @transform_9, window_bounds = array<i64: 256, 289>}, {pipeline_mode = #tpu.pipeline_mode<synchronous>, transform_indices = @transform_10, window_bounds = array<i64: 289, 256>}, {pipeline_mode = #tpu.pipeline_mode<synchronous>, transform_indices = @transform_11, window_bounds = array<i64: 289, 256>}, {pipeline_mode = #tpu.pipeline_mode<synchronous>, transform_indices = @transform_12, window_bounds = array<i64: 16, 64>}, {pipeline_mode = #tpu.pipeline_mode<synchronous>, transform_indices = @transform_13, window_bounds = array<i64: 16, 1>}, {transform_indices = @transform_14, window_bounds = array<i64: 1, 16, 256>}]} {
    %c0 = arith.constant 0 : index
    %c0_0 = arith.constant 0 : index
    %0 = vector.load %arg2[%c0, %c0_0] : memref<64x8xf32, #tpu.memory_space<vmem>>, vector<64x8xf32>
    %c0_1 = arith.constant 0 : index
    %c0_2 = arith.constant 0 : index
    %c0_3 = arith.constant 0 : index
    %1 = vector.load %arg1[%c0_1, %c0_2, %c0_3] : memref<1x8x256xf32, #tpu.memory_space<vmem>>, vector<1x8x256xf32>
    %2 = vector.shape_cast %1 : vector<1x8x256xf32> to vector<8x256xf32>
    %cst = arith.constant dense<0.000000e+00> : vector<64x256xf32>
    %3 = tpu.matmul %0, %2, %cst {dimension_numbers = #tpu.dot_dimension_numbers<[1], [0], [0], [1], [0, 0, 1, 1], [], []>} : vector<64x8xf32>, vector<8x256xf32>, vector<64x256xf32> -> vector<64x256xf32>
    %c0_4 = arith.constant 0 : index
    %c0_5 = arith.constant 0 : index
    %4 = vector.load %arg3[%c0_4, %c0_5] : memref<64x1xf32, #tpu.memory_space<vmem>>, vector<64x1xf32>
    %5 = vector.broadcast %4 : vector<64x1xf32> to vector<64x256xf32>
    %6 = arith.addf %3, %5 : vector<64x256xf32>
    %cst_6 = arith.constant 0.000000e+00 : f32
    %7 = vector.broadcast %cst_6 : f32 to vector<64x256xf32>
    %8 = arith.maximumf %6, %7 : vector<64x256xf32>
    %cst_7 = arith.constant 0.000000e+00 : bf16
    %9 = vector.broadcast %cst_7 : bf16 to vector<64x34xbf16>
    %c0_8 = arith.constant 0 : index
    %c0_9 = arith.constant 0 : index
    %10 = vector.load %arg16[%c0_8, %c0_9] : memref<64x324xbf16, #tpu.memory_space<vmem>>, vector<64x34xbf16>
    tpu.vector_store %arg16[%c0_8, %c0_9], %9 {strides = array<i32>} : memref<64x324xbf16, #tpu.memory_space<vmem>>, vector<64x34xbf16>,
    %cst_10 = arith.constant 0.000000e+00 : bf16
    %11 = vector.broadcast %cst_10 : bf16 to vector<64x34xbf16>
    %c0_11 = arith.constant 0 : index
    %c290 = arith.constant 290 : index
    %12 = vector.load %arg16[%c0_11, %c290] : memref<64x324xbf16, #tpu.memory_space<vmem>>, vector<64x34xbf16>
    tpu.vector_store %arg16[%c0_11, %c290], %11 {strides = array<i32>} : memref<64x324xbf16, #tpu.memory_space<vmem>>, vector<64x34xbf16>,
    %13 = arith.truncf %8 : vector<64x256xf32> to vector<64x256xbf16>
    %c0_12 = arith.constant 0 : index
    %c34 = arith.constant 34 : index
    %14 = vector.load %arg16[%c0_12, %c34] : memref<64x324xbf16, #tpu.memory_space<vmem>>, vector<64x256xbf16>
    tpu.vector_store %arg16[%c0_12, %c34], %13 {strides = array<i32>} : memref<64x324xbf16, #tpu.memory_space<vmem>>, vector<64x256xbf16>,
    %cst_13 = arith.constant 0.000000e+00 : f32
    %15 = vector.broadcast %cst_13 : f32 to vector<64x256xf32>
    %c0_14 = arith.constant 0 : index
    %c0_15 = arith.constant 0 : index
    %16 = vector.load %arg16[%c0_14, %c0_15] : memref<64x324xbf16, #tpu.memory_space<vmem>>, vector<64x256xbf16>
    %c0_16 = arith.constant 0 : index
    %c0_17 = arith.constant 0 : index
    %17 = vector.load %arg6[%c0_16, %c0_17] : memref<2x256xbf16, #tpu.memory_space<vmem>>, vector<1x256xbf16>
    %18 = vector.broadcast %17 : vector<1x256xbf16> to vector<64x256xbf16>
    %19 = arith.mulf %16, %18 : vector<64x256xbf16>
    %c0_18 = arith.constant 0 : index
    %c0_19 = arith.constant 0 : index
    %c0_20 = arith.constant 0 : index
    %20 = vector.load %arg4[%c0_18, %c0_19, %c0_20] : memref<9x64x64xbf16, #tpu.memory_space<vmem>>, vector<1x64x64xbf16>
    %21 = vector.shape_cast %20 : vector<1x64x64xbf16> to vector<64x64xbf16>
    %cst_21 = arith.constant dense<0.000000e+00> : vector<64x256xf32>
    %22 = tpu.matmul %21, %19, %cst_21 {dimension_numbers = #tpu.dot_dimension_numbers<[1], [0], [0], [1], [0, 0, 1, 1], [], []>} : vector<64x64xbf16>, vector<64x256xbf16>, vector<64x256xf32> -> vector<64x256xf32>
    %23 = arith.addf %15, %22 : vector<64x256xf32>
    %c0_22 = arith.constant 0 : index
    %c2 = arith.constant 2 : index
    %24 = vector.load %arg16[%c0_22, %c2] : memref<64x324xbf16, #tpu.memory_space<vmem>>, vector<64x256xbf16>
    %c1 = arith.constant 1 : index
    %c0_23 = arith.constant 0 : index
    %c0_24 = arith.constant 0 : index
    %25 = vector.load %arg4[%c1, %c0_23, %c0_24] : memref<9x64x64xbf16, #tpu.memory_space<vmem>>, vector<1x64x64xbf16>
    %26 = vector.shape_cast %25 : vector<1x64x64xbf16> to vector<64x64xbf16>
    %cst_25 = arith.constant dense<0.000000e+00> : vector<64x256xf32>
    %27 = tpu.matmul %26, %24, %cst_25 {dimension_numbers = #tpu.dot_dimension_numbers<[1], [0], [0], [1], [0, 0, 1, 1], [], []>} : vector<64x64xbf16>, vector<64x256xbf16>, vector<64x256xf32> -> vector<64x256xf32>
    %28 = arith.addf %23, %27 : vector<64x256xf32>
    %c0_26 = arith.constant 0 : index
    %c4 = arith.constant 4 : index
    %29 = vector.load %arg16[%c0_26, %c4] : memref<64x324xbf16, #tpu.memory_space<vmem>>, vector<64x256xbf16>
    %c1_27 = arith.constant 1 : index
    %c0_28 = arith.constant 0 : index
    %30 = vector.load %arg6[%c1_27, %c0_28] : memref<2x256xbf16, #tpu.memory_space<vmem>>, vector<1x256xbf16>
    %31 = vector.broadcast %30 : vector<1x256xbf16> to vector<64x256xbf16>
    %32 = arith.mulf %29, %31 : vector<64x256xbf16>
    %c2_29 = arith.constant 2 : index
    %c0_30 = arith.constant 0 : index
    %c0_31 = arith.constant 0 : index
    %33 = vector.load %arg4[%c2_29, %c0_30, %c0_31] : memref<9x64x64xbf16, #tpu.memory_space<vmem>>, vector<1x64x64xbf16>
    %34 = vector.shape_cast %33 : vector<1x64x64xbf16> to vector<64x64xbf16>
    %cst_32 = arith.constant dense<0.000000e+00> : vector<64x256xf32>
    %35 = tpu.matmul %34, %32, %cst_32 {dimension_numbers = #tpu.dot_dimension_numbers<[1], [0], [0], [1], [0, 0, 1, 1], [], []>} : vector<64x64xbf16>, vector<64x256xbf16>, vector<64x256xf32> -> vector<64x256xf32>
    %36 = arith.addf %28, %35 : vector<64x256xf32>
    %c0_33 = arith.constant 0 : index
    %c32 = arith.constant 32 : index
    %37 = vector.load %arg16[%c0_33, %c32] : memref<64x324xbf16, #tpu.memory_space<vmem>>, vector<64x256xbf16>
    %c0_34 = arith.constant 0 : index
    %c0_35 = arith.constant 0 : index
    %38 = vector.load %arg6[%c0_34, %c0_35] : memref<2x256xbf16, #tpu.memory_space<vmem>>, vector<1x256xbf16>
    %39 = vector.broadcast %38 : vector<1x256xbf16> to vector<64x256xbf16>
    %40 = arith.mulf %37, %39 : vector<64x256xbf16>
    %c3 = arith.constant 3 : index
    %c0_36 = arith.constant 0 : index
    %c0_37 = arith.constant 0 : index
    %41 = vector.load %arg4[%c3, %c0_36, %c0_37] : memref<9x64x64xbf16, #tpu.memory_space<vmem>>, vector<1x64x64xbf16>
    %42 = vector.shape_cast %41 : vector<1x64x64xbf16> to vector<64x64xbf16>
    %cst_38 = arith.constant dense<0.000000e+00> : vector<64x256xf32>
    %43 = tpu.matmul %42, %40, %cst_38 {dimension_numbers = #tpu.dot_dimension_numbers<[1], [0], [0], [1], [0, 0, 1, 1], [], []>} : vector<64x64xbf16>, vector<64x256xbf16>, vector<64x256xf32> -> vector<64x256xf32>
    %44 = arith.addf %36, %43 : vector<64x256xf32>
    %c0_39 = arith.constant 0 : index
    %c34_40 = arith.constant 34 : index
    %45 = vector.load %arg16[%c0_39, %c34_40] : memref<64x324xbf16, #tpu.memory_space<vmem>>, vector<64x256xbf16>
    %c4_41 = arith.constant 4 : index
    %c0_42 = arith.constant 0 : index
    %c0_43 = arith.constant 0 : index
    %46 = vector.load %arg4[%c4_41, %c0_42, %c0_43] : memref<9x64x64xbf16, #tpu.memory_space<vmem>>, vector<1x64x64xbf16>
    %47 = vector.shape_cast %46 : vector<1x64x64xbf16> to vector<64x64xbf16>
    %cst_44 = arith.constant dense<0.000000e+00> : vector<64x256xf32>
    %48 = tpu.matmul %47, %45, %cst_44 {dimension_numbers = #tpu.dot_dimension_numbers<[1], [0], [0], [1], [0, 0, 1, 1], [], []>} : vector<64x64xbf16>, vector<64x256xbf16>, vector<64x256xf32> -> vector<64x256xf32>
    %49 = arith.addf %44, %48 : vector<64x256xf32>
    %c0_45 = arith.constant 0 : index
    %c36 = arith.constant 36 : index
    %50 = vector.load %arg16[%c0_45, %c36] : memref<64x324xbf16, #tpu.memory_space<vmem>>, vector<64x256xbf16>
    %c1_46 = arith.constant 1 : index
    %c0_47 = arith.constant 0 : index
    %51 = vector.load %arg6[%c1_46, %c0_47] : memref<2x256xbf16, #tpu.memory_space<vmem>>, vector<1x256xbf16>
    %52 = vector.broadcast %51 : vector<1x256xbf16> to vector<64x256xbf16>
    %53 = arith.mulf %50, %52 : vector<64x256xbf16>
    %c5 = arith.constant 5 : index
    %c0_48 = arith.constant 0 : index
    %c0_49 = arith.constant 0 : index
    %54 = vector.load %arg4[%c5, %c0_48, %c0_49] : memref<9x64x64xbf16, #tpu.memory_space<vmem>>, vector<1x64x64xbf16>
    %55 = vector.shape_cast %54 : vector<1x64x64xbf16> to vector<64x64xbf16>
    %cst_50 = arith.constant dense<0.000000e+00> : vector<64x256xf32>
    %56 = tpu.matmul %55, %53, %cst_50 {dimension_numbers = #tpu.dot_dimension_numbers<[1], [0], [0], [1], [0, 0, 1, 1], [], []>} : vector<64x64xbf16>, vector<64x256xbf16>, vector<64x256xf32> -> vector<64x256xf32>
    %57 = arith.addf %49, %56 : vector<64x256xf32>
    %c0_51 = arith.constant 0 : index
    %c64 = arith.constant 64 : index
    %58 = vector.load %arg16[%c0_51, %c64] : memref<64x324xbf16, #tpu.memory_space<vmem>>, vector<64x256xbf16>
    %c0_52 = arith.constant 0 : index
    %c0_53 = arith.constant 0 : index
    %59 = vector.load %arg6[%c0_52, %c0_53] : memref<2x256xbf16, #tpu.memory_space<vmem>>, vector<1x256xbf16>
    %60 = vector.broadcast %59 : vector<1x256xbf16> to vector<64x256xbf16>
    %61 = arith.mulf %58, %60 : vector<64x256xbf16>
    %c6 = arith.constant 6 : index
    %c0_54 = arith.constant 0 : index
    %c0_55 = arith.constant 0 : index
    %62 = vector.load %arg4[%c6, %c0_54, %c0_55] : memref<9x64x64xbf16, #tpu.memory_space<vmem>>, vector<1x64x64xbf16>
    %63 = vector.shape_cast %62 : vector<1x64x64xbf16> to vector<64x64xbf16>
    %cst_56 = arith.constant dense<0.000000e+00> : vector<64x256xf32>
    %64 = tpu.matmul %63, %61, %cst_56 {dimension_numbers = #tpu.dot_dimension_numbers<[1], [0], [0], [1], [0, 0, 1, 1], [], []>} : vector<64x64xbf16>, vector<64x256xbf16>, vector<64x256xf32> -> vector<64x256xf32>
    %65 = arith.addf %57, %64 : vector<64x256xf32>
    %c0_57 = arith.constant 0 : index
    %c66 = arith.constant 66 : index
    %66 = vector.load %arg16[%c0_57, %c66] : memref<64x324xbf16, #tpu.memory_space<vmem>>, vector<64x256xbf16>
    %c7 = arith.constant 7 : index
    %c0_58 = arith.constant 0 : index
    %c0_59 = arith.constant 0 : index
    %67 = vector.load %arg4[%c7, %c0_58, %c0_59] : memref<9x64x64xbf16, #tpu.memory_space<vmem>>, vector<1x64x64xbf16>
    %68 = vector.shape_cast %67 : vector<1x64x64xbf16> to vector<64x64xbf16>
    %cst_60 = arith.constant dense<0.000000e+00> : vector<64x256xf32>
    %69 = tpu.matmul %68, %66, %cst_60 {dimension_numbers = #tpu.dot_dimension_numbers<[1], [0], [0], [1], [0, 0, 1, 1], [], []>} : vector<64x64xbf16>, vector<64x256xbf16>, vector<64x256xf32> -> vector<64x256xf32>
    %70 = arith.addf %65, %69 : vector<64x256xf32>
    %c0_61 = arith.constant 0 : index
    %c68 = arith.constant 68 : index
    %71 = vector.load %arg16[%c0_61, %c68] : memref<64x324xbf16, #tpu.memory_space<vmem>>, vector<64x256xbf16>
    %c1_62 = arith.constant 1 : index
    %c0_63 = arith.constant 0 : index
    %72 = vector.load %arg6[%c1_62, %c0_63] : memref<2x256xbf16, #tpu.memory_space<vmem>>, vector<1x256xbf16>
    %73 = vector.broadcast %72 : vector<1x256xbf16> to vector<64x256xbf16>
    %74 = arith.mulf %71, %73 : vector<64x256xbf16>
    %c8 = arith.constant 8 : index
    %c0_64 = arith.constant 0 : index
    %c0_65 = arith.constant 0 : index
    %75 = vector.load %arg4[%c8, %c0_64, %c0_65] : memref<9x64x64xbf16, #tpu.memory_space<vmem>>, vector<1x64x64xbf16>
    %76 = vector.shape_cast %75 : vector<1x64x64xbf16> to vector<64x64xbf16>
    %cst_66 = arith.constant dense<0.000000e+00> : vector<64x256xf32>
    %77 = tpu.matmul %76, %74, %cst_66 {dimension_numbers = #tpu.dot_dimension_numbers<[1], [0], [0], [1], [0, 0, 1, 1], [], []>} : vector<64x64xbf16>, vector<64x256xbf16>, vector<64x256xf32> -> vector<64x256xf32>
    %78 = arith.addf %70, %77 : vector<64x256xf32>
    %c0_67 = arith.constant 0 : index
    %c0_68 = arith.constant 0 : index
    %79 = vector.load %arg5[%c0_67, %c0_68] : memref<64x1xf32, #tpu.memory_space<vmem>>, vector<64x1xf32>
    %80 = vector.broadcast %79 : vector<64x1xf32> to vector<64x256xf32>
    %81 = arith.addf %78, %80 : vector<64x256xf32>
    %cst_69 = arith.constant 0.000000e+00 : f32
    %82 = vector.broadcast %cst_69 : f32 to vector<64x256xf32>
    %83 = arith.maximumf %81, %82 : vector<64x256xf32>
    %c0_70 = arith.constant 0 : index
    %c0_71 = arith.constant 0 : index
    %84 = vector.load %arg10[%c0_70, %c0_71] : memref<256x289xf32, #tpu.memory_space<vmem>>, vector<256x289xf32>
    %cst_72 = arith.constant dense<0.000000e+00> : vector<64x289xf32>
    %85 = tpu.matmul %83, %84, %cst_72 {dimension_numbers = #tpu.dot_dimension_numbers<[1], [0], [0], [1], [0, 0, 1, 1], [], []>} : vector<64x256xf32>, vector<256x289xf32>, vector<64x289xf32> -> vector<64x289xf32>
    %cst_73 = arith.constant 0.000000e+00 : bf16
    %86 = vector.broadcast %cst_73 : bf16 to vector<64x36xbf16>
    %c0_74 = arith.constant 0 : index
    %c0_75 = arith.constant 0 : index
    %87 = vector.load %arg17[%c0_74, %c0_75] : memref<64x361xbf16, #tpu.memory_space<vmem>>, vector<64x36xbf16>
    tpu.vector_store %arg17[%c0_74, %c0_75], %86 {strides = array<i32>} : memref<64x361xbf16, #tpu.memory_space<vmem>>, vector<64x36xbf16>,
    %cst_76 = arith.constant 0.000000e+00 : bf16
    %88 = vector.broadcast %cst_76 : bf16 to vector<64x36xbf16>
    %c0_77 = arith.constant 0 : index
    %c325 = arith.constant 325 : index
    %89 = vector.load %arg17[%c0_77, %c325] : memref<64x361xbf16, #tpu.memory_space<vmem>>, vector<64x36xbf16>
    tpu.vector_store %arg17[%c0_77, %c325], %88 {strides = array<i32>} : memref<64x361xbf16, #tpu.memory_space<vmem>>, vector<64x36xbf16>,
    %90 = arith.truncf %85 : vector<64x289xf32> to vector<64x289xbf16>
    %c0_78 = arith.constant 0 : index
    %c36_79 = arith.constant 36 : index
    %91 = vector.load %arg17[%c0_78, %c36_79] : memref<64x361xbf16, #tpu.memory_space<vmem>>, vector<64x289xbf16>
    tpu.vector_store %arg17[%c0_78, %c36_79], %90 {strides = array<i32>} : memref<64x361xbf16, #tpu.memory_space<vmem>>, vector<64x289xbf16>,
    %cst_80 = arith.constant 0.000000e+00 : f32
    %92 = vector.broadcast %cst_80 : f32 to vector<64x289xf32>
    %c0_81 = arith.constant 0 : index
    %c0_82 = arith.constant 0 : index
    %93 = vector.load %arg17[%c0_81, %c0_82] : memref<64x361xbf16, #tpu.memory_space<vmem>>, vector<64x289xbf16>
    %c0_83 = arith.constant 0 : index
    %c0_84 = arith.constant 0 : index
    %94 = vector.load %arg9[%c0_83, %c0_84] : memref<2x289xbf16, #tpu.memory_space<vmem>>, vector<1x289xbf16>
    %95 = vector.broadcast %94 : vector<1x289xbf16> to vector<64x289xbf16>
    %96 = arith.mulf %93, %95 : vector<64x289xbf16>
    %c0_85 = arith.constant 0 : index
    %c0_86 = arith.constant 0 : index
    %c0_87 = arith.constant 0 : index
    %97 = vector.load %arg7[%c0_85, %c0_86, %c0_87] : memref<9x64x64xbf16, #tpu.memory_space<vmem>>, vector<1x64x64xbf16>
    %98 = vector.shape_cast %97 : vector<1x64x64xbf16> to vector<64x64xbf16>
    %cst_88 = arith.constant dense<0.000000e+00> : vector<64x289xf32>
    %99 = tpu.matmul %98, %96, %cst_88 {dimension_numbers = #tpu.dot_dimension_numbers<[1], [0], [0], [1], [0, 0, 1, 1], [], []>} : vector<64x64xbf16>, vector<64x289xbf16>, vector<64x289xf32> -> vector<64x289xf32>
    %100 = arith.addf %92, %99 : vector<64x289xf32>
    %c0_89 = arith.constant 0 : index
    %c2_90 = arith.constant 2 : index
    %101 = vector.load %arg17[%c0_89, %c2_90] : memref<64x361xbf16, #tpu.memory_space<vmem>>, vector<64x289xbf16>
    %c1_91 = arith.constant 1 : index
    %c0_92 = arith.constant 0 : index
    %c0_93 = arith.constant 0 : index
    %102 = vector.load %arg7[%c1_91, %c0_92, %c0_93] : memref<9x64x64xbf16, #tpu.memory_space<vmem>>, vector<1x64x64xbf16>
    %103 = vector.shape_cast %102 : vector<1x64x64xbf16> to vector<64x64xbf16>
    %cst_94 = arith.constant dense<0.000000e+00> : vector<64x289xf32>
    %104 = tpu.matmul %103, %101, %cst_94 {dimension_numbers = #tpu.dot_dimension_numbers<[1], [0], [0], [1], [0, 0, 1, 1], [], []>} : vector<64x64xbf16>, vector<64x289xbf16>, vector<64x289xf32> -> vector<64x289xf32>
    %105 = arith.addf %100, %104 : vector<64x289xf32>
    %c0_95 = arith.constant 0 : index
    %c4_96 = arith.constant 4 : index
    %106 = vector.load %arg17[%c0_95, %c4_96] : memref<64x361xbf16, #tpu.memory_space<vmem>>, vector<64x289xbf16>
    %c1_97 = arith.constant 1 : index
    %c0_98 = arith.constant 0 : index
    %107 = vector.load %arg9[%c1_97, %c0_98] : memref<2x289xbf16, #tpu.memory_space<vmem>>, vector<1x289xbf16>
    %108 = vector.broadcast %107 : vector<1x289xbf16> to vector<64x289xbf16>
    %109 = arith.mulf %106, %108 : vector<64x289xbf16>
    %c2_99 = arith.constant 2 : index
    %c0_100 = arith.constant 0 : index
    %c0_101 = arith.constant 0 : index
    %110 = vector.load %arg7[%c2_99, %c0_100, %c0_101] : memref<9x64x64xbf16, #tpu.memory_space<vmem>>, vector<1x64x64xbf16>
    %111 = vector.shape_cast %110 : vector<1x64x64xbf16> to vector<64x64xbf16>
    %cst_102 = arith.constant dense<0.000000e+00> : vector<64x289xf32>
    %112 = tpu.matmul %111, %109, %cst_102 {dimension_numbers = #tpu.dot_dimension_numbers<[1], [0], [0], [1], [0, 0, 1, 1], [], []>} : vector<64x64xbf16>, vector<64x289xbf16>, vector<64x289xf32> -> vector<64x289xf32>
    %113 = arith.addf %105, %112 : vector<64x289xf32>
    %c0_103 = arith.constant 0 : index
    %c34_104 = arith.constant 34 : index
    %114 = vector.load %arg17[%c0_103, %c34_104] : memref<64x361xbf16, #tpu.memory_space<vmem>>, vector<64x289xbf16>
    %c0_105 = arith.constant 0 : index
    %c0_106 = arith.constant 0 : index
    %115 = vector.load %arg9[%c0_105, %c0_106] : memref<2x289xbf16, #tpu.memory_space<vmem>>, vector<1x289xbf16>
    %116 = vector.broadcast %115 : vector<1x289xbf16> to vector<64x289xbf16>
    %117 = arith.mulf %114, %116 : vector<64x289xbf16>
    %c3_107 = arith.constant 3 : index
    %c0_108 = arith.constant 0 : index
    %c0_109 = arith.constant 0 : index
    %118 = vector.load %arg7[%c3_107, %c0_108, %c0_109] : memref<9x64x64xbf16, #tpu.memory_space<vmem>>, vector<1x64x64xbf16>
    %119 = vector.shape_cast %118 : vector<1x64x64xbf16> to vector<64x64xbf16>
    %cst_110 = arith.constant dense<0.000000e+00> : vector<64x289xf32>
    %120 = tpu.matmul %119, %117, %cst_110 {dimension_numbers = #tpu.dot_dimension_numbers<[1], [0], [0], [1], [0, 0, 1, 1], [], []>} : vector<64x64xbf16>, vector<64x289xbf16>, vector<64x289xf32> -> vector<64x289xf32>
    %121 = arith.addf %113, %120 : vector<64x289xf32>
    %c0_111 = arith.constant 0 : index
    %c36_112 = arith.constant 36 : index
    %122 = vector.load %arg17[%c0_111, %c36_112] : memref<64x361xbf16, #tpu.memory_space<vmem>>, vector<64x289xbf16>
    %c4_113 = arith.constant 4 : index
    %c0_114 = arith.constant 0 : index
    %c0_115 = arith.constant 0 : index
    %123 = vector.load %arg7[%c4_113, %c0_114, %c0_115] : memref<9x64x64xbf16, #tpu.memory_space<vmem>>, vector<1x64x64xbf16>
    %124 = vector.shape_cast %123 : vector<1x64x64xbf16> to vector<64x64xbf16>
    %cst_116 = arith.constant dense<0.000000e+00> : vector<64x289xf32>
    %125 = tpu.matmul %124, %122, %cst_116 {dimension_numbers = #tpu.dot_dimension_numbers<[1], [0], [0], [1], [0, 0, 1, 1], [], []>} : vector<64x64xbf16>, vector<64x289xbf16>, vector<64x289xf32> -> vector<64x289xf32>
    %126 = arith.addf %121, %125 : vector<64x289xf32>
    %c0_117 = arith.constant 0 : index
    %c38 = arith.constant 38 : index
    %127 = vector.load %arg17[%c0_117, %c38] : memref<64x361xbf16, #tpu.memory_space<vmem>>, vector<64x289xbf16>
    %c1_118 = arith.constant 1 : index
    %c0_119 = arith.constant 0 : index
    %128 = vector.load %arg9[%c1_118, %c0_119] : memref<2x289xbf16, #tpu.memory_space<vmem>>, vector<1x289xbf16>
    %129 = vector.broadcast %128 : vector<1x289xbf16> to vector<64x289xbf16>
    %130 = arith.mulf %127, %129 : vector<64x289xbf16>
    %c5_120 = arith.constant 5 : index
    %c0_121 = arith.constant 0 : index
    %c0_122 = arith.constant 0 : index
    %131 = vector.load %arg7[%c5_120, %c0_121, %c0_122] : memref<9x64x64xbf16, #tpu.memory_space<vmem>>, vector<1x64x64xbf16>
    %132 = vector.shape_cast %131 : vector<1x64x64xbf16> to vector<64x64xbf16>
    %cst_123 = arith.constant dense<0.000000e+00> : vector<64x289xf32>
    %133 = tpu.matmul %132, %130, %cst_123 {dimension_numbers = #tpu.dot_dimension_numbers<[1], [0], [0], [1], [0, 0, 1, 1], [], []>} : vector<64x64xbf16>, vector<64x289xbf16>, vector<64x289xf32> -> vector<64x289xf32>
    %134 = arith.addf %126, %133 : vector<64x289xf32>
    %c0_124 = arith.constant 0 : index
    %c68_125 = arith.constant 68 : index
    %135 = vector.load %arg17[%c0_124, %c68_125] : memref<64x361xbf16, #tpu.memory_space<vmem>>, vector<64x289xbf16>
    %c0_126 = arith.constant 0 : index
    %c0_127 = arith.constant 0 : index
    %136 = vector.load %arg9[%c0_126, %c0_127] : memref<2x289xbf16, #tpu.memory_space<vmem>>, vector<1x289xbf16>
    %137 = vector.broadcast %136 : vector<1x289xbf16> to vector<64x289xbf16>
    %138 = arith.mulf %135, %137 : vector<64x289xbf16>
    %c6_128 = arith.constant 6 : index
    %c0_129 = arith.constant 0 : index
    %c0_130 = arith.constant 0 : index
    %139 = vector.load %arg7[%c6_128, %c0_129, %c0_130] : memref<9x64x64xbf16, #tpu.memory_space<vmem>>, vector<1x64x64xbf16>
    %140 = vector.shape_cast %139 : vector<1x64x64xbf16> to vector<64x64xbf16>
    %cst_131 = arith.constant dense<0.000000e+00> : vector<64x289xf32>
    %141 = tpu.matmul %140, %138, %cst_131 {dimension_numbers = #tpu.dot_dimension_numbers<[1], [0], [0], [1], [0, 0, 1, 1], [], []>} : vector<64x64xbf16>, vector<64x289xbf16>, vector<64x289xf32> -> vector<64x289xf32>
    %142 = arith.addf %134, %141 : vector<64x289xf32>
    %c0_132 = arith.constant 0 : index
    %c70 = arith.constant 70 : index
    %143 = vector.load %arg17[%c0_132, %c70] : memref<64x361xbf16, #tpu.memory_space<vmem>>, vector<64x289xbf16>
    %c7_133 = arith.constant 7 : index
    %c0_134 = arith.constant 0 : index
    %c0_135 = arith.constant 0 : index
    %144 = vector.load %arg7[%c7_133, %c0_134, %c0_135] : memref<9x64x64xbf16, #tpu.memory_space<vmem>>, vector<1x64x64xbf16>
    %145 = vector.shape_cast %144 : vector<1x64x64xbf16> to vector<64x64xbf16>
    %cst_136 = arith.constant dense<0.000000e+00> : vector<64x289xf32>
    %146 = tpu.matmul %145, %143, %cst_136 {dimension_numbers = #tpu.dot_dimension_numbers<[1], [0], [0], [1], [0, 0, 1, 1], [], []>} : vector<64x64xbf16>, vector<64x289xbf16>, vector<64x289xf32> -> vector<64x289xf32>
    %147 = arith.addf %142, %146 : vector<64x289xf32>
    %c0_137 = arith.constant 0 : index
    %c72 = arith.constant 72 : index
    %148 = vector.load %arg17[%c0_137, %c72] : memref<64x361xbf16, #tpu.memory_space<vmem>>, vector<64x289xbf16>
    %c1_138 = arith.constant 1 : index
    %c0_139 = arith.constant 0 : index
    %149 = vector.load %arg9[%c1_138, %c0_139] : memref<2x289xbf16, #tpu.memory_space<vmem>>, vector<1x289xbf16>
    %150 = vector.broadcast %149 : vector<1x289xbf16> to vector<64x289xbf16>
    %151 = arith.mulf %148, %150 : vector<64x289xbf16>
    %c8_140 = arith.constant 8 : index
    %c0_141 = arith.constant 0 : index
    %c0_142 = arith.constant 0 : index
    %152 = vector.load %arg7[%c8_140, %c0_141, %c0_142] : memref<9x64x64xbf16, #tpu.memory_space<vmem>>, vector<1x64x64xbf16>
    %153 = vector.shape_cast %152 : vector<1x64x64xbf16> to vector<64x64xbf16>
    %cst_143 = arith.constant dense<0.000000e+00> : vector<64x289xf32>
    %154 = tpu.matmul %153, %151, %cst_143 {dimension_numbers = #tpu.dot_dimension_numbers<[1], [0], [0], [1], [0, 0, 1, 1], [], []>} : vector<64x64xbf16>, vector<64x289xbf16>, vector<64x289xf32> -> vector<64x289xf32>
    %155 = arith.addf %147, %154 : vector<64x289xf32>
    %c0_144 = arith.constant 0 : index
    %c0_145 = arith.constant 0 : index
    %156 = vector.load %arg8[%c0_144, %c0_145] : memref<64x1xf32, #tpu.memory_space<vmem>>, vector<64x1xf32>
    %157 = vector.broadcast %156 : vector<64x1xf32> to vector<64x289xf32>
    %158 = arith.addf %155, %157 : vector<64x289xf32>
    %cst_146 = arith.constant 0.000000e+00 : f32
    %159 = vector.broadcast %cst_146 : f32 to vector<64x289xf32>
    %160 = arith.maximumf %158, %159 : vector<64x289xf32>
    %c0_147 = arith.constant 0 : index
    %c0_148 = arith.constant 0 : index
    %161 = vector.load %arg11[%c0_147, %c0_148] : memref<289x256xf32, #tpu.memory_space<vmem>>, vector<289x256xf32>
    %cst_149 = arith.constant dense<0.000000e+00> : vector<64x256xf32>
    %162 = tpu.matmul %85, %161, %cst_149 {dimension_numbers = #tpu.dot_dimension_numbers<[1], [0], [0], [1], [0, 0, 1, 1], [], []>} : vector<64x289xf32>, vector<289x256xf32>, vector<64x256xf32> -> vector<64x256xf32>
    %163 = arith.addf %8, %162 : vector<64x256xf32>
    %c0_150 = arith.constant 0 : index
    %c0_151 = arith.constant 0 : index
    %164 = vector.load %arg12[%c0_150, %c0_151] : memref<289x256xf32, #tpu.memory_space<vmem>>, vector<289x256xf32>
    %cst_152 = arith.constant dense<0.000000e+00> : vector<64x256xf32>
    %165 = tpu.matmul %160, %164, %cst_152 {dimension_numbers = #tpu.dot_dimension_numbers<[1], [0], [0], [1], [0, 0, 1, 1], [], []>} : vector<64x289xf32>, vector<289x256xf32>, vector<64x256xf32> -> vector<64x256xf32>
    %166 = arith.addf %163, %165 : vector<64x256xf32>
    %c0_153 = arith.constant 0 : index
    %c0_154 = arith.constant 0 : index
    %167 = vector.load %arg13[%c0_153, %c0_154] : memref<16x64xf32, #tpu.memory_space<vmem>>, vector<16x64xf32>
    %cst_155 = arith.constant dense<0.000000e+00> : vector<16x256xf32>
    %168 = tpu.matmul %167, %166, %cst_155 {dimension_numbers = #tpu.dot_dimension_numbers<[1], [0], [0], [1], [0, 0, 1, 1], [], []>} : vector<16x64xf32>, vector<64x256xf32>, vector<16x256xf32> -> vector<16x256xf32>
    %c0_156 = arith.constant 0 : index
    %c0_157 = arith.constant 0 : index
    %169 = vector.load %arg14[%c0_156, %c0_157] : memref<16x1xf32, #tpu.memory_space<vmem>>, vector<16x1xf32>
    %170 = vector.broadcast %169 : vector<16x1xf32> to vector<16x256xf32>
    %171 = arith.addf %168, %170 : vector<16x256xf32>
    %c0_158 = arith.constant 0 : index
    %c0_159 = arith.constant 0 : index
    %c0_160 = arith.constant 0 : index
    %172 = vector.load %arg15[%c0_158, %c0_159, %c0_160] : memref<1x16x256xf32, #tpu.memory_space<vmem>>, vector<1x16x256xf32>
    %173 = vector.shape_cast %172 : vector<1x16x256xf32> to vector<16x256xf32>
    %174 = vector.shape_cast %171 : vector<16x256xf32> to vector<1x16x256xf32>
    tpu.vector_store %arg15[%c0_158, %c0_159, %c0_160], %174 {strides = array<i32>} : memref<1x16x256xf32, #tpu.memory_space<vmem>>, vector<1x16x256xf32>,
    return
  }
  func.func @transform_0(%arg0: i32) -> (i32, i32, i32) {
    %c0_i32 = arith.constant 0 : i32
    %c0_i32_0 = arith.constant 0 : i32
    %c0_i32_1 = arith.constant 0 : i32
    return %arg0, %c0_i32, %c0_i32_0 : i32, i32, i32
  }
  func.func @transform_1(%arg0: i32) -> (i32, i32) {
    %c0_i32 = arith.constant 0 : i32
    %c0_i32_0 = arith.constant 0 : i32
    %c0_i32_1 = arith.constant 0 : i32
    return %c0_i32, %c0_i32_0 : i32, i32
  }
  func.func @transform_2(%arg0: i32) -> (i32, i32) {
    %c0_i32 = arith.constant 0 : i32
    %c0_i32_0 = arith.constant 0 : i32
    %c0_i32_1 = arith.constant 0 : i32
    return %c0_i32, %c0_i32_0 : i32, i32
  }
  func.func @transform_3(%arg0: i32) -> (i32, i32, i32) {
    %c0_i32 = arith.constant 0 : i32
    %c0_i32_0 = arith.constant 0 : i32
    %c0_i32_1 = arith.constant 0 : i32
    %c0_i32_2 = arith.constant 0 : i32
    return %c0_i32, %c0_i32_0, %c0_i32_1 : i32, i32, i32
  }
  func.func @transform_4(%arg0: i32) -> (i32, i32) {
    %c0_i32 = arith.constant 0 : i32
    %c0_i32_0 = arith.constant 0 : i32
    %c0_i32_1 = arith.constant 0 : i32
    return %c0_i32, %c0_i32_0 : i32, i32
  }
  func.func @transform_5(%arg0: i32) -> (i32, i32) {
    %c0_i32 = arith.constant 0 : i32
    %c0_i32_0 = arith.constant 0 : i32
    %c0_i32_1 = arith.constant 0 : i32
    return %c0_i32, %c0_i32_0 : i32, i32
  }
  func.func @transform_6(%arg0: i32) -> (i32, i32, i32) {
    %c0_i32 = arith.constant 0 : i32
    %c0_i32_0 = arith.constant 0 : i32
    %c0_i32_1 = arith.constant 0 : i32
    %c0_i32_2 = arith.constant 0 : i32
    return %c0_i32, %c0_i32_0, %c0_i32_1 : i32, i32, i32
  }
  func.func @transform_7(%arg0: i32) -> (i32, i32) {
    %c0_i32 = arith.constant 0 : i32
    %c0_i32_0 = arith.constant 0 : i32
    %c0_i32_1 = arith.constant 0 : i32
    return %c0_i32, %c0_i32_0 : i32, i32
  }
  func.func @transform_8(%arg0: i32) -> (i32, i32) {
    %c0_i32 = arith.constant 0 : i32
    %c0_i32_0 = arith.constant 0 : i32
    %c0_i32_1 = arith.constant 0 : i32
    return %c0_i32, %c0_i32_0 : i32, i32
  }
  func.func @transform_9(%arg0: i32) -> (i32, i32) {
    %c0_i32 = arith.constant 0 : i32
    %c0_i32_0 = arith.constant 0 : i32
    %c0_i32_1 = arith.constant 0 : i32
    return %c0_i32, %c0_i32_0 : i32, i32
  }
  func.func @transform_10(%arg0: i32) -> (i32, i32) {
    %c0_i32 = arith.constant 0 : i32
    %c0_i32_0 = arith.constant 0 : i32
    %c0_i32_1 = arith.constant 0 : i32
    return %c0_i32, %c0_i32_0 : i32, i32
  }
  func.func @transform_11(%arg0: i32) -> (i32, i32) {
    %c0_i32 = arith.constant 0 : i32
    %c0_i32_0 = arith.constant 0 : i32
    %c0_i32_1 = arith.constant 0 : i32
    return %c0_i32, %c0_i32_0 : i32, i32
  }
  func.func @transform_12(%arg0: i32) -> (i32, i32) {
    %c0_i32 = arith.constant 0 : i32
    %c0_i32_0 = arith.constant 0 : i32
    %c0_i32_1 = arith.constant 0 : i32
    return %c0_i32, %c0_i32_0 : i32, i32
  }
  func.func @transform_13(%arg0: i32) -> (i32, i32) {
    %c0_i32 = arith.constant 0 : i32
    %c0_i32_0 = arith.constant 0 : i32
    %c0_i32_1 = arith.constant 0 : i32
    return %c0_i32, %c0_i32_0 : i32, i32
  }
  func.func @transform_14(%arg0: i32) -> (i32, i32, i32) {
    %c0_i32 = arith.constant 0 : i32
    %c0_i32_0 = arith.constant 0 : i32
    %c0_i32_1 = arith.constant 0 : i32
    return %arg0, %c0_i32, %c0_i32_0 : i32, i32, i32
  }
}

</mosaic_0001>

<llo_original>
// kernel: tpu_custom_call.1
$region0: #{tpu_custom_call.1}
  #allocation0 [shape = 'u32[]', space=smem, size = 0x4, offset = 0x4, fixed_abs, tag = 'smem constant byte address 0x4 - core index']
  #allocation1 [shape = 'u32[144,128]{1,0:T(1,128)}', space=vmem, size = 0x12000, scoped, tag = 'internal scratch']
  #allocation2 [shape = 'bf16[64,324]{1,0:T(8,128)(2,1)}', space=vmem, size = 0xc000, scoped, tag = 'scratch operand']
  #allocation3 [shape = 'bf16[64,361]{1,0:T(8,128)(2,1)}', space=vmem, size = 0xc000, scoped, tag = 'scratch operand']
  %s0 = inlined_call_operand.vmem [shape: f32[2,8,256], index: 0, kind: input, shape index: {}]
  %s1 = inlined_call_operand.vmem [shape: f32[64,8], index: 1, kind: input, shape index: {}]
  %s2 = inlined_call_operand.vmem [shape: f32[64,1], index: 2, kind: input, shape index: {}]
  %s3 = inlined_call_operand.vmem [shape: bf16[9,64,64], index: 3, kind: input, shape index: {}]
  %s4 = inlined_call_operand.vmem [shape: f32[64,1], index: 4, kind: input, shape index: {}]
  %s5 = inlined_call_operand.vmem [shape: bf16[2,256], index: 5, kind: input, shape index: {}]
  %s6 = inlined_call_operand.hbm [shape: bf16[9,64,64], index: 6, kind: input, shape index: {}]
  %s7 = inlined_call_operand.vmem [shape: f32[64,1], index: 7, kind: input, shape index: {}]
  %s8 = inlined_call_operand.vmem [shape: bf16[2,289], index: 8, kind: input, shape index: {}]
  %s9 = inlined_call_operand.vmem [shape: f32[256,289], index: 9, kind: input, shape index: {}]
  %s10 = inlined_call_operand.vmem [shape: f32[289,256], index: 10, kind: input, shape index: {}]
  %s11 = inlined_call_operand.vmem [shape: f32[289,256], index: 11, kind: input, shape index: {}]
  %s12 = inlined_call_operand.vmem [shape: f32[16,64], index: 12, kind: input, shape index: {}]
  %s13 = inlined_call_operand.vmem [shape: f32[16,1], index: 13, kind: input, shape index: {}]
  %s14 = inlined_call_operand.hbm [shape: f32[2,16,256], index: 14, kind: output, shape index: {}]
  %s15 = sld [smem:[#allocation0]]
  $region93: #{tpu_custom_call.1} parent=0
    _
  %s17 = ssub.s32 1, %s15
  %s18 = scalar_select 0, %s17, %s15
  $region1: #{tpu_custom_call.1} parent=0
    #allocation4 [shape = 'u8[147456]{0}', space=vmem, size = 0x24000, scoped, tag = 'input window, operand 6, single buffered']
    #allocation5 [shape = 's32[2]{0}', space=sflag, size = 0x8, scoped, tag = 'scoped memory for tpu_custom_call.1']
    #allocation6 [shape = 's32[2]{0}', space=sflag, size = 0x8, scoped, tag = 'scoped memory for tpu_custom_call.1']
    #allocation7 [shape = 'u8[32768]{0}', space=vmem, size = 0x8000, scoped, tag = 'output window, operand 0']
    %19 = vsyncpa [#allocation5], 0
    %20 = vsyncpa [#allocation6], 0
    %s21 = scalar_lea.sflag [#allocation6], 1
    %22 = vsyncpa %s21, 0
    loop: start=0, step=1, limit=4
    $region2: #{tpu_custom_call.1} parent=1 // loop_pre_header
      _
    $region3: #{tpu_custom_call.1} parent=1 // loop_header
      %s24 = sphi 0, %s28
      %p25 = scmp.ge.s32.totalorder %s24, 4
      %s34 = sphi 0, %s36
      %s37 = sphi 0, %s34
      %s38 = sphi 0, %s37
      %s54 = sphi 0, %s38
      %s58 = sphi 0, %s58
      %s60 = sphi 0, %s58
      %s61 = sphi 0, %s60
      %s75 = sphi 0, %s61
      %s79 = sphi 0, %s79
      %s81 = sphi 0, %s79
      %s82 = sphi 0, %s81
      %s96 = sphi 0, %s82
      %s100 = sphi 0, %s100
      %s102 = sphi 0, %s100
      %s103 = sphi 0, %s102
      %s117 = sphi 0, %s103
      %s121 = sphi 0, %s121
      %s123 = sphi 0, %s121
      %s124 = sphi 0, %s123
      %s138 = sphi 0, %s124
      %s142 = sphi 0, %s142
      %s144 = sphi 0, %s142
      %s145 = sphi 0, %s144
      %s159 = sphi 0, %s145
      %s163 = sphi 0, %s163
      %s165 = sphi 0, %s163
      %s166 = sphi 0, %s165
      %s180 = sphi 0, %s166
      %s184 = sphi 0, %s184
      %s186 = sphi 0, %s184
      %s187 = sphi 0, %s186
      %s201 = sphi 0, %s187
      %s205 = sphi 0, %s205
      %s207 = sphi 0, %s205
      %s208 = sphi 0, %s207
      %s222 = sphi 0, %s208
      %s226 = sphi 0, %s226
      %s228 = sphi 0, %s226
      %s229 = sphi 0, %s228
      %s243 = sphi 0, %s229
      %s247 = sphi 0, %s247
      %s249 = sphi 0, %s247
      %s250 = sphi 0, %s249
      %s264 = sphi 0, %s250
      %s268 = sphi 0, %s268
      %s270 = sphi 0, %s268
      %s271 = sphi 0, %s270
      %s285 = sphi 0, %s271
      %s289 = sphi 0, %s289
      %s291 = sphi 0, %s289
      %s292 = sphi 0, %s291
      %s306 = sphi 0, %s292
      %s310 = sphi 0, %s310
      %s312 = sphi 0, %s310
      %s313 = sphi 0, %s312
      %s327 = sphi 0, %s313
      %s333 = sphi 0, %s335
      %s336 = sphi 0, %s333
      %s337 = sphi 0, %s336
      %s353 = sphi 0, %s337
    $region4: #{tpu_custom_call.1} parent=1 // loop_header_branch
      %27 = sbr.rel (%p25) target = $region8
    $region5: #{tpu_custom_call.1} parent=1 // loop_body
      %s29 = ssub.s32 %s24, 1
      %s30 = ssub.s32 %s24, 2
      %s31 = sadd.s32 %s24, 1
      %s32 = ssub.s32 %s24, %s31
      %p33 = scmp.eq.s32.totalorder %s32, 0
      %s35 = sadd.s32 %s34, 1
      %s36 = scalar_select %p33, %s34, %s35
      %p39 = pneg %p33
      %p40 = scmp.eq.s32.totalorder %s24, 1
      %p41 = por %p39, %p40
      %p42 = scmp.ne.s32.totalorder %s34, %s37
      %p43 = scmp.eq.s32.totalorder %s24, 0
      %p44 = por %p42, %p43
      %p45 = scmp.ne.s32.totalorder %s34, %s37
      %p46 = scmp.eq.s32.totalorder %s29, 1
      %p47 = por %p45, %p46
      %p48 = scmp.ne.s32.totalorder %s37, %s38
      %p49 = scmp.eq.s32.totalorder %s29, 0
      %p50 = por %p48, %p49
      %p51 = scmp.ne.s32.totalorder %s37, %s38
      %p52 = scmp.eq.s32.totalorder %s30, 1
      %p53 = por %p51, %p52
      %p55 = scmp.ne.s32.totalorder %s38, %s54
      %p56 = scmp.eq.s32.totalorder %s30, 0
      %p57 = por %p55, %p56
      %s59 = sadd.s32 %s58, 1
      %p62 = scmp.eq.s32.totalorder %s24, 1
      %p63 = scmp.ne.s32.totalorder %s58, %s60
      %p64 = scmp.eq.s32.totalorder %s24, 0
      %p65 = por %p63, %p64
      %p66 = scmp.ne.s32.totalorder %s58, %s60
      %p67 = scmp.eq.s32.totalorder %s29, 1
      %p68 = por %p66, %p67
      %p69 = scmp.ne.s32.totalorder %s60, %s61
      %p70 = scmp.eq.s32.totalorder %s29, 0
      %p71 = por %p69, %p70
      %p72 = scmp.ne.s32.totalorder %s60, %s61
      %p73 = scmp.eq.s32.totalorder %s30, 1
      %p74 = por %p72, %p73
      %p76 = scmp.ne.s32.totalorder %s61, %s75
      %p77 = scmp.eq.s32.totalorder %s30, 0
      %p78 = por %p76, %p77
      %s80 = sadd.s32 %s79, 1
      %p83 = scmp.eq.s32.totalorder %s24, 1
      %p84 = scmp.ne.s32.totalorder %s79, %s81
      %p85 = scmp.eq.s32.totalorder %s24, 0
      %p86 = por %p84, %p85
      %p87 = scmp.ne.s32.totalorder %s79, %s81
      %p88 = scmp.eq.s32.totalorder %s29, 1
      %p89 = por %p87, %p88
      %p90 = scmp.ne.s32.totalorder %s81, %s82
      %p91 = scmp.eq.s32.totalorder %s29, 0
      %p92 = por %p90, %p91
      %p93 = scmp.ne.s32.totalorder %s81, %s82
      %p94 = scmp.eq.s32.totalorder %s30, 1
      %p95 = por %p93, %p94
      %p97 = scmp.ne.s32.totalorder %s82, %s96
      %p98 = scmp.eq.s32.totalorder %s30, 0
      %p99 = por %p97, %p98
      %s101 = sadd.s32 %s100, 1
      %p104 = scmp.eq.s32.totalorder %s24, 1
      %p105 = scmp.ne.s32.totalorder %s100, %s102
      %p106 = scmp.eq.s32.totalorder %s24, 0
      %p107 = por %p105, %p106
      %p108 = scmp.ne.s32.totalorder %s100, %s102
      %p109 = scmp.eq.s32.totalorder %s29, 1
      %p110 = por %p108, %p109
      %p111 = scmp.ne.s32.totalorder %s102, %s103
      %p112 = scmp.eq.s32.totalorder %s29, 0
      %p113 = por %p111, %p112
      %p114 = scmp.ne.s32.totalorder %s102, %s103
      %p115 = scmp.eq.s32.totalorder %s30, 1
      %p116 = por %p114, %p115
      %p118 = scmp.ne.s32.totalorder %s103, %s117
      %p119 = scmp.eq.s32.totalorder %s30, 0
      %p120 = por %p118, %p119
      %s122 = sadd.s32 %s121, 1
      %p125 = scmp.eq.s32.totalorder %s24, 1
      %p126 = scmp.ne.s32.totalorder %s121, %s123
      %p127 = scmp.eq.s32.totalorder %s24, 0
      %p128 = por %p126, %p127
      %p129 = scmp.ne.s32.totalorder %s121, %s123
      %p130 = scmp.eq.s32.totalorder %s29, 1
      %p131 = por %p129, %p130
      %p132 = scmp.ne.s32.totalorder %s123, %s124
      %p133 = scmp.eq.s32.totalorder %s29, 0
      %p134 = por %p132, %p133
      %p135 = scmp.ne.s32.totalorder %s123, %s124
      %p136 = scmp.eq.s32.totalorder %s30, 1
      %p137 = por %p135, %p136
      %p139 = scmp.ne.s32.totalorder %s124, %s138
      %p140 = scmp.eq.s32.totalorder %s30, 0
      %p141 = por %p139, %p140
      %s143 = sadd.s32 %s142, 1
      %p146 = scmp.eq.s32.totalorder %s24, 1
      %p147 = scmp.ne.s32.totalorder %s142, %s144
      %p148 = scmp.eq.s32.totalorder %s24, 0
      %p149 = por %p147, %p148
      %p150 = scmp.ne.s32.totalorder %s142, %s144
      %p151 = scmp.eq.s32.totalorder %s29, 1
      %p152 = por %p150, %p151
      %p153 = scmp.ne.s32.totalorder %s144, %s145
      %p154 = scmp.eq.s32.totalorder %s29, 0
      %p155 = por %p153, %p154
      %p156 = scmp.ne.s32.totalorder %s144, %s145
      %p157 = scmp.eq.s32.totalorder %s30, 1
      %p158 = por %p156, %p157
      %p160 = scmp.ne.s32.totalorder %s145, %s159
      %p161 = scmp.eq.s32.totalorder %s30, 0
      %p162 = por %p160, %p161
      %s164 = sadd.s32 %s163, 1
      %p167 = scmp.eq.s32.totalorder %s24, 1
      %p168 = scmp.ne.s32.totalorder %s163, %s165
      %p169 = scmp.eq.s32.totalorder %s24, 0
      %p170 = por %p168, %p169
      %p171 = scmp.ne.s32.totalorder %s163, %s165
      %p172 = scmp.eq.s32.totalorder %s29, 1
      %p173 = por %p171, %p172
      %p174 = scmp.ne.s32.totalorder %s165, %s166
      %p175 = scmp.eq.s32.totalorder %s29, 0
      %p176 = por %p174, %p175
      %p177 = scmp.ne.s32.totalorder %s165, %s166
      %p178 = scmp.eq.s32.totalorder %s30, 1
      %p179 = por %p177, %p178
      %p181 = scmp.ne.s32.totalorder %s166, %s180
      %p182 = scmp.eq.s32.totalorder %s30, 0
      %p183 = por %p181, %p182
      %s185 = sadd.s32 %s184, 1
      %p188 = scmp.eq.s32.totalorder %s24, 1
      %p189 = scmp.ne.s32.totalorder %s184, %s186
      %p190 = scmp.eq.s32.totalorder %s24, 0
      %p191 = por %p189, %p190
      %p192 = scmp.ne.s32.totalorder %s184, %s186
      %p193 = scmp.eq.s32.totalorder %s29, 1
      %p194 = por %p192, %p193
      %p195 = scmp.ne.s32.totalorder %s186, %s187
      %p196 = scmp.eq.s32.totalorder %s29, 0
      %p197 = por %p195, %p196
      %p198 = scmp.ne.s32.totalorder %s186, %s187
      %p199 = scmp.eq.s32.totalorder %s30, 1
      %p200 = por %p198, %p199
      %p202 = scmp.ne.s32.totalorder %s187, %s201
      %p203 = scmp.eq.s32.totalorder %s30, 0
      %p204 = por %p202, %p203
      %s206 = sadd.s32 %s205, 1
      %p209 = scmp.eq.s32.totalorder %s24, 1
      %p210 = scmp.ne.s32.totalorder %s205, %s207
      %p211 = scmp.eq.s32.totalorder %s24, 0
      %p212 = por %p210, %p211
      %p213 = scmp.ne.s32.totalorder %s205, %s207
      %p214 = scmp.eq.s32.totalorder %s29, 1
      %p215 = por %p213, %p214
      %p216 = scmp.ne.s32.totalorder %s207, %s208
      %p217 = scmp.eq.s32.totalorder %s29, 0
      %p218 = por %p216, %p217
      %p219 = scmp.ne.s32.totalorder %s207, %s208
      %p220 = scmp.eq.s32.totalorder %s30, 1
      %p221 = por %p219, %p220
      %p223 = scmp.ne.s32.totalorder %s208, %s222
      %p224 = scmp.eq.s32.totalorder %s30, 0
      %p225 = por %p223, %p224
      %s227 = sadd.s32 %s226, 1
      %p230 = scmp.eq.s32.totalorder %s24, 1
      %p231 = scmp.ne.s32.totalorder %s226, %s228
      %p232 = scmp.eq.s32.totalorder %s24, 0
      %p233 = por %p231, %p232
      %p234 = scmp.ne.s32.totalorder %s226, %s228
      %p235 = scmp.eq.s32.totalorder %s29, 1
      %p236 = por %p234, %p235
      %p237 = scmp.ne.s32.totalorder %s228, %s229
      %p238 = scmp.eq.s32.totalorder %s29, 0
      %p239 = por %p237, %p238
      %p240 = scmp.ne.s32.totalorder %s228, %s229
      %p241 = scmp.eq.s32.totalorder %s30, 1
      %p242 = por %p240, %p241
      %p244 = scmp.ne.s32.totalorder %s229, %s243
      %p245 = scmp.eq.s32.totalorder %s30, 0
      %p246 = por %p244, %p245
      %s248 = sadd.s32 %s247, 1
      %p251 = scmp.eq.s32.totalorder %s24, 1
      %p252 = scmp.ne.s32.totalorder %s247, %s249
      %p253 = scmp.eq.s32.totalorder %s24, 0
      %p254 = por %p252, %p253
      %p255 = scmp.ne.s32.totalorder %s247, %s249
      %p256 = scmp.eq.s32.totalorder %s29, 1
      %p257 = por %p255, %p256
      %p258 = scmp.ne.s32.totalorder %s249, %s250
      %p259 = scmp.eq.s32.totalorder %s29, 0
      %p260 = por %p258, %p259
      %p261 = scmp.ne.s32.totalorder %s249, %s250
      %p262 = scmp.eq.s32.totalorder %s30, 1
      %p263 = por %p261, %p262
      %p265 = scmp.ne.s32.totalorder %s250, %s264
      %p266 = scmp.eq.s32.totalorder %s30, 0
      %p267 = por %p265, %p266
      %s269 = sadd.s32 %s268, 1
      %p272 = scmp.eq.s32.totalorder %s24, 1
      %p273 = scmp.ne.s32.totalorder %s268, %s270
      %p274 = scmp.eq.s32.totalorder %s24, 0
      %p275 = por %p273, %p274
      %p276 = scmp.ne.s32.totalorder %s268, %s270
      %p277 = scmp.eq.s32.totalorder %s29, 1
      %p278 = por %p276, %p277
      %p279 = scmp.ne.s32.totalorder %s270, %s271
      %p280 = scmp.eq.s32.totalorder %s29, 0
      %p281 = por %p279, %p280
      %p282 = scmp.ne.s32.totalorder %s270, %s271
      %p283 = scmp.eq.s32.totalorder %s30, 1
      %p284 = por %p282, %p283
      %p286 = scmp.ne.s32.totalorder %s271, %s285
      %p287 = scmp.eq.s32.totalorder %s30, 0
      %p288 = por %p286, %p287
      %s290 = sadd.s32 %s289, 1
      %p293 = scmp.eq.s32.totalorder %s24, 1
      %p294 = scmp.ne.s32.totalorder %s289, %s291
      %p295 = scmp.eq.s32.totalorder %s24, 0
      %p296 = por %p294, %p295
      %p297 = scmp.ne.s32.totalorder %s289, %s291
      %p298 = scmp.eq.s32.totalorder %s29, 1
      %p299 = por %p297, %p298
      %p300 = scmp.ne.s32.totalorder %s291, %s292
      %p301 = scmp.eq.s32.totalorder %s29, 0
      %p302 = por %p300, %p301
      %p303 = scmp.ne.s32.totalorder %s291, %s292
      %p304 = scmp.eq.s32.totalorder %s30, 1
      %p305 = por %p303, %p304
      %p307 = scmp.ne.s32.totalorder %s292, %s306
      %p308 = scmp.eq.s32.totalorder %s30, 0
      %p309 = por %p307, %p308
      %s311 = sadd.s32 %s310, 1
      %p314 = scmp.eq.s32.totalorder %s24, 1
      %p315 = scmp.ne.s32.totalorder %s310, %s312
      %p316 = scmp.eq.s32.totalorder %s24, 0
      %p317 = por %p315, %p316
      %p318 = scmp.ne.s32.totalorder %s310, %s312
      %p319 = scmp.eq.s32.totalorder %s29, 1
      %p320 = por %p318, %p319
      %p321 = scmp.ne.s32.totalorder %s312, %s313
      %p322 = scmp.eq.s32.totalorder %s29, 0
      %p323 = por %p321, %p322
      %p324 = scmp.ne.s32.totalorder %s312, %s313
      %p325 = scmp.eq.s32.totalorder %s30, 1
      %p326 = por %p324, %p325
      %p328 = scmp.ne.s32.totalorder %s313, %s327
      %p329 = scmp.eq.s32.totalorder %s30, 0
      %p330 = por %p328, %p329
      %s331 = ssub.s32 %s24, %s31
      %p332 = scmp.eq.s32.totalorder %s331, 0
      %s334 = sadd.s32 %s333, 1
      %s335 = scalar_select %p332, %s333, %s334
      %p338 = pneg %p332
      %p339 = scmp.eq.s32.totalorder %s24, 1
      %p340 = por %p338, %p339
      %p341 = scmp.ne.s32.totalorder %s333, %s336
      %p342 = scmp.eq.s32.totalorder %s24, 0
      %p343 = por %p341, %p342
      %p344 = scmp.ne.s32.totalorder %s333, %s336
      %p345 = scmp.eq.s32.totalorder %s29, 1
      %p346 = por %p344, %p345
      %p347 = scmp.ne.s32.totalorder %s336, %s337
      %p348 = scmp.eq.s32.totalorder %s29, 0
      %p349 = por %p347, %p348
      %p350 = scmp.ne.s32.totalorder %s336, %s337
      %p351 = scmp.eq.s32.totalorder %s30, 1
      %p352 = por %p350, %p351
      %p354 = scmp.ne.s32.totalorder %s337, %s353
      %p355 = scmp.eq.s32.totalorder %s30, 0
      %p356 = por %p354, %p355
      %p357 = scmp.le.s32.totalorder 1, %s24
      %p358 = scmp.lt.s32.totalorder %s24, 3
      %p359 = pnand %p357, %p358
      %p360 = pneg %p359
      // Predicated region
      $region9: #{tpu_custom_call.1} parent=5 // pred_check
        _
      $region10: #{tpu_custom_call.1} parent=5 // pred_check_branch
        %362 = sbr.rel (%p359) target = $region12
      $region11: #{tpu_custom_call.1} parent=5 // pred_region
        %s363 = ssub.s32 %s24, 1
        // Predicated region
        $region13: #{tpu_custom_call.1} parent=11 // pred_check
          %p364 = pneg %p71
        $region14: #{tpu_custom_call.1} parent=11 // pred_check_branch
          %366 = sbr.rel (%p364) target = $region16
        $region15: #{tpu_custom_call.1} parent=11 // pred_region
          _
        $region16: #{tpu_custom_call.1} parent=11 // pred_fallthru
          _
        // Predicated region
        $region17: #{tpu_custom_call.1} parent=11 // pred_check
          %p367 = pneg %p92
        $region18: #{tpu_custom_call.1} parent=11 // pred_check_branch
          %369 = sbr.rel (%p367) target = $region20
        $region19: #{tpu_custom_call.1} parent=11 // pred_region
          _
        $region20: #{tpu_custom_call.1} parent=11 // pred_fallthru
          _
        // Predicated region
        $region21: #{tpu_custom_call.1} parent=11 // pred_check
          %p370 = pneg %p113
        $region22: #{tpu_custom_call.1} parent=11 // pred_check_branch
          %372 = sbr.rel (%p370) target = $region24
        $region23: #{tpu_custom_call.1} parent=11 // pred_region
          _
        $region24: #{tpu_custom_call.1} parent=11 // pred_fallthru
          _
        // Predicated region
        $region25: #{tpu_custom_call.1} parent=11 // pred_check
          %p373 = pneg %p134
        $region26: #{tpu_custom_call.1} parent=11 // pred_check_branch
          %375 = sbr.rel (%p373) target = $region28
        $region27: #{tpu_custom_call.1} parent=11 // pred_region
          _
        $region28: #{tpu_custom_call.1} parent=11 // pred_fallthru
          _
        // Predicated region
        $region29: #{tpu_custom_call.1} parent=11 // pred_check
          %p376 = pneg %p155
        $region30: #{tpu_custom_call.1} parent=11 // pred_check_branch
          %378 = sbr.rel (%p376) target = $region32
        $region31: #{tpu_custom_call.1} parent=11 // pred_region
          _
        $region32: #{tpu_custom_call.1} parent=11 // pred_fallthru
          _
        // Predicated region
        $region33: #{tpu_custom_call.1} parent=11 // pred_check
          %p379 = pneg %p176
        $region34: #{tpu_custom_call.1} parent=11 // pred_check_branch
          %381 = sbr.rel (%p379) target = $region36
        $region35: #{tpu_custom_call.1} parent=11 // pred_region
          %s383 = ssub.s32 4608, 4608
          %384 = vsyncadd [#allocation5], %s383
          %s385 = sshll.u32 [#allocation4], 4
          %s386 = int_to_ptr.vmem [resolvable:$true] %s385
          %391 = dma.hbm_to_vmem [thread:$0]  %s6, 4608, %s386, [#allocation5], 64, 64, 4
        $region36: #{tpu_custom_call.1} parent=11 // pred_fallthru
          _
        // Predicated region
        $region37: #{tpu_custom_call.1} parent=11 // pred_check
          %p392 = pneg %p197
        $region38: #{tpu_custom_call.1} parent=11 // pred_check_branch
          %394 = sbr.rel (%p392) target = $region40
        $region39: #{tpu_custom_call.1} parent=11 // pred_region
          _
        $region40: #{tpu_custom_call.1} parent=11 // pred_fallthru
          _
        // Predicated region
        $region41: #{tpu_custom_call.1} parent=11 // pred_check
          %p395 = pneg %p218
        $region42: #{tpu_custom_call.1} parent=11 // pred_check_branch
          %397 = sbr.rel (%p395) target = $region44
        $region43: #{tpu_custom_call.1} parent=11 // pred_region
          _
        $region44: #{tpu_custom_call.1} parent=11 // pred_fallthru
          _
        // Predicated region
        $region45: #{tpu_custom_call.1} parent=11 // pred_check
          %p398 = pneg %p239
        $region46: #{tpu_custom_call.1} parent=11 // pred_check_branch
          %400 = sbr.rel (%p398) target = $region48
        $region47: #{tpu_custom_call.1} parent=11 // pred_region
          _
        $region48: #{tpu_custom_call.1} parent=11 // pred_fallthru
          _
        // Predicated region
        $region49: #{tpu_custom_call.1} parent=11 // pred_check
          %p401 = pneg %p260
        $region50: #{tpu_custom_call.1} parent=11 // pred_check_branch
          %403 = sbr.rel (%p401) target = $region52
        $region51: #{tpu_custom_call.1} parent=11 // pred_region
          _
        $region52: #{tpu_custom_call.1} parent=11 // pred_fallthru
          _
        // Predicated region
        $region53: #{tpu_custom_call.1} parent=11 // pred_check
          %p404 = pneg %p281
        $region54: #{tpu_custom_call.1} parent=11 // pred_check_branch
          %406 = sbr.rel (%p404) target = $region56
        $region55: #{tpu_custom_call.1} parent=11 // pred_region
          _
        $region56: #{tpu_custom_call.1} parent=11 // pred_fallthru
          _
        // Predicated region
        $region57: #{tpu_custom_call.1} parent=11 // pred_check
          %p407 = pneg %p302
        $region58: #{tpu_custom_call.1} parent=11 // pred_check_branch
          %409 = sbr.rel (%p407) target = $region60
        $region59: #{tpu_custom_call.1} parent=11 // pred_region
          _
        $region60: #{tpu_custom_call.1} parent=11 // pred_fallthru
          _
        // Predicated region
        $region61: #{tpu_custom_call.1} parent=11 // pred_check
          %p410 = pneg %p323
        $region62: #{tpu_custom_call.1} parent=11 // pred_check_branch
          %412 = sbr.rel (%p410) target = $region64
        $region63: #{tpu_custom_call.1} parent=11 // pred_region
          _
        $region64: #{tpu_custom_call.1} parent=11 // pred_fallthru
          _
      $region12: #{tpu_custom_call.1} parent=5 // pred_fallthru
        _
      %p413 = scmp.lt.s32.totalorder %s24, 2
      // Predicated region
      $region65: #{tpu_custom_call.1} parent=5 // pred_check
        %p414 = pneg %p413
      $region66: #{tpu_custom_call.1} parent=5 // pred_check_branch
        %416 = sbr.rel (%p414) target = $region68
      $region67: #{tpu_custom_call.1} parent=5 // pred_region
        // Predicated region
        $region69: #{tpu_custom_call.1} parent=67 // pred_check
          %p417 = pneg %p44
        $region70: #{tpu_custom_call.1} parent=67 // pred_check_branch
          %419 = sbr.rel (%p417) target = $region72
        $region71: #{tpu_custom_call.1} parent=67 // pred_region
          %p420 = scmp.lt.s32.totalorder %s24, 1
          %s421 = scalar_select %p420, %s24, 1
          %s422 = smul.addr %s421, 2
          %s423 = smul.addr %s422, 8
          %s424 = scalar_lea.vmem %s0, %s423
        $region72: #{tpu_custom_call.1} parent=67 // pred_fallthru
          _
      $region68: #{tpu_custom_call.1} parent=5 // pred_fallthru
        _
      %p425 = scmp.le.s32.totalorder 1, %s24
      %p426 = scmp.lt.s32.totalorder %s24, 3
      %p427 = pnand %p425, %p426
      %p428 = pneg %p427
      // Predicated region
      $region73: #{tpu_custom_call.1} parent=5 // pred_check
        _
      $region74: #{tpu_custom_call.1} parent=5 // pred_check_branch
        %430 = sbr.rel (%p427) target = $region76
      $region75: #{tpu_custom_call.1} parent=5 // pred_region
        %s431 = ssub.s32 %s24, 1
        // Predicated region
        $region77: #{tpu_custom_call.1} parent=75 // pred_check
          %p432 = pneg %p176
        $region78: #{tpu_custom_call.1} parent=75 // pred_check_branch
          %434 = sbr.rel (%p432) target = $region80
        $region79: #{tpu_custom_call.1} parent=75 // pred_region
          %435 = dma.done [#allocation5], 4608
        $region80: #{tpu_custom_call.1} parent=75 // pred_fallthru
          _
        %p436 = scmp.lt.s32.totalorder %s29, 1
        %s437 = scalar_select %p436, %s29, 1
        %s438 = smul.addr %s437, 2
        %s439 = smul.addr %s438, 8
        %s440 = scalar_lea.vmem %s0, %s439
        %p441 = pneg %p50
        %p442 = pneg %p47
        %p443 = pneg %p71
        %p444 = pneg %p68
        %p445 = pneg %p92
        %p446 = pneg %p89
        %p447 = pneg %p113
        %p448 = pneg %p110
        %p449 = pneg %p134
        %p450 = pneg %p131
        %p451 = pneg %p155
        %p452 = pneg %p152
        %p453 = pneg %p176
        %p454 = pneg %p173
        %p455 = pneg %p197
        %p456 = pneg %p194
        %p457 = pneg %p218
        %p458 = pneg %p215
        %p459 = pneg %p239
        %p460 = pneg %p236
        %p461 = pneg %p260
        %p462 = pneg %p257
        %p463 = pneg %p281
        %p464 = pneg %p278
        %p465 = pneg %p302
        %p466 = pneg %p299
        %p467 = pneg %p323
        %p468 = pneg %p320
        %p469 = pneg %p349
        %p470 = pneg %p346
        %s471 = sand.u32 %s336, 1
        %s472 = scalar_lea.sflag [#allocation6], %s471
        %s473 = sand.u32 %s336, 1
        %s474 = smul.addr %s473, 32
        %s475 = scalar_lea.vmem [#allocation7], %s474
        %p476 = scmp.lt.s32.totalorder %s29, 1
        %s477 = scalar_select %p476, %s29, 1
        %s478 = smul.addr %s477, 2
        %s479 = smul.addr %s478, 8
        %s480 = scalar_lea.vmem %s0, %s479
        %v482 = vld [vmem:[%s1] sm:$0xff]
        %v483 = vld [vmem:[%s1 + $0x8] sm:$0xff]
        %v484 = vld [vmem:[%s1 + $0x10] sm:$0xff]
        %v485 = vld [vmem:[%s1 + $0x18] sm:$0xff]
        %v486 = vld [vmem:[%s1 + $0x20] sm:$0xff]
        %v487 = vld [vmem:[%s1 + $0x28] sm:$0xff]
        %v488 = vld [vmem:[%s1 + $0x30] sm:$0xff]
        %v489 = vld [vmem:[%s1 + $0x38] sm:$0xff]
        %v490 = vld [vmem:[%s480] sm:$0xff]
        %v491 = vld [vmem:[%s480 + $0x8] sm:$0xff]
        %v492 = vld [vmem:[%s2] sm:$0xff]
        %v493 = vld [vmem:[%s2 + $0x8] sm:$0xff]
        %v494 = vld [vmem:[%s2 + $0x10] sm:$0xff]
        %v495 = vld [vmem:[%s2 + $0x18] sm:$0xff]
        %v496 = vld [vmem:[%s2 + $0x20] sm:$0xff]
        %v497 = vld [vmem:[%s2 + $0x28] sm:$0xff]
        %v498 = vld [vmem:[%s2 + $0x30] sm:$0xff]
        %v499 = vld [vmem:[%s2 + $0x38] sm:$0xff]
        %501 = vset.pattern.permute.xlu0 0
        %502 = vperm.xlu0 %501, %v492
        %v503 = vpop.permute.xlu0 %502
        %506 = vset.pattern.permute.xlu0 0
        %507 = vperm.xlu0 %506, %v493
        %v508 = vpop.permute.xlu0 %507
        %511 = vset.pattern.permute.xlu0 0
        %512 = vperm.xlu0 %511, %v494
        %v513 = vpop.permute.xlu0 %512
        %516 = vset.pattern.permute.xlu0 0
        %517 = vperm.xlu0 %516, %v495
        %v518 = vpop.permute.xlu0 %517
        %521 = vset.pattern.permute.xlu0 0
        %522 = vperm.xlu0 %521, %v496
        %v523 = vpop.permute.xlu0 %522
        %526 = vset.pattern.permute.xlu0 0
        %527 = vperm.xlu0 %526, %v497
        %v528 = vpop.permute.xlu0 %527
        %531 = vset.pattern.permute.xlu0 0
        %532 = vperm.xlu0 %531, %v498
        %v533 = vpop.permute.xlu0 %532
        %536 = vset.pattern.permute.xlu0 0
        %537 = vperm.xlu0 %536, %v499
        %v538 = vpop.permute.xlu0 %537
        %vm540 = vcmask 64512
        %v542 = vsel %vm540, %v482, 0
        %v545 = vsel %vm540, %v483, 0
        %v548 = vsel %vm540, %v484, 0
        %v551 = vsel %vm540, %v485, 0
        %v554 = vsel %vm540, %v486, 0
        %v557 = vsel %vm540, %v487, 0
        %v560 = vsel %vm540, %v488, 0
        %v563 = vsel %vm540, %v489, 0
        %565 = vmatprep.subr.mxu0 0.0
        %566 = vmatpush1.msra.mxu0 0.0
        %567 = vmatprep.subr.mxu0 0.0
        %568 = vmatpush1.msra.mxu0 0.0
        %569 = vmatprep.subr.mxu0 0.0
        %570 = vmatpush1.msra.mxu0 0.0
        %571 = vmatprep.subr.mxu0 0.0
        %572 = vmatpush1.msra.mxu0 0.0
        %573 = vmatprep.subr.mxu0 0.0
        %574 = vmatpush1.msra.mxu0 0.0
        %575 = vmatprep.subr.mxu0 0.0
        %576 = vmatpush1.msra.mxu0 0.0
        %577 = vmatprep.subr.mxu0 0.0
        %578 = vmatpush1.msra.mxu0 0.0
        %579 = vmatprep.subr.mxu0 0.0
        %580 = vmatpush1.msra.mxu0 0.0
        %581 = vmatprep.subr.mxu0 0.0
        %582 = vmatpush1.msra.mxu0 0.0
        %583 = vmatprep.subr.mxu0 0.0
        %584 = vmatpush1.msra.mxu0 0.0
        %585 = vmatprep.subr.mxu0 0.0
        %586 = vmatpush1.msra.mxu0 0.0
        %587 = vmatprep.subr.mxu0 0.0
        %588 = vmatpush1.msra.mxu0 0.0
        %589 = vmatprep.subr.mxu0 0.0
        %590 = vmatpush1.msra.mxu0 0.0
        %591 = vmatprep.subr.mxu0 0.0
        %592 = vmatpush1.msra.mxu0 0.0
        %593 = vmatprep.subr.mxu0 0.0
        %594 = vmatpush1.msra.mxu0 0.0
        %595 = vmatprep.subr.mxu0 %v491
        %596 = vmatpush1.msra.mxu0 %v490
        %597 = vmatprep.subr.mxu0 0.0
        %598 = vmatpush2.msra.mxu0 0.0
        %599 = vmatprep.subr.mxu0 0.0
        %600 = vmatpush2.msra.mxu0 0.0
        %601 = vmatprep.subr.mxu0 0.0
        %602 = vmatpush2.msra.mxu0 0.0
        %603 = vmatprep.subr.mxu0 0.0
        %604 = vmatpush2.msra.mxu0 0.0
        %605 = vmatprep.subr.mxu0 0.0
        %606 = vmatpush2.msra.mxu0 0.0
        %607 = vmatprep.subr.mxu0 0.0
        %608 = vmatpush2.msra.mxu0 0.0
        %609 = vmatprep.subr.mxu0 0.0
        %610 = vmatpush2.msra.mxu0 0.0
        %611 = vmatprep.subr.mxu0 0.0
        %612 = vmatpush2.msra.mxu0 0.0
        %613 = vmatprep.subr.mxu0 0.0
        %614 = vmatpush2.msra.mxu0 0.0
        %615 = vmatprep.subr.mxu0 0.0
        %616 = vmatpush2.msra.mxu0 0.0
        %617 = vmatprep.subr.mxu0 0.0
        %618 = vmatpush2.msra.mxu0 0.0
        %619 = vmatprep.subr.mxu0 0.0
        %620 = vmatpush2.msra.mxu0 0.0
        %621 = vmatprep.subr.mxu0 0.0
        %622 = vmatpush2.msra.mxu0 0.0
        %623 = vmatprep.subr.mxu0 0.0
        %624 = vmatpush2.msra.mxu0 0.0
        %625 = vmatprep.subr.mxu0 0.0
        %626 = vmatpush2.msra.mxu0 0.0
        %627 = vmatprep.subr.mxu0 0.0
        %628 = vmatpush2.msra.mxu0 0.0
        %629 = vmatprep.mubr.f32.mxu0 0.0
        %630 = vmatmul.mubr.f32.gmra.mxu0 %v542
        %v631 = vpop.f32.mrf.mxu0
        %v632 = vadd.f32 %v503, %v631
        %v633 = vpop.f32.mrf.mxu0
        %v634 = vadd.f32 %v503, %v633
        %635 = vmatprep.mubr.f32.mxu0 0.0
        %636 = vmatmul.mubr.f32.gmra.mxu0 %v545
        %v637 = vpop.f32.mrf.mxu0
        %v638 = vadd.f32 %v508, %v637
        %v639 = vpop.f32.mrf.mxu0
        %v640 = vadd.f32 %v508, %v639
        %641 = vmatprep.mubr.f32.mxu0 0.0
        %642 = vmatmul.mubr.f32.gmra.mxu0 %v548
        %v643 = vpop.f32.mrf.mxu0
        %v644 = vadd.f32 %v513, %v643
        %v645 = vpop.f32.mrf.mxu0
        %v646 = vadd.f32 %v513, %v645
        %647 = vmatprep.mubr.f32.mxu0 0.0
        %648 = vmatmul.mubr.f32.gmra.mxu0 %v551
        %v649 = vpop.f32.mrf.mxu0
        %v650 = vadd.f32 %v518, %v649
        %v651 = vpop.f32.mrf.mxu0
        %v652 = vadd.f32 %v518, %v651
        %653 = vmatprep.mubr.f32.mxu0 0.0
        %654 = vmatmul.mubr.f32.gmra.mxu0 %v554
        %v655 = vpop.f32.mrf.mxu0
        %v656 = vadd.f32 %v523, %v655
        %v657 = vpop.f32.mrf.mxu0
        %v658 = vadd.f32 %v523, %v657
        %659 = vmatprep.mubr.f32.mxu0 0.0
        %660 = vmatmul.mubr.f32.gmra.mxu0 %v557
        %v661 = vpop.f32.mrf.mxu0
        %v662 = vadd.f32 %v528, %v661
        %v663 = vpop.f32.mrf.mxu0
        %v664 = vadd.f32 %v528, %v663
        %665 = vmatprep.mubr.f32.mxu0 0.0
        %666 = vmatmul.mubr.f32.gmra.mxu0 %v560
        %v667 = vpop.f32.mrf.mxu0
        %v668 = vadd.f32 %v533, %v667
        %v669 = vpop.f32.mrf.mxu0
        %v670 = vadd.f32 %v533, %v669
        %671 = vmatprep.mubr.f32.mxu0 0.0
        %672 = vmatmul.mubr.f32.gmra.mxu0 %v563
        %v673 = vpop.f32.mrf.mxu0
        %v674 = vadd.f32 %v538, %v673
        %v675 = vpop.f32.mrf.mxu0
        %v676 = vadd.f32 %v538, %v675
        %677 = vdwg.mxu0
        %v678 = vmax.f32 %v632, 0.0
        %v679 = vmax.f32 %v634, 0.0
        %v680 = vmax.f32 %v638, 0.0
        %v681 = vmax.f32 %v640, 0.0
        %v682 = vmax.f32 %v644, 0.0
        %v683 = vmax.f32 %v646, 0.0
        %v684 = vmax.f32 %v650, 0.0
        %v685 = vmax.f32 %v652, 0.0
        %v686 = vmax.f32 %v656, 0.0
        %v687 = vmax.f32 %v658, 0.0
        %v688 = vmax.f32 %v662, 0.0
        %v689 = vmax.f32 %v664, 0.0
        %v690 = vmax.f32 %v668, 0.0
        %v691 = vmax.f32 %v670, 0.0
        %v692 = vmax.f32 %v674, 0.0
        %v693 = vmax.f32 %v676, 0.0
        %vm694 = vcmask 273408
        %695 = vst.msk [vmem:[#allocation2] sm:$0xf] %vm694, 0
        %696 = vst.msk [vmem:[#allocation2 + $0xc] sm:$0xf] %vm694, 0
        %697 = vst.msk [vmem:[#allocation2 + $0x18] sm:$0xf] %vm694, 0
        %698 = vst.msk [vmem:[#allocation2 + $0x24] sm:$0xf] %vm694, 0
        %699 = vst.msk [vmem:[#allocation2 + $0x30] sm:$0xf] %vm694, 0
        %700 = vst.msk [vmem:[#allocation2 + $0x3c] sm:$0xf] %vm694, 0
        %701 = vst.msk [vmem:[#allocation2 + $0x48] sm:$0xf] %vm694, 0
        %702 = vst.msk [vmem:[#allocation2 + $0x54] sm:$0xf] %vm694, 0
        %vm703 = vcmask 552208
        %704 = vst.msk [vmem:[#allocation2 + $0x8] sm:$0xf] %vm703, 0
        %705 = vst.msk [vmem:[#allocation2 + $0x14] sm:$0xf] %vm703, 0
        %706 = vst.msk [vmem:[#allocation2 + $0x20] sm:$0xf] %vm703, 0
        %707 = vst.msk [vmem:[#allocation2 + $0x2c] sm:$0xf] %vm703, 0
        %708 = vst.msk [vmem:[#allocation2 + $0x38] sm:$0xf] %vm703, 0
        %709 = vst.msk [vmem:[#allocation2 + $0x44] sm:$0xf] %vm703, 0
        %710 = vst.msk [vmem:[#allocation2 + $0x50] sm:$0xf] %vm703, 0
        %711 = vst.msk [vmem:[#allocation2 + $0x5c] sm:$0xf] %vm703, 0
        %v712 = vpack.c.bf16 %v680, %v678
        %v713 = vpack.c.bf16 %v681, %v679
        %v714 = vpack.c.bf16 %v684, %v682
        %v715 = vpack.c.bf16 %v685, %v683
        %v716 = vpack.c.bf16 %v688, %v686
        %v717 = vpack.c.bf16 %v689, %v687
        %v718 = vpack.c.bf16 %v692, %v690
        %v719 = vpack.c.bf16 %v693, %v691
        %v728 = vunpack.c.l.b16 %v712
        %v729 = vunpack.c.l.b16 %v713
        %v730 = vunpack.c.h.b16 %v712
        %v731 = vunpack.c.h.b16 %v713
        %v732 = vunpack.c.l.b16 %v714
        %v733 = vunpack.c.l.b16 %v715
        %v734 = vunpack.c.h.b16 %v714
        %v735 = vunpack.c.h.b16 %v715
        %v736 = vunpack.c.l.b16 %v716
        %v737 = vunpack.c.l.b16 %v717
        %v738 = vunpack.c.h.b16 %v716
        %v739 = vunpack.c.h.b16 %v717
        %v740 = vunpack.c.l.b16 %v718
        %v741 = vunpack.c.l.b16 %v719
        %v742 = vunpack.c.h.b16 %v718
        %v743 = vunpack.c.h.b16 %v719
        %v744 = vpack.c.b16 %v729, %v728
        %v745 = vpack.c.b16 %v731, %v730
        %v746 = vpack.c.b16 %v733, %v732
        %v747 = vpack.c.b16 %v735, %v734
        %v748 = vpack.c.b16 %v737, %v736
        %v749 = vpack.c.b16 %v739, %v738
        %v750 = vpack.c.b16 %v741, %v740
        %v751 = vpack.c.b16 %v743, %v742
        %752 = vrot.lane.b32.xlu0 %v744, 34
        %v753 = vpop.permute.xlu0 %752
        %754 = vrot.lane.b32.xlu0 %v745, 34
        %v755 = vpop.permute.xlu0 %754
        %756 = vrot.lane.b32.xlu0 %v746, 34
        %v757 = vpop.permute.xlu0 %756
        %758 = vrot.lane.b32.xlu0 %v747, 34
        %v759 = vpop.permute.xlu0 %758
        %760 = vrot.lane.b32.xlu0 %v748, 34
        %v761 = vpop.permute.xlu0 %760
        %762 = vrot.lane.b32.xlu0 %v749, 34
        %v763 = vpop.permute.xlu0 %762
        %764 = vrot.lane.b32.xlu0 %v750, 34
        %v765 = vpop.permute.xlu0 %764
        %766 = vrot.lane.b32.xlu0 %v751, 34
        %v767 = vpop.permute.xlu0 %766
        %v768 = vrot.slane %v753, 4
        %v769 = vrot.slane %v755, 4
        %v770 = vrot.slane %v757, 4
        %v771 = vrot.slane %v759, 4
        %v772 = vrot.slane %v761, 4
        %v773 = vrot.slane %v763, 4
        %v774 = vrot.slane %v765, 4
        %v775 = vrot.slane %v767, 4
        %vm776 = vcmask 277504
        %v777 = vsel %vm776, %v768, %v753
        %v778 = vsel %vm776, %v769, %v755
        %v779 = vsel %vm776, %v770, %v757
        %v780 = vsel %vm776, %v771, %v759
        %v781 = vsel %vm776, %v772, %v761
        %v782 = vsel %vm776, %v773, %v763
        %v783 = vsel %vm776, %v774, %v765
        %v784 = vsel %vm776, %v775, %v767
        %vm801 = vcmask 1043728
        %vm802 = vcmask 1047556
        %vm803 = vmor %vm802, %vm801
        %804 = vst.msk [vmem:[#allocation2] sm:$0xff] %vm803, %v777
        %805 = vst.msk [vmem:[#allocation2 + $0x8] sm:$0xf] %vm694, %v768
        %806 = vst.msk [vmem:[#allocation2 + $0xc] sm:$0xff] %vm803, %v778
        %807 = vst.msk [vmem:[#allocation2 + $0x14] sm:$0xf] %vm694, %v769
        %808 = vst.msk [vmem:[#allocation2 + $0x18] sm:$0xff] %vm803, %v779
        %809 = vst.msk [vmem:[#allocation2 + $0x20] sm:$0xf] %vm694, %v770
        %810 = vst.msk [vmem:[#allocation2 + $0x24] sm:$0xff] %vm803, %v780
        %811 = vst.msk [vmem:[#allocation2 + $0x2c] sm:$0xf] %vm694, %v771
        %812 = vst.msk [vmem:[#allocation2 + $0x30] sm:$0xff] %vm803, %v781
        %813 = vst.msk [vmem:[#allocation2 + $0x38] sm:$0xf] %vm694, %v772
        %814 = vst.msk [vmem:[#allocation2 + $0x3c] sm:$0xff] %vm803, %v782
        %815 = vst.msk [vmem:[#allocation2 + $0x44] sm:$0xf] %vm694, %v773
        %816 = vst.msk [vmem:[#allocation2 + $0x48] sm:$0xff] %vm803, %v783
        %817 = vst.msk [vmem:[#allocation2 + $0x50] sm:$0xf] %vm694, %v774
        %818 = vst.msk [vmem:[#allocation2 + $0x54] sm:$0xff] %vm803, %v784
        %819 = vst.msk [vmem:[#allocation2 + $0x5c] sm:$0xf] %vm694, %v775
        %v820 = vld [vmem:[#allocation2] sm:$0xff]
        %v821 = vld [vmem:[#allocation2 + $0xc] sm:$0xff]
        %v822 = vld [vmem:[#allocation2 + $0x18] sm:$0xff]
        %v823 = vld [vmem:[#allocation2 + $0x24] sm:$0xff]
        %v824 = vld [vmem:[#allocation2 + $0x30] sm:$0xff]
        %v825 = vld [vmem:[#allocation2 + $0x3c] sm:$0xff]
        %v826 = vld [vmem:[#allocation2 + $0x48] sm:$0xff]
        %v827 = vld [vmem:[#allocation2 + $0x54] sm:$0xff]
        %v828 = vld [vmem:[%s5] sm:$0x3]
        %v831 = vunpack.c.l.s4 1966171168
        %v832 = vunpack.c.0.s8 %v831
        %v833 = vlaneseq
        %v834 = vshrl.u32 %v833, 7
        %v835 = vsub.s32 %v832, %v834
        %v836 = vrot.slane %v828, %v835
        %v837 = vcombine.high %v836, %v836
        %v839 = vunpack.c.l.s4 1966171168
        %v840 = vunpack.c.0.s8 %v839
        %v841 = vlaneseq
        %v842 = vshrl.u32 %v841, 7
        %v843 = vsub.s32 %v840, %v842
        %v844 = vrot.slane %v836, %v843
        %v846 = vunpack.c.l.s4 1966171168
        %v847 = vunpack.c.0.s8 %v846
        %v848 = vlaneseq
        %v849 = vshrl.u32 %v848, 7
        %v850 = vsub.s32 %v847, %v849
        %v851 = vrot.slane %v837, %v850
        %v853 = vpack.i.b16 %v844, %v844
        %v855 = vlaneseq
        %v856 = vshrl.u32 %v855, 7
        %v857 = vsub.s32 0, %v856
        %v858 = vrot.slane %v853, %v857
        %v860 = vpack.i.b16 %v851, %v851
        %v862 = vlaneseq
        %v863 = vshrl.u32 %v862, 7
        %v864 = vsub.s32 0, %v863
        %v865 = vrot.slane %v860, %v864
        %v868 = vunpack.c.l.b16 %v858
        %v869 = vunpack.c.l.b16 %v865
        %v870 = vpack.c.b16 %v869, %v868
        %v872 = vmul.bf16 %v820, %v870
        %v873 = vmul.bf16 %v821, %v870
        %v874 = vmul.bf16 %v822, %v870
        %v875 = vmul.bf16 %v823, %v870
        %v876 = vmul.bf16 %v824, %v870
        %v877 = vmul.bf16 %v825, %v870
        %v878 = vmul.bf16 %v826, %v870
        %v879 = vmul.bf16 %v827, %v870
        %v880 = vld [vmem:[%s3] sm:$0xf]
        %v881 = vld [vmem:[%s3 + $0x4] sm:$0xf]
        %v882 = vld [vmem:[%s3 + $0x8] sm:$0xf]
        %v883 = vld [vmem:[%s3 + $0xc] sm:$0xf]
        %v884 = vld [vmem:[%s3 + $0x10] sm:$0xf]
        %v885 = vld [vmem:[%s3 + $0x14] sm:$0xf]
        %v886 = vld [vmem:[%s3 + $0x18] sm:$0xf]
        %v887 = vld [vmem:[%s3 + $0x1c] sm:$0xf]
        %v888 = vld [vmem:[#allocation2 + $0x8] sm:$0xf]
        %v889 = vld [vmem:[#allocation2 + $0x14] sm:$0xf]
        %v890 = vld [vmem:[#allocation2 + $0x20] sm:$0xf]
        %v891 = vld [vmem:[#allocation2 + $0x2c] sm:$0xf]
        %v892 = vld [vmem:[#allocation2 + $0x38] sm:$0xf]
        %v893 = vld [vmem:[#allocation2 + $0x44] sm:$0xf]
        %v894 = vld [vmem:[#allocation2 + $0x50] sm:$0xf]
        %v895 = vld [vmem:[#allocation2 + $0x5c] sm:$0xf]
        %s896 = scalar_lea.vmem %s3, 32
        %v897 = vld [vmem:[%s896] sm:$0xf]
        %v898 = vld [vmem:[%s896 + $0x4] sm:$0xf]
        %v899 = vld [vmem:[%s896 + $0x8] sm:$0xf]
        %v900 = vld [vmem:[%s896 + $0xc] sm:$0xf]
        %v901 = vld [vmem:[%s896 + $0x10] sm:$0xf]
        %v902 = vld [vmem:[%s896 + $0x14] sm:$0xf]
        %v903 = vld [vmem:[%s896 + $0x18] sm:$0xf]
        %v904 = vld [vmem:[%s896 + $0x1c] sm:$0xf]
        %v913 = vunpack.c.l.b16 %v897
        %v914 = vunpack.c.l.b16 %v898
        %v915 = vunpack.c.l.b16 %v899
        %v916 = vunpack.c.l.b16 %v900
        %v917 = vunpack.c.l.b16 %v901
        %v918 = vunpack.c.l.b16 %v902
        %v919 = vunpack.c.l.b16 %v903
        %v920 = vunpack.c.l.b16 %v904
        %v921 = vpack.c.b16 %v914, %v913
        %v922 = vpack.c.b16 %v916, %v915
        %v923 = vpack.c.b16 %v918, %v917
        %v924 = vpack.c.b16 %v920, %v919
        %v941 = vunpack.c.l.b16 %v820
        %v942 = vunpack.c.h.b16 %v820
        %v943 = vunpack.c.l.b16 %v888
        %v944 = vunpack.c.l.b16 %v821
        %v945 = vunpack.c.h.b16 %v821
        %v946 = vunpack.c.l.b16 %v889
        %v947 = vunpack.c.l.b16 %v822
        %v948 = vunpack.c.h.b16 %v822
        %v949 = vunpack.c.l.b16 %v890
        %v950 = vunpack.c.l.b16 %v823
        %v951 = vunpack.c.h.b16 %v823
        %v952 = vunpack.c.l.b16 %v891
        %v953 = vunpack.c.l.b16 %v824
        %v954 = vunpack.c.h.b16 %v824
        %v955 = vunpack.c.l.b16 %v892
        %v956 = vunpack.c.l.b16 %v825
        %v957 = vunpack.c.h.b16 %v825
        %v958 = vunpack.c.l.b16 %v893
        %v959 = vunpack.c.l.b16 %v826
        %v960 = vunpack.c.h.b16 %v826
        %v961 = vunpack.c.l.b16 %v894
        %v962 = vunpack.c.l.b16 %v827
        %v963 = vunpack.c.h.b16 %v827
        %v964 = vunpack.c.l.b16 %v895
        %v965 = vpack.c.b16 %v944, %v941
        %v966 = vpack.c.b16 %v945, %v942
        %v967 = vpack.c.b16 %v946, %v943
        %v968 = vpack.c.b16 %v950, %v947
        %v969 = vpack.c.b16 %v951, %v948
        %v970 = vpack.c.b16 %v952, %v949
        %v971 = vpack.c.b16 %v956, %v953
        %v972 = vpack.c.b16 %v957, %v954
        %v973 = vpack.c.b16 %v958, %v955
        %v974 = vpack.c.b16 %v962, %v959
        %v975 = vpack.c.b16 %v963, %v960
        %v976 = vpack.c.b16 %v964, %v961
        %977 = vrot.lane.b32.xlu0 %v965, 126
        %v978 = vpop.permute.xlu0 %977
        %979 = vrot.lane.b32.xlu0 %v966, 126
        %v980 = vpop.permute.xlu0 %979
        %981 = vrot.lane.b32.xlu0 %v967, 126
        %v982 = vpop.permute.xlu0 %981
        %983 = vrot.lane.b32.xlu0 %v968, 126
        %v984 = vpop.permute.xlu0 %983
        %985 = vrot.lane.b32.xlu0 %v969, 126
        %v986 = vpop.permute.xlu0 %985
        %987 = vrot.lane.b32.xlu0 %v970, 126
        %v988 = vpop.permute.xlu0 %987
        %989 = vrot.lane.b32.xlu0 %v971, 126
        %v990 = vpop.permute.xlu0 %989
        %991 = vrot.lane.b32.xlu0 %v972, 126
        %v992 = vpop.permute.xlu0 %991
        %993 = vrot.lane.b32.xlu0 %v973, 126
        %v994 = vpop.permute.xlu0 %993
        %995 = vrot.lane.b32.xlu0 %v974, 126
        %v996 = vpop.permute.xlu0 %995
        %997 = vrot.lane.b32.xlu0 %v975, 126
        %v998 = vpop.permute.xlu0 %997
        %999 = vrot.lane.b32.xlu0 %v976, 126
        %v1000 = vpop.permute.xlu0 %999
        %vm1001 = vcmask 1031168
        %v1002 = vsel %vm1001, %v978, %v980
        %v1003 = vsel %vm1001, %v980, %v982
        %v1004 = vsel %vm1001, %v984, %v986
        %v1005 = vsel %vm1001, %v986, %v988
        %v1006 = vsel %vm1001, %v990, %v992
        %v1007 = vsel %vm1001, %v992, %v994
        %v1008 = vsel %vm1001, %v996, %v998
        %v1009 = vsel %vm1001, %v998, %v1000
        %vm1018 = vcmask 523264
        %v1020 = vsel %vm1018, %v921, 0
        %v1023 = vsel %vm1018, %v922, 0
        %v1026 = vsel %vm1018, %v923, 0
        %v1029 = vsel %vm1018, %v924, 0
        %1031 = vmatprep.subr.bf16.mxu0 0
        %1032 = vmatpush1.bf16.msra.mxu0 0
        %1033 = vmatprep.subr.bf16.mxu0 0
        %1034 = vmatpush1.bf16.msra.mxu0 0
        %1035 = vmatprep.subr.bf16.mxu0 0
        %1036 = vmatpush1.bf16.msra.mxu0 0
        %1037 = vmatprep.subr.bf16.mxu0 0
        %1038 = vmatpush1.bf16.msra.mxu0 0
        %1039 = vmatprep.subr.bf16.mxu0 %v1009
        %1040 = vmatpush1.bf16.msra.mxu0 %v1008
        %1041 = vmatprep.subr.bf16.mxu0 %v1007
        %1042 = vmatpush1.bf16.msra.mxu0 %v1006
        %1043 = vmatprep.subr.bf16.mxu0 %v1005
        %1044 = vmatpush1.bf16.msra.mxu0 %v1004
        %1045 = vmatprep.subr.bf16.mxu0 %v1003
        %1046 = vmatpush1.bf16.msra.mxu0 %v1002
        %1047 = vmatprep.subr.bf16.mxu0 0
        %1048 = vmatpush2.bf16.msra.mxu0 0
        %1049 = vmatprep.subr.bf16.mxu0 0
        %1050 = vmatpush2.bf16.msra.mxu0 0
        %1051 = vmatprep.subr.bf16.mxu0 0
        %1052 = vmatpush2.bf16.msra.mxu0 0
        %1053 = vmatprep.subr.bf16.mxu0 0
        %1054 = vmatpush2.bf16.msra.mxu0 0
        %1055 = vmatprep.subr.bf16.mxu0 0
        %1056 = vmatpush2.bf16.msra.mxu0 0
        %1057 = vmatprep.subr.bf16.mxu0 0
        %1058 = vmatpush2.bf16.msra.mxu0 0
        %1059 = vmatprep.subr.bf16.mxu0 0
        %1060 = vmatpush2.bf16.msra.mxu0 0
        %1061 = vmatprep.subr.bf16.mxu0 0
        %1062 = vmatpush2.bf16.msra.mxu0 0
        %1063 = vmatprep.mubr.bf16.mxu0 0
        %1064 = vmatmul.mubr.bf16.gmra.mxu0 %v1020
        %v1065 = vpop.f32.mrf.mxu0
        %v1066 = vadd.f32 0.0, %v1065
        %v1067 = vpop.f32.mrf.mxu0
        %v1068 = vadd.f32 0.0, %v1067
        %v1069 = vpop.f32.mrf.mxu0
        %v1070 = vadd.f32 0.0, %v1069
        %v1071 = vpop.f32.mrf.mxu0
        %v1072 = vadd.f32 0.0, %v1071
        %1073 = vmatprep.mubr.bf16.mxu0 0
        %1074 = vmatmul.mubr.bf16.gmra.mxu0 %v1023
        %v1075 = vpop.f32.mrf.mxu0
        %v1076 = vadd.f32 0.0, %v1075
        %v1077 = vpop.f32.mrf.mxu0
        %v1078 = vadd.f32 0.0, %v1077
        %v1079 = vpop.f32.mrf.mxu0
        %v1080 = vadd.f32 0.0, %v1079
        %v1081 = vpop.f32.mrf.mxu0
        %v1082 = vadd.f32 0.0, %v1081
        %1083 = vmatprep.mubr.bf16.mxu0 0
        %1084 = vmatmul.mubr.bf16.gmra.mxu0 %v1026
        %v1085 = vpop.f32.mrf.mxu0
        %v1086 = vadd.f32 0.0, %v1085
        %v1087 = vpop.f32.mrf.mxu0
        %v1088 = vadd.f32 0.0, %v1087
        %v1089 = vpop.f32.mrf.mxu0
        %v1090 = vadd.f32 0.0, %v1089
        %v1091 = vpop.f32.mrf.mxu0
        %v1092 = vadd.f32 0.0, %v1091
        %1093 = vmatprep.mubr.bf16.mxu0 0
        %1094 = vmatmul.mubr.bf16.gmra.mxu0 %v1029
        %v1095 = vpop.f32.mrf.mxu0
        %v1096 = vadd.f32 0.0, %v1095
        %v1097 = vpop.f32.mrf.mxu0
        %v1098 = vadd.f32 0.0, %v1097
        %v1099 = vpop.f32.mrf.mxu0
        %v1100 = vadd.f32 0.0, %v1099
        %v1101 = vpop.f32.mrf.mxu0
        %v1102 = vadd.f32 0.0, %v1101
        %1103 = vdwg.mxu0
        %v1112 = vunpack.c.l.b16 %v880
        %v1113 = vunpack.c.l.b16 %v881
        %v1114 = vunpack.c.l.b16 %v882
        %v1115 = vunpack.c.l.b16 %v883
        %v1116 = vunpack.c.l.b16 %v884
        %v1117 = vunpack.c.l.b16 %v885
        %v1118 = vunpack.c.l.b16 %v886
        %v1119 = vunpack.c.l.b16 %v887
        %v1120 = vpack.c.b16 %v1113, %v1112
        %v1121 = vpack.c.b16 %v1115, %v1114
        %v1122 = vpack.c.b16 %v1117, %v1116
        %v1123 = vpack.c.b16 %v1119, %v1118
        %v1132 = vunpack.c.l.b16 %v872
        %v1133 = vunpack.c.h.b16 %v872
        %v1134 = vunpack.c.l.b16 %v873
        %v1135 = vunpack.c.h.b16 %v873
        %v1136 = vunpack.c.l.b16 %v874
        %v1137 = vunpack.c.h.b16 %v874
        %v1138 = vunpack.c.l.b16 %v875
        %v1139 = vunpack.c.h.b16 %v875
        %v1140 = vunpack.c.l.b16 %v876
        %v1141 = vunpack.c.h.b16 %v876
        %v1142 = vunpack.c.l.b16 %v877
        %v1143 = vunpack.c.h.b16 %v877
        %v1144 = vunpack.c.l.b16 %v878
        %v1145 = vunpack.c.h.b16 %v878
        %v1146 = vunpack.c.l.b16 %v879
        %v1147 = vunpack.c.h.b16 %v879
        %v1148 = vpack.c.b16 %v1134, %v1132
        %v1149 = vpack.c.b16 %v1135, %v1133
        %v1150 = vpack.c.b16 %v1138, %v1136
        %v1151 = vpack.c.b16 %v1139, %v1137
        %v1152 = vpack.c.b16 %v1142, %v1140
        %v1153 = vpack.c.b16 %v1143, %v1141
        %v1154 = vpack.c.b16 %v1146, %v1144
        %v1155 = vpack.c.b16 %v1147, %v1145
        %v1165 = vsel %vm1018, %v1120, 0
        %v1168 = vsel %vm1018, %v1121, 0
        %v1171 = vsel %vm1018, %v1122, 0
        %v1174 = vsel %vm1018, %v1123, 0
        %1176 = vmatprep.subr.bf16.mxu0 0
        %1177 = vmatpush1.bf16.msra.mxu0 0
        %1178 = vmatprep.subr.bf16.mxu0 0
        %1179 = vmatpush1.bf16.msra.mxu0 0
        %1180 = vmatprep.subr.bf16.mxu0 0
        %1181 = vmatpush1.bf16.msra.mxu0 0
        %1182 = vmatprep.subr.bf16.mxu0 0
        %1183 = vmatpush1.bf16.msra.mxu0 0
        %1184 = vmatprep.subr.bf16.mxu0 %v1155
        %1185 = vmatpush1.bf16.msra.mxu0 %v1154
        %1186 = vmatprep.subr.bf16.mxu0 %v1153
        %1187 = vmatpush1.bf16.msra.mxu0 %v1152
        %1188 = vmatprep.subr.bf16.mxu0 %v1151
        %1189 = vmatpush1.bf16.msra.mxu0 %v1150
        %1190 = vmatprep.subr.bf16.mxu0 %v1149
        %1191 = vmatpush1.bf16.msra.mxu0 %v1148
        %1192 = vmatprep.subr.bf16.mxu0 0
        %1193 = vmatpush2.bf16.msra.mxu0 0
        %1194 = vmatprep.subr.bf16.mxu0 0
        %1195 = vmatpush2.bf16.msra.mxu0 0
        %1196 = vmatprep.subr.bf16.mxu0 0
        %1197 = vmatpush2.bf16.msra.mxu0 0
        %1198 = vmatprep.subr.bf16.mxu0 0
        %1199 = vmatpush2.bf16.msra.mxu0 0
        %1200 = vmatprep.subr.bf16.mxu0 0
        %1201 = vmatpush2.bf16.msra.mxu0 0
        %1202 = vmatprep.subr.bf16.mxu0 0
        %1203 = vmatpush2.bf16.msra.mxu0 0
        %1204 = vmatprep.subr.bf16.mxu0 0
        %1205 = vmatpush2.bf16.msra.mxu0 0
        %1206 = vmatprep.subr.bf16.mxu0 0
        %1207 = vmatpush2.bf16.msra.mxu0 0
        %1208 = vmatprep.mubr.bf16.mxu0 0
        %1209 = vmatmul.mubr.bf16.gmra.mxu0 %v1165
        %v1210 = vpop.f32.mrf.mxu0
        %v1211 = vadd.f32 %v1066, %v1210
        %v1212 = vpop.f32.mrf.mxu0
        %v1213 = vadd.f32 %v1068, %v1212
        %v1214 = vpop.f32.mrf.mxu0
        %v1215 = vadd.f32 %v1070, %v1214
        %v1216 = vpop.f32.mrf.mxu0
        %v1217 = vadd.f32 %v1072, %v1216
        %1218 = vmatprep.mubr.bf16.mxu0 0
        %1219 = vmatmul.mubr.bf16.gmra.mxu0 %v1168
        %v1220 = vpop.f32.mrf.mxu0
        %v1221 = vadd.f32 %v1076, %v1220
        %v1222 = vpop.f32.mrf.mxu0
        %v1223 = vadd.f32 %v1078, %v1222
        %v1224 = vpop.f32.mrf.mxu0
        %v1225 = vadd.f32 %v1080, %v1224
        %v1226 = vpop.f32.mrf.mxu0
        %v1227 = vadd.f32 %v1082, %v1226
        %1228 = vmatprep.mubr.bf16.mxu0 0
        %1229 = vmatmul.mubr.bf16.gmra.mxu0 %v1171
        %v1230 = vpop.f32.mrf.mxu0
        %v1231 = vadd.f32 %v1086, %v1230
        %v1232 = vpop.f32.mrf.mxu0
        %v1233 = vadd.f32 %v1088, %v1232
        %v1234 = vpop.f32.mrf.mxu0
        %v1235 = vadd.f32 %v1090, %v1234
        %v1236 = vpop.f32.mrf.mxu0
        %v1237 = vadd.f32 %v1092, %v1236
        %1238 = vmatprep.mubr.bf16.mxu0 0
        %1239 = vmatmul.mubr.bf16.gmra.mxu0 %v1174
        %v1240 = vpop.f32.mrf.mxu0
        %v1241 = vadd.f32 %v1096, %v1240
        %v1242 = vpop.f32.mrf.mxu0
        %v1243 = vadd.f32 %v1098, %v1242
        %v1244 = vpop.f32.mrf.mxu0
        %v1245 = vadd.f32 %v1100, %v1244
        %v1246 = vpop.f32.mrf.mxu0
        %v1247 = vadd.f32 %v1102, %v1246
        %1248 = vdwg.mxu0
        %v1249 = vld [vmem:[%s5] sm:$0x3]
        %v1252 = vunpack.c.l.s4 1966171168
        %v1253 = vunpack.c.0.s8 %v1252
        %v1254 = vlaneseq
        %v1255 = vshrl.u32 %v1254, 7
        %v1256 = vsub.s32 %v1253, %v1255
        %v1257 = vrot.slane %v1249, %v1256
        %v1258 = vcombine.high %v1257, %v1257
        %v1260 = vunpack.c.l.s4 1966171168
        %v1261 = vunpack.c.0.s8 %v1260
        %v1262 = vlaneseq
        %v1263 = vshrl.u32 %v1262, 7
        %v1264 = vsub.s32 %v1261, %v1263
        %v1265 = vrot.slane %v1257, %v1264
        %v1267 = vunpack.c.l.s4 1966171168
        %v1268 = vunpack.c.0.s8 %v1267
        %v1269 = vlaneseq
        %v1270 = vshrl.u32 %v1269, 7
        %v1271 = vsub.s32 %v1268, %v1270
        %v1272 = vrot.slane %v1258, %v1271
        %v1274 = vshrl.u32 %v1265, 16
        %v1275 = vpack.i.b16 %v1274, %v1274
        %v1277 = vlaneseq
        %v1278 = vshrl.u32 %v1277, 7
        %v1279 = vsub.s32 0, %v1278
        %v1280 = vrot.slane %v1275, %v1279
        %v1282 = vshrl.u32 %v1272, 16
        %v1283 = vpack.i.b16 %v1282, %v1282
        %v1285 = vlaneseq
        %v1286 = vshrl.u32 %v1285, 7
        %v1287 = vsub.s32 0, %v1286
        %v1288 = vrot.slane %v1283, %v1287
        %v1291 = vunpack.c.l.b16 %v1280
        %v1292 = vunpack.c.l.b16 %v1288
        %v1293 = vpack.c.b16 %v1292, %v1291
        %1294 = vrot.lane.b32.xlu0 %v1293, 4
        %v1295 = vpop.permute.xlu0 %1294
        %v1296 = vrot.slane %v1295, 4
        %vm1297 = vcmask 31744
        %v1298 = vsel %vm1297, %v1296, %v1295
        %v1301 = vmul.bf16 %v820, %v1298
        %v1302 = vmul.bf16 %v888, %v1296
        %v1303 = vmul.bf16 %v821, %v1298
        %v1304 = vmul.bf16 %v889, %v1296
        %v1305 = vmul.bf16 %v822, %v1298
        %v1306 = vmul.bf16 %v890, %v1296
        %v1307 = vmul.bf16 %v823, %v1298
        %v1308 = vmul.bf16 %v891, %v1296
        %v1309 = vmul.bf16 %v824, %v1298
        %v1310 = vmul.bf16 %v892, %v1296
        %v1311 = vmul.bf16 %v825, %v1298
        %v1312 = vmul.bf16 %v893, %v1296
        %v1313 = vmul.bf16 %v826, %v1298
        %v1314 = vmul.bf16 %v894, %v1296
        %v1315 = vmul.bf16 %v827, %v1298
        %v1316 = vmul.bf16 %v895, %v1296
        %s1317 = scalar_lea.vmem %s3, 64
        %v1318 = vld [vmem:[%s1317] sm:$0xf]
        %v1319 = vld [vmem:[%s1317 + $0x4] sm:$0xf]
        %v1320 = vld [vmem:[%s1317 + $0x8] sm:$0xf]
        %v1321 = vld [vmem:[%s1317 + $0xc] sm:$0xf]
        %v1322 = vld [vmem:[%s1317 + $0x10] sm:$0xf]
        %v1323 = vld [vmem:[%s1317 + $0x14] sm:$0xf]
        %v1324 = vld [vmem:[%s1317 + $0x18] sm:$0xf]
        %v1325 = vld [vmem:[%s1317 + $0x1c] sm:$0xf]
        %v1334 = vunpack.c.l.b16 %v1318
        %v1335 = vunpack.c.l.b16 %v1319
        %v1336 = vunpack.c.l.b16 %v1320
        %v1337 = vunpack.c.l.b16 %v1321
        %v1338 = vunpack.c.l.b16 %v1322
        %v1339 = vunpack.c.l.b16 %v1323
        %v1340 = vunpack.c.l.b16 %v1324
        %v1341 = vunpack.c.l.b16 %v1325
        %v1342 = vpack.c.b16 %v1335, %v1334
        %v1343 = vpack.c.b16 %v1337, %v1336
        %v1344 = vpack.c.b16 %v1339, %v1338
        %v1345 = vpack.c.b16 %v1341, %v1340
        %v1362 = vunpack.c.l.b16 %v1301
        %v1363 = vunpack.c.h.b16 %v1301
        %v1364 = vunpack.c.l.b16 %v1302
        %v1365 = vunpack.c.l.b16 %v1303
        %v1366 = vunpack.c.h.b16 %v1303
        %v1367 = vunpack.c.l.b16 %v1304
        %v1368 = vunpack.c.l.b16 %v1305
        %v1369 = vunpack.c.h.b16 %v1305
        %v1370 = vunpack.c.l.b16 %v1306
        %v1371 = vunpack.c.l.b16 %v1307
        %v1372 = vunpack.c.h.b16 %v1307
        %v1373 = vunpack.c.l.b16 %v1308
        %v1374 = vunpack.c.l.b16 %v1309
        %v1375 = vunpack.c.h.b16 %v1309
        %v1376 = vunpack.c.l.b16 %v1310
        %v1377 = vunpack.c.l.b16 %v1311
        %v1378 = vunpack.c.h.b16 %v1311
        %v1379 = vunpack.c.l.b16 %v1312
        %v1380 = vunpack.c.l.b16 %v1313
        %v1381 = vunpack.c.h.b16 %v1313
        %v1382 = vunpack.c.l.b16 %v1314
        %v1383 = vunpack.c.l.b16 %v1315
        %v1384 = vunpack.c.h.b16 %v1315
        %v1385 = vunpack.c.l.b16 %v1316
        %v1386 = vpack.c.b16 %v1365, %v1362
        %v1387 = vpack.c.b16 %v1366, %v1363
        %v1388 = vpack.c.b16 %v1367, %v1364
        %v1389 = vpack.c.b16 %v1371, %v1368
        %v1390 = vpack.c.b16 %v1372, %v1369
        %v1391 = vpack.c.b16 %v1373, %v1370
        %v1392 = vpack.c.b16 %v1377, %v1374
        %v1393 = vpack.c.b16 %v1378, %v1375
        %v1394 = vpack.c.b16 %v1379, %v1376
        %v1395 = vpack.c.b16 %v1383, %v1380
        %v1396 = vpack.c.b16 %v1384, %v1381
        %v1397 = vpack.c.b16 %v1385, %v1382
        %1398 = vrot.lane.b32.xlu0 %v1386, 124
        %v1399 = vpop.permute.xlu0 %1398
        %1400 = vrot.lane.b32.xlu0 %v1387, 124
        %v1401 = vpop.permute.xlu0 %1400
        %1402 = vrot.lane.b32.xlu0 %v1388, 124
        %v1403 = vpop.permute.xlu0 %1402
        %1404 = vrot.lane.b32.xlu0 %v1389, 124
        %v1405 = vpop.permute.xlu0 %1404
        %1406 = vrot.lane.b32.xlu0 %v1390, 124
        %v1407 = vpop.permute.xlu0 %1406
        %1408 = vrot.lane.b32.xlu0 %v1391, 124
        %v1409 = vpop.permute.xlu0 %1408
        %1410 = vrot.lane.b32.xlu0 %v1392, 124
        %v1411 = vpop.permute.xlu0 %1410
        %1412 = vrot.lane.b32.xlu0 %v1393, 124
        %v1413 = vpop.permute.xlu0 %1412
        %1414 = vrot.lane.b32.xlu0 %v1394, 124
        %v1415 = vpop.permute.xlu0 %1414
        %1416 = vrot.lane.b32.xlu0 %v1395, 124
        %v1417 = vpop.permute.xlu0 %1416
        %1418 = vrot.lane.b32.xlu0 %v1396, 124
        %v1419 = vpop.permute.xlu0 %1418
        %1420 = vrot.lane.b32.xlu0 %v1397, 124
        %v1421 = vpop.permute.xlu0 %1420
        %vm1422 = vcmask 1014784
        %v1423 = vsel %vm1422, %v1399, %v1401
        %v1424 = vsel %vm1422, %v1401, %v1403
        %v1425 = vsel %vm1422, %v1405, %v1407
        %v1426 = vsel %vm1422, %v1407, %v1409
        %v1427 = vsel %vm1422, %v1411, %v1413
        %v1428 = vsel %vm1422, %v1413, %v1415
        %v1429 = vsel %vm1422, %v1417, %v1419
        %v1430 = vsel %vm1422, %v1419, %v1421
        %v1440 = vsel %vm1018, %v1342, 0
        %v1443 = vsel %vm1018, %v1343, 0
        %v1446 = vsel %vm1018, %v1344, 0
        %v1449 = vsel %vm1018, %v1345, 0
        %1451 = vmatprep.subr.bf16.mxu0 0
        %1452 = vmatpush1.bf16.msra.mxu0 0
        %1453 = vmatprep.subr.bf16.mxu0 0
        %1454 = vmatpush1.bf16.msra.mxu0 0
        %1455 = vmatprep.subr.bf16.mxu0 0
        %1456 = vmatpush1.bf16.msra.mxu0 0
        %1457 = vmatprep.subr.bf16.mxu0 0
        %1458 = vmatpush1.bf16.msra.mxu0 0
        %1459 = vmatprep.subr.bf16.mxu0 %v1430
        %1460 = vmatpush1.bf16.msra.mxu0 %v1429
        %1461 = vmatprep.subr.bf16.mxu0 %v1428
        %1462 = vmatpush1.bf16.msra.mxu0 %v1427
        %1463 = vmatprep.subr.bf16.mxu0 %v1426
        %1464 = vmatpush1.bf16.msra.mxu0 %v1425
        %1465 = vmatprep.subr.bf16.mxu0 %v1424
        %1466 = vmatpush1.bf16.msra.mxu0 %v1423
        %1467 = vmatprep.subr.bf16.mxu0 0
        %1468 = vmatpush2.bf16.msra.mxu0 0
        %1469 = vmatprep.subr.bf16.mxu0 0
        %1470 = vmatpush2.bf16.msra.mxu0 0
        %1471 = vmatprep.subr.bf16.mxu0 0
        %1472 = vmatpush2.bf16.msra.mxu0 0
        %1473 = vmatprep.subr.bf16.mxu0 0
        %1474 = vmatpush2.bf16.msra.mxu0 0
        %1475 = vmatprep.subr.bf16.mxu0 0
        %1476 = vmatpush2.bf16.msra.mxu0 0
        %1477 = vmatprep.subr.bf16.mxu0 0
        %1478 = vmatpush2.bf16.msra.mxu0 0
        %1479 = vmatprep.subr.bf16.mxu0 0
        %1480 = vmatpush2.bf16.msra.mxu0 0
        %1481 = vmatprep.subr.bf16.mxu0 0
        %1482 = vmatpush2.bf16.msra.mxu0 0
        %1483 = vmatprep.mubr.bf16.mxu0 0
        %1484 = vmatmul.mubr.bf16.gmra.mxu0 %v1440
        %v1485 = vpop.f32.mrf.mxu0
        %v1486 = vadd.f32 0.0, %v1485
        %v1487 = vpop.f32.mrf.mxu0
        %v1488 = vadd.f32 0.0, %v1487
        %v1489 = vpop.f32.mrf.mxu0
        %v1490 = vadd.f32 0.0, %v1489
        %v1491 = vpop.f32.mrf.mxu0
        %v1492 = vadd.f32 0.0, %v1491
        %1493 = vmatprep.mubr.bf16.mxu0 0
        %1494 = vmatmul.mubr.bf16.gmra.mxu0 %v1443
        %v1495 = vpop.f32.mrf.mxu0
        %v1496 = vadd.f32 0.0, %v1495
        %v1497 = vpop.f32.mrf.mxu0
        %v1498 = vadd.f32 0.0, %v1497
        %v1499 = vpop.f32.mrf.mxu0
        %v1500 = vadd.f32 0.0, %v1499
        %v1501 = vpop.f32.mrf.mxu0
        %v1502 = vadd.f32 0.0, %v1501
        %1503 = vmatprep.mubr.bf16.mxu0 0
        %1504 = vmatmul.mubr.bf16.gmra.mxu0 %v1446
        %v1505 = vpop.f32.mrf.mxu0
        %v1506 = vadd.f32 0.0, %v1505
        %v1507 = vpop.f32.mrf.mxu0
        %v1508 = vadd.f32 0.0, %v1507
        %v1509 = vpop.f32.mrf.mxu0
        %v1510 = vadd.f32 0.0, %v1509
        %v1511 = vpop.f32.mrf.mxu0
        %v1512 = vadd.f32 0.0, %v1511
        %1513 = vmatprep.mubr.bf16.mxu0 0
        %1514 = vmatmul.mubr.bf16.gmra.mxu0 %v1449
        %v1515 = vpop.f32.mrf.mxu0
        %v1516 = vadd.f32 0.0, %v1515
        %v1517 = vpop.f32.mrf.mxu0
        %v1518 = vadd.f32 0.0, %v1517
        %v1519 = vpop.f32.mrf.mxu0
        %v1520 = vadd.f32 0.0, %v1519
        %v1521 = vpop.f32.mrf.mxu0
        %v1522 = vadd.f32 0.0, %v1521
        %1523 = vdwg.mxu0
        %v1524 = vadd.f32 %v1211, %v1486
        %v1525 = vadd.f32 %v1213, %v1488
        %v1526 = vadd.f32 %v1215, %v1490
        %v1527 = vadd.f32 %v1217, %v1492
        %v1528 = vadd.f32 %v1221, %v1496
        %v1529 = vadd.f32 %v1223, %v1498
        %v1530 = vadd.f32 %v1225, %v1500
        %v1531 = vadd.f32 %v1227, %v1502
        %v1532 = vadd.f32 %v1231, %v1506
        %v1533 = vadd.f32 %v1233, %v1508
        %v1534 = vadd.f32 %v1235, %v1510
        %v1535 = vadd.f32 %v1237, %v1512
        %v1536 = vadd.f32 %v1241, %v1516
        %v1537 = vadd.f32 %v1243, %v1518
        %v1538 = vadd.f32 %v1245, %v1520
        %v1539 = vadd.f32 %v1247, %v1522
        %v1540 = vld [vmem:[#allocation2] sm:$0xff]
        %v1541 = vld [vmem:[#allocation2 + $0x8] sm:$0xf]
        %v1542 = vld [vmem:[#allocation2 + $0xc] sm:$0xff]
        %v1543 = vld [vmem:[#allocation2 + $0x14] sm:$0xf]
        %v1544 = vld [vmem:[#allocation2 + $0x18] sm:$0xff]
        %v1545 = vld [vmem:[#allocation2 + $0x20] sm:$0xf]
        %v1546 = vld [vmem:[#allocation2 + $0x24] sm:$0xff]
        %v1547 = vld [vmem:[#allocation2 + $0x2c] sm:$0xf]
        %v1548 = vld [vmem:[#allocation2 + $0x30] sm:$0xff]
        %v1549 = vld [vmem:[#allocation2 + $0x38] sm:$0xf]
        %v1550 = vld [vmem:[#allocation2 + $0x3c] sm:$0xff]
        %v1551 = vld [vmem:[#allocation2 + $0x44] sm:$0xf]
        %v1552 = vld [vmem:[#allocation2 + $0x48] sm:$0xff]
        %v1553 = vld [vmem:[#allocation2 + $0x50] sm:$0xf]
        %v1554 = vld [vmem:[#allocation2 + $0x54] sm:$0xff]
        %v1555 = vld [vmem:[#allocation2 + $0x5c] sm:$0xf]
        %1556 = vrot.lane.b32.xlu0 %v870, 32
        %v1557 = vpop.permute.xlu0 %1556
        %v1558 = vrot.slane %v1557, 4
        %vm1559 = vcmask 261120
        %v1560 = vsel %vm1559, %v1558, %v1557
        %v1563 = vmul.bf16 %v1540, %v1560
        %v1564 = vmul.bf16 %v1541, %v1558
        %v1565 = vmul.bf16 %v1542, %v1560
        %v1566 = vmul.bf16 %v1543, %v1558
        %v1567 = vmul.bf16 %v1544, %v1560
        %v1568 = vmul.bf16 %v1545, %v1558
        %v1569 = vmul.bf16 %v1546, %v1560
        %v1570 = vmul.bf16 %v1547, %v1558
        %v1571 = vmul.bf16 %v1548, %v1560
        %v1572 = vmul.bf16 %v1549, %v1558
        %v1573 = vmul.bf16 %v1550, %v1560
        %v1574 = vmul.bf16 %v1551, %v1558
        %v1575 = vmul.bf16 %v1552, %v1560
        %v1576 = vmul.bf16 %v1553, %v1558
        %v1577 = vmul.bf16 %v1554, %v1560
        %v1578 = vmul.bf16 %v1555, %v1558
        %s1579 = scalar_lea.vmem %s3, 96
        %v1580 = vld [vmem:[%s1579] sm:$0xf]
        %v1581 = vld [vmem:[%s1579 + $0x4] sm:$0xf]
        %v1582 = vld [vmem:[%s1579 + $0x8] sm:$0xf]
        %v1583 = vld [vmem:[%s1579 + $0xc] sm:$0xf]
        %v1584 = vld [vmem:[%s1579 + $0x10] sm:$0xf]
        %v1585 = vld [vmem:[%s1579 + $0x14] sm:$0xf]
        %v1586 = vld [vmem:[%s1579 + $0x18] sm:$0xf]
        %v1587 = vld [vmem:[%s1579 + $0x1c] sm:$0xf]
        %v1596 = vunpack.c.l.b16 %v1580
        %v1597 = vunpack.c.l.b16 %v1581
        %v1598 = vunpack.c.l.b16 %v1582
        %v1599 = vunpack.c.l.b16 %v1583
        %v1600 = vunpack.c.l.b16 %v1584
        %v1601 = vunpack.c.l.b16 %v1585
        %v1602 = vunpack.c.l.b16 %v1586
        %v1603 = vunpack.c.l.b16 %v1587
        %v1604 = vpack.c.b16 %v1597, %v1596
        %v1605 = vpack.c.b16 %v1599, %v1598
        %v1606 = vpack.c.b16 %v1601, %v1600
        %v1607 = vpack.c.b16 %v1603, %v1602
        %v1624 = vunpack.c.l.b16 %v1563
        %v1625 = vunpack.c.h.b16 %v1563
        %v1626 = vunpack.c.l.b16 %v1564
        %v1627 = vunpack.c.l.b16 %v1565
        %v1628 = vunpack.c.h.b16 %v1565
        %v1629 = vunpack.c.l.b16 %v1566
        %v1630 = vunpack.c.l.b16 %v1567
        %v1631 = vunpack.c.h.b16 %v1567
        %v1632 = vunpack.c.l.b16 %v1568
        %v1633 = vunpack.c.l.b16 %v1569
        %v1634 = vunpack.c.h.b16 %v1569
        %v1635 = vunpack.c.l.b16 %v1570
        %v1636 = vunpack.c.l.b16 %v1571
        %v1637 = vunpack.c.h.b16 %v1571
        %v1638 = vunpack.c.l.b16 %v1572
        %v1639 = vunpack.c.l.b16 %v1573
        %v1640 = vunpack.c.h.b16 %v1573
        %v1641 = vunpack.c.l.b16 %v1574
        %v1642 = vunpack.c.l.b16 %v1575
        %v1643 = vunpack.c.h.b16 %v1575
        %v1644 = vunpack.c.l.b16 %v1576
        %v1645 = vunpack.c.l.b16 %v1577
        %v1646 = vunpack.c.h.b16 %v1577
        %v1647 = vunpack.c.l.b16 %v1578
        %v1648 = vpack.c.b16 %v1627, %v1624
        %v1649 = vpack.c.b16 %v1628, %v1625
        %v1650 = vpack.c.b16 %v1629, %v1626
        %v1651 = vpack.c.b16 %v1633, %v1630
        %v1652 = vpack.c.b16 %v1634, %v1631
        %v1653 = vpack.c.b16 %v1635, %v1632
        %v1654 = vpack.c.b16 %v1639, %v1636
        %v1655 = vpack.c.b16 %v1640, %v1637
        %v1656 = vpack.c.b16 %v1641, %v1638
        %v1657 = vpack.c.b16 %v1645, %v1642
        %v1658 = vpack.c.b16 %v1646, %v1643
        %v1659 = vpack.c.b16 %v1647, %v1644
        %1660 = vrot.lane.b32.xlu0 %v1648, 96
        %v1661 = vpop.permute.xlu0 %1660
        %1662 = vrot.lane.b32.xlu0 %v1649, 96
        %v1663 = vpop.permute.xlu0 %1662
        %1664 = vrot.lane.b32.xlu0 %v1650, 96
        %v1665 = vpop.permute.xlu0 %1664
        %1666 = vrot.lane.b32.xlu0 %v1651, 96
        %v1667 = vpop.permute.xlu0 %1666
        %1668 = vrot.lane.b32.xlu0 %v1652, 96
        %v1669 = vpop.permute.xlu0 %1668
        %1670 = vrot.lane.b32.xlu0 %v1653, 96
        %v1671 = vpop.permute.xlu0 %1670
        %1672 = vrot.lane.b32.xlu0 %v1654, 96
        %v1673 = vpop.permute.xlu0 %1672
        %1674 = vrot.lane.b32.xlu0 %v1655, 96
        %v1675 = vpop.permute.xlu0 %1674
        %1676 = vrot.lane.b32.xlu0 %v1656, 96
        %v1677 = vpop.permute.xlu0 %1676
        %1678 = vrot.lane.b32.xlu0 %v1657, 96
        %v1679 = vpop.permute.xlu0 %1678
        %1680 = vrot.lane.b32.xlu0 %v1658, 96
        %v1681 = vpop.permute.xlu0 %1680
        %1682 = vrot.lane.b32.xlu0 %v1659, 96
        %v1683 = vpop.permute.xlu0 %1682
        %vm1684 = vcmask 785408
        %v1685 = vsel %vm1684, %v1661, %v1663
        %v1686 = vsel %vm1684, %v1663, %v1665
        %v1687 = vsel %vm1684, %v1667, %v1669
        %v1688 = vsel %vm1684, %v1669, %v1671
        %v1689 = vsel %vm1684, %v1673, %v1675
        %v1690 = vsel %vm1684, %v1675, %v1677
        %v1691 = vsel %vm1684, %v1679, %v1681
        %v1692 = vsel %vm1684, %v1681, %v1683
        %v1702 = vsel %vm1018, %v1604, 0
        %v1705 = vsel %vm1018, %v1605, 0
        %v1708 = vsel %vm1018, %v1606, 0
        %v1711 = vsel %vm1018, %v1607, 0
        %1713 = vmatprep.subr.bf16.mxu0 0
        %1714 = vmatpush1.bf16.msra.mxu0 0
        %1715 = vmatprep.subr.bf16.mxu0 0
        %1716 = vmatpush1.bf16.msra.mxu0 0
        %1717 = vmatprep.subr.bf16.mxu0 0
        %1718 = vmatpush1.bf16.msra.mxu0 0
        %1719 = vmatprep.subr.bf16.mxu0 0
        %1720 = vmatpush1.bf16.msra.mxu0 0
        %1721 = vmatprep.subr.bf16.mxu0 %v1692
        %1722 = vmatpush1.bf16.msra.mxu0 %v1691
        %1723 = vmatprep.subr.bf16.mxu0 %v1690
        %1724 = vmatpush1.bf16.msra.mxu0 %v1689
        %1725 = vmatprep.subr.bf16.mxu0 %v1688
        %1726 = vmatpush1.bf16.msra.mxu0 %v1687
        %1727 = vmatprep.subr.bf16.mxu0 %v1686
        %1728 = vmatpush1.bf16.msra.mxu0 %v1685
        %1729 = vmatprep.subr.bf16.mxu0 0
        %1730 = vmatpush2.bf16.msra.mxu0 0
        %1731 = vmatprep.subr.bf16.mxu0 0
        %1732 = vmatpush2.bf16.msra.mxu0 0
        %1733 = vmatprep.subr.bf16.mxu0 0
        %1734 = vmatpush2.bf16.msra.mxu0 0
        %1735 = vmatprep.subr.bf16.mxu0 0
        %1736 = vmatpush2.bf16.msra.mxu0 0
        %1737 = vmatprep.subr.bf16.mxu0 0
        %1738 = vmatpush2.bf16.msra.mxu0 0
        %1739 = vmatprep.subr.bf16.mxu0 0
        %1740 = vmatpush2.bf16.msra.mxu0 0
        %1741 = vmatprep.subr.bf16.mxu0 0
        %1742 = vmatpush2.bf16.msra.mxu0 0
        %1743 = vmatprep.subr.bf16.mxu0 0
        %1744 = vmatpush2.bf16.msra.mxu0 0
        %1745 = vmatprep.mubr.bf16.mxu0 0
        %1746 = vmatmul.mubr.bf16.gmra.mxu0 %v1702
        %v1747 = vpop.f32.mrf.mxu0
        %v1748 = vadd.f32 0.0, %v1747
        %v1749 = vpop.f32.mrf.mxu0
        %v1750 = vadd.f32 0.0, %v1749
        %v1751 = vpop.f32.mrf.mxu0
        %v1752 = vadd.f32 0.0, %v1751
        %v1753 = vpop.f32.mrf.mxu0
        %v1754 = vadd.f32 0.0, %v1753
        %1755 = vmatprep.mubr.bf16.mxu0 0
        %1756 = vmatmul.mubr.bf16.gmra.mxu0 %v1705
        %v1757 = vpop.f32.mrf.mxu0
        %v1758 = vadd.f32 0.0, %v1757
        %v1759 = vpop.f32.mrf.mxu0
        %v1760 = vadd.f32 0.0, %v1759
        %v1761 = vpop.f32.mrf.mxu0
        %v1762 = vadd.f32 0.0, %v1761
        %v1763 = vpop.f32.mrf.mxu0
        %v1764 = vadd.f32 0.0, %v1763
        %1765 = vmatprep.mubr.bf16.mxu0 0
        %1766 = vmatmul.mubr.bf16.gmra.mxu0 %v1708
        %v1767 = vpop.f32.mrf.mxu0
        %v1768 = vadd.f32 0.0, %v1767
        %v1769 = vpop.f32.mrf.mxu0
        %v1770 = vadd.f32 0.0, %v1769
        %v1771 = vpop.f32.mrf.mxu0
        %v1772 = vadd.f32 0.0, %v1771
        %v1773 = vpop.f32.mrf.mxu0
        %v1774 = vadd.f32 0.0, %v1773
        %1775 = vmatprep.mubr.bf16.mxu0 0
        %1776 = vmatmul.mubr.bf16.gmra.mxu0 %v1711
        %v1777 = vpop.f32.mrf.mxu0
        %v1778 = vadd.f32 0.0, %v1777
        %v1779 = vpop.f32.mrf.mxu0
        %v1780 = vadd.f32 0.0, %v1779
        %v1781 = vpop.f32.mrf.mxu0
        %v1782 = vadd.f32 0.0, %v1781
        %v1783 = vpop.f32.mrf.mxu0
        %v1784 = vadd.f32 0.0, %v1783
        %1785 = vdwg.mxu0
        %v1786 = vadd.f32 %v1524, %v1748
        %v1787 = vadd.f32 %v1525, %v1750
        %v1788 = vadd.f32 %v1526, %v1752
        %v1789 = vadd.f32 %v1527, %v1754
        %v1790 = vadd.f32 %v1528, %v1758
        %v1791 = vadd.f32 %v1529, %v1760
        %v1792 = vadd.f32 %v1530, %v1762
        %v1793 = vadd.f32 %v1531, %v1764
        %v1794 = vadd.f32 %v1532, %v1768
        %v1795 = vadd.f32 %v1533, %v1770
        %v1796 = vadd.f32 %v1534, %v1772
        %v1797 = vadd.f32 %v1535, %v1774
        %v1798 = vadd.f32 %v1536, %v1778
        %v1799 = vadd.f32 %v1537, %v1780
        %v1800 = vadd.f32 %v1538, %v1782
        %v1801 = vadd.f32 %v1539, %v1784
        %s1802 = scalar_lea.vmem %s3, 128
        %v1803 = vld [vmem:[%s1802] sm:$0xf]
        %v1804 = vld [vmem:[%s1802 + $0x4] sm:$0xf]
        %v1805 = vld [vmem:[%s1802 + $0x8] sm:$0xf]
        %v1806 = vld [vmem:[%s1802 + $0xc] sm:$0xf]
        %v1807 = vld [vmem:[%s1802 + $0x10] sm:$0xf]
        %v1808 = vld [vmem:[%s1802 + $0x14] sm:$0xf]
        %v1809 = vld [vmem:[%s1802 + $0x18] sm:$0xf]
        %v1810 = vld [vmem:[%s1802 + $0x1c] sm:$0xf]
        %v1819 = vunpack.c.l.b16 %v1803
        %v1820 = vunpack.c.l.b16 %v1804
        %v1821 = vunpack.c.l.b16 %v1805
        %v1822 = vunpack.c.l.b16 %v1806
        %v1823 = vunpack.c.l.b16 %v1807
        %v1824 = vunpack.c.l.b16 %v1808
        %v1825 = vunpack.c.l.b16 %v1809
        %v1826 = vunpack.c.l.b16 %v1810
        %v1827 = vpack.c.b16 %v1820, %v1819
        %v1828 = vpack.c.b16 %v1822, %v1821
        %v1829 = vpack.c.b16 %v1824, %v1823
        %v1830 = vpack.c.b16 %v1826, %v1825
        %v1847 = vunpack.c.l.b16 %v1540
        %v1848 = vunpack.c.h.b16 %v1540
        %v1849 = vunpack.c.l.b16 %v1541
        %v1850 = vunpack.c.l.b16 %v1542
        %v1851 = vunpack.c.h.b16 %v1542
        %v1852 = vunpack.c.l.b16 %v1543
        %v1853 = vunpack.c.l.b16 %v1544
        %v1854 = vunpack.c.h.b16 %v1544
        %v1855 = vunpack.c.l.b16 %v1545
        %v1856 = vunpack.c.l.b16 %v1546
        %v1857 = vunpack.c.h.b16 %v1546
        %v1858 = vunpack.c.l.b16 %v1547
        %v1859 = vunpack.c.l.b16 %v1548
        %v1860 = vunpack.c.h.b16 %v1548
        %v1861 = vunpack.c.l.b16 %v1549
        %v1862 = vunpack.c.l.b16 %v1550
        %v1863 = vunpack.c.h.b16 %v1550
        %v1864 = vunpack.c.l.b16 %v1551
        %v1865 = vunpack.c.l.b16 %v1552
        %v1866 = vunpack.c.h.b16 %v1552
        %v1867 = vunpack.c.l.b16 %v1553
        %v1868 = vunpack.c.l.b16 %v1554
        %v1869 = vunpack.c.h.b16 %v1554
        %v1870 = vunpack.c.l.b16 %v1555
        %v1871 = vpack.c.b16 %v1850, %v1847
        %v1872 = vpack.c.b16 %v1851, %v1848
        %v1873 = vpack.c.b16 %v1852, %v1849
        %v1874 = vpack.c.b16 %v1856, %v1853
        %v1875 = vpack.c.b16 %v1857, %v1854
        %v1876 = vpack.c.b16 %v1858, %v1855
        %v1877 = vpack.c.b16 %v1862, %v1859
        %v1878 = vpack.c.b16 %v1863, %v1860
        %v1879 = vpack.c.b16 %v1864, %v1861
        %v1880 = vpack.c.b16 %v1868, %v1865
        %v1881 = vpack.c.b16 %v1869, %v1866
        %v1882 = vpack.c.b16 %v1870, %v1867
        %1883 = vrot.lane.b32.xlu0 %v1871, 94
        %v1884 = vpop.permute.xlu0 %1883
        %1885 = vrot.lane.b32.xlu0 %v1872, 94
        %v1886 = vpop.permute.xlu0 %1885
        %1887 = vrot.lane.b32.xlu0 %v1873, 94
        %v1888 = vpop.permute.xlu0 %1887
        %1889 = vrot.lane.b32.xlu0 %v1874, 94
        %v1890 = vpop.permute.xlu0 %1889
        %1891 = vrot.lane.b32.xlu0 %v1875, 94
        %v1892 = vpop.permute.xlu0 %1891
        %1893 = vrot.lane.b32.xlu0 %v1876, 94
        %v1894 = vpop.permute.xlu0 %1893
        %1895 = vrot.lane.b32.xlu0 %v1877, 94
        %v1896 = vpop.permute.xlu0 %1895
        %1897 = vrot.lane.b32.xlu0 %v1878, 94
        %v1898 = vpop.permute.xlu0 %1897
        %1899 = vrot.lane.b32.xlu0 %v1879, 94
        %v1900 = vpop.permute.xlu0 %1899
        %1901 = vrot.lane.b32.xlu0 %v1880, 94
        %v1902 = vpop.permute.xlu0 %1901
        %1903 = vrot.lane.b32.xlu0 %v1881, 94
        %v1904 = vpop.permute.xlu0 %1903
        %1905 = vrot.lane.b32.xlu0 %v1882, 94
        %v1906 = vpop.permute.xlu0 %1905
        %vm1907 = vcmask 769024
        %v1908 = vsel %vm1907, %v1884, %v1886
        %v1909 = vsel %vm1907, %v1886, %v1888
        %v1910 = vsel %vm1907, %v1890, %v1892
        %v1911 = vsel %vm1907, %v1892, %v1894
        %v1912 = vsel %vm1907, %v1896, %v1898
        %v1913 = vsel %vm1907, %v1898, %v1900
        %v1914 = vsel %vm1907, %v1902, %v1904
        %v1915 = vsel %vm1907, %v1904, %v1906
        %v1925 = vsel %vm1018, %v1827, 0
        %v1928 = vsel %vm1018, %v1828, 0
        %v1931 = vsel %vm1018, %v1829, 0
        %v1934 = vsel %vm1018, %v1830, 0
        %1936 = vmatprep.subr.bf16.mxu0 0
        %1937 = vmatpush1.bf16.msra.mxu0 0
        %1938 = vmatprep.subr.bf16.mxu0 0
        %1939 = vmatpush1.bf16.msra.mxu0 0
        %1940 = vmatprep.subr.bf16.mxu0 0
        %1941 = vmatpush1.bf16.msra.mxu0 0
        %1942 = vmatprep.subr.bf16.mxu0 0
        %1943 = vmatpush1.bf16.msra.mxu0 0
        %1944 = vmatprep.subr.bf16.mxu0 %v1915
        %1945 = vmatpush1.bf16.msra.mxu0 %v1914
        %1946 = vmatprep.subr.bf16.mxu0 %v1913
        %1947 = vmatpush1.bf16.msra.mxu0 %v1912
        %1948 = vmatprep.subr.bf16.mxu0 %v1911
        %1949 = vmatpush1.bf16.msra.mxu0 %v1910
        %1950 = vmatprep.subr.bf16.mxu0 %v1909
        %1951 = vmatpush1.bf16.msra.mxu0 %v1908
        %1952 = vmatprep.subr.bf16.mxu0 0
        %1953 = vmatpush2.bf16.msra.mxu0 0
        %1954 = vmatprep.subr.bf16.mxu0 0
        %1955 = vmatpush2.bf16.msra.mxu0 0
        %1956 = vmatprep.subr.bf16.mxu0 0
        %1957 = vmatpush2.bf16.msra.mxu0 0
        %1958 = vmatprep.subr.bf16.mxu0 0
        %1959 = vmatpush2.bf16.msra.mxu0 0
        %1960 = vmatprep.subr.bf16.mxu0 0
        %1961 = vmatpush2.bf16.msra.mxu0 0
        %1962 = vmatprep.subr.bf16.mxu0 0
        %1963 = vmatpush2.bf16.msra.mxu0 0
        %1964 = vmatprep.subr.bf16.mxu0 0
        %1965 = vmatpush2.bf16.msra.mxu0 0
        %1966 = vmatprep.subr.bf16.mxu0 0
        %1967 = vmatpush2.bf16.msra.mxu0 0
        %1968 = vmatprep.mubr.bf16.mxu0 0
        %1969 = vmatmul.mubr.bf16.gmra.mxu0 %v1925
        %v1970 = vpop.f32.mrf.mxu0
        %v1971 = vadd.f32 0.0, %v1970
        %v1972 = vpop.f32.mrf.mxu0
        %v1973 = vadd.f32 0.0, %v1972
        %v1974 = vpop.f32.mrf.mxu0
        %v1975 = vadd.f32 0.0, %v1974
        %v1976 = vpop.f32.mrf.mxu0
        %v1977 = vadd.f32 0.0, %v1976
        %1978 = vmatprep.mubr.bf16.mxu0 0
        %1979 = vmatmul.mubr.bf16.gmra.mxu0 %v1928
        %v1980 = vpop.f32.mrf.mxu0
        %v1981 = vadd.f32 0.0, %v1980
        %v1982 = vpop.f32.mrf.mxu0
        %v1983 = vadd.f32 0.0, %v1982
        %v1984 = vpop.f32.mrf.mxu0
        %v1985 = vadd.f32 0.0, %v1984
        %v1986 = vpop.f32.mrf.mxu0
        %v1987 = vadd.f32 0.0, %v1986
        %1988 = vmatprep.mubr.bf16.mxu0 0
        %1989 = vmatmul.mubr.bf16.gmra.mxu0 %v1931
        %v1990 = vpop.f32.mrf.mxu0
        %v1991 = vadd.f32 0.0, %v1990
        %v1992 = vpop.f32.mrf.mxu0
        %v1993 = vadd.f32 0.0, %v1992
        %v1994 = vpop.f32.mrf.mxu0
        %v1995 = vadd.f32 0.0, %v1994
        %v1996 = vpop.f32.mrf.mxu0
        %v1997 = vadd.f32 0.0, %v1996
        %1998 = vmatprep.mubr.bf16.mxu0 0
        %1999 = vmatmul.mubr.bf16.gmra.mxu0 %v1934
        %v2000 = vpop.f32.mrf.mxu0
        %v2001 = vadd.f32 0.0, %v2000
        %v2002 = vpop.f32.mrf.mxu0
        %v2003 = vadd.f32 0.0, %v2002
        %v2004 = vpop.f32.mrf.mxu0
        %v2005 = vadd.f32 0.0, %v2004
        %v2006 = vpop.f32.mrf.mxu0
        %v2007 = vadd.f32 0.0, %v2006
        %2008 = vdwg.mxu0
        %v2009 = vadd.f32 %v1786, %v1971
        %v2010 = vadd.f32 %v1787, %v1973
        %v2011 = vadd.f32 %v1788, %v1975
        %v2012 = vadd.f32 %v1789, %v1977
        %v2013 = vadd.f32 %v1790, %v1981
        %v2014 = vadd.f32 %v1791, %v1983
        %v2015 = vadd.f32 %v1792, %v1985
        %v2016 = vadd.f32 %v1793, %v1987
        %v2017 = vadd.f32 %v1794, %v1991
        %v2018 = vadd.f32 %v1795, %v1993
        %v2019 = vadd.f32 %v1796, %v1995
        %v2020 = vadd.f32 %v1797, %v1997
        %v2021 = vadd.f32 %v1798, %v2001
        %v2022 = vadd.f32 %v1799, %v2003
        %v2023 = vadd.f32 %v1800, %v2005
        %v2024 = vadd.f32 %v1801, %v2007
        %2025 = vrot.lane.b32.xlu0 %v1293, 36
        %v2026 = vpop.permute.xlu0 %2025
        %v2027 = vrot.slane %v2026, 4
        %vm2028 = vcmask 293888
        %v2029 = vsel %vm2028, %v2027, %v2026
        %v2032 = vmul.bf16 %v1540, %v2029
        %v2033 = vmul.bf16 %v1541, %v2027
        %v2034 = vmul.bf16 %v1542, %v2029
        %v2035 = vmul.bf16 %v1543, %v2027
        %v2036 = vmul.bf16 %v1544, %v2029
        %v2037 = vmul.bf16 %v1545, %v2027
        %v2038 = vmul.bf16 %v1546, %v2029
        %v2039 = vmul.bf16 %v1547, %v2027
        %v2040 = vmul.bf16 %v1548, %v2029
        %v2041 = vmul.bf16 %v1549, %v2027
        %v2042 = vmul.bf16 %v1550, %v2029
        %v2043 = vmul.bf16 %v1551, %v2027
        %v2044 = vmul.bf16 %v1552, %v2029
        %v2045 = vmul.bf16 %v1553, %v2027
        %v2046 = vmul.bf16 %v1554, %v2029
        %v2047 = vmul.bf16 %v1555, %v2027
        %s2048 = scalar_lea.vmem %s3, 160
        %v2049 = vld [vmem:[%s2048] sm:$0xf]
        %v2050 = vld [vmem:[%s2048 + $0x4] sm:$0xf]
        %v2051 = vld [vmem:[%s2048 + $0x8] sm:$0xf]
        %v2052 = vld [vmem:[%s2048 + $0xc] sm:$0xf]
        %v2053 = vld [vmem:[%s2048 + $0x10] sm:$0xf]
        %v2054 = vld [vmem:[%s2048 + $0x14] sm:$0xf]
        %v2055 = vld [vmem:[%s2048 + $0x18] sm:$0xf]
        %v2056 = vld [vmem:[%s2048 + $0x1c] sm:$0xf]
        %v2065 = vunpack.c.l.b16 %v2049
        %v2066 = vunpack.c.l.b16 %v2050
        %v2067 = vunpack.c.l.b16 %v2051
        %v2068 = vunpack.c.l.b16 %v2052
        %v2069 = vunpack.c.l.b16 %v2053
        %v2070 = vunpack.c.l.b16 %v2054
        %v2071 = vunpack.c.l.b16 %v2055
        %v2072 = vunpack.c.l.b16 %v2056
        %v2073 = vpack.c.b16 %v2066, %v2065
        %v2074 = vpack.c.b16 %v2068, %v2067
        %v2075 = vpack.c.b16 %v2070, %v2069
        %v2076 = vpack.c.b16 %v2072, %v2071
        %v2093 = vunpack.c.l.b16 %v2032
        %v2094 = vunpack.c.h.b16 %v2032
        %v2095 = vunpack.c.l.b16 %v2033
        %v2096 = vunpack.c.l.b16 %v2034
        %v2097 = vunpack.c.h.b16 %v2034
        %v2098 = vunpack.c.l.b16 %v2035
        %v2099 = vunpack.c.l.b16 %v2036
        %v2100 = vunpack.c.h.b16 %v2036
        %v2101 = vunpack.c.l.b16 %v2037
        %v2102 = vunpack.c.l.b16 %v2038
        %v2103 = vunpack.c.h.b16 %v2038
        %v2104 = vunpack.c.l.b16 %v2039
        %v2105 = vunpack.c.l.b16 %v2040
        %v2106 = vunpack.c.h.b16 %v2040
        %v2107 = vunpack.c.l.b16 %v2041
        %v2108 = vunpack.c.l.b16 %v2042
        %v2109 = vunpack.c.h.b16 %v2042
        %v2110 = vunpack.c.l.b16 %v2043
        %v2111 = vunpack.c.l.b16 %v2044
        %v2112 = vunpack.c.h.b16 %v2044
        %v2113 = vunpack.c.l.b16 %v2045
        %v2114 = vunpack.c.l.b16 %v2046
        %v2115 = vunpack.c.h.b16 %v2046
        %v2116 = vunpack.c.l.b16 %v2047
        %v2117 = vpack.c.b16 %v2096, %v2093
        %v2118 = vpack.c.b16 %v2097, %v2094
        %v2119 = vpack.c.b16 %v2098, %v2095
        %v2120 = vpack.c.b16 %v2102, %v2099
        %v2121 = vpack.c.b16 %v2103, %v2100
        %v2122 = vpack.c.b16 %v2104, %v2101
        %v2123 = vpack.c.b16 %v2108, %v2105
        %v2124 = vpack.c.b16 %v2109, %v2106
        %v2125 = vpack.c.b16 %v2110, %v2107
        %v2126 = vpack.c.b16 %v2114, %v2111
        %v2127 = vpack.c.b16 %v2115, %v2112
        %v2128 = vpack.c.b16 %v2116, %v2113
        %2129 = vrot.lane.b32.xlu0 %v2117, 92
        %v2130 = vpop.permute.xlu0 %2129
        %2131 = vrot.lane.b32.xlu0 %v2118, 92
        %v2132 = vpop.permute.xlu0 %2131
        %2133 = vrot.lane.b32.xlu0 %v2119, 92
        %v2134 = vpop.permute.xlu0 %2133
        %2135 = vrot.lane.b32.xlu0 %v2120, 92
        %v2136 = vpop.permute.xlu0 %2135
        %2137 = vrot.lane.b32.xlu0 %v2121, 92
        %v2138 = vpop.permute.xlu0 %2137
        %2139 = vrot.lane.b32.xlu0 %v2122, 92
        %v2140 = vpop.permute.xlu0 %2139
        %2141 = vrot.lane.b32.xlu0 %v2123, 92
        %v2142 = vpop.permute.xlu0 %2141
        %2143 = vrot.lane.b32.xlu0 %v2124, 92
        %v2144 = vpop.permute.xlu0 %2143
        %2145 = vrot.lane.b32.xlu0 %v2125, 92
        %v2146 = vpop.permute.xlu0 %2145
        %2147 = vrot.lane.b32.xlu0 %v2126, 92
        %v2148 = vpop.permute.xlu0 %2147
        %2149 = vrot.lane.b32.xlu0 %v2127, 92
        %v2150 = vpop.permute.xlu0 %2149
        %2151 = vrot.lane.b32.xlu0 %v2128, 92
        %v2152 = vpop.permute.xlu0 %2151
        %vm2153 = vcmask 752640
        %v2154 = vsel %vm2153, %v2130, %v2132
        %v2155 = vsel %vm2153, %v2132, %v2134
        %v2156 = vsel %vm2153, %v2136, %v2138
        %v2157 = vsel %vm2153, %v2138, %v2140
        %v2158 = vsel %vm2153, %v2142, %v2144
        %v2159 = vsel %vm2153, %v2144, %v2146
        %v2160 = vsel %vm2153, %v2148, %v2150
        %v2161 = vsel %vm2153, %v2150, %v2152
        %v2171 = vsel %vm1018, %v2073, 0
        %v2174 = vsel %vm1018, %v2074, 0
        %v2177 = vsel %vm1018, %v2075, 0
        %v2180 = vsel %vm1018, %v2076, 0
        %2182 = vmatprep.subr.bf16.mxu0 0
        %2183 = vmatpush1.bf16.msra.mxu0 0
        %2184 = vmatprep.subr.bf16.mxu0 0
        %2185 = vmatpush1.bf16.msra.mxu0 0
        %2186 = vmatprep.subr.bf16.mxu0 0
        %2187 = vmatpush1.bf16.msra.mxu0 0
        %2188 = vmatprep.subr.bf16.mxu0 0
        %2189 = vmatpush1.bf16.msra.mxu0 0
        %2190 = vmatprep.subr.bf16.mxu0 %v2161
        %2191 = vmatpush1.bf16.msra.mxu0 %v2160
        %2192 = vmatprep.subr.bf16.mxu0 %v2159
        %2193 = vmatpush1.bf16.msra.mxu0 %v2158
        %2194 = vmatprep.subr.bf16.mxu0 %v2157
        %2195 = vmatpush1.bf16.msra.mxu0 %v2156
        %2196 = vmatprep.subr.bf16.mxu0 %v2155
        %2197 = vmatpush1.bf16.msra.mxu0 %v2154
        %2198 = vmatprep.subr.bf16.mxu0 0
        %2199 = vmatpush2.bf16.msra.mxu0 0
        %2200 = vmatprep.subr.bf16.mxu0 0
        %2201 = vmatpush2.bf16.msra.mxu0 0
        %2202 = vmatprep.subr.bf16.mxu0 0
        %2203 = vmatpush2.bf16.msra.mxu0 0
        %2204 = vmatprep.subr.bf16.mxu0 0
        %2205 = vmatpush2.bf16.msra.mxu0 0
        %2206 = vmatprep.subr.bf16.mxu0 0
        %2207 = vmatpush2.bf16.msra.mxu0 0
        %2208 = vmatprep.subr.bf16.mxu0 0
        %2209 = vmatpush2.bf16.msra.mxu0 0
        %2210 = vmatprep.subr.bf16.mxu0 0
        %2211 = vmatpush2.bf16.msra.mxu0 0
        %2212 = vmatprep.subr.bf16.mxu0 0
        %2213 = vmatpush2.bf16.msra.mxu0 0
        %2214 = vmatprep.mubr.bf16.mxu0 0
        %2215 = vmatmul.mubr.bf16.gmra.mxu0 %v2171
        %v2216 = vpop.f32.mrf.mxu0
        %v2217 = vadd.f32 0.0, %v2216
        %v2218 = vpop.f32.mrf.mxu0
        %v2219 = vadd.f32 0.0, %v2218
        %v2220 = vpop.f32.mrf.mxu0
        %v2221 = vadd.f32 0.0, %v2220
        %v2222 = vpop.f32.mrf.mxu0
        %v2223 = vadd.f32 0.0, %v2222
        %2224 = vmatprep.mubr.bf16.mxu0 0
        %2225 = vmatmul.mubr.bf16.gmra.mxu0 %v2174
        %v2226 = vpop.f32.mrf.mxu0
        %v2227 = vadd.f32 0.0, %v2226
        %v2228 = vpop.f32.mrf.mxu0
        %v2229 = vadd.f32 0.0, %v2228
        %v2230 = vpop.f32.mrf.mxu0
        %v2231 = vadd.f32 0.0, %v2230
        %v2232 = vpop.f32.mrf.mxu0
        %v2233 = vadd.f32 0.0, %v2232
        %2234 = vmatprep.mubr.bf16.mxu0 0
        %2235 = vmatmul.mubr.bf16.gmra.mxu0 %v2177
        %v2236 = vpop.f32.mrf.mxu0
        %v2237 = vadd.f32 0.0, %v2236
        %v2238 = vpop.f32.mrf.mxu0
        %v2239 = vadd.f32 0.0, %v2238
        %v2240 = vpop.f32.mrf.mxu0
        %v2241 = vadd.f32 0.0, %v2240
        %v2242 = vpop.f32.mrf.mxu0
        %v2243 = vadd.f32 0.0, %v2242
        %2244 = vmatprep.mubr.bf16.mxu0 0
        %2245 = vmatmul.mubr.bf16.gmra.mxu0 %v2180
        %v2246 = vpop.f32.mrf.mxu0
        %v2247 = vadd.f32 0.0, %v2246
        %v2248 = vpop.f32.mrf.mxu0
        %v2249 = vadd.f32 0.0, %v2248
        %v2250 = vpop.f32.mrf.mxu0
        %v2251 = vadd.f32 0.0, %v2250
        %v2252 = vpop.f32.mrf.mxu0
        %v2253 = vadd.f32 0.0, %v2252
        %2254 = vdwg.mxu0
        %v2255 = vadd.f32 %v2009, %v2217
        %v2256 = vadd.f32 %v2010, %v2219
        %v2257 = vadd.f32 %v2011, %v2221
        %v2258 = vadd.f32 %v2012, %v2223
        %v2259 = vadd.f32 %v2013, %v2227
        %v2260 = vadd.f32 %v2014, %v2229
        %v2261 = vadd.f32 %v2015, %v2231
        %v2262 = vadd.f32 %v2016, %v2233
        %v2263 = vadd.f32 %v2017, %v2237
        %v2264 = vadd.f32 %v2018, %v2239
        %v2265 = vadd.f32 %v2019, %v2241
        %v2266 = vadd.f32 %v2020, %v2243
        %v2267 = vadd.f32 %v2021, %v2247
        %v2268 = vadd.f32 %v2022, %v2249
        %v2269 = vadd.f32 %v2023, %v2251
        %v2270 = vadd.f32 %v2024, %v2253
        %2271 = vrot.lane.b32.xlu0 %v870, 64
        %v2272 = vpop.permute.xlu0 %2271
        %v2273 = vrot.slane %v2272, 4
        %vm2274 = vcmask 523264
        %v2275 = vsel %vm2274, %v2273, %v2272
        %v2278 = vmul.bf16 %v1540, %v2275
        %v2279 = vmul.bf16 %v1541, %v2273
        %v2280 = vmul.bf16 %v1542, %v2275
        %v2281 = vmul.bf16 %v1543, %v2273
        %v2282 = vmul.bf16 %v1544, %v2275
        %v2283 = vmul.bf16 %v1545, %v2273
        %v2284 = vmul.bf16 %v1546, %v2275
        %v2285 = vmul.bf16 %v1547, %v2273
        %v2286 = vmul.bf16 %v1548, %v2275
        %v2287 = vmul.bf16 %v1549, %v2273
        %v2288 = vmul.bf16 %v1550, %v2275
        %v2289 = vmul.bf16 %v1551, %v2273
        %v2290 = vmul.bf16 %v1552, %v2275
        %v2291 = vmul.bf16 %v1553, %v2273
        %v2292 = vmul.bf16 %v1554, %v2275
        %v2293 = vmul.bf16 %v1555, %v2273
        %s2294 = scalar_lea.vmem %s3, 192
        %v2295 = vld [vmem:[%s2294] sm:$0xf]
        %v2296 = vld [vmem:[%s2294 + $0x4] sm:$0xf]
        %v2297 = vld [vmem:[%s2294 + $0x8] sm:$0xf]
        %v2298 = vld [vmem:[%s2294 + $0xc] sm:$0xf]
        %v2299 = vld [vmem:[%s2294 + $0x10] sm:$0xf]
        %v2300 = vld [vmem:[%s2294 + $0x14] sm:$0xf]
        %v2301 = vld [vmem:[%s2294 + $0x18] sm:$0xf]
        %v2302 = vld [vmem:[%s2294 + $0x1c] sm:$0xf]
        %v2311 = vunpack.c.l.b16 %v2295
        %v2312 = vunpack.c.l.b16 %v2296
        %v2313 = vunpack.c.l.b16 %v2297
        %v2314 = vunpack.c.l.b16 %v2298
        %v2315 = vunpack.c.l.b16 %v2299
        %v2316 = vunpack.c.l.b16 %v2300
        %v2317 = vunpack.c.l.b16 %v2301
        %v2318 = vunpack.c.l.b16 %v2302
        %v2319 = vpack.c.b16 %v2312, %v2311
        %v2320 = vpack.c.b16 %v2314, %v2313
        %v2321 = vpack.c.b16 %v2316, %v2315
        %v2322 = vpack.c.b16 %v2318, %v2317
        %v2339 = vunpack.c.l.b16 %v2278
        %v2340 = vunpack.c.h.b16 %v2278
        %v2341 = vunpack.c.l.b16 %v2279
        %v2342 = vunpack.c.l.b16 %v2280
        %v2343 = vunpack.c.h.b16 %v2280
        %v2344 = vunpack.c.l.b16 %v2281
        %v2345 = vunpack.c.l.b16 %v2282
        %v2346 = vunpack.c.h.b16 %v2282
        %v2347 = vunpack.c.l.b16 %v2283
        %v2348 = vunpack.c.l.b16 %v2284
        %v2349 = vunpack.c.h.b16 %v2284
        %v2350 = vunpack.c.l.b16 %v2285
        %v2351 = vunpack.c.l.b16 %v2286
        %v2352 = vunpack.c.h.b16 %v2286
        %v2353 = vunpack.c.l.b16 %v2287
        %v2354 = vunpack.c.l.b16 %v2288
        %v2355 = vunpack.c.h.b16 %v2288
        %v2356 = vunpack.c.l.b16 %v2289
        %v2357 = vunpack.c.l.b16 %v2290
        %v2358 = vunpack.c.h.b16 %v2290
        %v2359 = vunpack.c.l.b16 %v2291
        %v2360 = vunpack.c.l.b16 %v2292
        %v2361 = vunpack.c.h.b16 %v2292
        %v2362 = vunpack.c.l.b16 %v2293
        %v2363 = vpack.c.b16 %v2342, %v2339
        %v2364 = vpack.c.b16 %v2343, %v2340
        %v2365 = vpack.c.b16 %v2344, %v2341
        %v2366 = vpack.c.b16 %v2348, %v2345
        %v2367 = vpack.c.b16 %v2349, %v2346
        %v2368 = vpack.c.b16 %v2350, %v2347
        %v2369 = vpack.c.b16 %v2354, %v2351
        %v2370 = vpack.c.b16 %v2355, %v2352
        %v2371 = vpack.c.b16 %v2356, %v2353
        %v2372 = vpack.c.b16 %v2360, %v2357
        %v2373 = vpack.c.b16 %v2361, %v2358
        %v2374 = vpack.c.b16 %v2362, %v2359
        %2375 = vrot.lane.b32.xlu0 %v2363, 64
        %v2376 = vpop.permute.xlu0 %2375
        %2377 = vrot.lane.b32.xlu0 %v2364, 64
        %v2378 = vpop.permute.xlu0 %2377
        %2379 = vrot.lane.b32.xlu0 %v2365, 64
        %v2380 = vpop.permute.xlu0 %2379
        %2381 = vrot.lane.b32.xlu0 %v2366, 64
        %v2382 = vpop.permute.xlu0 %2381
        %2383 = vrot.lane.b32.xlu0 %v2367, 64
        %v2384 = vpop.permute.xlu0 %2383
        %2385 = vrot.lane.b32.xlu0 %v2368, 64
        %v2386 = vpop.permute.xlu0 %2385
        %2387 = vrot.lane.b32.xlu0 %v2369, 64
        %v2388 = vpop.permute.xlu0 %2387
        %2389 = vrot.lane.b32.xlu0 %v2370, 64
        %v2390 = vpop.permute.xlu0 %2389
        %2391 = vrot.lane.b32.xlu0 %v2371, 64
        %v2392 = vpop.permute.xlu0 %2391
        %2393 = vrot.lane.b32.xlu0 %v2372, 64
        %v2394 = vpop.permute.xlu0 %2393
        %2395 = vrot.lane.b32.xlu0 %v2373, 64
        %v2396 = vpop.permute.xlu0 %2395
        %2397 = vrot.lane.b32.xlu0 %v2374, 64
        %v2398 = vpop.permute.xlu0 %2397
        %v2399 = vsel %vm2274, %v2376, %v2378
        %v2400 = vsel %vm2274, %v2378, %v2380
        %v2401 = vsel %vm2274, %v2382, %v2384
        %v2402 = vsel %vm2274, %v2384, %v2386
        %v2403 = vsel %vm2274, %v2388, %v2390
        %v2404 = vsel %vm2274, %v2390, %v2392
        %v2405 = vsel %vm2274, %v2394, %v2396
        %v2406 = vsel %vm2274, %v2396, %v2398
        %v2416 = vsel %vm1018, %v2319, 0
        %v2419 = vsel %vm1018, %v2320, 0
        %v2422 = vsel %vm1018, %v2321, 0
        %v2425 = vsel %vm1018, %v2322, 0
        %2427 = vmatprep.subr.bf16.mxu0 0
        %2428 = vmatpush1.bf16.msra.mxu0 0
        %2429 = vmatprep.subr.bf16.mxu0 0
        %2430 = vmatpush1.bf16.msra.mxu0 0
        %2431 = vmatprep.subr.bf16.mxu0 0
        %2432 = vmatpush1.bf16.msra.mxu0 0
        %2433 = vmatprep.subr.bf16.mxu0 0
        %2434 = vmatpush1.bf16.msra.mxu0 0
        %2435 = vmatprep.subr.bf16.mxu0 %v2406
        %2436 = vmatpush1.bf16.msra.mxu0 %v2405
        %2437 = vmatprep.subr.bf16.mxu0 %v2404
        %2438 = vmatpush1.bf16.msra.mxu0 %v2403
        %2439 = vmatprep.subr.bf16.mxu0 %v2402
        %2440 = vmatpush1.bf16.msra.mxu0 %v2401
        %2441 = vmatprep.subr.bf16.mxu0 %v2400
        %2442 = vmatpush1.bf16.msra.mxu0 %v2399
        %2443 = vmatprep.subr.bf16.mxu0 0
        %2444 = vmatpush2.bf16.msra.mxu0 0
        %2445 = vmatprep.subr.bf16.mxu0 0
        %2446 = vmatpush2.bf16.msra.mxu0 0
        %2447 = vmatprep.subr.bf16.mxu0 0
        %2448 = vmatpush2.bf16.msra.mxu0 0
        %2449 = vmatprep.subr.bf16.mxu0 0
        %2450 = vmatpush2.bf16.msra.mxu0 0
        %2451 = vmatprep.subr.bf16.mxu0 0
        %2452 = vmatpush2.bf16.msra.mxu0 0
        %2453 = vmatprep.subr.bf16.mxu0 0
        %2454 = vmatpush2.bf16.msra.mxu0 0
        %2455 = vmatprep.subr.bf16.mxu0 0
        %2456 = vmatpush2.bf16.msra.mxu0 0
        %2457 = vmatprep.subr.bf16.mxu0 0
        %2458 = vmatpush2.bf16.msra.mxu0 0
        %2459 = vmatprep.mubr.bf16.mxu0 0
        %2460 = vmatmul.mubr.bf16.gmra.mxu0 %v2416
        %v2461 = vpop.f32.mrf.mxu0
        %v2462 = vadd.f32 0.0, %v2461
        %v2463 = vpop.f32.mrf.mxu0
        %v2464 = vadd.f32 0.0, %v2463
        %v2465 = vpop.f32.mrf.mxu0
        %v2466 = vadd.f32 0.0, %v2465
        %v2467 = vpop.f32.mrf.mxu0
        %v2468 = vadd.f32 0.0, %v2467
        %2469 = vmatprep.mubr.bf16.mxu0 0
        %2470 = vmatmul.mubr.bf16.gmra.mxu0 %v2419
        %v2471 = vpop.f32.mrf.mxu0
        %v2472 = vadd.f32 0.0, %v2471
        %v2473 = vpop.f32.mrf.mxu0
        %v2474 = vadd.f32 0.0, %v2473
        %v2475 = vpop.f32.mrf.mxu0
        %v2476 = vadd.f32 0.0, %v2475
        %v2477 = vpop.f32.mrf.mxu0
        %v2478 = vadd.f32 0.0, %v2477
        %2479 = vmatprep.mubr.bf16.mxu0 0
        %2480 = vmatmul.mubr.bf16.gmra.mxu0 %v2422
        %v2481 = vpop.f32.mrf.mxu0
        %v2482 = vadd.f32 0.0, %v2481
        %v2483 = vpop.f32.mrf.mxu0
        %v2484 = vadd.f32 0.0, %v2483
        %v2485 = vpop.f32.mrf.mxu0
        %v2486 = vadd.f32 0.0, %v2485
        %v2487 = vpop.f32.mrf.mxu0
        %v2488 = vadd.f32 0.0, %v2487
        %2489 = vmatprep.mubr.bf16.mxu0 0
        %2490 = vmatmul.mubr.bf16.gmra.mxu0 %v2425
        %v2491 = vpop.f32.mrf.mxu0
        %v2492 = vadd.f32 0.0, %v2491
        %v2493 = vpop.f32.mrf.mxu0
        %v2494 = vadd.f32 0.0, %v2493
        %v2495 = vpop.f32.mrf.mxu0
        %v2496 = vadd.f32 0.0, %v2495
        %v2497 = vpop.f32.mrf.mxu0
        %v2498 = vadd.f32 0.0, %v2497
        %2499 = vdwg.mxu0
        %v2500 = vadd.f32 %v2255, %v2462
        %v2501 = vadd.f32 %v2256, %v2464
        %v2502 = vadd.f32 %v2257, %v2466
        %v2503 = vadd.f32 %v2258, %v2468
        %v2504 = vadd.f32 %v2259, %v2472
        %v2505 = vadd.f32 %v2260, %v2474
        %v2506 = vadd.f32 %v2261, %v2476
        %v2507 = vadd.f32 %v2262, %v2478
        %v2508 = vadd.f32 %v2263, %v2482
        %v2509 = vadd.f32 %v2264, %v2484
        %v2510 = vadd.f32 %v2265, %v2486
        %v2511 = vadd.f32 %v2266, %v2488
        %v2512 = vadd.f32 %v2267, %v2492
        %v2513 = vadd.f32 %v2268, %v2494
        %v2514 = vadd.f32 %v2269, %v2496
        %v2515 = vadd.f32 %v2270, %v2498
        %s2516 = scalar_lea.vmem %s3, 224
        %v2517 = vld [vmem:[%s2516] sm:$0xf]
        %v2518 = vld [vmem:[%s2516 + $0x4] sm:$0xf]
        %v2519 = vld [vmem:[%s2516 + $0x8] sm:$0xf]
        %v2520 = vld [vmem:[%s2516 + $0xc] sm:$0xf]
        %v2521 = vld [vmem:[%s2516 + $0x10] sm:$0xf]
        %v2522 = vld [vmem:[%s2516 + $0x14] sm:$0xf]
        %v2523 = vld [vmem:[%s2516 + $0x18] sm:$0xf]
        %v2524 = vld [vmem:[%s2516 + $0x1c] sm:$0xf]
        %v2533 = vunpack.c.l.b16 %v2517
        %v2534 = vunpack.c.l.b16 %v2518
        %v2535 = vunpack.c.l.b16 %v2519
        %v2536 = vunpack.c.l.b16 %v2520
        %v2537 = vunpack.c.l.b16 %v2521
        %v2538 = vunpack.c.l.b16 %v2522
        %v2539 = vunpack.c.l.b16 %v2523
        %v2540 = vunpack.c.l.b16 %v2524
        %v2541 = vpack.c.b16 %v2534, %v2533
        %v2542 = vpack.c.b16 %v2536, %v2535
        %v2543 = vpack.c.b16 %v2538, %v2537
        %v2544 = vpack.c.b16 %v2540, %v2539
        %2545 = vrot.lane.b32.xlu0 %v1871, 62
        %v2546 = vpop.permute.xlu0 %2545
        %2547 = vrot.lane.b32.xlu0 %v1872, 62
        %v2548 = vpop.permute.xlu0 %2547
        %2549 = vrot.lane.b32.xlu0 %v1873, 62
        %v2550 = vpop.permute.xlu0 %2549
        %2551 = vrot.lane.b32.xlu0 %v1874, 62
        %v2552 = vpop.permute.xlu0 %2551
        %2553 = vrot.lane.b32.xlu0 %v1875, 62
        %v2554 = vpop.permute.xlu0 %2553
        %2555 = vrot.lane.b32.xlu0 %v1876, 62
        %v2556 = vpop.permute.xlu0 %2555
        %2557 = vrot.lane.b32.xlu0 %v1877, 62
        %v2558 = vpop.permute.xlu0 %2557
        %2559 = vrot.lane.b32.xlu0 %v1878, 62
        %v2560 = vpop.permute.xlu0 %2559
        %2561 = vrot.lane.b32.xlu0 %v1879, 62
        %v2562 = vpop.permute.xlu0 %2561
        %2563 = vrot.lane.b32.xlu0 %v1880, 62
        %v2564 = vpop.permute.xlu0 %2563
        %2565 = vrot.lane.b32.xlu0 %v1881, 62
        %v2566 = vpop.permute.xlu0 %2565
        %2567 = vrot.lane.b32.xlu0 %v1882, 62
        %v2568 = vpop.permute.xlu0 %2567
        %vm2569 = vcmask 506880
        %v2570 = vsel %vm2569, %v2546, %v2548
        %v2571 = vsel %vm2569, %v2548, %v2550
        %v2572 = vsel %vm2569, %v2552, %v2554
        %v2573 = vsel %vm2569, %v2554, %v2556
        %v2574 = vsel %vm2569, %v2558, %v2560
        %v2575 = vsel %vm2569, %v2560, %v2562
        %v2576 = vsel %vm2569, %v2564, %v2566
        %v2577 = vsel %vm2569, %v2566, %v2568
        %v2587 = vsel %vm1018, %v2541, 0
        %v2590 = vsel %vm1018, %v2542, 0
        %v2593 = vsel %vm1018, %v2543, 0
        %v2596 = vsel %vm1018, %v2544, 0
        %2598 = vmatprep.subr.bf16.mxu0 0
        %2599 = vmatpush1.bf16.msra.mxu0 0
        %2600 = vmatprep.subr.bf16.mxu0 0
        %2601 = vmatpush1.bf16.msra.mxu0 0
        %2602 = vmatprep.subr.bf16.mxu0 0
        %2603 = vmatpush1.bf16.msra.mxu0 0
        %2604 = vmatprep.subr.bf16.mxu0 0
        %2605 = vmatpush1.bf16.msra.mxu0 0
        %2606 = vmatprep.subr.bf16.mxu0 %v2577
        %2607 = vmatpush1.bf16.msra.mxu0 %v2576
        %2608 = vmatprep.subr.bf16.mxu0 %v2575
        %2609 = vmatpush1.bf16.msra.mxu0 %v2574
        %2610 = vmatprep.subr.bf16.mxu0 %v2573
        %2611 = vmatpush1.bf16.msra.mxu0 %v2572
        %2612 = vmatprep.subr.bf16.mxu0 %v2571
        %2613 = vmatpush1.bf16.msra.mxu0 %v2570
        %2614 = vmatprep.subr.bf16.mxu0 0
        %2615 = vmatpush2.bf16.msra.mxu0 0
        %2616 = vmatprep.subr.bf16.mxu0 0
        %2617 = vmatpush2.bf16.msra.mxu0 0
        %2618 = vmatprep.subr.bf16.mxu0 0
        %2619 = vmatpush2.bf16.msra.mxu0 0
        %2620 = vmatprep.subr.bf16.mxu0 0
        %2621 = vmatpush2.bf16.msra.mxu0 0
        %2622 = vmatprep.subr.bf16.mxu0 0
        %2623 = vmatpush2.bf16.msra.mxu0 0
        %2624 = vmatprep.subr.bf16.mxu0 0
        %2625 = vmatpush2.bf16.msra.mxu0 0
        %2626 = vmatprep.subr.bf16.mxu0 0
        %2627 = vmatpush2.bf16.msra.mxu0 0
        %2628 = vmatprep.subr.bf16.mxu0 0
        %2629 = vmatpush2.bf16.msra.mxu0 0
        %2630 = vmatprep.mubr.bf16.mxu0 0
        %2631 = vmatmul.mubr.bf16.gmra.mxu0 %v2587
        %v2632 = vpop.f32.mrf.mxu0
        %v2633 = vadd.f32 0.0, %v2632
        %v2634 = vpop.f32.mrf.mxu0
        %v2635 = vadd.f32 0.0, %v2634
        %v2636 = vpop.f32.mrf.mxu0
        %v2637 = vadd.f32 0.0, %v2636
        %v2638 = vpop.f32.mrf.mxu0
        %v2639 = vadd.f32 0.0, %v2638
        %2640 = vmatprep.mubr.bf16.mxu0 0
        %2641 = vmatmul.mubr.bf16.gmra.mxu0 %v2590
        %v2642 = vpop.f32.mrf.mxu0
        %v2643 = vadd.f32 0.0, %v2642
        %v2644 = vpop.f32.mrf.mxu0
        %v2645 = vadd.f32 0.0, %v2644
        %v2646 = vpop.f32.mrf.mxu0
        %v2647 = vadd.f32 0.0, %v2646
        %v2648 = vpop.f32.mrf.mxu0
        %v2649 = vadd.f32 0.0, %v2648
        %2650 = vmatprep.mubr.bf16.mxu0 0
        %2651 = vmatmul.mubr.bf16.gmra.mxu0 %v2593
        %v2652 = vpop.f32.mrf.mxu0
        %v2653 = vadd.f32 0.0, %v2652
        %v2654 = vpop.f32.mrf.mxu0
        %v2655 = vadd.f32 0.0, %v2654
        %v2656 = vpop.f32.mrf.mxu0
        %v2657 = vadd.f32 0.0, %v2656
        %v2658 = vpop.f32.mrf.mxu0
        %v2659 = vadd.f32 0.0, %v2658
        %2660 = vmatprep.mubr.bf16.mxu0 0
        %2661 = vmatmul.mubr.bf16.gmra.mxu0 %v2596
        %v2662 = vpop.f32.mrf.mxu0
        %v2663 = vadd.f32 0.0, %v2662
        %v2664 = vpop.f32.mrf.mxu0
        %v2665 = vadd.f32 0.0, %v2664
        %v2666 = vpop.f32.mrf.mxu0
        %v2667 = vadd.f32 0.0, %v2666
        %v2668 = vpop.f32.mrf.mxu0
        %v2669 = vadd.f32 0.0, %v2668
        %2670 = vdwg.mxu0
        %v2671 = vadd.f32 %v2500, %v2633
        %v2672 = vadd.f32 %v2501, %v2635
        %v2673 = vadd.f32 %v2502, %v2637
        %v2674 = vadd.f32 %v2503, %v2639
        %v2675 = vadd.f32 %v2504, %v2643
        %v2676 = vadd.f32 %v2505, %v2645
        %v2677 = vadd.f32 %v2506, %v2647
        %v2678 = vadd.f32 %v2507, %v2649
        %v2679 = vadd.f32 %v2508, %v2653
        %v2680 = vadd.f32 %v2509, %v2655
        %v2681 = vadd.f32 %v2510, %v2657
        %v2682 = vadd.f32 %v2511, %v2659
        %v2683 = vadd.f32 %v2512, %v2663
        %v2684 = vadd.f32 %v2513, %v2665
        %v2685 = vadd.f32 %v2514, %v2667
        %v2686 = vadd.f32 %v2515, %v2669
        %2687 = vrot.lane.b32.xlu0 %v1293, 68
        %v2688 = vpop.permute.xlu0 %2687
        %v2689 = vrot.slane %v2688, 4
        %vm2690 = vcmask 556032
        %v2691 = vsel %vm2690, %v2689, %v2688
        %v2694 = vmul.bf16 %v1540, %v2691
        %v2695 = vmul.bf16 %v1541, %v2689
        %v2696 = vmul.bf16 %v1542, %v2691
        %v2697 = vmul.bf16 %v1543, %v2689
        %v2698 = vmul.bf16 %v1544, %v2691
        %v2699 = vmul.bf16 %v1545, %v2689
        %v2700 = vmul.bf16 %v1546, %v2691
        %v2701 = vmul.bf16 %v1547, %v2689
        %v2702 = vmul.bf16 %v1548, %v2691
        %v2703 = vmul.bf16 %v1549, %v2689
        %v2704 = vmul.bf16 %v1550, %v2691
        %v2705 = vmul.bf16 %v1551, %v2689
        %v2706 = vmul.bf16 %v1552, %v2691
        %v2707 = vmul.bf16 %v1553, %v2689
        %v2708 = vmul.bf16 %v1554, %v2691
        %v2709 = vmul.bf16 %v1555, %v2689
        %s2710 = scalar_lea.vmem %s3, 256
        %v2711 = vld [vmem:[%s2710] sm:$0xf]
        %v2712 = vld [vmem:[%s2710 + $0x4] sm:$0xf]
        %v2713 = vld [vmem:[%s2710 + $0x8] sm:$0xf]
        %v2714 = vld [vmem:[%s2710 + $0xc] sm:$0xf]
        %v2715 = vld [vmem:[%s2710 + $0x10] sm:$0xf]
        %v2716 = vld [vmem:[%s2710 + $0x14] sm:$0xf]
        %v2717 = vld [vmem:[%s2710 + $0x18] sm:$0xf]
        %v2718 = vld [vmem:[%s2710 + $0x1c] sm:$0xf]
        %v2727 = vunpack.c.l.b16 %v2711
        %v2728 = vunpack.c.l.b16 %v2712
        %v2729 = vunpack.c.l.b16 %v2713
        %v2730 = vunpack.c.l.b16 %v2714
        %v2731 = vunpack.c.l.b16 %v2715
        %v2732 = vunpack.c.l.b16 %v2716
        %v2733 = vunpack.c.l.b16 %v2717
        %v2734 = vunpack.c.l.b16 %v2718
        %v2735 = vpack.c.b16 %v2728, %v2727
        %v2736 = vpack.c.b16 %v2730, %v2729
        %v2737 = vpack.c.b16 %v2732, %v2731
        %v2738 = vpack.c.b16 %v2734, %v2733
        %v2755 = vunpack.c.l.b16 %v2694
        %v2756 = vunpack.c.h.b16 %v2694
        %v2757 = vunpack.c.l.b16 %v2695
        %v2758 = vunpack.c.l.b16 %v2696
        %v2759 = vunpack.c.h.b16 %v2696
        %v2760 = vunpack.c.l.b16 %v2697
        %v2761 = vunpack.c.l.b16 %v2698
        %v2762 = vunpack.c.h.b16 %v2698
        %v2763 = vunpack.c.l.b16 %v2699
        %v2764 = vunpack.c.l.b16 %v2700
        %v2765 = vunpack.c.h.b16 %v2700
        %v2766 = vunpack.c.l.b16 %v2701
        %v2767 = vunpack.c.l.b16 %v2702
        %v2768 = vunpack.c.h.b16 %v2702
        %v2769 = vunpack.c.l.b16 %v2703
        %v2770 = vunpack.c.l.b16 %v2704
        %v2771 = vunpack.c.h.b16 %v2704
        %v2772 = vunpack.c.l.b16 %v2705
        %v2773 = vunpack.c.l.b16 %v2706
        %v2774 = vunpack.c.h.b16 %v2706
        %v2775 = vunpack.c.l.b16 %v2707
        %v2776 = vunpack.c.l.b16 %v2708
        %v2777 = vunpack.c.h.b16 %v2708
        %v2778 = vunpack.c.l.b16 %v2709
        %v2779 = vpack.c.b16 %v2758, %v2755
        %v2780 = vpack.c.b16 %v2759, %v2756
        %v2781 = vpack.c.b16 %v2760, %v2757
        %v2782 = vpack.c.b16 %v2764, %v2761
        %v2783 = vpack.c.b16 %v2765, %v2762
        %v2784 = vpack.c.b16 %v2766, %v2763
        %v2785 = vpack.c.b16 %v2770, %v2767
        %v2786 = vpack.c.b16 %v2771, %v2768
        %v2787 = vpack.c.b16 %v2772, %v2769
        %v2788 = vpack.c.b16 %v2776, %v2773
        %v2789 = vpack.c.b16 %v2777, %v2774
        %v2790 = vpack.c.b16 %v2778, %v2775
        %2791 = vrot.lane.b32.xlu0 %v2779, 60
        %v2792 = vpop.permute.xlu0 %2791
        %2793 = vrot.lane.b32.xlu0 %v2780, 60
        %v2794 = vpop.permute.xlu0 %2793
        %2795 = vrot.lane.b32.xlu0 %v2781, 60
        %v2796 = vpop.permute.xlu0 %2795
        %2797 = vrot.lane.b32.xlu0 %v2782, 60
        %v2798 = vpop.permute.xlu0 %2797
        %2799 = vrot.lane.b32.xlu0 %v2783, 60
        %v2800 = vpop.permute.xlu0 %2799
        %2801 = vrot.lane.b32.xlu0 %v2784, 60
        %v2802 = vpop.permute.xlu0 %2801
        %2803 = vrot.lane.b32.xlu0 %v2785, 60
        %v2804 = vpop.permute.xlu0 %2803
        %2805 = vrot.lane.b32.xlu0 %v2786, 60
        %v2806 = vpop.permute.xlu0 %2805
        %2807 = vrot.lane.b32.xlu0 %v2787, 60
        %v2808 = vpop.permute.xlu0 %2807
        %2809 = vrot.lane.b32.xlu0 %v2788, 60
        %v2810 = vpop.permute.xlu0 %2809
        %2811 = vrot.lane.b32.xlu0 %v2789, 60
        %v2812 = vpop.permute.xlu0 %2811
        %2813 = vrot.lane.b32.xlu0 %v2790, 60
        %v2814 = vpop.permute.xlu0 %2813
        %vm2815 = vcmask 490496
        %v2816 = vsel %vm2815, %v2792, %v2794
        %v2817 = vsel %vm2815, %v2794, %v2796
        %v2818 = vsel %vm2815, %v2798, %v2800
        %v2819 = vsel %vm2815, %v2800, %v2802
        %v2820 = vsel %vm2815, %v2804, %v2806
        %v2821 = vsel %vm2815, %v2806, %v2808
        %v2822 = vsel %vm2815, %v2810, %v2812
        %v2823 = vsel %vm2815, %v2812, %v2814
        %v2833 = vsel %vm1018, %v2735, 0
        %v2836 = vsel %vm1018, %v2736, 0
        %v2839 = vsel %vm1018, %v2737, 0
        %v2842 = vsel %vm1018, %v2738, 0
        %2844 = vmatprep.subr.bf16.mxu0 0
        %2845 = vmatpush1.bf16.msra.mxu0 0
        %2846 = vmatprep.subr.bf16.mxu0 0
        %2847 = vmatpush1.bf16.msra.mxu0 0
        %2848 = vmatprep.subr.bf16.mxu0 0
        %2849 = vmatpush1.bf16.msra.mxu0 0
        %2850 = vmatprep.subr.bf16.mxu0 0
        %2851 = vmatpush1.bf16.msra.mxu0 0
        %2852 = vmatprep.subr.bf16.mxu0 %v2823
        %2853 = vmatpush1.bf16.msra.mxu0 %v2822
        %2854 = vmatprep.subr.bf16.mxu0 %v2821
        %2855 = vmatpush1.bf16.msra.mxu0 %v2820
        %2856 = vmatprep.subr.bf16.mxu0 %v2819
        %2857 = vmatpush1.bf16.msra.mxu0 %v2818
        %2858 = vmatprep.subr.bf16.mxu0 %v2817
        %2859 = vmatpush1.bf16.msra.mxu0 %v2816
        %2860 = vmatprep.subr.bf16.mxu0 0
        %2861 = vmatpush2.bf16.msra.mxu0 0
        %2862 = vmatprep.subr.bf16.mxu0 0
        %2863 = vmatpush2.bf16.msra.mxu0 0
        %2864 = vmatprep.subr.bf16.mxu0 0
        %2865 = vmatpush2.bf16.msra.mxu0 0
        %2866 = vmatprep.subr.bf16.mxu0 0
        %2867 = vmatpush2.bf16.msra.mxu0 0
        %2868 = vmatprep.subr.bf16.mxu0 0
        %2869 = vmatpush2.bf16.msra.mxu0 0
        %2870 = vmatprep.subr.bf16.mxu0 0
        %2871 = vmatpush2.bf16.msra.mxu0 0
        %2872 = vmatprep.subr.bf16.mxu0 0
        %2873 = vmatpush2.bf16.msra.mxu0 0
        %2874 = vmatprep.subr.bf16.mxu0 0
        %2875 = vmatpush2.bf16.msra.mxu0 0
        %2876 = vmatprep.mubr.bf16.mxu0 0
        %2877 = vmatmul.mubr.bf16.gmra.mxu0 %v2833
        %v2878 = vpop.f32.mrf.mxu0
        %v2879 = vadd.f32 0.0, %v2878
        %v2880 = vpop.f32.mrf.mxu0
        %v2881 = vadd.f32 0.0, %v2880
        %v2882 = vpop.f32.mrf.mxu0
        %v2883 = vadd.f32 0.0, %v2882
        %v2884 = vpop.f32.mrf.mxu0
        %v2885 = vadd.f32 0.0, %v2884
        %2886 = vmatprep.mubr.bf16.mxu0 0
        %2887 = vmatmul.mubr.bf16.gmra.mxu0 %v2836
        %v2888 = vpop.f32.mrf.mxu0
        %v2889 = vadd.f32 0.0, %v2888
        %v2890 = vpop.f32.mrf.mxu0
        %v2891 = vadd.f32 0.0, %v2890
        %v2892 = vpop.f32.mrf.mxu0
        %v2893 = vadd.f32 0.0, %v2892
        %v2894 = vpop.f32.mrf.mxu0
        %v2895 = vadd.f32 0.0, %v2894
        %2896 = vmatprep.mubr.bf16.mxu0 0
        %2897 = vmatmul.mubr.bf16.gmra.mxu0 %v2839
        %v2898 = vpop.f32.mrf.mxu0
        %v2899 = vadd.f32 0.0, %v2898
        %v2900 = vpop.f32.mrf.mxu0
        %v2901 = vadd.f32 0.0, %v2900
        %v2902 = vpop.f32.mrf.mxu0
        %v2903 = vadd.f32 0.0, %v2902
        %v2904 = vpop.f32.mrf.mxu0
        %v2905 = vadd.f32 0.0, %v2904
        %2906 = vmatprep.mubr.bf16.mxu0 0
        %2907 = vmatmul.mubr.bf16.gmra.mxu0 %v2842
        %v2908 = vpop.f32.mrf.mxu0
        %v2909 = vadd.f32 0.0, %v2908
        %v2910 = vpop.f32.mrf.mxu0
        %v2911 = vadd.f32 0.0, %v2910
        %v2912 = vpop.f32.mrf.mxu0
        %v2913 = vadd.f32 0.0, %v2912
        %v2914 = vpop.f32.mrf.mxu0
        %v2915 = vadd.f32 0.0, %v2914
        %2916 = vdwg.mxu0
        %v2917 = vadd.f32 %v2671, %v2879
        %v2918 = vadd.f32 %v2672, %v2881
        %v2919 = vadd.f32 %v2673, %v2883
        %v2920 = vadd.f32 %v2674, %v2885
        %v2921 = vadd.f32 %v2675, %v2889
        %v2922 = vadd.f32 %v2676, %v2891
        %v2923 = vadd.f32 %v2677, %v2893
        %v2924 = vadd.f32 %v2678, %v2895
        %v2925 = vadd.f32 %v2679, %v2899
        %v2926 = vadd.f32 %v2680, %v2901
        %v2927 = vadd.f32 %v2681, %v2903
        %v2928 = vadd.f32 %v2682, %v2905
        %v2929 = vadd.f32 %v2683, %v2909
        %v2930 = vadd.f32 %v2684, %v2911
        %v2931 = vadd.f32 %v2685, %v2913
        %v2932 = vadd.f32 %v2686, %v2915
        %v2933 = vld [vmem:[%s4] sm:$0xff]
        %v2934 = vld [vmem:[%s4 + $0x8] sm:$0xff]
        %v2935 = vld [vmem:[%s4 + $0x10] sm:$0xff]
        %v2936 = vld [vmem:[%s4 + $0x18] sm:$0xff]
        %v2937 = vld [vmem:[%s4 + $0x20] sm:$0xff]
        %v2938 = vld [vmem:[%s4 + $0x28] sm:$0xff]
        %v2939 = vld [vmem:[%s4 + $0x30] sm:$0xff]
        %v2940 = vld [vmem:[%s4 + $0x38] sm:$0xff]
        %2942 = vset.pattern.permute.xlu0 0
        %2943 = vperm.xlu0 %2942, %v2933
        %v2944 = vpop.permute.xlu0 %2943
        %2947 = vset.pattern.permute.xlu0 0
        %2948 = vperm.xlu0 %2947, %v2934
        %v2949 = vpop.permute.xlu0 %2948
        %2952 = vset.pattern.permute.xlu0 0
        %2953 = vperm.xlu0 %2952, %v2935
        %v2954 = vpop.permute.xlu0 %2953
        %2957 = vset.pattern.permute.xlu0 0
        %2958 = vperm.xlu0 %2957, %v2936
        %v2959 = vpop.permute.xlu0 %2958
        %2962 = vset.pattern.permute.xlu0 0
        %2963 = vperm.xlu0 %2962, %v2937
        %v2964 = vpop.permute.xlu0 %2963
        %2967 = vset.pattern.permute.xlu0 0
        %2968 = vperm.xlu0 %2967, %v2938
        %v2969 = vpop.permute.xlu0 %2968
        %2972 = vset.pattern.permute.xlu0 0
        %2973 = vperm.xlu0 %2972, %v2939
        %v2974 = vpop.permute.xlu0 %2973
        %2977 = vset.pattern.permute.xlu0 0
        %2978 = vperm.xlu0 %2977, %v2940
        %v2979 = vpop.permute.xlu0 %2978
        %v2981 = vadd.f32 %v2917, %v2944
        %v2982 = vadd.f32 %v2918, %v2944
        %v2983 = vadd.f32 %v2919, %v2949
        %v2984 = vadd.f32 %v2920, %v2949
        %v2985 = vadd.f32 %v2921, %v2954
        %v2986 = vadd.f32 %v2922, %v2954
        %v2987 = vadd.f32 %v2923, %v2959
        %v2988 = vadd.f32 %v2924, %v2959
        %v2989 = vadd.f32 %v2925, %v2964
        %v2990 = vadd.f32 %v2926, %v2964
        %v2991 = vadd.f32 %v2927, %v2969
        %v2992 = vadd.f32 %v2928, %v2969
        %v2993 = vadd.f32 %v2929, %v2974
        %v2994 = vadd.f32 %v2930, %v2974
        %v2995 = vadd.f32 %v2931, %v2979
        %v2996 = vadd.f32 %v2932, %v2979
        %v2997 = vmax.f32 %v2981, 0.0
        %v2998 = vmax.f32 %v2982, 0.0
        %v2999 = vmax.f32 %v2983, 0.0
        %v3000 = vmax.f32 %v2984, 0.0
        %v3001 = vmax.f32 %v2985, 0.0
        %v3002 = vmax.f32 %v2986, 0.0
        %v3003 = vmax.f32 %v2987, 0.0
        %v3004 = vmax.f32 %v2988, 0.0
        %v3005 = vmax.f32 %v2989, 0.0
        %v3006 = vmax.f32 %v2990, 0.0
        %v3007 = vmax.f32 %v2991, 0.0
        %v3008 = vmax.f32 %v2992, 0.0
        %v3009 = vmax.f32 %v2993, 0.0
        %v3010 = vmax.f32 %v2994, 0.0
        %v3011 = vmax.f32 %v2995, 0.0
        %v3012 = vmax.f32 %v2996, 0.0
        %v3013 = vld [vmem:[%s9] sm:$0xff]
        %v3014 = vld [vmem:[%s9 + $0x8] sm:$0xff]
        %v3015 = vld [vmem:[%s9 + $0x10] sm:$0xff]
        %v3016 = vld [vmem:[%s9 + $0x18] sm:$0xff]
        %v3017 = vld [vmem:[%s9 + $0x20] sm:$0xff]
        %v3018 = vld [vmem:[%s9 + $0x28] sm:$0xff]
        %v3019 = vld [vmem:[%s9 + $0x30] sm:$0xff]
        %v3020 = vld [vmem:[%s9 + $0x38] sm:$0xff]
        %v3021 = vld [vmem:[%s9 + $0x40] sm:$0xff]
        %v3022 = vld [vmem:[%s9 + $0x48] sm:$0xff]
        %v3023 = vld [vmem:[%s9 + $0x50] sm:$0xff]
        %v3024 = vld [vmem:[%s9 + $0x58] sm:$0xff]
        %v3025 = vld [vmem:[%s9 + $0x60] sm:$0xff]
        %v3026 = vld [vmem:[%s9 + $0x68] sm:$0xff]
        %v3027 = vld [vmem:[%s9 + $0x70] sm:$0xff]
        %v3028 = vld [vmem:[%s9 + $0x78] sm:$0xff]
        %v3029 = vld [vmem:[%s9 + $0x80] sm:$0xff]
        %v3030 = vld [vmem:[%s9 + $0x88] sm:$0xff]
        %v3031 = vld [vmem:[%s9 + $0x90] sm:$0xff]
        %v3032 = vld [vmem:[%s9 + $0x98] sm:$0xff]
        %v3033 = vld [vmem:[%s9 + $0xa0] sm:$0xff]
        %v3034 = vld [vmem:[%s9 + $0xa8] sm:$0xff]
        %v3035 = vld [vmem:[%s9 + $0xb0] sm:$0xff]
        %v3036 = vld [vmem:[%s9 + $0xb8] sm:$0xff]
        %v3037 = vld [vmem:[%s9 + $0xc0] sm:$0xff]
        %v3038 = vld [vmem:[%s9 + $0xc8] sm:$0xff]
        %v3039 = vld [vmem:[%s9 + $0xd0] sm:$0xff]
        %v3040 = vld [vmem:[%s9 + $0xd8] sm:$0xff]
        %v3041 = vld [vmem:[%s9 + $0xe0] sm:$0xff]
        %v3042 = vld [vmem:[%s9 + $0xe8] sm:$0xff]
        %v3043 = vld [vmem:[%s9 + $0xf0] sm:$0xff]
        %v3044 = vld [vmem:[%s9 + $0xf8] sm:$0xff]
        %v3045 = vld [vmem:[%s9 + $0x100] sm:$0xff]
        %v3046 = vld [vmem:[%s9 + $0x108] sm:$0xff]
        %v3047 = vld [vmem:[%s9 + $0x110] sm:$0xff]
        %v3048 = vld [vmem:[%s9 + $0x118] sm:$0xff]
        %v3049 = vld [vmem:[%s9 + $0x120] sm:$0xff]
        %v3050 = vld [vmem:[%s9 + $0x128] sm:$0xff]
        %v3051 = vld [vmem:[%s9 + $0x130] sm:$0xff]
        %v3052 = vld [vmem:[%s9 + $0x138] sm:$0xff]
        %v3053 = vld [vmem:[%s9 + $0x140] sm:$0xff]
        %v3054 = vld [vmem:[%s9 + $0x148] sm:$0xff]
        %v3055 = vld [vmem:[%s9 + $0x150] sm:$0xff]
        %v3056 = vld [vmem:[%s9 + $0x158] sm:$0xff]
        %v3057 = vld [vmem:[%s9 + $0x160] sm:$0xff]
        %v3058 = vld [vmem:[%s9 + $0x168] sm:$0xff]
        %v3059 = vld [vmem:[%s9 + $0x170] sm:$0xff]
        %v3060 = vld [vmem:[%s9 + $0x178] sm:$0xff]
        %v3061 = vld [vmem:[%s9 + $0x180] sm:$0xff]
        %v3062 = vld [vmem:[%s9 + $0x188] sm:$0xff]
        %v3063 = vld [vmem:[%s9 + $0x190] sm:$0xff]
        %v3064 = vld [vmem:[%s9 + $0x198] sm:$0xff]
        %v3065 = vld [vmem:[%s9 + $0x1a0] sm:$0xff]
        %v3066 = vld [vmem:[%s9 + $0x1a8] sm:$0xff]
        %v3067 = vld [vmem:[%s9 + $0x1b0] sm:$0xff]
        %v3068 = vld [vmem:[%s9 + $0x1b8] sm:$0xff]
        %v3069 = vld [vmem:[%s9 + $0x1c0] sm:$0xff]
        %v3070 = vld [vmem:[%s9 + $0x1c8] sm:$0xff]
        %v3071 = vld [vmem:[%s9 + $0x1d0] sm:$0xff]
        %v3072 = vld [vmem:[%s9 + $0x1d8] sm:$0xff]
        %v3073 = vld [vmem:[%s9 + $0x1e0] sm:$0xff]
        %v3074 = vld [vmem:[%s9 + $0x1e8] sm:$0xff]
        %v3075 = vld [vmem:[%s9 + $0x1f0] sm:$0xff]
        %v3076 = vld [vmem:[%s9 + $0x1f8] sm:$0xff]
        %v3077 = vld [vmem:[%s9 + $0x200] sm:$0xff]
        %v3078 = vld [vmem:[%s9 + $0x208] sm:$0xff]
        %v3079 = vld [vmem:[%s9 + $0x210] sm:$0xff]
        %v3080 = vld [vmem:[%s9 + $0x218] sm:$0xff]
        %v3081 = vld [vmem:[%s9 + $0x220] sm:$0xff]
        %v3082 = vld [vmem:[%s9 + $0x228] sm:$0xff]
        %v3083 = vld [vmem:[%s9 + $0x230] sm:$0xff]
        %v3084 = vld [vmem:[%s9 + $0x238] sm:$0xff]
        %v3085 = vld [vmem:[%s9 + $0x240] sm:$0xff]
        %v3086 = vld [vmem:[%s9 + $0x248] sm:$0xff]
        %v3087 = vld [vmem:[%s9 + $0x250] sm:$0xff]
        %v3088 = vld [vmem:[%s9 + $0x258] sm:$0xff]
        %v3089 = vld [vmem:[%s9 + $0x260] sm:$0xff]
        %v3090 = vld [vmem:[%s9 + $0x268] sm:$0xff]
        %v3091 = vld [vmem:[%s9 + $0x270] sm:$0xff]
        %v3092 = vld [vmem:[%s9 + $0x278] sm:$0xff]
        %v3093 = vld [vmem:[%s9 + $0x280] sm:$0xff]
        %v3094 = vld [vmem:[%s9 + $0x288] sm:$0xff]
        %v3095 = vld [vmem:[%s9 + $0x290] sm:$0xff]
        %v3096 = vld [vmem:[%s9 + $0x298] sm:$0xff]
        %v3097 = vld [vmem:[%s9 + $0x2a0] sm:$0xff]
        %v3098 = vld [vmem:[%s9 + $0x2a8] sm:$0xff]
        %v3099 = vld [vmem:[%s9 + $0x2b0] sm:$0xff]
        %v3100 = vld [vmem:[%s9 + $0x2b8] sm:$0xff]
        %v3101 = vld [vmem:[%s9 + $0x2c0] sm:$0xff]
        %v3102 = vld [vmem:[%s9 + $0x2c8] sm:$0xff]
        %v3103 = vld [vmem:[%s9 + $0x2d0] sm:$0xff]
        %v3104 = vld [vmem:[%s9 + $0x2d8] sm:$0xff]
        %v3105 = vld [vmem:[%s9 + $0x2e0] sm:$0xff]
        %v3106 = vld [vmem:[%s9 + $0x2e8] sm:$0xff]
        %v3107 = vld [vmem:[%s9 + $0x2f0] sm:$0xff]
        %v3108 = vld [vmem:[%s9 + $0x2f8] sm:$0xff]
        %3109 = vmatprep.subr.mxu0 %v3059
        %3110 = vmatpush1.msra.mxu0 %v3058
        %3111 = vmatprep.subr.mxu0 %v3056
        %3112 = vmatpush1.msra.mxu0 %v3055
        %3113 = vmatprep.subr.mxu0 %v3053
        %3114 = vmatpush1.msra.mxu0 %v3052
        %3115 = vmatprep.subr.mxu0 %v3050
        %3116 = vmatpush1.msra.mxu0 %v3049
        %3117 = vmatprep.subr.mxu0 %v3047
        %3118 = vmatpush1.msra.mxu0 %v3046
        %3119 = vmatprep.subr.mxu0 %v3044
        %3120 = vmatpush1.msra.mxu0 %v3043
        %3121 = vmatprep.subr.mxu0 %v3041
        %3122 = vmatpush1.msra.mxu0 %v3040
        %3123 = vmatprep.subr.mxu0 %v3038
        %3124 = vmatpush1.msra.mxu0 %v3037
        %3125 = vmatprep.subr.mxu0 %v3035
        %3126 = vmatpush1.msra.mxu0 %v3034
        %3127 = vmatprep.subr.mxu0 %v3032
        %3128 = vmatpush1.msra.mxu0 %v3031
        %3129 = vmatprep.subr.mxu0 %v3029
        %3130 = vmatpush1.msra.mxu0 %v3028
        %3131 = vmatprep.subr.mxu0 %v3026
        %3132 = vmatpush1.msra.mxu0 %v3025
        %3133 = vmatprep.subr.mxu0 %v3023
        %3134 = vmatpush1.msra.mxu0 %v3022
        %3135 = vmatprep.subr.mxu0 %v3020
        %3136 = vmatpush1.msra.mxu0 %v3019
        %3137 = vmatprep.subr.mxu0 %v3017
        %3138 = vmatpush1.msra.mxu0 %v3016
        %3139 = vmatprep.subr.mxu0 %v3014
        %3140 = vmatpush1.msra.mxu0 %v3013
        %3141 = vmatprep.subr.mxu0 %v3107
        %3142 = vmatpush2.msra.mxu0 %v3106
        %3143 = vmatprep.subr.mxu0 %v3104
        %3144 = vmatpush2.msra.mxu0 %v3103
        %3145 = vmatprep.subr.mxu0 %v3101
        %3146 = vmatpush2.msra.mxu0 %v3100
        %3147 = vmatprep.subr.mxu0 %v3098
        %3148 = vmatpush2.msra.mxu0 %v3097
        %3149 = vmatprep.subr.mxu0 %v3095
        %3150 = vmatpush2.msra.mxu0 %v3094
        %3151 = vmatprep.subr.mxu0 %v3092
        %3152 = vmatpush2.msra.mxu0 %v3091
        %3153 = vmatprep.subr.mxu0 %v3089
        %3154 = vmatpush2.msra.mxu0 %v3088
        %3155 = vmatprep.subr.mxu0 %v3086
        %3156 = vmatpush2.msra.mxu0 %v3085
        %3157 = vmatprep.subr.mxu0 %v3083
        %3158 = vmatpush2.msra.mxu0 %v3082
        %3159 = vmatprep.subr.mxu0 %v3080
        %3160 = vmatpush2.msra.mxu0 %v3079
        %3161 = vmatprep.subr.mxu0 %v3077
        %3162 = vmatpush2.msra.mxu0 %v3076
        %3163 = vmatprep.subr.mxu0 %v3074
        %3164 = vmatpush2.msra.mxu0 %v3073
        %3165 = vmatprep.subr.mxu0 %v3071
        %3166 = vmatpush2.msra.mxu0 %v3070
        %3167 = vmatprep.subr.mxu0 %v3068
        %3168 = vmatpush2.msra.mxu0 %v3067
        %3169 = vmatprep.subr.mxu0 %v3065
        %3170 = vmatpush2.msra.mxu0 %v3064
        %3171 = vmatprep.subr.mxu0 %v3062
        %3172 = vmatpush2.msra.mxu0 %v3061
        %3173 = vmatprep.mubr.f32.mxu0 %v2998
        %3174 = vmatmul.mubr.f32.gmra.mxu0 %v2997
        %v3175 = vpop.f32.mrf.mxu0
        %v3176 = vadd.f32 0.0, %v3175
        %v3177 = vpop.f32.mrf.mxu0
        %v3178 = vadd.f32 0.0, %v3177
        %3179 = vmatprep.mubr.f32.mxu0 %v3000
        %3180 = vmatmul.mubr.f32.gmra.mxu0 %v2999
        %v3181 = vpop.f32.mrf.mxu0
        %v3182 = vadd.f32 0.0, %v3181
        %v3183 = vpop.f32.mrf.mxu0
        %v3184 = vadd.f32 0.0, %v3183
        %3185 = vmatprep.mubr.f32.mxu0 %v3002
        %3186 = vmatmul.mubr.f32.gmra.mxu0 %v3001
        %v3187 = vpop.f32.mrf.mxu0
        %v3188 = vadd.f32 0.0, %v3187
        %v3189 = vpop.f32.mrf.mxu0
        %v3190 = vadd.f32 0.0, %v3189
        %3191 = vmatprep.mubr.f32.mxu0 %v3004
        %3192 = vmatmul.mubr.f32.gmra.mxu0 %v3003
        %v3193 = vpop.f32.mrf.mxu0
        %v3194 = vadd.f32 0.0, %v3193
        %v3195 = vpop.f32.mrf.mxu0
        %v3196 = vadd.f32 0.0, %v3195
        %3197 = vmatprep.mubr.f32.mxu0 %v3006
        %3198 = vmatmul.mubr.f32.gmra.mxu0 %v3005
        %v3199 = vpop.f32.mrf.mxu0
        %v3200 = vadd.f32 0.0, %v3199
        %v3201 = vpop.f32.mrf.mxu0
        %v3202 = vadd.f32 0.0, %v3201
        %3203 = vmatprep.mubr.f32.mxu0 %v3008
        %3204 = vmatmul.mubr.f32.gmra.mxu0 %v3007
        %v3205 = vpop.f32.mrf.mxu0
        %v3206 = vadd.f32 0.0, %v3205
        %v3207 = vpop.f32.mrf.mxu0
        %v3208 = vadd.f32 0.0, %v3207
        %3209 = vmatprep.mubr.f32.mxu0 %v3010
        %3210 = vmatmul.mubr.f32.gmra.mxu0 %v3009
        %v3211 = vpop.f32.mrf.mxu0
        %v3212 = vadd.f32 0.0, %v3211
        %v3213 = vpop.f32.mrf.mxu0
        %v3214 = vadd.f32 0.0, %v3213
        %3215 = vmatprep.mubr.f32.mxu0 %v3012
        %3216 = vmatmul.mubr.f32.gmra.mxu0 %v3011
        %v3217 = vpop.f32.mrf.mxu0
        %v3218 = vadd.f32 0.0, %v3217
        %v3219 = vpop.f32.mrf.mxu0
        %v3220 = vadd.f32 0.0, %v3219
        %3221 = vdwg.mxu0
        %3222 = vmatprep.subr.mxu0 0.0
        %3223 = vmatpush1.msra.mxu0 %v3060
        %3224 = vmatprep.subr.mxu0 0.0
        %3225 = vmatpush1.msra.mxu0 %v3057
        %3226 = vmatprep.subr.mxu0 0.0
        %3227 = vmatpush1.msra.mxu0 %v3054
        %3228 = vmatprep.subr.mxu0 0.0
        %3229 = vmatpush1.msra.mxu0 %v3051
        %3230 = vmatprep.subr.mxu0 0.0
        %3231 = vmatpush1.msra.mxu0 %v3048
        %3232 = vmatprep.subr.mxu0 0.0
        %3233 = vmatpush1.msra.mxu0 %v3045
        %3234 = vmatprep.subr.mxu0 0.0
        %3235 = vmatpush1.msra.mxu0 %v3042
        %3236 = vmatprep.subr.mxu0 0.0
        %3237 = vmatpush1.msra.mxu0 %v3039
        %3238 = vmatprep.subr.mxu0 0.0
        %3239 = vmatpush1.msra.mxu0 %v3036
        %3240 = vmatprep.subr.mxu0 0.0
        %3241 = vmatpush1.msra.mxu0 %v3033
        %3242 = vmatprep.subr.mxu0 0.0
        %3243 = vmatpush1.msra.mxu0 %v3030
        %3244 = vmatprep.subr.mxu0 0.0
        %3245 = vmatpush1.msra.mxu0 %v3027
        %3246 = vmatprep.subr.mxu0 0.0
        %3247 = vmatpush1.msra.mxu0 %v3024
        %3248 = vmatprep.subr.mxu0 0.0
        %3249 = vmatpush1.msra.mxu0 %v3021
        %3250 = vmatprep.subr.mxu0 0.0
        %3251 = vmatpush1.msra.mxu0 %v3018
        %3252 = vmatprep.subr.mxu0 0.0
        %3253 = vmatpush1.msra.mxu0 %v3015
        %3254 = vmatprep.subr.mxu0 0.0
        %3255 = vmatpush2.msra.mxu0 %v3108
        %3256 = vmatprep.subr.mxu0 0.0
        %3257 = vmatpush2.msra.mxu0 %v3105
        %3258 = vmatprep.subr.mxu0 0.0
        %3259 = vmatpush2.msra.mxu0 %v3102
        %3260 = vmatprep.subr.mxu0 0.0
        %3261 = vmatpush2.msra.mxu0 %v3099
        %3262 = vmatprep.subr.mxu0 0.0
        %3263 = vmatpush2.msra.mxu0 %v3096
        %3264 = vmatprep.subr.mxu0 0.0
        %3265 = vmatpush2.msra.mxu0 %v3093
        %3266 = vmatprep.subr.mxu0 0.0
        %3267 = vmatpush2.msra.mxu0 %v3090
        %3268 = vmatprep.subr.mxu0 0.0
        %3269 = vmatpush2.msra.mxu0 %v3087
        %3270 = vmatprep.subr.mxu0 0.0
        %3271 = vmatpush2.msra.mxu0 %v3084
        %3272 = vmatprep.subr.mxu0 0.0
        %3273 = vmatpush2.msra.mxu0 %v3081
        %3274 = vmatprep.subr.mxu0 0.0
        %3275 = vmatpush2.msra.mxu0 %v3078
        %3276 = vmatprep.subr.mxu0 0.0
        %3277 = vmatpush2.msra.mxu0 %v3075
        %3278 = vmatprep.subr.mxu0 0.0
        %3279 = vmatpush2.msra.mxu0 %v3072
        %3280 = vmatprep.subr.mxu0 0.0
        %3281 = vmatpush2.msra.mxu0 %v3069
        %3282 = vmatprep.subr.mxu0 0.0
        %3283 = vmatpush2.msra.mxu0 %v3066
        %3284 = vmatprep.subr.mxu0 0.0
        %3285 = vmatpush2.msra.mxu0 %v3063
        %3286 = vmatprep.mubr.f32.mxu0 %v2998
        %3287 = vmatmul.mubr.f32.gmra.mxu0 %v2997
        %v3288 = vpop.f32.mrf.mxu0
        %v3289 = vadd.f32 0.0, %v3288
        %v3290 = vpop.f32.mrf.mxu0
        %3291 = vmatprep.mubr.f32.mxu0 %v3000
        %3292 = vmatmul.mubr.f32.gmra.mxu0 %v2999
        %v3293 = vpop.f32.mrf.mxu0
        %v3294 = vadd.f32 0.0, %v3293
        %v3295 = vpop.f32.mrf.mxu0
        %3296 = vmatprep.mubr.f32.mxu0 %v3002
        %3297 = vmatmul.mubr.f32.gmra.mxu0 %v3001
        %v3298 = vpop.f32.mrf.mxu0
        %v3299 = vadd.f32 0.0, %v3298
        %v3300 = vpop.f32.mrf.mxu0
        %3301 = vmatprep.mubr.f32.mxu0 %v3004
        %3302 = vmatmul.mubr.f32.gmra.mxu0 %v3003
        %v3303 = vpop.f32.mrf.mxu0
        %v3304 = vadd.f32 0.0, %v3303
        %v3305 = vpop.f32.mrf.mxu0
        %3306 = vmatprep.mubr.f32.mxu0 %v3006
        %3307 = vmatmul.mubr.f32.gmra.mxu0 %v3005
        %v3308 = vpop.f32.mrf.mxu0
        %v3309 = vadd.f32 0.0, %v3308
        %v3310 = vpop.f32.mrf.mxu0
        %3311 = vmatprep.mubr.f32.mxu0 %v3008
        %3312 = vmatmul.mubr.f32.gmra.mxu0 %v3007
        %v3313 = vpop.f32.mrf.mxu0
        %v3314 = vadd.f32 0.0, %v3313
        %v3315 = vpop.f32.mrf.mxu0
        %3316 = vmatprep.mubr.f32.mxu0 %v3010
        %3317 = vmatmul.mubr.f32.gmra.mxu0 %v3009
        %v3318 = vpop.f32.mrf.mxu0
        %v3319 = vadd.f32 0.0, %v3318
        %v3320 = vpop.f32.mrf.mxu0
        %3321 = vmatprep.mubr.f32.mxu0 %v3012
        %3322 = vmatmul.mubr.f32.gmra.mxu0 %v3011
        %v3323 = vpop.f32.mrf.mxu0
        %v3324 = vadd.f32 0.0, %v3323
        %v3325 = vpop.f32.mrf.mxu0
        %3326 = vdwg.mxu0
        %vm3327 = vcmask 289792
        %3328 = vst.msk [vmem:[#allocation3] sm:$0xf] %vm3327, 0
        %3329 = vst.msk [vmem:[#allocation3 + $0xc] sm:$0xf] %vm3327, 0
        %3330 = vst.msk [vmem:[#allocation3 + $0x18] sm:$0xf] %vm3327, 0
        %3331 = vst.msk [vmem:[#allocation3 + $0x24] sm:$0xf] %vm3327, 0
        %3332 = vst.msk [vmem:[#allocation3 + $0x30] sm:$0xf] %vm3327, 0
        %3333 = vst.msk [vmem:[#allocation3 + $0x3c] sm:$0xf] %vm3327, 0
        %3334 = vst.msk [vmem:[#allocation3 + $0x48] sm:$0xf] %vm3327, 0
        %3335 = vst.msk [vmem:[#allocation3 + $0x54] sm:$0xf] %vm3327, 0
        %vm3336 = vcmask 855592
        %3337 = vst.msk [vmem:[#allocation3 + $0x8] sm:$0xf] %vm3336, 0
        %3338 = vst.msk [vmem:[#allocation3 + $0x14] sm:$0xf] %vm3336, 0
        %3339 = vst.msk [vmem:[#allocation3 + $0x20] sm:$0xf] %vm3336, 0
        %3340 = vst.msk [vmem:[#allocation3 + $0x2c] sm:$0xf] %vm3336, 0
        %3341 = vst.msk [vmem:[#allocation3 + $0x38] sm:$0xf] %vm3336, 0
        %3342 = vst.msk [vmem:[#allocation3 + $0x44] sm:$0xf] %vm3336, 0
        %3343 = vst.msk [vmem:[#allocation3 + $0x50] sm:$0xf] %vm3336, 0
        %3344 = vst.msk [vmem:[#allocation3 + $0x5c] sm:$0xf] %vm3336, 0
        %v3345 = vpack.c.bf16 %v3182, %v3176
        %v3346 = vpack.c.bf16 %v3184, %v3178
        %v3347 = vpack.c.bf16 %v3294, %v3289
        %v3348 = vpack.c.bf16 %v3194, %v3188
        %v3349 = vpack.c.bf16 %v3196, %v3190
        %v3350 = vpack.c.bf16 %v3304, %v3299
        %v3351 = vpack.c.bf16 %v3206, %v3200
        %v3352 = vpack.c.bf16 %v3208, %v3202
        %v3353 = vpack.c.bf16 %v3314, %v3309
        %v3354 = vpack.c.bf16 %v3218, %v3212
        %v3355 = vpack.c.bf16 %v3220, %v3214
        %v3356 = vpack.c.bf16 %v3324, %v3319
        %v3369 = vunpack.c.l.b16 %v3345
        %v3370 = vunpack.c.l.b16 %v3346
        %v3371 = vunpack.c.l.b16 %v3347
        %v3372 = vunpack.c.h.b16 %v3345
        %v3373 = vunpack.c.h.b16 %v3346
        %v3374 = vunpack.c.h.b16 %v3347
        %v3375 = vunpack.c.l.b16 %v3348
        %v3376 = vunpack.c.l.b16 %v3349
        %v3377 = vunpack.c.l.b16 %v3350
        %v3378 = vunpack.c.h.b16 %v3348
        %v3379 = vunpack.c.h.b16 %v3349
        %v3380 = vunpack.c.h.b16 %v3350
        %v3381 = vunpack.c.l.b16 %v3351
        %v3382 = vunpack.c.l.b16 %v3352
        %v3383 = vunpack.c.l.b16 %v3353
        %v3384 = vunpack.c.h.b16 %v3351
        %v3385 = vunpack.c.h.b16 %v3352
        %v3386 = vunpack.c.h.b16 %v3353
        %v3387 = vunpack.c.l.b16 %v3354
        %v3388 = vunpack.c.l.b16 %v3355
        %v3389 = vunpack.c.l.b16 %v3356
        %v3390 = vunpack.c.h.b16 %v3354
        %v3391 = vunpack.c.h.b16 %v3355
        %v3392 = vunpack.c.h.b16 %v3356
        %v3393 = vpack.c.b16 %v3370, %v3369
        %v3394 = vpack.c.b16 %v3371, %v3371
        %v3395 = vpack.c.b16 %v3373, %v3372
        %v3396 = vpack.c.b16 %v3374, %v3374
        %v3397 = vpack.c.b16 %v3376, %v3375
        %v3398 = vpack.c.b16 %v3377, %v3377
        %v3399 = vpack.c.b16 %v3379, %v3378
        %v3400 = vpack.c.b16 %v3380, %v3380
        %v3401 = vpack.c.b16 %v3382, %v3381
        %v3402 = vpack.c.b16 %v3383, %v3383
        %v3403 = vpack.c.b16 %v3385, %v3384
        %v3404 = vpack.c.b16 %v3386, %v3386
        %v3405 = vpack.c.b16 %v3388, %v3387
        %v3406 = vpack.c.b16 %v3389, %v3389
        %v3407 = vpack.c.b16 %v3391, %v3390
        %v3408 = vpack.c.b16 %v3392, %v3392
        %3409 = vrot.lane.b32.xlu0 %v3393, 36
        %v3410 = vpop.permute.xlu0 %3409
        %3411 = vrot.lane.b32.xlu0 %v3394, 36
        %v3412 = vpop.permute.xlu0 %3411
        %3413 = vrot.lane.b32.xlu0 %v3395, 36
        %v3414 = vpop.permute.xlu0 %3413
        %3415 = vrot.lane.b32.xlu0 %v3396, 36
        %v3416 = vpop.permute.xlu0 %3415
        %3417 = vrot.lane.b32.xlu0 %v3397, 36
        %v3418 = vpop.permute.xlu0 %3417
        %3419 = vrot.lane.b32.xlu0 %v3398, 36
        %v3420 = vpop.permute.xlu0 %3419
        %3421 = vrot.lane.b32.xlu0 %v3399, 36
        %v3422 = vpop.permute.xlu0 %3421
        %3423 = vrot.lane.b32.xlu0 %v3400, 36
        %v3424 = vpop.permute.xlu0 %3423
        %3425 = vrot.lane.b32.xlu0 %v3401, 36
        %v3426 = vpop.permute.xlu0 %3425
        %3427 = vrot.lane.b32.xlu0 %v3402, 36
        %v3428 = vpop.permute.xlu0 %3427
        %3429 = vrot.lane.b32.xlu0 %v3403, 36
        %v3430 = vpop.permute.xlu0 %3429
        %3431 = vrot.lane.b32.xlu0 %v3404, 36
        %v3432 = vpop.permute.xlu0 %3431
        %3433 = vrot.lane.b32.xlu0 %v3405, 36
        %v3434 = vpop.permute.xlu0 %3433
        %3435 = vrot.lane.b32.xlu0 %v3406, 36
        %v3436 = vpop.permute.xlu0 %3435
        %3437 = vrot.lane.b32.xlu0 %v3407, 36
        %v3438 = vpop.permute.xlu0 %3437
        %3439 = vrot.lane.b32.xlu0 %v3408, 36
        %v3440 = vpop.permute.xlu0 %3439
        %v3441 = vrot.slane %v3410, 4
        %v3442 = vrot.slane %v3414, 4
        %v3443 = vrot.slane %v3418, 4
        %v3444 = vrot.slane %v3422, 4
        %v3445 = vrot.slane %v3426, 4
        %v3446 = vrot.slane %v3430, 4
        %v3447 = vrot.slane %v3434, 4
        %v3448 = vrot.slane %v3438, 4
        %v3449 = vsel %vm2028, %v3441, %v3410
        %v3450 = vsel %vm2028, %v3441, %v3412
        %v3451 = vsel %vm2028, %v3442, %v3414
        %v3452 = vsel %vm2028, %v3442, %v3416
        %v3453 = vsel %vm2028, %v3443, %v3418
        %v3454 = vsel %vm2028, %v3443, %v3420
        %v3455 = vsel %vm2028, %v3444, %v3422
        %v3456 = vsel %vm2028, %v3444, %v3424
        %v3457 = vsel %vm2028, %v3445, %v3426
        %v3458 = vsel %vm2028, %v3445, %v3428
        %v3459 = vsel %vm2028, %v3446, %v3430
        %v3460 = vsel %vm2028, %v3446, %v3432
        %v3461 = vsel %vm2028, %v3447, %v3434
        %v3462 = vsel %vm2028, %v3447, %v3436
        %v3463 = vsel %vm2028, %v3448, %v3438
        %v3464 = vsel %vm2028, %v3448, %v3440
        %vm3481 = vcmask 1043744
        %vm3482 = vmor %vm802, %vm3481
        %3483 = vst.msk [vmem:[#allocation3] sm:$0xff] %vm3482, %v3449
        %vm3484 = vcmask 560128
        %3485 = vst.msk [vmem:[#allocation3 + $0x8] sm:$0xf] %vm3484, %v3450
        %3486 = vst.msk [vmem:[#allocation3 + $0xc] sm:$0xff] %vm3482, %v3451
        %3487 = vst.msk [vmem:[#allocation3 + $0x14] sm:$0xf] %vm3484, %v3452
        %3488 = vst.msk [vmem:[#allocation3 + $0x18] sm:$0xff] %vm3482, %v3453
        %3489 = vst.msk [vmem:[#allocation3 + $0x20] sm:$0xf] %vm3484, %v3454
        %3490 = vst.msk [vmem:[#allocation3 + $0x24] sm:$0xff] %vm3482, %v3455
        %3491 = vst.msk [vmem:[#allocation3 + $0x2c] sm:$0xf] %vm3484, %v3456
        %3492 = vst.msk [vmem:[#allocation3 + $0x30] sm:$0xff] %vm3482, %v3457
        %3493 = vst.msk [vmem:[#allocation3 + $0x38] sm:$0xf] %vm3484, %v3458
        %3494 = vst.msk [vmem:[#allocation3 + $0x3c] sm:$0xff] %vm3482, %v3459
        %3495 = vst.msk [vmem:[#allocation3 + $0x44] sm:$0xf] %vm3484, %v3460
        %3496 = vst.msk [vmem:[#allocation3 + $0x48] sm:$0xff] %vm3482, %v3461
        %3497 = vst.msk [vmem:[#allocation3 + $0x50] sm:$0xf] %vm3484, %v3462
        %3498 = vst.msk [vmem:[#allocation3 + $0x54] sm:$0xff] %vm3482, %v3463
        %3499 = vst.msk [vmem:[#allocation3 + $0x5c] sm:$0xf] %vm3484, %v3464
        %v3500 = vld [vmem:[#allocation3] sm:$0xff]
        %v3501 = vld [vmem:[#allocation3 + $0x8] sm:$0xf]
        %v3502 = vld [vmem:[#allocation3 + $0xc] sm:$0xff]
        %v3503 = vld [vmem:[#allocation3 + $0x14] sm:$0xf]
        %v3504 = vld [vmem:[#allocation3 + $0x18] sm:$0xff]
        %v3505 = vld [vmem:[#allocation3 + $0x20] sm:$0xf]
        %v3506 = vld [vmem:[#allocation3 + $0x24] sm:$0xff]
        %v3507 = vld [vmem:[#allocation3 + $0x2c] sm:$0xf]
        %v3508 = vld [vmem:[#allocation3 + $0x30] sm:$0xff]
        %v3509 = vld [vmem:[#allocation3 + $0x38] sm:$0xf]
        %v3510 = vld [vmem:[#allocation3 + $0x3c] sm:$0xff]
        %v3511 = vld [vmem:[#allocation3 + $0x44] sm:$0xf]
        %v3512 = vld [vmem:[#allocation3 + $0x48] sm:$0xff]
        %v3513 = vld [vmem:[#allocation3 + $0x50] sm:$0xf]
        %v3514 = vld [vmem:[#allocation3 + $0x54] sm:$0xff]
        %v3515 = vld [vmem:[#allocation3 + $0x5c] sm:$0xf]
        %v3516 = vld [vmem:[%s8] sm:$0x7]
        %v3519 = vunpack.c.l.s4 1966171168
        %v3520 = vunpack.c.0.s8 %v3519
        %v3521 = vlaneseq
        %v3522 = vshrl.u32 %v3521, 7
        %v3523 = vsub.s32 %v3520, %v3522
        %v3524 = vrot.slane %v3516, %v3523
        %v3525 = vcombine.high %v3524, %v3524
        %v3527 = vunpack.c.l.s4 1966171168
        %v3528 = vunpack.c.0.s8 %v3527
        %v3529 = vlaneseq
        %v3530 = vshrl.u32 %v3529, 7
        %v3531 = vsub.s32 %v3528, %v3530
        %v3532 = vrot.slane %v3524, %v3531
        %v3534 = vunpack.c.l.s4 1966171168
        %v3535 = vunpack.c.0.s8 %v3534
        %v3536 = vlaneseq
        %v3537 = vshrl.u32 %v3536, 7
        %v3538 = vsub.s32 %v3535, %v3537
        %v3539 = vrot.slane %v3525, %v3538
        %v3540 = vcombine.high %v3532, %v3532
        %v3542 = vpack.i.b16 %v3532, %v3532
        %v3544 = vlaneseq
        %v3545 = vshrl.u32 %v3544, 7
        %v3546 = vsub.s32 0, %v3545
        %v3547 = vrot.slane %v3542, %v3546
        %v3549 = vpack.i.b16 %v3539, %v3539
        %v3551 = vlaneseq
        %v3552 = vshrl.u32 %v3551, 7
        %v3553 = vsub.s32 0, %v3552
        %v3554 = vrot.slane %v3549, %v3553
        %v3556 = vpack.i.b16 %v3540, %v3540
        %v3558 = vlaneseq
        %v3559 = vshrl.u32 %v3558, 7
        %v3560 = vsub.s32 0, %v3559
        %v3561 = vrot.slane %v3556, %v3560
        %v3565 = vunpack.c.l.b16 %v3547
        %v3566 = vunpack.c.l.b16 %v3554
        %v3567 = vunpack.c.l.b16 %v3561
        %v3568 = vpack.c.b16 %v3566, %v3565
        %v3569 = vpack.c.b16 %v3567, %v3567
        %v3572 = vmul.bf16 %v3500, %v3568
        %v3573 = vmul.bf16 %v3501, %v3569
        %v3574 = vmul.bf16 %v3502, %v3568
        %v3575 = vmul.bf16 %v3503, %v3569
        %v3576 = vmul.bf16 %v3504, %v3568
        %v3577 = vmul.bf16 %v3505, %v3569
        %v3578 = vmul.bf16 %v3506, %v3568
        %v3579 = vmul.bf16 %v3507, %v3569
        %v3580 = vmul.bf16 %v3508, %v3568
        %v3581 = vmul.bf16 %v3509, %v3569
        %v3582 = vmul.bf16 %v3510, %v3568
        %v3583 = vmul.bf16 %v3511, %v3569
        %v3584 = vmul.bf16 %v3512, %v3568
        %v3585 = vmul.bf16 %v3513, %v3569
        %v3586 = vmul.bf16 %v3514, %v3568
        %v3587 = vmul.bf16 %v3515, %v3569
        %v3588 = vld [vmem:[#allocation4] sm:$0xf]
        %v3589 = vld [vmem:[#allocation4 + $0x4] sm:$0xf]
        %v3590 = vld [vmem:[#allocation4 + $0x8] sm:$0xf]
        %v3591 = vld [vmem:[#allocation4 + $0xc] sm:$0xf]
        %v3592 = vld [vmem:[#allocation4 + $0x10] sm:$0xf]
        %v3593 = vld [vmem:[#allocation4 + $0x14] sm:$0xf]
        %v3594 = vld [vmem:[#allocation4 + $0x18] sm:$0xf]
        %v3595 = vld [vmem:[#allocation4 + $0x1c] sm:$0xf]
        %s3596 = scalar_lea.vmem [#allocation4], 32
        %v3597 = vld [vmem:[%s3596] sm:$0xf]
        %v3598 = vld [vmem:[%s3596 + $0x4] sm:$0xf]
        %v3599 = vld [vmem:[%s3596 + $0x8] sm:$0xf]
        %v3600 = vld [vmem:[%s3596 + $0xc] sm:$0xf]
        %v3601 = vld [vmem:[%s3596 + $0x10] sm:$0xf]
        %v3602 = vld [vmem:[%s3596 + $0x14] sm:$0xf]
        %v3603 = vld [vmem:[%s3596 + $0x18] sm:$0xf]
        %v3604 = vld [vmem:[%s3596 + $0x1c] sm:$0xf]
        %v3613 = vunpack.c.l.b16 %v3597
        %v3614 = vunpack.c.l.b16 %v3598
        %v3615 = vunpack.c.l.b16 %v3599
        %v3616 = vunpack.c.l.b16 %v3600
        %v3617 = vunpack.c.l.b16 %v3601
        %v3618 = vunpack.c.l.b16 %v3602
        %v3619 = vunpack.c.l.b16 %v3603
        %v3620 = vunpack.c.l.b16 %v3604
        %v3621 = vpack.c.b16 %v3614, %v3613
        %v3622 = vpack.c.b16 %v3616, %v3615
        %v3623 = vpack.c.b16 %v3618, %v3617
        %v3624 = vpack.c.b16 %v3620, %v3619
        %v3641 = vunpack.c.l.b16 %v3500
        %v3642 = vunpack.c.h.b16 %v3500
        %v3643 = vunpack.c.l.b16 %v3501
        %v3644 = vunpack.c.l.b16 %v3502
        %v3645 = vunpack.c.h.b16 %v3502
        %v3646 = vunpack.c.l.b16 %v3503
        %v3647 = vunpack.c.l.b16 %v3504
        %v3648 = vunpack.c.h.b16 %v3504
        %v3649 = vunpack.c.l.b16 %v3505
        %v3650 = vunpack.c.l.b16 %v3506
        %v3651 = vunpack.c.h.b16 %v3506
        %v3652 = vunpack.c.l.b16 %v3507
        %v3653 = vunpack.c.l.b16 %v3508
        %v3654 = vunpack.c.h.b16 %v3508
        %v3655 = vunpack.c.l.b16 %v3509
        %v3656 = vunpack.c.l.b16 %v3510
        %v3657 = vunpack.c.h.b16 %v3510
        %v3658 = vunpack.c.l.b16 %v3511
        %v3659 = vunpack.c.l.b16 %v3512
        %v3660 = vunpack.c.h.b16 %v3512
        %v3661 = vunpack.c.l.b16 %v3513
        %v3662 = vunpack.c.l.b16 %v3514
        %v3663 = vunpack.c.h.b16 %v3514
        %v3664 = vunpack.c.l.b16 %v3515
        %v3665 = vpack.c.b16 %v3644, %v3641
        %v3666 = vpack.c.b16 %v3645, %v3642
        %v3667 = vpack.c.b16 %v3646, %v3643
        %v3668 = vpack.c.b16 %v3650, %v3647
        %v3669 = vpack.c.b16 %v3651, %v3648
        %v3670 = vpack.c.b16 %v3652, %v3649
        %v3671 = vpack.c.b16 %v3656, %v3653
        %v3672 = vpack.c.b16 %v3657, %v3654
        %v3673 = vpack.c.b16 %v3658, %v3655
        %v3674 = vpack.c.b16 %v3662, %v3659
        %v3675 = vpack.c.b16 %v3663, %v3660
        %v3676 = vpack.c.b16 %v3664, %v3661
        %3677 = vrot.lane.b32.xlu0 %v3665, 126
        %v3678 = vpop.permute.xlu0 %3677
        %3679 = vrot.lane.b32.xlu0 %v3666, 126
        %v3680 = vpop.permute.xlu0 %3679
        %3681 = vrot.lane.b32.xlu0 %v3667, 126
        %v3682 = vpop.permute.xlu0 %3681
        %3683 = vrot.lane.b32.xlu0 %v3668, 126
        %v3684 = vpop.permute.xlu0 %3683
        %3685 = vrot.lane.b32.xlu0 %v3669, 126
        %v3686 = vpop.permute.xlu0 %3685
        %3687 = vrot.lane.b32.xlu0 %v3670, 126
        %v3688 = vpop.permute.xlu0 %3687
        %3689 = vrot.lane.b32.xlu0 %v3671, 126
        %v3690 = vpop.permute.xlu0 %3689
        %3691 = vrot.lane.b32.xlu0 %v3672, 126
        %v3692 = vpop.permute.xlu0 %3691
        %3693 = vrot.lane.b32.xlu0 %v3673, 126
        %v3694 = vpop.permute.xlu0 %3693
        %3695 = vrot.lane.b32.xlu0 %v3674, 126
        %v3696 = vpop.permute.xlu0 %3695
        %3697 = vrot.lane.b32.xlu0 %v3675, 126
        %v3698 = vpop.permute.xlu0 %3697
        %3699 = vrot.lane.b32.xlu0 %v3676, 126
        %v3700 = vpop.permute.xlu0 %3699
        %v3701 = vsel %vm1001, %v3678, %v3680
        %v3702 = vsel %vm1001, %v3680, %v3682
        %v3703 = vsel %vm1001, %v3684, %v3686
        %v3704 = vsel %vm1001, %v3686, %v3688
        %v3705 = vsel %vm1001, %v3690, %v3692
        %v3706 = vsel %vm1001, %v3692, %v3694
        %v3707 = vsel %vm1001, %v3696, %v3698
        %v3708 = vsel %vm1001, %v3698, %v3700
        %v3722 = vsel %vm1018, %v3621, 0
        %v3725 = vsel %vm1018, %v3622, 0
        %v3728 = vsel %vm1018, %v3623, 0
        %v3731 = vsel %vm1018, %v3624, 0
        %3733 = vmatprep.subr.bf16.mxu0 0
        %3734 = vmatpush1.bf16.msra.mxu0 0
        %3735 = vmatprep.subr.bf16.mxu0 0
        %3736 = vmatpush1.bf16.msra.mxu0 0
        %3737 = vmatprep.subr.bf16.mxu0 0
        %3738 = vmatpush1.bf16.msra.mxu0 0
        %3739 = vmatprep.subr.bf16.mxu0 0
        %3740 = vmatpush1.bf16.msra.mxu0 0
        %3741 = vmatprep.subr.bf16.mxu0 %v3708
        %3742 = vmatpush1.bf16.msra.mxu0 %v3707
        %3743 = vmatprep.subr.bf16.mxu0 %v3706
        %3744 = vmatpush1.bf16.msra.mxu0 %v3705
        %3745 = vmatprep.subr.bf16.mxu0 %v3704
        %3746 = vmatpush1.bf16.msra.mxu0 %v3703
        %3747 = vmatprep.subr.bf16.mxu0 %v3702
        %3748 = vmatpush1.bf16.msra.mxu0 %v3701
        %3749 = vmatprep.subr.bf16.mxu0 0
        %3750 = vmatpush2.bf16.msra.mxu0 0
        %3751 = vmatprep.subr.bf16.mxu0 0
        %3752 = vmatpush2.bf16.msra.mxu0 0
        %3753 = vmatprep.subr.bf16.mxu0 0
        %3754 = vmatpush2.bf16.msra.mxu0 0
        %3755 = vmatprep.subr.bf16.mxu0 0
        %3756 = vmatpush2.bf16.msra.mxu0 0
        %3757 = vmatprep.subr.bf16.mxu0 0
        %3758 = vmatpush2.bf16.msra.mxu0 0
        %3759 = vmatprep.subr.bf16.mxu0 0
        %3760 = vmatpush2.bf16.msra.mxu0 0
        %3761 = vmatprep.subr.bf16.mxu0 0
        %3762 = vmatpush2.bf16.msra.mxu0 0
        %3763 = vmatprep.subr.bf16.mxu0 0
        %3764 = vmatpush2.bf16.msra.mxu0 0
        %3765 = vmatprep.mubr.bf16.mxu0 0
        %3766 = vmatmul.mubr.bf16.gmra.mxu0 %v3722
        %v3767 = vpop.f32.mrf.mxu0
        %v3768 = vadd.f32 0.0, %v3767
        %v3769 = vpop.f32.mrf.mxu0
        %v3770 = vadd.f32 0.0, %v3769
        %v3771 = vpop.f32.mrf.mxu0
        %v3772 = vadd.f32 0.0, %v3771
        %v3773 = vpop.f32.mrf.mxu0
        %v3774 = vadd.f32 0.0, %v3773
        %3775 = vmatprep.mubr.bf16.mxu0 0
        %3776 = vmatmul.mubr.bf16.gmra.mxu0 %v3725
        %v3777 = vpop.f32.mrf.mxu0
        %v3778 = vadd.f32 0.0, %v3777
        %v3779 = vpop.f32.mrf.mxu0
        %v3780 = vadd.f32 0.0, %v3779
        %v3781 = vpop.f32.mrf.mxu0
        %v3782 = vadd.f32 0.0, %v3781
        %v3783 = vpop.f32.mrf.mxu0
        %v3784 = vadd.f32 0.0, %v3783
        %3785 = vmatprep.mubr.bf16.mxu0 0
        %3786 = vmatmul.mubr.bf16.gmra.mxu0 %v3728
        %v3787 = vpop.f32.mrf.mxu0
        %v3788 = vadd.f32 0.0, %v3787
        %v3789 = vpop.f32.mrf.mxu0
        %v3790 = vadd.f32 0.0, %v3789
        %v3791 = vpop.f32.mrf.mxu0
        %v3792 = vadd.f32 0.0, %v3791
        %v3793 = vpop.f32.mrf.mxu0
        %v3794 = vadd.f32 0.0, %v3793
        %3795 = vmatprep.mubr.bf16.mxu0 0
        %3796 = vmatmul.mubr.bf16.gmra.mxu0 %v3731
        %v3797 = vpop.f32.mrf.mxu0
        %v3798 = vadd.f32 0.0, %v3797
        %v3799 = vpop.f32.mrf.mxu0
        %v3800 = vadd.f32 0.0, %v3799
        %v3801 = vpop.f32.mrf.mxu0
        %v3802 = vadd.f32 0.0, %v3801
        %v3803 = vpop.f32.mrf.mxu0
        %v3804 = vadd.f32 0.0, %v3803
        %3805 = vdwg.mxu0
        %3806 = vmatprep.subr.bf16.mxu0 0
        %3807 = vmatpush1.bf16.msra.mxu0 0
        %3808 = vmatprep.subr.bf16.mxu0 0
        %3809 = vmatpush1.bf16.msra.mxu0 0
        %3810 = vmatprep.subr.bf16.mxu0 0
        %3811 = vmatpush1.bf16.msra.mxu0 0
        %3812 = vmatprep.subr.bf16.mxu0 0
        %3813 = vmatpush1.bf16.msra.mxu0 0
        %3814 = vmatprep.subr.bf16.mxu0 0
        %3815 = vmatpush1.bf16.msra.mxu0 %v3700
        %3816 = vmatprep.subr.bf16.mxu0 0
        %3817 = vmatpush1.bf16.msra.mxu0 %v3694
        %3818 = vmatprep.subr.bf16.mxu0 0
        %3819 = vmatpush1.bf16.msra.mxu0 %v3688
        %3820 = vmatprep.subr.bf16.mxu0 0
        %3821 = vmatpush1.bf16.msra.mxu0 %v3682
        %3822 = vmatprep.subr.bf16.mxu0 0
        %3823 = vmatpush2.bf16.msra.mxu0 0
        %3824 = vmatprep.subr.bf16.mxu0 0
        %3825 = vmatpush2.bf16.msra.mxu0 0
        %3826 = vmatprep.subr.bf16.mxu0 0
        %3827 = vmatpush2.bf16.msra.mxu0 0
        %3828 = vmatprep.subr.bf16.mxu0 0
        %3829 = vmatpush2.bf16.msra.mxu0 0
        %3830 = vmatprep.subr.bf16.mxu0 0
        %3831 = vmatpush2.bf16.msra.mxu0 0
        %3832 = vmatprep.subr.bf16.mxu0 0
        %3833 = vmatpush2.bf16.msra.mxu0 0
        %3834 = vmatprep.subr.bf16.mxu0 0
        %3835 = vmatpush2.bf16.msra.mxu0 0
        %3836 = vmatprep.subr.bf16.mxu0 0
        %3837 = vmatpush2.bf16.msra.mxu0 0
        %3838 = vmatprep.mubr.bf16.mxu0 0
        %3839 = vmatmul.mubr.bf16.gmra.mxu0 %v3722
        %v3840 = vpop.f32.mrf.mxu0
        %v3841 = vadd.f32 0.0, %v3840
        %v3842 = vpop.f32.mrf.mxu0
        %v3843 = vpop.f32.mrf.mxu0
        %v3844 = vadd.f32 0.0, %v3843
        %v3845 = vpop.f32.mrf.mxu0
        %3846 = vmatprep.mubr.bf16.mxu0 0
        %3847 = vmatmul.mubr.bf16.gmra.mxu0 %v3725
        %v3848 = vpop.f32.mrf.mxu0
        %v3849 = vadd.f32 0.0, %v3848
        %v3850 = vpop.f32.mrf.mxu0
        %v3851 = vpop.f32.mrf.mxu0
        %v3852 = vadd.f32 0.0, %v3851
        %v3853 = vpop.f32.mrf.mxu0
        %3854 = vmatprep.mubr.bf16.mxu0 0
        %3855 = vmatmul.mubr.bf16.gmra.mxu0 %v3728
        %v3856 = vpop.f32.mrf.mxu0
        %v3857 = vadd.f32 0.0, %v3856
        %v3858 = vpop.f32.mrf.mxu0
        %v3859 = vpop.f32.mrf.mxu0
        %v3860 = vadd.f32 0.0, %v3859
        %v3861 = vpop.f32.mrf.mxu0
        %3862 = vmatprep.mubr.bf16.mxu0 0
        %3863 = vmatmul.mubr.bf16.gmra.mxu0 %v3731
        %v3864 = vpop.f32.mrf.mxu0
        %v3865 = vadd.f32 0.0, %v3864
        %v3866 = vpop.f32.mrf.mxu0
        %v3867 = vpop.f32.mrf.mxu0
        %v3868 = vadd.f32 0.0, %v3867
        %v3869 = vpop.f32.mrf.mxu0
        %3870 = vdwg.mxu0
        %v3879 = vunpack.c.l.b16 %v3588
        %v3880 = vunpack.c.l.b16 %v3589
        %v3881 = vunpack.c.l.b16 %v3590
        %v3882 = vunpack.c.l.b16 %v3591
        %v3883 = vunpack.c.l.b16 %v3592
        %v3884 = vunpack.c.l.b16 %v3593
        %v3885 = vunpack.c.l.b16 %v3594
        %v3886 = vunpack.c.l.b16 %v3595
        %v3887 = vpack.c.b16 %v3880, %v3879
        %v3888 = vpack.c.b16 %v3882, %v3881
        %v3889 = vpack.c.b16 %v3884, %v3883
        %v3890 = vpack.c.b16 %v3886, %v3885
        %v3907 = vunpack.c.l.b16 %v3572
        %v3908 = vunpack.c.h.b16 %v3572
        %v3909 = vunpack.c.l.b16 %v3573
        %v3910 = vunpack.c.l.b16 %v3574
        %v3911 = vunpack.c.h.b16 %v3574
        %v3912 = vunpack.c.l.b16 %v3575
        %v3913 = vunpack.c.l.b16 %v3576
        %v3914 = vunpack.c.h.b16 %v3576
        %v3915 = vunpack.c.l.b16 %v3577
        %v3916 = vunpack.c.l.b16 %v3578
        %v3917 = vunpack.c.h.b16 %v3578
        %v3918 = vunpack.c.l.b16 %v3579
        %v3919 = vunpack.c.l.b16 %v3580
        %v3920 = vunpack.c.h.b16 %v3580
        %v3921 = vunpack.c.l.b16 %v3581
        %v3922 = vunpack.c.l.b16 %v3582
        %v3923 = vunpack.c.h.b16 %v3582
        %v3924 = vunpack.c.l.b16 %v3583
        %v3925 = vunpack.c.l.b16 %v3584
        %v3926 = vunpack.c.h.b16 %v3584
        %v3927 = vunpack.c.l.b16 %v3585
        %v3928 = vunpack.c.l.b16 %v3586
        %v3929 = vunpack.c.h.b16 %v3586
        %v3930 = vunpack.c.l.b16 %v3587
        %v3931 = vpack.c.b16 %v3910, %v3907
        %v3932 = vpack.c.b16 %v3911, %v3908
        %v3933 = vpack.c.b16 %v3912, %v3909
        %v3934 = vpack.c.b16 %v3916, %v3913
        %v3935 = vpack.c.b16 %v3917, %v3914
        %v3936 = vpack.c.b16 %v3918, %v3915
        %v3937 = vpack.c.b16 %v3922, %v3919
        %v3938 = vpack.c.b16 %v3923, %v3920
        %v3939 = vpack.c.b16 %v3924, %v3921
        %v3940 = vpack.c.b16 %v3928, %v3925
        %v3941 = vpack.c.b16 %v3929, %v3926
        %v3942 = vpack.c.b16 %v3930, %v3927
        %v3956 = vsel %vm1018, %v3887, 0
        %v3959 = vsel %vm1018, %v3888, 0
        %v3962 = vsel %vm1018, %v3889, 0
        %v3965 = vsel %vm1018, %v3890, 0
        %3967 = vmatprep.subr.bf16.mxu0 0
        %3968 = vmatpush1.bf16.msra.mxu0 0
        %3969 = vmatprep.subr.bf16.mxu0 0
        %3970 = vmatpush1.bf16.msra.mxu0 0
        %3971 = vmatprep.subr.bf16.mxu0 0
        %3972 = vmatpush1.bf16.msra.mxu0 0
        %3973 = vmatprep.subr.bf16.mxu0 0
        %3974 = vmatpush1.bf16.msra.mxu0 0
        %3975 = vmatprep.subr.bf16.mxu0 %v3941
        %3976 = vmatpush1.bf16.msra.mxu0 %v3940
        %3977 = vmatprep.subr.bf16.mxu0 %v3938
        %3978 = vmatpush1.bf16.msra.mxu0 %v3937
        %3979 = vmatprep.subr.bf16.mxu0 %v3935
        %3980 = vmatpush1.bf16.msra.mxu0 %v3934
        %3981 = vmatprep.subr.bf16.mxu0 %v3932
        %3982 = vmatpush1.bf16.msra.mxu0 %v3931
        %3983 = vmatprep.subr.bf16.mxu0 0
        %3984 = vmatpush2.bf16.msra.mxu0 0
        %3985 = vmatprep.subr.bf16.mxu0 0
        %3986 = vmatpush2.bf16.msra.mxu0 0
        %3987 = vmatprep.subr.bf16.mxu0 0
        %3988 = vmatpush2.bf16.msra.mxu0 0
        %3989 = vmatprep.subr.bf16.mxu0 0
        %3990 = vmatpush2.bf16.msra.mxu0 0
        %3991 = vmatprep.subr.bf16.mxu0 0
        %3992 = vmatpush2.bf16.msra.mxu0 0
        %3993 = vmatprep.subr.bf16.mxu0 0
        %3994 = vmatpush2.bf16.msra.mxu0 0
        %3995 = vmatprep.subr.bf16.mxu0 0
        %3996 = vmatpush2.bf16.msra.mxu0 0
        %3997 = vmatprep.subr.bf16.mxu0 0
        %3998 = vmatpush2.bf16.msra.mxu0 0
        %3999 = vmatprep.mubr.bf16.mxu0 0
        %4000 = vmatmul.mubr.bf16.gmra.mxu0 %v3956
        %v4001 = vpop.f32.mrf.mxu0
        %v4002 = vadd.f32 %v3768, %v4001
        %v4003 = vpop.f32.mrf.mxu0
        %v4004 = vadd.f32 %v3770, %v4003
        %v4005 = vpop.f32.mrf.mxu0
        %v4006 = vadd.f32 %v3772, %v4005
        %v4007 = vpop.f32.mrf.mxu0
        %v4008 = vadd.f32 %v3774, %v4007
        %4009 = vmatprep.mubr.bf16.mxu0 0
        %4010 = vmatmul.mubr.bf16.gmra.mxu0 %v3959
        %v4011 = vpop.f32.mrf.mxu0
        %v4012 = vadd.f32 %v3778, %v4011
        %v4013 = vpop.f32.mrf.mxu0
        %v4014 = vadd.f32 %v3780, %v4013
        %v4015 = vpop.f32.mrf.mxu0
        %v4016 = vadd.f32 %v3782, %v4015
        %v4017 = vpop.f32.mrf.mxu0
        %v4018 = vadd.f32 %v3784, %v4017
        %4019 = vmatprep.mubr.bf16.mxu0 0
        %4020 = vmatmul.mubr.bf16.gmra.mxu0 %v3962
        %v4021 = vpop.f32.mrf.mxu0
        %v4022 = vadd.f32 %v3788, %v4021
        %v4023 = vpop.f32.mrf.mxu0
        %v4024 = vadd.f32 %v3790, %v4023
        %v4025 = vpop.f32.mrf.mxu0
        %v4026 = vadd.f32 %v3792, %v4025
        %v4027 = vpop.f32.mrf.mxu0
        %v4028 = vadd.f32 %v3794, %v4027
        %4029 = vmatprep.mubr.bf16.mxu0 0
        %4030 = vmatmul.mubr.bf16.gmra.mxu0 %v3965
        %v4031 = vpop.f32.mrf.mxu0
        %v4032 = vadd.f32 %v3798, %v4031
        %v4033 = vpop.f32.mrf.mxu0
        %v4034 = vadd.f32 %v3800, %v4033
        %v4035 = vpop.f32.mrf.mxu0
        %v4036 = vadd.f32 %v3802, %v4035
        %v4037 = vpop.f32.mrf.mxu0
        %v4038 = vadd.f32 %v3804, %v4037
        %4039 = vdwg.mxu0
        %4040 = vmatprep.subr.bf16.mxu0 0
        %4041 = vmatpush1.bf16.msra.mxu0 0
        %4042 = vmatprep.subr.bf16.mxu0 0
        %4043 = vmatpush1.bf16.msra.mxu0 0
        %4044 = vmatprep.subr.bf16.mxu0 0
        %4045 = vmatpush1.bf16.msra.mxu0 0
        %4046 = vmatprep.subr.bf16.mxu0 0
        %4047 = vmatpush1.bf16.msra.mxu0 0
        %4048 = vmatprep.subr.bf16.mxu0 0
        %4049 = vmatpush1.bf16.msra.mxu0 %v3942
        %4050 = vmatprep.subr.bf16.mxu0 0
        %4051 = vmatpush1.bf16.msra.mxu0 %v3939
        %4052 = vmatprep.subr.bf16.mxu0 0
        %4053 = vmatpush1.bf16.msra.mxu0 %v3936
        %4054 = vmatprep.subr.bf16.mxu0 0
        %4055 = vmatpush1.bf16.msra.mxu0 %v3933
        %4056 = vmatprep.subr.bf16.mxu0 0
        %4057 = vmatpush2.bf16.msra.mxu0 0
        %4058 = vmatprep.subr.bf16.mxu0 0
        %4059 = vmatpush2.bf16.msra.mxu0 0
        %4060 = vmatprep.subr.bf16.mxu0 0
        %4061 = vmatpush2.bf16.msra.mxu0 0
        %4062 = vmatprep.subr.bf16.mxu0 0
        %4063 = vmatpush2.bf16.msra.mxu0 0
        %4064 = vmatprep.subr.bf16.mxu0 0
        %4065 = vmatpush2.bf16.msra.mxu0 0
        %4066 = vmatprep.subr.bf16.mxu0 0
        %4067 = vmatpush2.bf16.msra.mxu0 0
        %4068 = vmatprep.subr.bf16.mxu0 0
        %4069 = vmatpush2.bf16.msra.mxu0 0
        %4070 = vmatprep.subr.bf16.mxu0 0
        %4071 = vmatpush2.bf16.msra.mxu0 0
        %4072 = vmatprep.mubr.bf16.mxu0 0
        %4073 = vmatmul.mubr.bf16.gmra.mxu0 %v3956
        %v4074 = vpop.f32.mrf.mxu0
        %v4075 = vadd.f32 %v3841, %v4074
        %v4076 = vpop.f32.mrf.mxu0
        %v4077 = vpop.f32.mrf.mxu0
        %v4078 = vadd.f32 %v3844, %v4077
        %v4079 = vpop.f32.mrf.mxu0
        %4080 = vmatprep.mubr.bf16.mxu0 0
        %4081 = vmatmul.mubr.bf16.gmra.mxu0 %v3959
        %v4082 = vpop.f32.mrf.mxu0
        %v4083 = vadd.f32 %v3849, %v4082
        %v4084 = vpop.f32.mrf.mxu0
        %v4085 = vpop.f32.mrf.mxu0
        %v4086 = vadd.f32 %v3852, %v4085
        %v4087 = vpop.f32.mrf.mxu0
        %4088 = vmatprep.mubr.bf16.mxu0 0
        %4089 = vmatmul.mubr.bf16.gmra.mxu0 %v3962
        %v4090 = vpop.f32.mrf.mxu0
        %v4091 = vadd.f32 %v3857, %v4090
        %v4092 = vpop.f32.mrf.mxu0
        %v4093 = vpop.f32.mrf.mxu0
        %v4094 = vadd.f32 %v3860, %v4093
        %v4095 = vpop.f32.mrf.mxu0
        %4096 = vmatprep.mubr.bf16.mxu0 0
        %4097 = vmatmul.mubr.bf16.gmra.mxu0 %v3965
        %v4098 = vpop.f32.mrf.mxu0
        %v4099 = vadd.f32 %v3865, %v4098
        %v4100 = vpop.f32.mrf.mxu0
        %v4101 = vpop.f32.mrf.mxu0
        %v4102 = vadd.f32 %v3868, %v4101
        %v4103 = vpop.f32.mrf.mxu0
        %4104 = vdwg.mxu0
        %v4105 = vld [vmem:[%s8] sm:$0x7]
        %v4108 = vunpack.c.l.s4 1966171168
        %v4109 = vunpack.c.0.s8 %v4108
        %v4110 = vlaneseq
        %v4111 = vshrl.u32 %v4110, 7
        %v4112 = vsub.s32 %v4109, %v4111
        %v4113 = vrot.slane %v4105, %v4112
        %v4114 = vcombine.high %v4113, %v4113
        %v4116 = vunpack.c.l.s4 1966171168
        %v4117 = vunpack.c.0.s8 %v4116
        %v4118 = vlaneseq
        %v4119 = vshrl.u32 %v4118, 7
        %v4120 = vsub.s32 %v4117, %v4119
        %v4121 = vrot.slane %v4113, %v4120
        %v4123 = vunpack.c.l.s4 1966171168
        %v4124 = vunpack.c.0.s8 %v4123
        %v4125 = vlaneseq
        %v4126 = vshrl.u32 %v4125, 7
        %v4127 = vsub.s32 %v4124, %v4126
        %v4128 = vrot.slane %v4114, %v4127
        %v4129 = vcombine.high %v4121, %v4121
        %v4131 = vshrl.u32 %v4121, 16
        %v4132 = vpack.i.b16 %v4131, %v4131
        %v4134 = vlaneseq
        %v4135 = vshrl.u32 %v4134, 7
        %v4136 = vsub.s32 0, %v4135
        %v4137 = vrot.slane %v4132, %v4136
        %v4139 = vshrl.u32 %v4128, 16
        %v4140 = vpack.i.b16 %v4139, %v4139
        %v4142 = vlaneseq
        %v4143 = vshrl.u32 %v4142, 7
        %v4144 = vsub.s32 0, %v4143
        %v4145 = vrot.slane %v4140, %v4144
        %v4147 = vshrl.u32 %v4129, 16
        %v4148 = vpack.i.b16 %v4147, %v4147
        %v4150 = vlaneseq
        %v4151 = vshrl.u32 %v4150, 7
        %v4152 = vsub.s32 0, %v4151
        %v4153 = vrot.slane %v4148, %v4152
        %v4157 = vunpack.c.l.b16 %v4137
        %v4158 = vunpack.c.l.b16 %v4145
        %v4159 = vunpack.c.l.b16 %v4153
        %v4160 = vpack.c.b16 %v4158, %v4157
        %v4161 = vpack.c.b16 %v4159, %v4159
        %4162 = vrot.lane.b32.xlu0 %v4160, 4
        %v4163 = vpop.permute.xlu0 %4162
        %4164 = vrot.lane.b32.xlu0 %v4161, 4
        %v4165 = vpop.permute.xlu0 %4164
        %v4166 = vrot.slane %v4163, 4
        %v4167 = vsel %vm1297, %v4166, %v4163
        %v4168 = vsel %vm1297, %v4166, %v4165
        %v4171 = vmul.bf16 %v3500, %v4167
        %v4172 = vmul.bf16 %v3501, %v4168
        %v4173 = vmul.bf16 %v3502, %v4167
        %v4174 = vmul.bf16 %v3503, %v4168
        %v4175 = vmul.bf16 %v3504, %v4167
        %v4176 = vmul.bf16 %v3505, %v4168
        %v4177 = vmul.bf16 %v3506, %v4167
        %v4178 = vmul.bf16 %v3507, %v4168
        %v4179 = vmul.bf16 %v3508, %v4167
        %v4180 = vmul.bf16 %v3509, %v4168
        %v4181 = vmul.bf16 %v3510, %v4167
        %v4182 = vmul.bf16 %v3511, %v4168
        %v4183 = vmul.bf16 %v3512, %v4167
        %v4184 = vmul.bf16 %v3513, %v4168
        %v4185 = vmul.bf16 %v3514, %v4167
        %v4186 = vmul.bf16 %v3515, %v4168
        %s4187 = scalar_lea.vmem [#allocation4], 64
        %v4188 = vld [vmem:[%s4187] sm:$0xf]
        %v4189 = vld [vmem:[%s4187 + $0x4] sm:$0xf]
        %v4190 = vld [vmem:[%s4187 + $0x8] sm:$0xf]
        %v4191 = vld [vmem:[%s4187 + $0xc] sm:$0xf]
        %v4192 = vld [vmem:[%s4187 + $0x10] sm:$0xf]
        %v4193 = vld [vmem:[%s4187 + $0x14] sm:$0xf]
        %v4194 = vld [vmem:[%s4187 + $0x18] sm:$0xf]
        %v4195 = vld [vmem:[%s4187 + $0x1c] sm:$0xf]
        %v4204 = vunpack.c.l.b16 %v4188
        %v4205 = vunpack.c.l.b16 %v4189
        %v4206 = vunpack.c.l.b16 %v4190
        %v4207 = vunpack.c.l.b16 %v4191
        %v4208 = vunpack.c.l.b16 %v4192
        %v4209 = vunpack.c.l.b16 %v4193
        %v4210 = vunpack.c.l.b16 %v4194
        %v4211 = vunpack.c.l.b16 %v4195
        %v4212 = vpack.c.b16 %v4205, %v4204
        %v4213 = vpack.c.b16 %v4207, %v4206
        %v4214 = vpack.c.b16 %v4209, %v4208
        %v4215 = vpack.c.b16 %v4211, %v4210
        %v4232 = vunpack.c.l.b16 %v4171
        %v4233 = vunpack.c.h.b16 %v4171
        %v4234 = vunpack.c.l.b16 %v4172
        %v4235 = vunpack.c.l.b16 %v4173
        %v4236 = vunpack.c.h.b16 %v4173
        %v4237 = vunpack.c.l.b16 %v4174
        %v4238 = vunpack.c.l.b16 %v4175
        %v4239 = vunpack.c.h.b16 %v4175
        %v4240 = vunpack.c.l.b16 %v4176
        %v4241 = vunpack.c.l.b16 %v4177
        %v4242 = vunpack.c.h.b16 %v4177
        %v4243 = vunpack.c.l.b16 %v4178
        %v4244 = vunpack.c.l.b16 %v4179
        %v4245 = vunpack.c.h.b16 %v4179
        %v4246 = vunpack.c.l.b16 %v4180
        %v4247 = vunpack.c.l.b16 %v4181
        %v4248 = vunpack.c.h.b16 %v4181
        %v4249 = vunpack.c.l.b16 %v4182
        %v4250 = vunpack.c.l.b16 %v4183
        %v4251 = vunpack.c.h.b16 %v4183
        %v4252 = vunpack.c.l.b16 %v4184
        %v4253 = vunpack.c.l.b16 %v4185
        %v4254 = vunpack.c.h.b16 %v4185
        %v4255 = vunpack.c.l.b16 %v4186
        %v4256 = vpack.c.b16 %v4235, %v4232
        %v4257 = vpack.c.b16 %v4236, %v4233
        %v4258 = vpack.c.b16 %v4237, %v4234
        %v4259 = vpack.c.b16 %v4241, %v4238
        %v4260 = vpack.c.b16 %v4242, %v4239
        %v4261 = vpack.c.b16 %v4243, %v4240
        %v4262 = vpack.c.b16 %v4247, %v4244
        %v4263 = vpack.c.b16 %v4248, %v4245
        %v4264 = vpack.c.b16 %v4249, %v4246
        %v4265 = vpack.c.b16 %v4253, %v4250
        %v4266 = vpack.c.b16 %v4254, %v4251
        %v4267 = vpack.c.b16 %v4255, %v4252
        %4268 = vrot.lane.b32.xlu0 %v4256, 124
        %v4269 = vpop.permute.xlu0 %4268
        %4270 = vrot.lane.b32.xlu0 %v4257, 124
        %v4271 = vpop.permute.xlu0 %4270
        %4272 = vrot.lane.b32.xlu0 %v4258, 124
        %v4273 = vpop.permute.xlu0 %4272
        %4274 = vrot.lane.b32.xlu0 %v4259, 124
        %v4275 = vpop.permute.xlu0 %4274
        %4276 = vrot.lane.b32.xlu0 %v4260, 124
        %v4277 = vpop.permute.xlu0 %4276
        %4278 = vrot.lane.b32.xlu0 %v4261, 124
        %v4279 = vpop.permute.xlu0 %4278
        %4280 = vrot.lane.b32.xlu0 %v4262, 124
        %v4281 = vpop.permute.xlu0 %4280
        %4282 = vrot.lane.b32.xlu0 %v4263, 124
        %v4283 = vpop.permute.xlu0 %4282
        %4284 = vrot.lane.b32.xlu0 %v4264, 124
        %v4285 = vpop.permute.xlu0 %4284
        %4286 = vrot.lane.b32.xlu0 %v4265, 124
        %v4287 = vpop.permute.xlu0 %4286
        %4288 = vrot.lane.b32.xlu0 %v4266, 124
        %v4289 = vpop.permute.xlu0 %4288
        %4290 = vrot.lane.b32.xlu0 %v4267, 124
        %v4291 = vpop.permute.xlu0 %4290
        %v4292 = vsel %vm1422, %v4269, %v4271
        %v4293 = vsel %vm1422, %v4271, %v4273
        %v4294 = vsel %vm1422, %v4275, %v4277
        %v4295 = vsel %vm1422, %v4277, %v4279
        %v4296 = vsel %vm1422, %v4281, %v4283
        %v4297 = vsel %vm1422, %v4283, %v4285
        %v4298 = vsel %vm1422, %v4287, %v4289
        %v4299 = vsel %vm1422, %v4289, %v4291
        %v4313 = vsel %vm1018, %v4212, 0
        %v4316 = vsel %vm1018, %v4213, 0
        %v4319 = vsel %vm1018, %v4214, 0
        %v4322 = vsel %vm1018, %v4215, 0
        %4324 = vmatprep.subr.bf16.mxu0 0
        %4325 = vmatpush1.bf16.msra.mxu0 0
        %4326 = vmatprep.subr.bf16.mxu0 0
        %4327 = vmatpush1.bf16.msra.mxu0 0
        %4328 = vmatprep.subr.bf16.mxu0 0
        %4329 = vmatpush1.bf16.msra.mxu0 0
        %4330 = vmatprep.subr.bf16.mxu0 0
        %4331 = vmatpush1.bf16.msra.mxu0 0
        %4332 = vmatprep.subr.bf16.mxu0 %v4299
        %4333 = vmatpush1.bf16.msra.mxu0 %v4298
        %4334 = vmatprep.subr.bf16.mxu0 %v4297
        %4335 = vmatpush1.bf16.msra.mxu0 %v4296
        %4336 = vmatprep.subr.bf16.mxu0 %v4295
        %4337 = vmatpush1.bf16.msra.mxu0 %v4294
        %4338 = vmatprep.subr.bf16.mxu0 %v4293
        %4339 = vmatpush1.bf16.msra.mxu0 %v4292
        %4340 = vmatprep.subr.bf16.mxu0 0
        %4341 = vmatpush2.bf16.msra.mxu0 0
        %4342 = vmatprep.subr.bf16.mxu0 0
        %4343 = vmatpush2.bf16.msra.mxu0 0
        %4344 = vmatprep.subr.bf16.mxu0 0
        %4345 = vmatpush2.bf16.msra.mxu0 0
        %4346 = vmatprep.subr.bf16.mxu0 0
        %4347 = vmatpush2.bf16.msra.mxu0 0
        %4348 = vmatprep.subr.bf16.mxu0 0
        %4349 = vmatpush2.bf16.msra.mxu0 0
        %4350 = vmatprep.subr.bf16.mxu0 0
        %4351 = vmatpush2.bf16.msra.mxu0 0
        %4352 = vmatprep.subr.bf16.mxu0 0
        %4353 = vmatpush2.bf16.msra.mxu0 0
        %4354 = vmatprep.subr.bf16.mxu0 0
        %4355 = vmatpush2.bf16.msra.mxu0 0
        %4356 = vmatprep.mubr.bf16.mxu0 0
        %4357 = vmatmul.mubr.bf16.gmra.mxu0 %v4313
        %v4358 = vpop.f32.mrf.mxu0
        %v4359 = vadd.f32 0.0, %v4358
        %v4360 = vpop.f32.mrf.mxu0
        %v4361 = vadd.f32 0.0, %v4360
        %v4362 = vpop.f32.mrf.mxu0
        %v4363 = vadd.f32 0.0, %v4362
        %v4364 = vpop.f32.mrf.mxu0
        %v4365 = vadd.f32 0.0, %v4364
        %4366 = vmatprep.mubr.bf16.mxu0 0
        %4367 = vmatmul.mubr.bf16.gmra.mxu0 %v4316
        %v4368 = vpop.f32.mrf.mxu0
        %v4369 = vadd.f32 0.0, %v4368
        %v4370 = vpop.f32.mrf.mxu0
        %v4371 = vadd.f32 0.0, %v4370
        %v4372 = vpop.f32.mrf.mxu0
        %v4373 = vadd.f32 0.0, %v4372
        %v4374 = vpop.f32.mrf.mxu0
        %v4375 = vadd.f32 0.0, %v4374
        %4376 = vmatprep.mubr.bf16.mxu0 0
        %4377 = vmatmul.mubr.bf16.gmra.mxu0 %v4319
        %v4378 = vpop.f32.mrf.mxu0
        %v4379 = vadd.f32 0.0, %v4378
        %v4380 = vpop.f32.mrf.mxu0
        %v4381 = vadd.f32 0.0, %v4380
        %v4382 = vpop.f32.mrf.mxu0
        %v4383 = vadd.f32 0.0, %v4382
        %v4384 = vpop.f32.mrf.mxu0
        %v4385 = vadd.f32 0.0, %v4384
        %4386 = vmatprep.mubr.bf16.mxu0 0
        %4387 = vmatmul.mubr.bf16.gmra.mxu0 %v4322
        %v4388 = vpop.f32.mrf.mxu0
        %v4389 = vadd.f32 0.0, %v4388
        %v4390 = vpop.f32.mrf.mxu0
        %v4391 = vadd.f32 0.0, %v4390
        %v4392 = vpop.f32.mrf.mxu0
        %v4393 = vadd.f32 0.0, %v4392
        %v4394 = vpop.f32.mrf.mxu0
        %v4395 = vadd.f32 0.0, %v4394
        %4396 = vdwg.mxu0
        %4397 = vmatprep.subr.bf16.mxu0 0
        %4398 = vmatpush1.bf16.msra.mxu0 0
        %4399 = vmatprep.subr.bf16.mxu0 0
        %4400 = vmatpush1.bf16.msra.mxu0 0
        %4401 = vmatprep.subr.bf16.mxu0 0
        %4402 = vmatpush1.bf16.msra.mxu0 0
        %4403 = vmatprep.subr.bf16.mxu0 0
        %4404 = vmatpush1.bf16.msra.mxu0 0
        %4405 = vmatprep.subr.bf16.mxu0 0
        %4406 = vmatpush1.bf16.msra.mxu0 %v4291
        %4407 = vmatprep.subr.bf16.mxu0 0
        %4408 = vmatpush1.bf16.msra.mxu0 %v4285
        %4409 = vmatprep.subr.bf16.mxu0 0
        %4410 = vmatpush1.bf16.msra.mxu0 %v4279
        %4411 = vmatprep.subr.bf16.mxu0 0
        %4412 = vmatpush1.bf16.msra.mxu0 %v4273
        %4413 = vmatprep.subr.bf16.mxu0 0
        %4414 = vmatpush2.bf16.msra.mxu0 0
        %4415 = vmatprep.subr.bf16.mxu0 0
        %4416 = vmatpush2.bf16.msra.mxu0 0
        %4417 = vmatprep.subr.bf16.mxu0 0
        %4418 = vmatpush2.bf16.msra.mxu0 0
        %4419 = vmatprep.subr.bf16.mxu0 0
        %4420 = vmatpush2.bf16.msra.mxu0 0
        %4421 = vmatprep.subr.bf16.mxu0 0
        %4422 = vmatpush2.bf16.msra.mxu0 0
        %4423 = vmatprep.subr.bf16.mxu0 0
        %4424 = vmatpush2.bf16.msra.mxu0 0
        %4425 = vmatprep.subr.bf16.mxu0 0
        %4426 = vmatpush2.bf16.msra.mxu0 0
        %4427 = vmatprep.subr.bf16.mxu0 0
        %4428 = vmatpush2.bf16.msra.mxu0 0
        %4429 = vmatprep.mubr.bf16.mxu0 0
        %4430 = vmatmul.mubr.bf16.gmra.mxu0 %v4313
        %v4431 = vpop.f32.mrf.mxu0
        %v4432 = vadd.f32 0.0, %v4431
        %v4433 = vpop.f32.mrf.mxu0
        %v4434 = vpop.f32.mrf.mxu0
        %v4435 = vadd.f32 0.0, %v4434
        %v4436 = vpop.f32.mrf.mxu0
        %4437 = vmatprep.mubr.bf16.mxu0 0
        %4438 = vmatmul.mubr.bf16.gmra.mxu0 %v4316
        %v4439 = vpop.f32.mrf.mxu0
        %v4440 = vadd.f32 0.0, %v4439
        %v4441 = vpop.f32.mrf.mxu0
        %v4442 = vpop.f32.mrf.mxu0
        %v4443 = vadd.f32 0.0, %v4442
        %v4444 = vpop.f32.mrf.mxu0
        %4445 = vmatprep.mubr.bf16.mxu0 0
        %4446 = vmatmul.mubr.bf16.gmra.mxu0 %v4319
        %v4447 = vpop.f32.mrf.mxu0
        %v4448 = vadd.f32 0.0, %v4447
        %v4449 = vpop.f32.mrf.mxu0
        %v4450 = vpop.f32.mrf.mxu0
        %v4451 = vadd.f32 0.0, %v4450
        %v4452 = vpop.f32.mrf.mxu0
        %4453 = vmatprep.mubr.bf16.mxu0 0
        %4454 = vmatmul.mubr.bf16.gmra.mxu0 %v4322
        %v4455 = vpop.f32.mrf.mxu0
        %v4456 = vadd.f32 0.0, %v4455
        %v4457 = vpop.f32.mrf.mxu0
        %v4458 = vpop.f32.mrf.mxu0
        %v4459 = vadd.f32 0.0, %v4458
        %v4460 = vpop.f32.mrf.mxu0
        %4461 = vdwg.mxu0
        %v4462 = vadd.f32 %v4002, %v4359
        %v4463 = vadd.f32 %v4004, %v4361
        %v4464 = vadd.f32 %v4075, %v4432
        %v4465 = vadd.f32 %v4006, %v4363
        %v4466 = vadd.f32 %v4008, %v4365
        %v4467 = vadd.f32 %v4078, %v4435
        %v4468 = vadd.f32 %v4012, %v4369
        %v4469 = vadd.f32 %v4014, %v4371
        %v4470 = vadd.f32 %v4083, %v4440
        %v4471 = vadd.f32 %v4016, %v4373
        %v4472 = vadd.f32 %v4018, %v4375
        %v4473 = vadd.f32 %v4086, %v4443
        %v4474 = vadd.f32 %v4022, %v4379
        %v4475 = vadd.f32 %v4024, %v4381
        %v4476 = vadd.f32 %v4091, %v4448
        %v4477 = vadd.f32 %v4026, %v4383
        %v4478 = vadd.f32 %v4028, %v4385
        %v4479 = vadd.f32 %v4094, %v4451
        %v4480 = vadd.f32 %v4032, %v4389
        %v4481 = vadd.f32 %v4034, %v4391
        %v4482 = vadd.f32 %v4099, %v4456
        %v4483 = vadd.f32 %v4036, %v4393
        %v4484 = vadd.f32 %v4038, %v4395
        %v4485 = vadd.f32 %v4102, %v4459
        %v4486 = vld [vmem:[#allocation3] sm:$0xff]
        %v4487 = vld [vmem:[#allocation3 + $0x8] sm:$0xf]
        %v4488 = vld [vmem:[#allocation3 + $0xc] sm:$0xff]
        %v4489 = vld [vmem:[#allocation3 + $0x14] sm:$0xf]
        %v4490 = vld [vmem:[#allocation3 + $0x18] sm:$0xff]
        %v4491 = vld [vmem:[#allocation3 + $0x20] sm:$0xf]
        %v4492 = vld [vmem:[#allocation3 + $0x24] sm:$0xff]
        %v4493 = vld [vmem:[#allocation3 + $0x2c] sm:$0xf]
        %v4494 = vld [vmem:[#allocation3 + $0x30] sm:$0xff]
        %v4495 = vld [vmem:[#allocation3 + $0x38] sm:$0xf]
        %v4496 = vld [vmem:[#allocation3 + $0x3c] sm:$0xff]
        %v4497 = vld [vmem:[#allocation3 + $0x44] sm:$0xf]
        %v4498 = vld [vmem:[#allocation3 + $0x48] sm:$0xff]
        %v4499 = vld [vmem:[#allocation3 + $0x50] sm:$0xf]
        %v4500 = vld [vmem:[#allocation3 + $0x54] sm:$0xff]
        %v4501 = vld [vmem:[#allocation3 + $0x5c] sm:$0xf]
        %4502 = vrot.lane.b32.xlu0 %v3568, 34
        %v4503 = vpop.permute.xlu0 %4502
        %4504 = vrot.lane.b32.xlu0 %v3569, 34
        %v4505 = vpop.permute.xlu0 %4504
        %v4506 = vrot.slane %v4503, 4
        %v4507 = vsel %vm776, %v4506, %v4503
        %v4508 = vsel %vm776, %v4506, %v4505
        %v4511 = vmul.bf16 %v4486, %v4507
        %v4512 = vmul.bf16 %v4487, %v4508
        %v4513 = vmul.bf16 %v4488, %v4507
        %v4514 = vmul.bf16 %v4489, %v4508
        %v4515 = vmul.bf16 %v4490, %v4507
        %v4516 = vmul.bf16 %v4491, %v4508
        %v4517 = vmul.bf16 %v4492, %v4507
        %v4518 = vmul.bf16 %v4493, %v4508
        %v4519 = vmul.bf16 %v4494, %v4507
        %v4520 = vmul.bf16 %v4495, %v4508
        %v4521 = vmul.bf16 %v4496, %v4507
        %v4522 = vmul.bf16 %v4497, %v4508
        %v4523 = vmul.bf16 %v4498, %v4507
        %v4524 = vmul.bf16 %v4499, %v4508
        %v4525 = vmul.bf16 %v4500, %v4507
        %v4526 = vmul.bf16 %v4501, %v4508
        %s4527 = scalar_lea.vmem [#allocation4], 96
        %v4528 = vld [vmem:[%s4527] sm:$0xf]
        %v4529 = vld [vmem:[%s4527 + $0x4] sm:$0xf]
        %v4530 = vld [vmem:[%s4527 + $0x8] sm:$0xf]
        %v4531 = vld [vmem:[%s4527 + $0xc] sm:$0xf]
        %v4532 = vld [vmem:[%s4527 + $0x10] sm:$0xf]
        %v4533 = vld [vmem:[%s4527 + $0x14] sm:$0xf]
        %v4534 = vld [vmem:[%s4527 + $0x18] sm:$0xf]
        %v4535 = vld [vmem:[%s4527 + $0x1c] sm:$0xf]
        %v4544 = vunpack.c.l.b16 %v4528
        %v4545 = vunpack.c.l.b16 %v4529
        %v4546 = vunpack.c.l.b16 %v4530
        %v4547 = vunpack.c.l.b16 %v4531
        %v4548 = vunpack.c.l.b16 %v4532
        %v4549 = vunpack.c.l.b16 %v4533
        %v4550 = vunpack.c.l.b16 %v4534
        %v4551 = vunpack.c.l.b16 %v4535
        %v4552 = vpack.c.b16 %v4545, %v4544
        %v4553 = vpack.c.b16 %v4547, %v4546
        %v4554 = vpack.c.b16 %v4549, %v4548
        %v4555 = vpack.c.b16 %v4551, %v4550
        %v4572 = vunpack.c.l.b16 %v4511
        %v4573 = vunpack.c.h.b16 %v4511
        %v4574 = vunpack.c.l.b16 %v4512
        %v4575 = vunpack.c.l.b16 %v4513
        %v4576 = vunpack.c.h.b16 %v4513
        %v4577 = vunpack.c.l.b16 %v4514
        %v4578 = vunpack.c.l.b16 %v4515
        %v4579 = vunpack.c.h.b16 %v4515
        %v4580 = vunpack.c.l.b16 %v4516
        %v4581 = vunpack.c.l.b16 %v4517
        %v4582 = vunpack.c.h.b16 %v4517
        %v4583 = vunpack.c.l.b16 %v4518
        %v4584 = vunpack.c.l.b16 %v4519
        %v4585 = vunpack.c.h.b16 %v4519
        %v4586 = vunpack.c.l.b16 %v4520
        %v4587 = vunpack.c.l.b16 %v4521
        %v4588 = vunpack.c.h.b16 %v4521
        %v4589 = vunpack.c.l.b16 %v4522
        %v4590 = vunpack.c.l.b16 %v4523
        %v4591 = vunpack.c.h.b16 %v4523
        %v4592 = vunpack.c.l.b16 %v4524
        %v4593 = vunpack.c.l.b16 %v4525
        %v4594 = vunpack.c.h.b16 %v4525
        %v4595 = vunpack.c.l.b16 %v4526
        %v4596 = vpack.c.b16 %v4575, %v4572
        %v4597 = vpack.c.b16 %v4576, %v4573
        %v4598 = vpack.c.b16 %v4577, %v4574
        %v4599 = vpack.c.b16 %v4581, %v4578
        %v4600 = vpack.c.b16 %v4582, %v4579
        %v4601 = vpack.c.b16 %v4583, %v4580
        %v4602 = vpack.c.b16 %v4587, %v4584
        %v4603 = vpack.c.b16 %v4588, %v4585
        %v4604 = vpack.c.b16 %v4589, %v4586
        %v4605 = vpack.c.b16 %v4593, %v4590
        %v4606 = vpack.c.b16 %v4594, %v4591
        %v4607 = vpack.c.b16 %v4595, %v4592
        %4608 = vrot.lane.b32.xlu0 %v4596, 94
        %v4609 = vpop.permute.xlu0 %4608
        %4610 = vrot.lane.b32.xlu0 %v4597, 94
        %v4611 = vpop.permute.xlu0 %4610
        %4612 = vrot.lane.b32.xlu0 %v4598, 94
        %v4613 = vpop.permute.xlu0 %4612
        %4614 = vrot.lane.b32.xlu0 %v4599, 94
        %v4615 = vpop.permute.xlu0 %4614
        %4616 = vrot.lane.b32.xlu0 %v4600, 94
        %v4617 = vpop.permute.xlu0 %4616
        %4618 = vrot.lane.b32.xlu0 %v4601, 94
        %v4619 = vpop.permute.xlu0 %4618
        %4620 = vrot.lane.b32.xlu0 %v4602, 94
        %v4621 = vpop.permute.xlu0 %4620
        %4622 = vrot.lane.b32.xlu0 %v4603, 94
        %v4623 = vpop.permute.xlu0 %4622
        %4624 = vrot.lane.b32.xlu0 %v4604, 94
        %v4625 = vpop.permute.xlu0 %4624
        %4626 = vrot.lane.b32.xlu0 %v4605, 94
        %v4627 = vpop.permute.xlu0 %4626
        %4628 = vrot.lane.b32.xlu0 %v4606, 94
        %v4629 = vpop.permute.xlu0 %4628
        %4630 = vrot.lane.b32.xlu0 %v4607, 94
        %v4631 = vpop.permute.xlu0 %4630
        %v4632 = vsel %vm1907, %v4609, %v4611
        %v4633 = vsel %vm1907, %v4611, %v4613
        %v4634 = vsel %vm1907, %v4615, %v4617
        %v4635 = vsel %vm1907, %v4617, %v4619
        %v4636 = vsel %vm1907, %v4621, %v4623
        %v4637 = vsel %vm1907, %v4623, %v4625
        %v4638 = vsel %vm1907, %v4627, %v4629
        %v4639 = vsel %vm1907, %v4629, %v4631
        %v4653 = vsel %vm1018, %v4552, 0
        %v4656 = vsel %vm1018, %v4553, 0
        %v4659 = vsel %vm1018, %v4554, 0
        %v4662 = vsel %vm1018, %v4555, 0
        %4664 = vmatprep.subr.bf16.mxu0 0
        %4665 = vmatpush1.bf16.msra.mxu0 0
        %4666 = vmatprep.subr.bf16.mxu0 0
        %4667 = vmatpush1.bf16.msra.mxu0 0
        %4668 = vmatprep.subr.bf16.mxu0 0
        %4669 = vmatpush1.bf16.msra.mxu0 0
        %4670 = vmatprep.subr.bf16.mxu0 0
        %4671 = vmatpush1.bf16.msra.mxu0 0
        %4672 = vmatprep.subr.bf16.mxu0 %v4639
        %4673 = vmatpush1.bf16.msra.mxu0 %v4638
        %4674 = vmatprep.subr.bf16.mxu0 %v4637
        %4675 = vmatpush1.bf16.msra.mxu0 %v4636
        %4676 = vmatprep.subr.bf16.mxu0 %v4635
        %4677 = vmatpush1.bf16.msra.mxu0 %v4634
        %4678 = vmatprep.subr.bf16.mxu0 %v4633
        %4679 = vmatpush1.bf16.msra.mxu0 %v4632
        %4680 = vmatprep.subr.bf16.mxu0 0
        %4681 = vmatpush2.bf16.msra.mxu0 0
        %4682 = vmatprep.subr.bf16.mxu0 0
        %4683 = vmatpush2.bf16.msra.mxu0 0
        %4684 = vmatprep.subr.bf16.mxu0 0
        %4685 = vmatpush2.bf16.msra.mxu0 0
        %4686 = vmatprep.subr.bf16.mxu0 0
        %4687 = vmatpush2.bf16.msra.mxu0 0
        %4688 = vmatprep.subr.bf16.mxu0 0
        %4689 = vmatpush2.bf16.msra.mxu0 0
        %4690 = vmatprep.subr.bf16.mxu0 0
        %4691 = vmatpush2.bf16.msra.mxu0 0
        %4692 = vmatprep.subr.bf16.mxu0 0
        %4693 = vmatpush2.bf16.msra.mxu0 0
        %4694 = vmatprep.subr.bf16.mxu0 0
        %4695 = vmatpush2.bf16.msra.mxu0 0
        %4696 = vmatprep.mubr.bf16.mxu0 0
        %4697 = vmatmul.mubr.bf16.gmra.mxu0 %v4653
        %v4698 = vpop.f32.mrf.mxu0
        %v4699 = vadd.f32 0.0, %v4698
        %v4700 = vpop.f32.mrf.mxu0
        %v4701 = vadd.f32 0.0, %v4700
        %v4702 = vpop.f32.mrf.mxu0
        %v4703 = vadd.f32 0.0, %v4702
        %v4704 = vpop.f32.mrf.mxu0
        %v4705 = vadd.f32 0.0, %v4704
        %4706 = vmatprep.mubr.bf16.mxu0 0
        %4707 = vmatmul.mubr.bf16.gmra.mxu0 %v4656
        %v4708 = vpop.f32.mrf.mxu0
        %v4709 = vadd.f32 0.0, %v4708
        %v4710 = vpop.f32.mrf.mxu0
        %v4711 = vadd.f32 0.0, %v4710
        %v4712 = vpop.f32.mrf.mxu0
        %v4713 = vadd.f32 0.0, %v4712
        %v4714 = vpop.f32.mrf.mxu0
        %v4715 = vadd.f32 0.0, %v4714
        %4716 = vmatprep.mubr.bf16.mxu0 0
        %4717 = vmatmul.mubr.bf16.gmra.mxu0 %v4659
        %v4718 = vpop.f32.mrf.mxu0
        %v4719 = vadd.f32 0.0, %v4718
        %v4720 = vpop.f32.mrf.mxu0
        %v4721 = vadd.f32 0.0, %v4720
        %v4722 = vpop.f32.mrf.mxu0
        %v4723 = vadd.f32 0.0, %v4722
        %v4724 = vpop.f32.mrf.mxu0
        %v4725 = vadd.f32 0.0, %v4724
        %4726 = vmatprep.mubr.bf16.mxu0 0
        %4727 = vmatmul.mubr.bf16.gmra.mxu0 %v4662
        %v4728 = vpop.f32.mrf.mxu0
        %v4729 = vadd.f32 0.0, %v4728
        %v4730 = vpop.f32.mrf.mxu0
        %v4731 = vadd.f32 0.0, %v4730
        %v4732 = vpop.f32.mrf.mxu0
        %v4733 = vadd.f32 0.0, %v4732
        %v4734 = vpop.f32.mrf.mxu0
        %v4735 = vadd.f32 0.0, %v4734
        %4736 = vdwg.mxu0
        %4737 = vmatprep.subr.bf16.mxu0 0
        %4738 = vmatpush1.bf16.msra.mxu0 0
        %4739 = vmatprep.subr.bf16.mxu0 0
        %4740 = vmatpush1.bf16.msra.mxu0 0
        %4741 = vmatprep.subr.bf16.mxu0 0
        %4742 = vmatpush1.bf16.msra.mxu0 0
        %4743 = vmatprep.subr.bf16.mxu0 0
        %4744 = vmatpush1.bf16.msra.mxu0 0
        %4745 = vmatprep.subr.bf16.mxu0 0
        %4746 = vmatpush1.bf16.msra.mxu0 %v4631
        %4747 = vmatprep.subr.bf16.mxu0 0
        %4748 = vmatpush1.bf16.msra.mxu0 %v4625
        %4749 = vmatprep.subr.bf16.mxu0 0
        %4750 = vmatpush1.bf16.msra.mxu0 %v4619
        %4751 = vmatprep.subr.bf16.mxu0 0
        %4752 = vmatpush1.bf16.msra.mxu0 %v4613
        %4753 = vmatprep.subr.bf16.mxu0 0
        %4754 = vmatpush2.bf16.msra.mxu0 0
        %4755 = vmatprep.subr.bf16.mxu0 0
        %4756 = vmatpush2.bf16.msra.mxu0 0
        %4757 = vmatprep.subr.bf16.mxu0 0
        %4758 = vmatpush2.bf16.msra.mxu0 0
        %4759 = vmatprep.subr.bf16.mxu0 0
        %4760 = vmatpush2.bf16.msra.mxu0 0
        %4761 = vmatprep.subr.bf16.mxu0 0
        %4762 = vmatpush2.bf16.msra.mxu0 0
        %4763 = vmatprep.subr.bf16.mxu0 0
        %4764 = vmatpush2.bf16.msra.mxu0 0
        %4765 = vmatprep.subr.bf16.mxu0 0
        %4766 = vmatpush2.bf16.msra.mxu0 0
        %4767 = vmatprep.subr.bf16.mxu0 0
        %4768 = vmatpush2.bf16.msra.mxu0 0
        %4769 = vmatprep.mubr.bf16.mxu0 0
        %4770 = vmatmul.mubr.bf16.gmra.mxu0 %v4653
        %v4771 = vpop.f32.mrf.mxu0
        %v4772 = vadd.f32 0.0, %v4771
        %v4773 = vpop.f32.mrf.mxu0
        %v4774 = vpop.f32.mrf.mxu0
        %v4775 = vadd.f32 0.0, %v4774
        %v4776 = vpop.f32.mrf.mxu0
        %4777 = vmatprep.mubr.bf16.mxu0 0
        %4778 = vmatmul.mubr.bf16.gmra.mxu0 %v4656
        %v4779 = vpop.f32.mrf.mxu0
        %v4780 = vadd.f32 0.0, %v4779
        %v4781 = vpop.f32.mrf.mxu0
        %v4782 = vpop.f32.mrf.mxu0
        %v4783 = vadd.f32 0.0, %v4782
        %v4784 = vpop.f32.mrf.mxu0
        %4785 = vmatprep.mubr.bf16.mxu0 0
        %4786 = vmatmul.mubr.bf16.gmra.mxu0 %v4659
        %v4787 = vpop.f32.mrf.mxu0
        %v4788 = vadd.f32 0.0, %v4787
        %v4789 = vpop.f32.mrf.mxu0
        %v4790 = vpop.f32.mrf.mxu0
        %v4791 = vadd.f32 0.0, %v4790
        %v4792 = vpop.f32.mrf.mxu0
        %4793 = vmatprep.mubr.bf16.mxu0 0
        %4794 = vmatmul.mubr.bf16.gmra.mxu0 %v4662
        %v4795 = vpop.f32.mrf.mxu0
        %v4796 = vadd.f32 0.0, %v4795
        %v4797 = vpop.f32.mrf.mxu0
        %v4798 = vpop.f32.mrf.mxu0
        %v4799 = vadd.f32 0.0, %v4798
        %v4800 = vpop.f32.mrf.mxu0
        %4801 = vdwg.mxu0
        %v4802 = vadd.f32 %v4462, %v4699
        %v4803 = vadd.f32 %v4463, %v4701
        %v4804 = vadd.f32 %v4464, %v4772
        %v4805 = vadd.f32 %v4465, %v4703
        %v4806 = vadd.f32 %v4466, %v4705
        %v4807 = vadd.f32 %v4467, %v4775
        %v4808 = vadd.f32 %v4468, %v4709
        %v4809 = vadd.f32 %v4469, %v4711
        %v4810 = vadd.f32 %v4470, %v4780
        %v4811 = vadd.f32 %v4471, %v4713
        %v4812 = vadd.f32 %v4472, %v4715
        %v4813 = vadd.f32 %v4473, %v4783
        %v4814 = vadd.f32 %v4474, %v4719
        %v4815 = vadd.f32 %v4475, %v4721
        %v4816 = vadd.f32 %v4476, %v4788
        %v4817 = vadd.f32 %v4477, %v4723
        %v4818 = vadd.f32 %v4478, %v4725
        %v4819 = vadd.f32 %v4479, %v4791
        %v4820 = vadd.f32 %v4480, %v4729
        %v4821 = vadd.f32 %v4481, %v4731
        %v4822 = vadd.f32 %v4482, %v4796
        %v4823 = vadd.f32 %v4483, %v4733
        %v4824 = vadd.f32 %v4484, %v4735
        %v4825 = vadd.f32 %v4485, %v4799
        %s4826 = scalar_lea.vmem [#allocation4], 128
        %v4827 = vld [vmem:[%s4826] sm:$0xf]
        %v4828 = vld [vmem:[%s4826 + $0x4] sm:$0xf]
        %v4829 = vld [vmem:[%s4826 + $0x8] sm:$0xf]
        %v4830 = vld [vmem:[%s4826 + $0xc] sm:$0xf]
        %v4831 = vld [vmem:[%s4826 + $0x10] sm:$0xf]
        %v4832 = vld [vmem:[%s4826 + $0x14] sm:$0xf]
        %v4833 = vld [vmem:[%s4826 + $0x18] sm:$0xf]
        %v4834 = vld [vmem:[%s4826 + $0x1c] sm:$0xf]
        %v4843 = vunpack.c.l.b16 %v4827
        %v4844 = vunpack.c.l.b16 %v4828
        %v4845 = vunpack.c.l.b16 %v4829
        %v4846 = vunpack.c.l.b16 %v4830
        %v4847 = vunpack.c.l.b16 %v4831
        %v4848 = vunpack.c.l.b16 %v4832
        %v4849 = vunpack.c.l.b16 %v4833
        %v4850 = vunpack.c.l.b16 %v4834
        %v4851 = vpack.c.b16 %v4844, %v4843
        %v4852 = vpack.c.b16 %v4846, %v4845
        %v4853 = vpack.c.b16 %v4848, %v4847
        %v4854 = vpack.c.b16 %v4850, %v4849
        %v4871 = vunpack.c.l.b16 %v4486
        %v4872 = vunpack.c.h.b16 %v4486
        %v4873 = vunpack.c.l.b16 %v4487
        %v4874 = vunpack.c.l.b16 %v4488
        %v4875 = vunpack.c.h.b16 %v4488
        %v4876 = vunpack.c.l.b16 %v4489
        %v4877 = vunpack.c.l.b16 %v4490
        %v4878 = vunpack.c.h.b16 %v4490
        %v4879 = vunpack.c.l.b16 %v4491
        %v4880 = vunpack.c.l.b16 %v4492
        %v4881 = vunpack.c.h.b16 %v4492
        %v4882 = vunpack.c.l.b16 %v4493
        %v4883 = vunpack.c.l.b16 %v4494
        %v4884 = vunpack.c.h.b16 %v4494
        %v4885 = vunpack.c.l.b16 %v4495
        %v4886 = vunpack.c.l.b16 %v4496
        %v4887 = vunpack.c.h.b16 %v4496
        %v4888 = vunpack.c.l.b16 %v4497
        %v4889 = vunpack.c.l.b16 %v4498
        %v4890 = vunpack.c.h.b16 %v4498
        %v4891 = vunpack.c.l.b16 %v4499
        %v4892 = vunpack.c.l.b16 %v4500
        %v4893 = vunpack.c.h.b16 %v4500
        %v4894 = vunpack.c.l.b16 %v4501
        %v4895 = vpack.c.b16 %v4874, %v4871
        %v4896 = vpack.c.b16 %v4875, %v4872
        %v4897 = vpack.c.b16 %v4876, %v4873
        %v4898 = vpack.c.b16 %v4880, %v4877
        %v4899 = vpack.c.b16 %v4881, %v4878
        %v4900 = vpack.c.b16 %v4882, %v4879
        %v4901 = vpack.c.b16 %v4886, %v4883
        %v4902 = vpack.c.b16 %v4887, %v4884
        %v4903 = vpack.c.b16 %v4888, %v4885
        %v4904 = vpack.c.b16 %v4892, %v4889
        %v4905 = vpack.c.b16 %v4893, %v4890
        %v4906 = vpack.c.b16 %v4894, %v4891
        %4907 = vrot.lane.b32.xlu0 %v4895, 92
        %v4908 = vpop.permute.xlu0 %4907
        %4909 = vrot.lane.b32.xlu0 %v4896, 92
        %v4910 = vpop.permute.xlu0 %4909
        %4911 = vrot.lane.b32.xlu0 %v4897, 92
        %v4912 = vpop.permute.xlu0 %4911
        %4913 = vrot.lane.b32.xlu0 %v4898, 92
        %v4914 = vpop.permute.xlu0 %4913
        %4915 = vrot.lane.b32.xlu0 %v4899, 92
        %v4916 = vpop.permute.xlu0 %4915
        %4917 = vrot.lane.b32.xlu0 %v4900, 92
        %v4918 = vpop.permute.xlu0 %4917
        %4919 = vrot.lane.b32.xlu0 %v4901, 92
        %v4920 = vpop.permute.xlu0 %4919
        %4921 = vrot.lane.b32.xlu0 %v4902, 92
        %v4922 = vpop.permute.xlu0 %4921
        %4923 = vrot.lane.b32.xlu0 %v4903, 92
        %v4924 = vpop.permute.xlu0 %4923
        %4925 = vrot.lane.b32.xlu0 %v4904, 92
        %v4926 = vpop.permute.xlu0 %4925
        %4927 = vrot.lane.b32.xlu0 %v4905, 92
        %v4928 = vpop.permute.xlu0 %4927
        %4929 = vrot.lane.b32.xlu0 %v4906, 92
        %v4930 = vpop.permute.xlu0 %4929
        %v4931 = vsel %vm2153, %v4908, %v4910
        %v4932 = vsel %vm2153, %v4910, %v4912
        %v4933 = vsel %vm2153, %v4914, %v4916
        %v4934 = vsel %vm2153, %v4916, %v4918
        %v4935 = vsel %vm2153, %v4920, %v4922
        %v4936 = vsel %vm2153, %v4922, %v4924
        %v4937 = vsel %vm2153, %v4926, %v4928
        %v4938 = vsel %vm2153, %v4928, %v4930
        %v4952 = vsel %vm1018, %v4851, 0
        %v4955 = vsel %vm1018, %v4852, 0
        %v4958 = vsel %vm1018, %v4853, 0
        %v4961 = vsel %vm1018, %v4854, 0
        %4963 = vmatprep.subr.bf16.mxu0 0
        %4964 = vmatpush1.bf16.msra.mxu0 0
        %4965 = vmatprep.subr.bf16.mxu0 0
        %4966 = vmatpush1.bf16.msra.mxu0 0
        %4967 = vmatprep.subr.bf16.mxu0 0
        %4968 = vmatpush1.bf16.msra.mxu0 0
        %4969 = vmatprep.subr.bf16.mxu0 0
        %4970 = vmatpush1.bf16.msra.mxu0 0
        %4971 = vmatprep.subr.bf16.mxu0 %v4938
        %4972 = vmatpush1.bf16.msra.mxu0 %v4937
        %4973 = vmatprep.subr.bf16.mxu0 %v4936
        %4974 = vmatpush1.bf16.msra.mxu0 %v4935
        %4975 = vmatprep.subr.bf16.mxu0 %v4934
        %4976 = vmatpush1.bf16.msra.mxu0 %v4933
        %4977 = vmatprep.subr.bf16.mxu0 %v4932
        %4978 = vmatpush1.bf16.msra.mxu0 %v4931
        %4979 = vmatprep.subr.bf16.mxu0 0
        %4980 = vmatpush2.bf16.msra.mxu0 0
        %4981 = vmatprep.subr.bf16.mxu0 0
        %4982 = vmatpush2.bf16.msra.mxu0 0
        %4983 = vmatprep.subr.bf16.mxu0 0
        %4984 = vmatpush2.bf16.msra.mxu0 0
        %4985 = vmatprep.subr.bf16.mxu0 0
        %4986 = vmatpush2.bf16.msra.mxu0 0
        %4987 = vmatprep.subr.bf16.mxu0 0
        %4988 = vmatpush2.bf16.msra.mxu0 0
        %4989 = vmatprep.subr.bf16.mxu0 0
        %4990 = vmatpush2.bf16.msra.mxu0 0
        %4991 = vmatprep.subr.bf16.mxu0 0
        %4992 = vmatpush2.bf16.msra.mxu0 0
        %4993 = vmatprep.subr.bf16.mxu0 0
        %4994 = vmatpush2.bf16.msra.mxu0 0
        %4995 = vmatprep.mubr.bf16.mxu0 0
        %4996 = vmatmul.mubr.bf16.gmra.mxu0 %v4952
        %v4997 = vpop.f32.mrf.mxu0
        %v4998 = vadd.f32 0.0, %v4997
        %v4999 = vpop.f32.mrf.mxu0
        %v5000 = vadd.f32 0.0, %v4999
        %v5001 = vpop.f32.mrf.mxu0
        %v5002 = vadd.f32 0.0, %v5001
        %v5003 = vpop.f32.mrf.mxu0
        %v5004 = vadd.f32 0.0, %v5003
        %5005 = vmatprep.mubr.bf16.mxu0 0
        %5006 = vmatmul.mubr.bf16.gmra.mxu0 %v4955
        %v5007 = vpop.f32.mrf.mxu0
        %v5008 = vadd.f32 0.0, %v5007
        %v5009 = vpop.f32.mrf.mxu0
        %v5010 = vadd.f32 0.0, %v5009
        %v5011 = vpop.f32.mrf.mxu0
        %v5012 = vadd.f32 0.0, %v5011
        %v5013 = vpop.f32.mrf.mxu0
        %v5014 = vadd.f32 0.0, %v5013
        %5015 = vmatprep.mubr.bf16.mxu0 0
        %5016 = vmatmul.mubr.bf16.gmra.mxu0 %v4958
        %v5017 = vpop.f32.mrf.mxu0
        %v5018 = vadd.f32 0.0, %v5017
        %v5019 = vpop.f32.mrf.mxu0
        %v5020 = vadd.f32 0.0, %v5019
        %v5021 = vpop.f32.mrf.mxu0
        %v5022 = vadd.f32 0.0, %v5021
        %v5023 = vpop.f32.mrf.mxu0
        %v5024 = vadd.f32 0.0, %v5023
        %5025 = vmatprep.mubr.bf16.mxu0 0
        %5026 = vmatmul.mubr.bf16.gmra.mxu0 %v4961
        %v5027 = vpop.f32.mrf.mxu0
        %v5028 = vadd.f32 0.0, %v5027
        %v5029 = vpop.f32.mrf.mxu0
        %v5030 = vadd.f32 0.0, %v5029
        %v5031 = vpop.f32.mrf.mxu0
        %v5032 = vadd.f32 0.0, %v5031
        %v5033 = vpop.f32.mrf.mxu0
        %v5034 = vadd.f32 0.0, %v5033
        %5035 = vdwg.mxu0
        %5036 = vmatprep.subr.bf16.mxu0 0
        %5037 = vmatpush1.bf16.msra.mxu0 0
        %5038 = vmatprep.subr.bf16.mxu0 0
        %5039 = vmatpush1.bf16.msra.mxu0 0
        %5040 = vmatprep.subr.bf16.mxu0 0
        %5041 = vmatpush1.bf16.msra.mxu0 0
        %5042 = vmatprep.subr.bf16.mxu0 0
        %5043 = vmatpush1.bf16.msra.mxu0 0
        %5044 = vmatprep.subr.bf16.mxu0 0
        %5045 = vmatpush1.bf16.msra.mxu0 %v4930
        %5046 = vmatprep.subr.bf16.mxu0 0
        %5047 = vmatpush1.bf16.msra.mxu0 %v4924
        %5048 = vmatprep.subr.bf16.mxu0 0
        %5049 = vmatpush1.bf16.msra.mxu0 %v4918
        %5050 = vmatprep.subr.bf16.mxu0 0
        %5051 = vmatpush1.bf16.msra.mxu0 %v4912
        %5052 = vmatprep.subr.bf16.mxu0 0
        %5053 = vmatpush2.bf16.msra.mxu0 0
        %5054 = vmatprep.subr.bf16.mxu0 0
        %5055 = vmatpush2.bf16.msra.mxu0 0
        %5056 = vmatprep.subr.bf16.mxu0 0
        %5057 = vmatpush2.bf16.msra.mxu0 0
        %5058 = vmatprep.subr.bf16.mxu0 0
        %5059 = vmatpush2.bf16.msra.mxu0 0
        %5060 = vmatprep.subr.bf16.mxu0 0
        %5061 = vmatpush2.bf16.msra.mxu0 0
        %5062 = vmatprep.subr.bf16.mxu0 0
        %5063 = vmatpush2.bf16.msra.mxu0 0
        %5064 = vmatprep.subr.bf16.mxu0 0
        %5065 = vmatpush2.bf16.msra.mxu0 0
        %5066 = vmatprep.subr.bf16.mxu0 0
        %5067 = vmatpush2.bf16.msra.mxu0 0
        %5068 = vmatprep.mubr.bf16.mxu0 0
        %5069 = vmatmul.mubr.bf16.gmra.mxu0 %v4952
        %v5070 = vpop.f32.mrf.mxu0
        %v5071 = vadd.f32 0.0, %v5070
        %v5072 = vpop.f32.mrf.mxu0
        %v5073 = vpop.f32.mrf.mxu0
        %v5074 = vadd.f32 0.0, %v5073
        %v5075 = vpop.f32.mrf.mxu0
        %5076 = vmatprep.mubr.bf16.mxu0 0
        %5077 = vmatmul.mubr.bf16.gmra.mxu0 %v4955
        %v5078 = vpop.f32.mrf.mxu0
        %v5079 = vadd.f32 0.0, %v5078
        %v5080 = vpop.f32.mrf.mxu0
        %v5081 = vpop.f32.mrf.mxu0
        %v5082 = vadd.f32 0.0, %v5081
        %v5083 = vpop.f32.mrf.mxu0
        %5084 = vmatprep.mubr.bf16.mxu0 0
        %5085 = vmatmul.mubr.bf16.gmra.mxu0 %v4958
        %v5086 = vpop.f32.mrf.mxu0
        %v5087 = vadd.f32 0.0, %v5086
        %v5088 = vpop.f32.mrf.mxu0
        %v5089 = vpop.f32.mrf.mxu0
        %v5090 = vadd.f32 0.0, %v5089
        %v5091 = vpop.f32.mrf.mxu0
        %5092 = vmatprep.mubr.bf16.mxu0 0
        %5093 = vmatmul.mubr.bf16.gmra.mxu0 %v4961
        %v5094 = vpop.f32.mrf.mxu0
        %v5095 = vadd.f32 0.0, %v5094
        %v5096 = vpop.f32.mrf.mxu0
        %v5097 = vpop.f32.mrf.mxu0
        %v5098 = vadd.f32 0.0, %v5097
        %v5099 = vpop.f32.mrf.mxu0
        %5100 = vdwg.mxu0
        %v5101 = vadd.f32 %v4802, %v4998
        %v5102 = vadd.f32 %v4803, %v5000
        %v5103 = vadd.f32 %v4804, %v5071
        %v5104 = vadd.f32 %v4805, %v5002
        %v5105 = vadd.f32 %v4806, %v5004
        %v5106 = vadd.f32 %v4807, %v5074
        %v5107 = vadd.f32 %v4808, %v5008
        %v5108 = vadd.f32 %v4809, %v5010
        %v5109 = vadd.f32 %v4810, %v5079
        %v5110 = vadd.f32 %v4811, %v5012
        %v5111 = vadd.f32 %v4812, %v5014
        %v5112 = vadd.f32 %v4813, %v5082
        %v5113 = vadd.f32 %v4814, %v5018
        %v5114 = vadd.f32 %v4815, %v5020
        %v5115 = vadd.f32 %v4816, %v5087
        %v5116 = vadd.f32 %v4817, %v5022
        %v5117 = vadd.f32 %v4818, %v5024
        %v5118 = vadd.f32 %v4819, %v5090
        %v5119 = vadd.f32 %v4820, %v5028
        %v5120 = vadd.f32 %v4821, %v5030
        %v5121 = vadd.f32 %v4822, %v5095
        %v5122 = vadd.f32 %v4823, %v5032
        %v5123 = vadd.f32 %v4824, %v5034
        %v5124 = vadd.f32 %v4825, %v5098
        %5125 = vrot.lane.b32.xlu0 %v4160, 38
        %v5126 = vpop.permute.xlu0 %5125
        %5127 = vrot.lane.b32.xlu0 %v4161, 38
        %v5128 = vpop.permute.xlu0 %5127
        %v5129 = vrot.slane %v5126, 4
        %vm5130 = vcmask 310272
        %v5131 = vsel %vm5130, %v5129, %v5126
        %v5132 = vsel %vm5130, %v5129, %v5128
        %v5135 = vmul.bf16 %v4486, %v5131
        %v5136 = vmul.bf16 %v4487, %v5132
        %v5137 = vmul.bf16 %v4488, %v5131
        %v5138 = vmul.bf16 %v4489, %v5132
        %v5139 = vmul.bf16 %v4490, %v5131
        %v5140 = vmul.bf16 %v4491, %v5132
        %v5141 = vmul.bf16 %v4492, %v5131
        %v5142 = vmul.bf16 %v4493, %v5132
        %v5143 = vmul.bf16 %v4494, %v5131
        %v5144 = vmul.bf16 %v4495, %v5132
        %v5145 = vmul.bf16 %v4496, %v5131
        %v5146 = vmul.bf16 %v4497, %v5132
        %v5147 = vmul.bf16 %v4498, %v5131
        %v5148 = vmul.bf16 %v4499, %v5132
        %v5149 = vmul.bf16 %v4500, %v5131
        %v5150 = vmul.bf16 %v4501, %v5132
        %s5151 = scalar_lea.vmem [#allocation4], 160
        %v5152 = vld [vmem:[%s5151] sm:$0xf]
        %v5153 = vld [vmem:[%s5151 + $0x4] sm:$0xf]
        %v5154 = vld [vmem:[%s5151 + $0x8] sm:$0xf]
        %v5155 = vld [vmem:[%s5151 + $0xc] sm:$0xf]
        %v5156 = vld [vmem:[%s5151 + $0x10] sm:$0xf]
        %v5157 = vld [vmem:[%s5151 + $0x14] sm:$0xf]
        %v5158 = vld [vmem:[%s5151 + $0x18] sm:$0xf]
        %v5159 = vld [vmem:[%s5151 + $0x1c] sm:$0xf]
        %v5168 = vunpack.c.l.b16 %v5152
        %v5169 = vunpack.c.l.b16 %v5153
        %v5170 = vunpack.c.l.b16 %v5154
        %v5171 = vunpack.c.l.b16 %v5155
        %v5172 = vunpack.c.l.b16 %v5156
        %v5173 = vunpack.c.l.b16 %v5157
        %v5174 = vunpack.c.l.b16 %v5158
        %v5175 = vunpack.c.l.b16 %v5159
        %v5176 = vpack.c.b16 %v5169, %v5168
        %v5177 = vpack.c.b16 %v5171, %v5170
        %v5178 = vpack.c.b16 %v5173, %v5172
        %v5179 = vpack.c.b16 %v5175, %v5174
        %v5196 = vunpack.c.l.b16 %v5135
        %v5197 = vunpack.c.h.b16 %v5135
        %v5198 = vunpack.c.l.b16 %v5136
        %v5199 = vunpack.c.l.b16 %v5137
        %v5200 = vunpack.c.h.b16 %v5137
        %v5201 = vunpack.c.l.b16 %v5138
        %v5202 = vunpack.c.l.b16 %v5139
        %v5203 = vunpack.c.h.b16 %v5139
        %v5204 = vunpack.c.l.b16 %v5140
        %v5205 = vunpack.c.l.b16 %v5141
        %v5206 = vunpack.c.h.b16 %v5141
        %v5207 = vunpack.c.l.b16 %v5142
        %v5208 = vunpack.c.l.b16 %v5143
        %v5209 = vunpack.c.h.b16 %v5143
        %v5210 = vunpack.c.l.b16 %v5144
        %v5211 = vunpack.c.l.b16 %v5145
        %v5212 = vunpack.c.h.b16 %v5145
        %v5213 = vunpack.c.l.b16 %v5146
        %v5214 = vunpack.c.l.b16 %v5147
        %v5215 = vunpack.c.h.b16 %v5147
        %v5216 = vunpack.c.l.b16 %v5148
        %v5217 = vunpack.c.l.b16 %v5149
        %v5218 = vunpack.c.h.b16 %v5149
        %v5219 = vunpack.c.l.b16 %v5150
        %v5220 = vpack.c.b16 %v5199, %v5196
        %v5221 = vpack.c.b16 %v5200, %v5197
        %v5222 = vpack.c.b16 %v5201, %v5198
        %v5223 = vpack.c.b16 %v5205, %v5202
        %v5224 = vpack.c.b16 %v5206, %v5203
        %v5225 = vpack.c.b16 %v5207, %v5204
        %v5226 = vpack.c.b16 %v5211, %v5208
        %v5227 = vpack.c.b16 %v5212, %v5209
        %v5228 = vpack.c.b16 %v5213, %v5210
        %v5229 = vpack.c.b16 %v5217, %v5214
        %v5230 = vpack.c.b16 %v5218, %v5215
        %v5231 = vpack.c.b16 %v5219, %v5216
        %5232 = vrot.lane.b32.xlu0 %v5220, 90
        %v5233 = vpop.permute.xlu0 %5232
        %5234 = vrot.lane.b32.xlu0 %v5221, 90
        %v5235 = vpop.permute.xlu0 %5234
        %5236 = vrot.lane.b32.xlu0 %v5222, 90
        %v5237 = vpop.permute.xlu0 %5236
        %5238 = vrot.lane.b32.xlu0 %v5223, 90
        %v5239 = vpop.permute.xlu0 %5238
        %5240 = vrot.lane.b32.xlu0 %v5224, 90
        %v5241 = vpop.permute.xlu0 %5240
        %5242 = vrot.lane.b32.xlu0 %v5225, 90
        %v5243 = vpop.permute.xlu0 %5242
        %5244 = vrot.lane.b32.xlu0 %v5226, 90
        %v5245 = vpop.permute.xlu0 %5244
        %5246 = vrot.lane.b32.xlu0 %v5227, 90
        %v5247 = vpop.permute.xlu0 %5246
        %5248 = vrot.lane.b32.xlu0 %v5228, 90
        %v5249 = vpop.permute.xlu0 %5248
        %5250 = vrot.lane.b32.xlu0 %v5229, 90
        %v5251 = vpop.permute.xlu0 %5250
        %5252 = vrot.lane.b32.xlu0 %v5230, 90
        %v5253 = vpop.permute.xlu0 %5252
        %5254 = vrot.lane.b32.xlu0 %v5231, 90
        %v5255 = vpop.permute.xlu0 %5254
        %vm5256 = vcmask 736256
        %v5257 = vsel %vm5256, %v5233, %v5235
        %v5258 = vsel %vm5256, %v5235, %v5237
        %v5259 = vsel %vm5256, %v5239, %v5241
        %v5260 = vsel %vm5256, %v5241, %v5243
        %v5261 = vsel %vm5256, %v5245, %v5247
        %v5262 = vsel %vm5256, %v5247, %v5249
        %v5263 = vsel %vm5256, %v5251, %v5253
        %v5264 = vsel %vm5256, %v5253, %v5255
        %v5278 = vsel %vm1018, %v5176, 0
        %v5281 = vsel %vm1018, %v5177, 0
        %v5284 = vsel %vm1018, %v5178, 0
        %v5287 = vsel %vm1018, %v5179, 0
        %5289 = vmatprep.subr.bf16.mxu0 0
        %5290 = vmatpush1.bf16.msra.mxu0 0
        %5291 = vmatprep.subr.bf16.mxu0 0
        %5292 = vmatpush1.bf16.msra.mxu0 0
        %5293 = vmatprep.subr.bf16.mxu0 0
        %5294 = vmatpush1.bf16.msra.mxu0 0
        %5295 = vmatprep.subr.bf16.mxu0 0
        %5296 = vmatpush1.bf16.msra.mxu0 0
        %5297 = vmatprep.subr.bf16.mxu0 %v5264
        %5298 = vmatpush1.bf16.msra.mxu0 %v5263
        %5299 = vmatprep.subr.bf16.mxu0 %v5262
        %5300 = vmatpush1.bf16.msra.mxu0 %v5261
        %5301 = vmatprep.subr.bf16.mxu0 %v5260
        %5302 = vmatpush1.bf16.msra.mxu0 %v5259
        %5303 = vmatprep.subr.bf16.mxu0 %v5258
        %5304 = vmatpush1.bf16.msra.mxu0 %v5257
        %5305 = vmatprep.subr.bf16.mxu0 0
        %5306 = vmatpush2.bf16.msra.mxu0 0
        %5307 = vmatprep.subr.bf16.mxu0 0
        %5308 = vmatpush2.bf16.msra.mxu0 0
        %5309 = vmatprep.subr.bf16.mxu0 0
        %5310 = vmatpush2.bf16.msra.mxu0 0
        %5311 = vmatprep.subr.bf16.mxu0 0
        %5312 = vmatpush2.bf16.msra.mxu0 0
        %5313 = vmatprep.subr.bf16.mxu0 0
        %5314 = vmatpush2.bf16.msra.mxu0 0
        %5315 = vmatprep.subr.bf16.mxu0 0
        %5316 = vmatpush2.bf16.msra.mxu0 0
        %5317 = vmatprep.subr.bf16.mxu0 0
        %5318 = vmatpush2.bf16.msra.mxu0 0
        %5319 = vmatprep.subr.bf16.mxu0 0
        %5320 = vmatpush2.bf16.msra.mxu0 0
        %5321 = vmatprep.mubr.bf16.mxu0 0
        %5322 = vmatmul.mubr.bf16.gmra.mxu0 %v5278
        %v5323 = vpop.f32.mrf.mxu0
        %v5324 = vadd.f32 0.0, %v5323
        %v5325 = vpop.f32.mrf.mxu0
        %v5326 = vadd.f32 0.0, %v5325
        %v5327 = vpop.f32.mrf.mxu0
        %v5328 = vadd.f32 0.0, %v5327
        %v5329 = vpop.f32.mrf.mxu0
        %v5330 = vadd.f32 0.0, %v5329
        %5331 = vmatprep.mubr.bf16.mxu0 0
        %5332 = vmatmul.mubr.bf16.gmra.mxu0 %v5281
        %v5333 = vpop.f32.mrf.mxu0
        %v5334 = vadd.f32 0.0, %v5333
        %v5335 = vpop.f32.mrf.mxu0
        %v5336 = vadd.f32 0.0, %v5335
        %v5337 = vpop.f32.mrf.mxu0
        %v5338 = vadd.f32 0.0, %v5337
        %v5339 = vpop.f32.mrf.mxu0
        %v5340 = vadd.f32 0.0, %v5339
        %5341 = vmatprep.mubr.bf16.mxu0 0
        %5342 = vmatmul.mubr.bf16.gmra.mxu0 %v5284
        %v5343 = vpop.f32.mrf.mxu0
        %v5344 = vadd.f32 0.0, %v5343
        %v5345 = vpop.f32.mrf.mxu0
        %v5346 = vadd.f32 0.0, %v5345
        %v5347 = vpop.f32.mrf.mxu0
        %v5348 = vadd.f32 0.0, %v5347
        %v5349 = vpop.f32.mrf.mxu0
        %v5350 = vadd.f32 0.0, %v5349
        %5351 = vmatprep.mubr.bf16.mxu0 0
        %5352 = vmatmul.mubr.bf16.gmra.mxu0 %v5287
        %v5353 = vpop.f32.mrf.mxu0
        %v5354 = vadd.f32 0.0, %v5353
        %v5355 = vpop.f32.mrf.mxu0
        %v5356 = vadd.f32 0.0, %v5355
        %v5357 = vpop.f32.mrf.mxu0
        %v5358 = vadd.f32 0.0, %v5357
        %v5359 = vpop.f32.mrf.mxu0
        %v5360 = vadd.f32 0.0, %v5359
        %5361 = vdwg.mxu0
        %5362 = vmatprep.subr.bf16.mxu0 0
        %5363 = vmatpush1.bf16.msra.mxu0 0
        %5364 = vmatprep.subr.bf16.mxu0 0
        %5365 = vmatpush1.bf16.msra.mxu0 0
        %5366 = vmatprep.subr.bf16.mxu0 0
        %5367 = vmatpush1.bf16.msra.mxu0 0
        %5368 = vmatprep.subr.bf16.mxu0 0
        %5369 = vmatpush1.bf16.msra.mxu0 0
        %5370 = vmatprep.subr.bf16.mxu0 0
        %5371 = vmatpush1.bf16.msra.mxu0 %v5255
        %5372 = vmatprep.subr.bf16.mxu0 0
        %5373 = vmatpush1.bf16.msra.mxu0 %v5249
        %5374 = vmatprep.subr.bf16.mxu0 0
        %5375 = vmatpush1.bf16.msra.mxu0 %v5243
        %5376 = vmatprep.subr.bf16.mxu0 0
        %5377 = vmatpush1.bf16.msra.mxu0 %v5237
        %5378 = vmatprep.subr.bf16.mxu0 0
        %5379 = vmatpush2.bf16.msra.mxu0 0
        %5380 = vmatprep.subr.bf16.mxu0 0
        %5381 = vmatpush2.bf16.msra.mxu0 0
        %5382 = vmatprep.subr.bf16.mxu0 0
        %5383 = vmatpush2.bf16.msra.mxu0 0
        %5384 = vmatprep.subr.bf16.mxu0 0
        %5385 = vmatpush2.bf16.msra.mxu0 0
        %5386 = vmatprep.subr.bf16.mxu0 0
        %5387 = vmatpush2.bf16.msra.mxu0 0
        %5388 = vmatprep.subr.bf16.mxu0 0
        %5389 = vmatpush2.bf16.msra.mxu0 0
        %5390 = vmatprep.subr.bf16.mxu0 0
        %5391 = vmatpush2.bf16.msra.mxu0 0
        %5392 = vmatprep.subr.bf16.mxu0 0
        %5393 = vmatpush2.bf16.msra.mxu0 0
        %5394 = vmatprep.mubr.bf16.mxu0 0
        %5395 = vmatmul.mubr.bf16.gmra.mxu0 %v5278
        %v5396 = vpop.f32.mrf.mxu0
        %v5397 = vadd.f32 0.0, %v5396
        %v5398 = vpop.f32.mrf.mxu0
        %v5399 = vpop.f32.mrf.mxu0
        %v5400 = vadd.f32 0.0, %v5399
        %v5401 = vpop.f32.mrf.mxu0
        %5402 = vmatprep.mubr.bf16.mxu0 0
        %5403 = vmatmul.mubr.bf16.gmra.mxu0 %v5281
        %v5404 = vpop.f32.mrf.mxu0
        %v5405 = vadd.f32 0.0, %v5404
        %v5406 = vpop.f32.mrf.mxu0
        %v5407 = vpop.f32.mrf.mxu0
        %v5408 = vadd.f32 0.0, %v5407
        %v5409 = vpop.f32.mrf.mxu0
        %5410 = vmatprep.mubr.bf16.mxu0 0
        %5411 = vmatmul.mubr.bf16.gmra.mxu0 %v5284
        %v5412 = vpop.f32.mrf.mxu0
        %v5413 = vadd.f32 0.0, %v5412
        %v5414 = vpop.f32.mrf.mxu0
        %v5415 = vpop.f32.mrf.mxu0
        %v5416 = vadd.f32 0.0, %v5415
        %v5417 = vpop.f32.mrf.mxu0
        %5418 = vmatprep.mubr.bf16.mxu0 0
        %5419 = vmatmul.mubr.bf16.gmra.mxu0 %v5287
        %v5420 = vpop.f32.mrf.mxu0
        %v5421 = vadd.f32 0.0, %v5420
        %v5422 = vpop.f32.mrf.mxu0
        %v5423 = vpop.f32.mrf.mxu0
        %v5424 = vadd.f32 0.0, %v5423
        %v5425 = vpop.f32.mrf.mxu0
        %5426 = vdwg.mxu0
        %v5427 = vadd.f32 %v5101, %v5324
        %v5428 = vadd.f32 %v5102, %v5326
        %v5429 = vadd.f32 %v5103, %v5397
        %v5430 = vadd.f32 %v5104, %v5328
        %v5431 = vadd.f32 %v5105, %v5330
        %v5432 = vadd.f32 %v5106, %v5400
        %v5433 = vadd.f32 %v5107, %v5334
        %v5434 = vadd.f32 %v5108, %v5336
        %v5435 = vadd.f32 %v5109, %v5405
        %v5436 = vadd.f32 %v5110, %v5338
        %v5437 = vadd.f32 %v5111, %v5340
        %v5438 = vadd.f32 %v5112, %v5408
        %v5439 = vadd.f32 %v5113, %v5344
        %v5440 = vadd.f32 %v5114, %v5346
        %v5441 = vadd.f32 %v5115, %v5413
        %v5442 = vadd.f32 %v5116, %v5348
        %v5443 = vadd.f32 %v5117, %v5350
        %v5444 = vadd.f32 %v5118, %v5416
        %v5445 = vadd.f32 %v5119, %v5354
        %v5446 = vadd.f32 %v5120, %v5356
        %v5447 = vadd.f32 %v5121, %v5421
        %v5448 = vadd.f32 %v5122, %v5358
        %v5449 = vadd.f32 %v5123, %v5360
        %v5450 = vadd.f32 %v5124, %v5424
        %5451 = vrot.lane.b32.xlu0 %v3568, 68
        %v5452 = vpop.permute.xlu0 %5451
        %5453 = vrot.lane.b32.xlu0 %v3569, 68
        %v5454 = vpop.permute.xlu0 %5453
        %v5455 = vrot.slane %v5452, 4
        %v5456 = vsel %vm2690, %v5455, %v5452
        %v5457 = vsel %vm2690, %v5455, %v5454
        %v5460 = vmul.bf16 %v4486, %v5456
        %v5461 = vmul.bf16 %v4487, %v5457
        %v5462 = vmul.bf16 %v4488, %v5456
        %v5463 = vmul.bf16 %v4489, %v5457
        %v5464 = vmul.bf16 %v4490, %v5456
        %v5465 = vmul.bf16 %v4491, %v5457
        %v5466 = vmul.bf16 %v4492, %v5456
        %v5467 = vmul.bf16 %v4493, %v5457
        %v5468 = vmul.bf16 %v4494, %v5456
        %v5469 = vmul.bf16 %v4495, %v5457
        %v5470 = vmul.bf16 %v4496, %v5456
        %v5471 = vmul.bf16 %v4497, %v5457
        %v5472 = vmul.bf16 %v4498, %v5456
        %v5473 = vmul.bf16 %v4499, %v5457
        %v5474 = vmul.bf16 %v4500, %v5456
        %v5475 = vmul.bf16 %v4501, %v5457
        %s5476 = scalar_lea.vmem [#allocation4], 192
        %v5477 = vld [vmem:[%s5476] sm:$0xf]
        %v5478 = vld [vmem:[%s5476 + $0x4] sm:$0xf]
        %v5479 = vld [vmem:[%s5476 + $0x8] sm:$0xf]
        %v5480 = vld [vmem:[%s5476 + $0xc] sm:$0xf]
        %v5481 = vld [vmem:[%s5476 + $0x10] sm:$0xf]
        %v5482 = vld [vmem:[%s5476 + $0x14] sm:$0xf]
        %v5483 = vld [vmem:[%s5476 + $0x18] sm:$0xf]
        %v5484 = vld [vmem:[%s5476 + $0x1c] sm:$0xf]
        %v5493 = vunpack.c.l.b16 %v5477
        %v5494 = vunpack.c.l.b16 %v5478
        %v5495 = vunpack.c.l.b16 %v5479
        %v5496 = vunpack.c.l.b16 %v5480
        %v5497 = vunpack.c.l.b16 %v5481
        %v5498 = vunpack.c.l.b16 %v5482
        %v5499 = vunpack.c.l.b16 %v5483
        %v5500 = vunpack.c.l.b16 %v5484
        %v5501 = vpack.c.b16 %v5494, %v5493
        %v5502 = vpack.c.b16 %v5496, %v5495
        %v5503 = vpack.c.b16 %v5498, %v5497
        %v5504 = vpack.c.b16 %v5500, %v5499
        %v5521 = vunpack.c.l.b16 %v5460
        %v5522 = vunpack.c.h.b16 %v5460
        %v5523 = vunpack.c.l.b16 %v5461
        %v5524 = vunpack.c.l.b16 %v5462
        %v5525 = vunpack.c.h.b16 %v5462
        %v5526 = vunpack.c.l.b16 %v5463
        %v5527 = vunpack.c.l.b16 %v5464
        %v5528 = vunpack.c.h.b16 %v5464
        %v5529 = vunpack.c.l.b16 %v5465
        %v5530 = vunpack.c.l.b16 %v5466
        %v5531 = vunpack.c.h.b16 %v5466
        %v5532 = vunpack.c.l.b16 %v5467
        %v5533 = vunpack.c.l.b16 %v5468
        %v5534 = vunpack.c.h.b16 %v5468
        %v5535 = vunpack.c.l.b16 %v5469
        %v5536 = vunpack.c.l.b16 %v5470
        %v5537 = vunpack.c.h.b16 %v5470
        %v5538 = vunpack.c.l.b16 %v5471
        %v5539 = vunpack.c.l.b16 %v5472
        %v5540 = vunpack.c.h.b16 %v5472
        %v5541 = vunpack.c.l.b16 %v5473
        %v5542 = vunpack.c.l.b16 %v5474
        %v5543 = vunpack.c.h.b16 %v5474
        %v5544 = vunpack.c.l.b16 %v5475
        %v5545 = vpack.c.b16 %v5524, %v5521
        %v5546 = vpack.c.b16 %v5525, %v5522
        %v5547 = vpack.c.b16 %v5526, %v5523
        %v5548 = vpack.c.b16 %v5530, %v5527
        %v5549 = vpack.c.b16 %v5531, %v5528
        %v5550 = vpack.c.b16 %v5532, %v5529
        %v5551 = vpack.c.b16 %v5536, %v5533
        %v5552 = vpack.c.b16 %v5537, %v5534
        %v5553 = vpack.c.b16 %v5538, %v5535
        %v5554 = vpack.c.b16 %v5542, %v5539
        %v5555 = vpack.c.b16 %v5543, %v5540
        %v5556 = vpack.c.b16 %v5544, %v5541
        %5557 = vrot.lane.b32.xlu0 %v5545, 60
        %v5558 = vpop.permute.xlu0 %5557
        %5559 = vrot.lane.b32.xlu0 %v5546, 60
        %v5560 = vpop.permute.xlu0 %5559
        %5561 = vrot.lane.b32.xlu0 %v5547, 60
        %v5562 = vpop.permute.xlu0 %5561
        %5563 = vrot.lane.b32.xlu0 %v5548, 60
        %v5564 = vpop.permute.xlu0 %5563
        %5565 = vrot.lane.b32.xlu0 %v5549, 60
        %v5566 = vpop.permute.xlu0 %5565
        %5567 = vrot.lane.b32.xlu0 %v5550, 60
        %v5568 = vpop.permute.xlu0 %5567
        %5569 = vrot.lane.b32.xlu0 %v5551, 60
        %v5570 = vpop.permute.xlu0 %5569
        %5571 = vrot.lane.b32.xlu0 %v5552, 60
        %v5572 = vpop.permute.xlu0 %5571
        %5573 = vrot.lane.b32.xlu0 %v5553, 60
        %v5574 = vpop.permute.xlu0 %5573
        %5575 = vrot.lane.b32.xlu0 %v5554, 60
        %v5576 = vpop.permute.xlu0 %5575
        %5577 = vrot.lane.b32.xlu0 %v5555, 60
        %v5578 = vpop.permute.xlu0 %5577
        %5579 = vrot.lane.b32.xlu0 %v5556, 60
        %v5580 = vpop.permute.xlu0 %5579
        %v5581 = vsel %vm2815, %v5558, %v5560
        %v5582 = vsel %vm2815, %v5560, %v5562
        %v5583 = vsel %vm2815, %v5564, %v5566
        %v5584 = vsel %vm2815, %v5566, %v5568
        %v5585 = vsel %vm2815, %v5570, %v5572
        %v5586 = vsel %vm2815, %v5572, %v5574
        %v5587 = vsel %vm2815, %v5576, %v5578
        %v5588 = vsel %vm2815, %v5578, %v5580
        %v5602 = vsel %vm1018, %v5501, 0
        %v5605 = vsel %vm1018, %v5502, 0
        %v5608 = vsel %vm1018, %v5503, 0
        %v5611 = vsel %vm1018, %v5504, 0
        %5613 = vmatprep.subr.bf16.mxu0 0
        %5614 = vmatpush1.bf16.msra.mxu0 0
        %5615 = vmatprep.subr.bf16.mxu0 0
        %5616 = vmatpush1.bf16.msra.mxu0 0
        %5617 = vmatprep.subr.bf16.mxu0 0
        %5618 = vmatpush1.bf16.msra.mxu0 0
        %5619 = vmatprep.subr.bf16.mxu0 0
        %5620 = vmatpush1.bf16.msra.mxu0 0
        %5621 = vmatprep.subr.bf16.mxu0 %v5588
        %5622 = vmatpush1.bf16.msra.mxu0 %v5587
        %5623 = vmatprep.subr.bf16.mxu0 %v5586
        %5624 = vmatpush1.bf16.msra.mxu0 %v5585
        %5625 = vmatprep.subr.bf16.mxu0 %v5584
        %5626 = vmatpush1.bf16.msra.mxu0 %v5583
        %5627 = vmatprep.subr.bf16.mxu0 %v5582
        %5628 = vmatpush1.bf16.msra.mxu0 %v5581
        %5629 = vmatprep.subr.bf16.mxu0 0
        %5630 = vmatpush2.bf16.msra.mxu0 0
        %5631 = vmatprep.subr.bf16.mxu0 0
        %5632 = vmatpush2.bf16.msra.mxu0 0
        %5633 = vmatprep.subr.bf16.mxu0 0
        %5634 = vmatpush2.bf16.msra.mxu0 0
        %5635 = vmatprep.subr.bf16.mxu0 0
        %5636 = vmatpush2.bf16.msra.mxu0 0
        %5637 = vmatprep.subr.bf16.mxu0 0
        %5638 = vmatpush2.bf16.msra.mxu0 0
        %5639 = vmatprep.subr.bf16.mxu0 0
        %5640 = vmatpush2.bf16.msra.mxu0 0
        %5641 = vmatprep.subr.bf16.mxu0 0
        %5642 = vmatpush2.bf16.msra.mxu0 0
        %5643 = vmatprep.subr.bf16.mxu0 0
        %5644 = vmatpush2.bf16.msra.mxu0 0
        %5645 = vmatprep.mubr.bf16.mxu0 0
        %5646 = vmatmul.mubr.bf16.gmra.mxu0 %v5602
        %v5647 = vpop.f32.mrf.mxu0
        %v5648 = vadd.f32 0.0, %v5647
        %v5649 = vpop.f32.mrf.mxu0
        %v5650 = vadd.f32 0.0, %v5649
        %v5651 = vpop.f32.mrf.mxu0
        %v5652 = vadd.f32 0.0, %v5651
        %v5653 = vpop.f32.mrf.mxu0
        %v5654 = vadd.f32 0.0, %v5653
        %5655 = vmatprep.mubr.bf16.mxu0 0
        %5656 = vmatmul.mubr.bf16.gmra.mxu0 %v5605
        %v5657 = vpop.f32.mrf.mxu0
        %v5658 = vadd.f32 0.0, %v5657
        %v5659 = vpop.f32.mrf.mxu0
        %v5660 = vadd.f32 0.0, %v5659
        %v5661 = vpop.f32.mrf.mxu0
        %v5662 = vadd.f32 0.0, %v5661
        %v5663 = vpop.f32.mrf.mxu0
        %v5664 = vadd.f32 0.0, %v5663
        %5665 = vmatprep.mubr.bf16.mxu0 0
        %5666 = vmatmul.mubr.bf16.gmra.mxu0 %v5608
        %v5667 = vpop.f32.mrf.mxu0
        %v5668 = vadd.f32 0.0, %v5667
        %v5669 = vpop.f32.mrf.mxu0
        %v5670 = vadd.f32 0.0, %v5669
        %v5671 = vpop.f32.mrf.mxu0
        %v5672 = vadd.f32 0.0, %v5671
        %v5673 = vpop.f32.mrf.mxu0
        %v5674 = vadd.f32 0.0, %v5673
        %5675 = vmatprep.mubr.bf16.mxu0 0
        %5676 = vmatmul.mubr.bf16.gmra.mxu0 %v5611
        %v5677 = vpop.f32.mrf.mxu0
        %v5678 = vadd.f32 0.0, %v5677
        %v5679 = vpop.f32.mrf.mxu0
        %v5680 = vadd.f32 0.0, %v5679
        %v5681 = vpop.f32.mrf.mxu0
        %v5682 = vadd.f32 0.0, %v5681
        %v5683 = vpop.f32.mrf.mxu0
        %v5684 = vadd.f32 0.0, %v5683
        %5685 = vdwg.mxu0
        %5686 = vmatprep.subr.bf16.mxu0 0
        %5687 = vmatpush1.bf16.msra.mxu0 0
        %5688 = vmatprep.subr.bf16.mxu0 0
        %5689 = vmatpush1.bf16.msra.mxu0 0
        %5690 = vmatprep.subr.bf16.mxu0 0
        %5691 = vmatpush1.bf16.msra.mxu0 0
        %5692 = vmatprep.subr.bf16.mxu0 0
        %5693 = vmatpush1.bf16.msra.mxu0 0
        %5694 = vmatprep.subr.bf16.mxu0 0
        %5695 = vmatpush1.bf16.msra.mxu0 %v5580
        %5696 = vmatprep.subr.bf16.mxu0 0
        %5697 = vmatpush1.bf16.msra.mxu0 %v5574
        %5698 = vmatprep.subr.bf16.mxu0 0
        %5699 = vmatpush1.bf16.msra.mxu0 %v5568
        %5700 = vmatprep.subr.bf16.mxu0 0
        %5701 = vmatpush1.bf16.msra.mxu0 %v5562
        %5702 = vmatprep.subr.bf16.mxu0 0
        %5703 = vmatpush2.bf16.msra.mxu0 0
        %5704 = vmatprep.subr.bf16.mxu0 0
        %5705 = vmatpush2.bf16.msra.mxu0 0
        %5706 = vmatprep.subr.bf16.mxu0 0
        %5707 = vmatpush2.bf16.msra.mxu0 0
        %5708 = vmatprep.subr.bf16.mxu0 0
        %5709 = vmatpush2.bf16.msra.mxu0 0
        %5710 = vmatprep.subr.bf16.mxu0 0
        %5711 = vmatpush2.bf16.msra.mxu0 0
        %5712 = vmatprep.subr.bf16.mxu0 0
        %5713 = vmatpush2.bf16.msra.mxu0 0
        %5714 = vmatprep.subr.bf16.mxu0 0
        %5715 = vmatpush2.bf16.msra.mxu0 0
        %5716 = vmatprep.subr.bf16.mxu0 0
        %5717 = vmatpush2.bf16.msra.mxu0 0
        %5718 = vmatprep.mubr.bf16.mxu0 0
        %5719 = vmatmul.mubr.bf16.gmra.mxu0 %v5602
        %v5720 = vpop.f32.mrf.mxu0
        %v5721 = vadd.f32 0.0, %v5720
        %v5722 = vpop.f32.mrf.mxu0
        %v5723 = vpop.f32.mrf.mxu0
        %v5724 = vadd.f32 0.0, %v5723
        %v5725 = vpop.f32.mrf.mxu0
        %5726 = vmatprep.mubr.bf16.mxu0 0
        %5727 = vmatmul.mubr.bf16.gmra.mxu0 %v5605
        %v5728 = vpop.f32.mrf.mxu0
        %v5729 = vadd.f32 0.0, %v5728
        %v5730 = vpop.f32.mrf.mxu0
        %v5731 = vpop.f32.mrf.mxu0
        %v5732 = vadd.f32 0.0, %v5731
        %v5733 = vpop.f32.mrf.mxu0
        %5734 = vmatprep.mubr.bf16.mxu0 0
        %5735 = vmatmul.mubr.bf16.gmra.mxu0 %v5608
        %v5736 = vpop.f32.mrf.mxu0
        %v5737 = vadd.f32 0.0, %v5736
        %v5738 = vpop.f32.mrf.mxu0
        %v5739 = vpop.f32.mrf.mxu0
        %v5740 = vadd.f32 0.0, %v5739
        %v5741 = vpop.f32.mrf.mxu0
        %5742 = vmatprep.mubr.bf16.mxu0 0
        %5743 = vmatmul.mubr.bf16.gmra.mxu0 %v5611
        %v5744 = vpop.f32.mrf.mxu0
        %v5745 = vadd.f32 0.0, %v5744
        %v5746 = vpop.f32.mrf.mxu0
        %v5747 = vpop.f32.mrf.mxu0
        %v5748 = vadd.f32 0.0, %v5747
        %v5749 = vpop.f32.mrf.mxu0
        %5750 = vdwg.mxu0
        %v5751 = vadd.f32 %v5427, %v5648
        %v5752 = vadd.f32 %v5428, %v5650
        %v5753 = vadd.f32 %v5429, %v5721
        %v5754 = vadd.f32 %v5430, %v5652
        %v5755 = vadd.f32 %v5431, %v5654
        %v5756 = vadd.f32 %v5432, %v5724
        %v5757 = vadd.f32 %v5433, %v5658
        %v5758 = vadd.f32 %v5434, %v5660
        %v5759 = vadd.f32 %v5435, %v5729
        %v5760 = vadd.f32 %v5436, %v5662
        %v5761 = vadd.f32 %v5437, %v5664
        %v5762 = vadd.f32 %v5438, %v5732
        %v5763 = vadd.f32 %v5439, %v5668
        %v5764 = vadd.f32 %v5440, %v5670
        %v5765 = vadd.f32 %v5441, %v5737
        %v5766 = vadd.f32 %v5442, %v5672
        %v5767 = vadd.f32 %v5443, %v5674
        %v5768 = vadd.f32 %v5444, %v5740
        %v5769 = vadd.f32 %v5445, %v5678
        %v5770 = vadd.f32 %v5446, %v5680
        %v5771 = vadd.f32 %v5447, %v5745
        %v5772 = vadd.f32 %v5448, %v5682
        %v5773 = vadd.f32 %v5449, %v5684
        %v5774 = vadd.f32 %v5450, %v5748
        %s5775 = scalar_lea.vmem [#allocation4], 224
        %v5776 = vld [vmem:[%s5775] sm:$0xf]
        %v5777 = vld [vmem:[%s5775 + $0x4] sm:$0xf]
        %v5778 = vld [vmem:[%s5775 + $0x8] sm:$0xf]
        %v5779 = vld [vmem:[%s5775 + $0xc] sm:$0xf]
        %v5780 = vld [vmem:[%s5775 + $0x10] sm:$0xf]
        %v5781 = vld [vmem:[%s5775 + $0x14] sm:$0xf]
        %v5782 = vld [vmem:[%s5775 + $0x18] sm:$0xf]
        %v5783 = vld [vmem:[%s5775 + $0x1c] sm:$0xf]
        %v5792 = vunpack.c.l.b16 %v5776
        %v5793 = vunpack.c.l.b16 %v5777
        %v5794 = vunpack.c.l.b16 %v5778
        %v5795 = vunpack.c.l.b16 %v5779
        %v5796 = vunpack.c.l.b16 %v5780
        %v5797 = vunpack.c.l.b16 %v5781
        %v5798 = vunpack.c.l.b16 %v5782
        %v5799 = vunpack.c.l.b16 %v5783
        %v5800 = vpack.c.b16 %v5793, %v5792
        %v5801 = vpack.c.b16 %v5795, %v5794
        %v5802 = vpack.c.b16 %v5797, %v5796
        %v5803 = vpack.c.b16 %v5799, %v5798
        %5804 = vrot.lane.b32.xlu0 %v4895, 58
        %v5805 = vpop.permute.xlu0 %5804
        %5806 = vrot.lane.b32.xlu0 %v4896, 58
        %v5807 = vpop.permute.xlu0 %5806
        %5808 = vrot.lane.b32.xlu0 %v4897, 58
        %v5809 = vpop.permute.xlu0 %5808
        %5810 = vrot.lane.b32.xlu0 %v4898, 58
        %v5811 = vpop.permute.xlu0 %5810
        %5812 = vrot.lane.b32.xlu0 %v4899, 58
        %v5813 = vpop.permute.xlu0 %5812
        %5814 = vrot.lane.b32.xlu0 %v4900, 58
        %v5815 = vpop.permute.xlu0 %5814
        %5816 = vrot.lane.b32.xlu0 %v4901, 58
        %v5817 = vpop.permute.xlu0 %5816
        %5818 = vrot.lane.b32.xlu0 %v4902, 58
        %v5819 = vpop.permute.xlu0 %5818
        %5820 = vrot.lane.b32.xlu0 %v4903, 58
        %v5821 = vpop.permute.xlu0 %5820
        %5822 = vrot.lane.b32.xlu0 %v4904, 58
        %v5823 = vpop.permute.xlu0 %5822
        %5824 = vrot.lane.b32.xlu0 %v4905, 58
        %v5825 = vpop.permute.xlu0 %5824
        %5826 = vrot.lane.b32.xlu0 %v4906, 58
        %v5827 = vpop.permute.xlu0 %5826
        %vm5828 = vcmask 474112
        %v5829 = vsel %vm5828, %v5805, %v5807
        %v5830 = vsel %vm5828, %v5807, %v5809
        %v5831 = vsel %vm5828, %v5811, %v5813
        %v5832 = vsel %vm5828, %v5813, %v5815
        %v5833 = vsel %vm5828, %v5817, %v5819
        %v5834 = vsel %vm5828, %v5819, %v5821
        %v5835 = vsel %vm5828, %v5823, %v5825
        %v5836 = vsel %vm5828, %v5825, %v5827
        %v5850 = vsel %vm1018, %v5800, 0
        %v5853 = vsel %vm1018, %v5801, 0
        %v5856 = vsel %vm1018, %v5802, 0
        %v5859 = vsel %vm1018, %v5803, 0
        %5861 = vmatprep.subr.bf16.mxu0 0
        %5862 = vmatpush1.bf16.msra.mxu0 0
        %5863 = vmatprep.subr.bf16.mxu0 0
        %5864 = vmatpush1.bf16.msra.mxu0 0
        %5865 = vmatprep.subr.bf16.mxu0 0
        %5866 = vmatpush1.bf16.msra.mxu0 0
        %5867 = vmatprep.subr.bf16.mxu0 0
        %5868 = vmatpush1.bf16.msra.mxu0 0
        %5869 = vmatprep.subr.bf16.mxu0 %v5836
        %5870 = vmatpush1.bf16.msra.mxu0 %v5835
        %5871 = vmatprep.subr.bf16.mxu0 %v5834
        %5872 = vmatpush1.bf16.msra.mxu0 %v5833
        %5873 = vmatprep.subr.bf16.mxu0 %v5832
        %5874 = vmatpush1.bf16.msra.mxu0 %v5831
        %5875 = vmatprep.subr.bf16.mxu0 %v5830
        %5876 = vmatpush1.bf16.msra.mxu0 %v5829
        %5877 = vmatprep.subr.bf16.mxu0 0
        %5878 = vmatpush2.bf16.msra.mxu0 0
        %5879 = vmatprep.subr.bf16.mxu0 0
        %5880 = vmatpush2.bf16.msra.mxu0 0
        %5881 = vmatprep.subr.bf16.mxu0 0
        %5882 = vmatpush2.bf16.msra.mxu0 0
        %5883 = vmatprep.subr.bf16.mxu0 0
        %5884 = vmatpush2.bf16.msra.mxu0 0
        %5885 = vmatprep.subr.bf16.mxu0 0
        %5886 = vmatpush2.bf16.msra.mxu0 0
        %5887 = vmatprep.subr.bf16.mxu0 0
        %5888 = vmatpush2.bf16.msra.mxu0 0
        %5889 = vmatprep.subr.bf16.mxu0 0
        %5890 = vmatpush2.bf16.msra.mxu0 0
        %5891 = vmatprep.subr.bf16.mxu0 0
        %5892 = vmatpush2.bf16.msra.mxu0 0
        %5893 = vmatprep.mubr.bf16.mxu0 0
        %5894 = vmatmul.mubr.bf16.gmra.mxu0 %v5850
        %v5895 = vpop.f32.mrf.mxu0
        %v5896 = vadd.f32 0.0, %v5895
        %v5897 = vpop.f32.mrf.mxu0
        %v5898 = vadd.f32 0.0, %v5897
        %v5899 = vpop.f32.mrf.mxu0
        %v5900 = vadd.f32 0.0, %v5899
        %v5901 = vpop.f32.mrf.mxu0
        %v5902 = vadd.f32 0.0, %v5901
        %5903 = vmatprep.mubr.bf16.mxu0 0
        %5904 = vmatmul.mubr.bf16.gmra.mxu0 %v5853
        %v5905 = vpop.f32.mrf.mxu0
        %v5906 = vadd.f32 0.0, %v5905
        %v5907 = vpop.f32.mrf.mxu0
        %v5908 = vadd.f32 0.0, %v5907
        %v5909 = vpop.f32.mrf.mxu0
        %v5910 = vadd.f32 0.0, %v5909
        %v5911 = vpop.f32.mrf.mxu0
        %v5912 = vadd.f32 0.0, %v5911
        %5913 = vmatprep.mubr.bf16.mxu0 0
        %5914 = vmatmul.mubr.bf16.gmra.mxu0 %v5856
        %v5915 = vpop.f32.mrf.mxu0
        %v5916 = vadd.f32 0.0, %v5915
        %v5917 = vpop.f32.mrf.mxu0
        %v5918 = vadd.f32 0.0, %v5917
        %v5919 = vpop.f32.mrf.mxu0
        %v5920 = vadd.f32 0.0, %v5919
        %v5921 = vpop.f32.mrf.mxu0
        %v5922 = vadd.f32 0.0, %v5921
        %5923 = vmatprep.mubr.bf16.mxu0 0
        %5924 = vmatmul.mubr.bf16.gmra.mxu0 %v5859
        %v5925 = vpop.f32.mrf.mxu0
        %v5926 = vadd.f32 0.0, %v5925
        %v5927 = vpop.f32.mrf.mxu0
        %v5928 = vadd.f32 0.0, %v5927
        %v5929 = vpop.f32.mrf.mxu0
        %v5930 = vadd.f32 0.0, %v5929
        %v5931 = vpop.f32.mrf.mxu0
        %v5932 = vadd.f32 0.0, %v5931
        %5933 = vdwg.mxu0
        %5934 = vmatprep.subr.bf16.mxu0 0
        %5935 = vmatpush1.bf16.msra.mxu0 0
        %5936 = vmatprep.subr.bf16.mxu0 0
        %5937 = vmatpush1.bf16.msra.mxu0 0
        %5938 = vmatprep.subr.bf16.mxu0 0
        %5939 = vmatpush1.bf16.msra.mxu0 0
        %5940 = vmatprep.subr.bf16.mxu0 0
        %5941 = vmatpush1.bf16.msra.mxu0 0
        %5942 = vmatprep.subr.bf16.mxu0 0
        %5943 = vmatpush1.bf16.msra.mxu0 %v5827
        %5944 = vmatprep.subr.bf16.mxu0 0
        %5945 = vmatpush1.bf16.msra.mxu0 %v5821
        %5946 = vmatprep.subr.bf16.mxu0 0
        %5947 = vmatpush1.bf16.msra.mxu0 %v5815
        %5948 = vmatprep.subr.bf16.mxu0 0
        %5949 = vmatpush1.bf16.msra.mxu0 %v5809
        %5950 = vmatprep.subr.bf16.mxu0 0
        %5951 = vmatpush2.bf16.msra.mxu0 0
        %5952 = vmatprep.subr.bf16.mxu0 0
        %5953 = vmatpush2.bf16.msra.mxu0 0
        %5954 = vmatprep.subr.bf16.mxu0 0
        %5955 = vmatpush2.bf16.msra.mxu0 0
        %5956 = vmatprep.subr.bf16.mxu0 0
        %5957 = vmatpush2.bf16.msra.mxu0 0
        %5958 = vmatprep.subr.bf16.mxu0 0
        %5959 = vmatpush2.bf16.msra.mxu0 0
        %5960 = vmatprep.subr.bf16.mxu0 0
        %5961 = vmatpush2.bf16.msra.mxu0 0
        %5962 = vmatprep.subr.bf16.mxu0 0
        %5963 = vmatpush2.bf16.msra.mxu0 0
        %5964 = vmatprep.subr.bf16.mxu0 0
        %5965 = vmatpush2.bf16.msra.mxu0 0
        %5966 = vmatprep.mubr.bf16.mxu0 0
        %5967 = vmatmul.mubr.bf16.gmra.mxu0 %v5850
        %v5968 = vpop.f32.mrf.mxu0
        %v5969 = vadd.f32 0.0, %v5968
        %v5970 = vpop.f32.mrf.mxu0
        %v5971 = vpop.f32.mrf.mxu0
        %v5972 = vadd.f32 0.0, %v5971
        %v5973 = vpop.f32.mrf.mxu0
        %5974 = vmatprep.mubr.bf16.mxu0 0
        %5975 = vmatmul.mubr.bf16.gmra.mxu0 %v5853
        %v5976 = vpop.f32.mrf.mxu0
        %v5977 = vadd.f32 0.0, %v5976
        %v5978 = vpop.f32.mrf.mxu0
        %v5979 = vpop.f32.mrf.mxu0
        %v5980 = vadd.f32 0.0, %v5979
        %v5981 = vpop.f32.mrf.mxu0
        %5982 = vmatprep.mubr.bf16.mxu0 0
        %5983 = vmatmul.mubr.bf16.gmra.mxu0 %v5856
        %v5984 = vpop.f32.mrf.mxu0
        %v5985 = vadd.f32 0.0, %v5984
        %v5986 = vpop.f32.mrf.mxu0
        %v5987 = vpop.f32.mrf.mxu0
        %v5988 = vadd.f32 0.0, %v5987
        %v5989 = vpop.f32.mrf.mxu0
        %5990 = vmatprep.mubr.bf16.mxu0 0
        %5991 = vmatmul.mubr.bf16.gmra.mxu0 %v5859
        %v5992 = vpop.f32.mrf.mxu0
        %v5993 = vadd.f32 0.0, %v5992
        %v5994 = vpop.f32.mrf.mxu0
        %v5995 = vpop.f32.mrf.mxu0
        %v5996 = vadd.f32 0.0, %v5995
        %v5997 = vpop.f32.mrf.mxu0
        %5998 = vdwg.mxu0
        %v5999 = vadd.f32 %v5751, %v5896
        %v6000 = vadd.f32 %v5752, %v5898
        %v6001 = vadd.f32 %v5753, %v5969
        %v6002 = vadd.f32 %v5754, %v5900
        %v6003 = vadd.f32 %v5755, %v5902
        %v6004 = vadd.f32 %v5756, %v5972
        %v6005 = vadd.f32 %v5757, %v5906
        %v6006 = vadd.f32 %v5758, %v5908
        %v6007 = vadd.f32 %v5759, %v5977
        %v6008 = vadd.f32 %v5760, %v5910
        %v6009 = vadd.f32 %v5761, %v5912
        %v6010 = vadd.f32 %v5762, %v5980
        %v6011 = vadd.f32 %v5763, %v5916
        %v6012 = vadd.f32 %v5764, %v5918
        %v6013 = vadd.f32 %v5765, %v5985
        %v6014 = vadd.f32 %v5766, %v5920
        %v6015 = vadd.f32 %v5767, %v5922
        %v6016 = vadd.f32 %v5768, %v5988
        %v6017 = vadd.f32 %v5769, %v5926
        %v6018 = vadd.f32 %v5770, %v5928
        %v6019 = vadd.f32 %v5771, %v5993
        %v6020 = vadd.f32 %v5772, %v5930
        %v6021 = vadd.f32 %v5773, %v5932
        %v6022 = vadd.f32 %v5774, %v5996
        %6023 = vrot.lane.b32.xlu0 %v4160, 72
        %v6024 = vpop.permute.xlu0 %6023
        %6025 = vrot.lane.b32.xlu0 %v4161, 72
        %v6026 = vpop.permute.xlu0 %6025
        %v6027 = vrot.slane %v6024, 4
        %vm6028 = vcmask 588800
        %v6029 = vsel %vm6028, %v6027, %v6024
        %v6030 = vsel %vm6028, %v6027, %v6026
        %v6033 = vmul.bf16 %v4486, %v6029
        %v6034 = vmul.bf16 %v4487, %v6030
        %v6035 = vmul.bf16 %v4488, %v6029
        %v6036 = vmul.bf16 %v4489, %v6030
        %v6037 = vmul.bf16 %v4490, %v6029
        %v6038 = vmul.bf16 %v4491, %v6030
        %v6039 = vmul.bf16 %v4492, %v6029
        %v6040 = vmul.bf16 %v4493, %v6030
        %v6041 = vmul.bf16 %v4494, %v6029
        %v6042 = vmul.bf16 %v4495, %v6030
        %v6043 = vmul.bf16 %v4496, %v6029
        %v6044 = vmul.bf16 %v4497, %v6030
        %v6045 = vmul.bf16 %v4498, %v6029
        %v6046 = vmul.bf16 %v4499, %v6030
        %v6047 = vmul.bf16 %v4500, %v6029
        %v6048 = vmul.bf16 %v4501, %v6030
        %s6049 = scalar_lea.vmem [#allocation4], 256
        %v6050 = vld [vmem:[%s6049] sm:$0xf]
        %v6051 = vld [vmem:[%s6049 + $0x4] sm:$0xf]
        %v6052 = vld [vmem:[%s6049 + $0x8] sm:$0xf]
        %v6053 = vld [vmem:[%s6049 + $0xc] sm:$0xf]
        %v6054 = vld [vmem:[%s6049 + $0x10] sm:$0xf]
        %v6055 = vld [vmem:[%s6049 + $0x14] sm:$0xf]
        %v6056 = vld [vmem:[%s6049 + $0x18] sm:$0xf]
        %v6057 = vld [vmem:[%s6049 + $0x1c] sm:$0xf]
        %v6066 = vunpack.c.l.b16 %v6050
        %v6067 = vunpack.c.l.b16 %v6051
        %v6068 = vunpack.c.l.b16 %v6052
        %v6069 = vunpack.c.l.b16 %v6053
        %v6070 = vunpack.c.l.b16 %v6054
        %v6071 = vunpack.c.l.b16 %v6055
        %v6072 = vunpack.c.l.b16 %v6056
        %v6073 = vunpack.c.l.b16 %v6057
        %v6074 = vpack.c.b16 %v6067, %v6066
        %v6075 = vpack.c.b16 %v6069, %v6068
        %v6076 = vpack.c.b16 %v6071, %v6070
        %v6077 = vpack.c.b16 %v6073, %v6072
        %v6094 = vunpack.c.l.b16 %v6033
        %v6095 = vunpack.c.h.b16 %v6033
        %v6096 = vunpack.c.l.b16 %v6034
        %v6097 = vunpack.c.l.b16 %v6035
        %v6098 = vunpack.c.h.b16 %v6035
        %v6099 = vunpack.c.l.b16 %v6036
        %v6100 = vunpack.c.l.b16 %v6037
        %v6101 = vunpack.c.h.b16 %v6037
        %v6102 = vunpack.c.l.b16 %v6038
        %v6103 = vunpack.c.l.b16 %v6039
        %v6104 = vunpack.c.h.b16 %v6039
        %v6105 = vunpack.c.l.b16 %v6040
        %v6106 = vunpack.c.l.b16 %v6041
        %v6107 = vunpack.c.h.b16 %v6041
        %v6108 = vunpack.c.l.b16 %v6042
        %v6109 = vunpack.c.l.b16 %v6043
        %v6110 = vunpack.c.h.b16 %v6043
        %v6111 = vunpack.c.l.b16 %v6044
        %v6112 = vunpack.c.l.b16 %v6045
        %v6113 = vunpack.c.h.b16 %v6045
        %v6114 = vunpack.c.l.b16 %v6046
        %v6115 = vunpack.c.l.b16 %v6047
        %v6116 = vunpack.c.h.b16 %v6047
        %v6117 = vunpack.c.l.b16 %v6048
        %v6118 = vpack.c.b16 %v6097, %v6094
        %v6119 = vpack.c.b16 %v6098, %v6095
        %v6120 = vpack.c.b16 %v6099, %v6096
        %v6121 = vpack.c.b16 %v6103, %v6100
        %v6122 = vpack.c.b16 %v6104, %v6101
        %v6123 = vpack.c.b16 %v6105, %v6102
        %v6124 = vpack.c.b16 %v6109, %v6106
        %v6125 = vpack.c.b16 %v6110, %v6107
        %v6126 = vpack.c.b16 %v6111, %v6108
        %v6127 = vpack.c.b16 %v6115, %v6112
        %v6128 = vpack.c.b16 %v6116, %v6113
        %v6129 = vpack.c.b16 %v6117, %v6114
        %6130 = vrot.lane.b32.xlu0 %v6118, 56
        %v6131 = vpop.permute.xlu0 %6130
        %6132 = vrot.lane.b32.xlu0 %v6119, 56
        %v6133 = vpop.permute.xlu0 %6132
        %6134 = vrot.lane.b32.xlu0 %v6120, 56
        %v6135 = vpop.permute.xlu0 %6134
        %6136 = vrot.lane.b32.xlu0 %v6121, 56
        %v6137 = vpop.permute.xlu0 %6136
        %6138 = vrot.lane.b32.xlu0 %v6122, 56
        %v6139 = vpop.permute.xlu0 %6138
        %6140 = vrot.lane.b32.xlu0 %v6123, 56
        %v6141 = vpop.permute.xlu0 %6140
        %6142 = vrot.lane.b32.xlu0 %v6124, 56
        %v6143 = vpop.permute.xlu0 %6142
        %6144 = vrot.lane.b32.xlu0 %v6125, 56
        %v6145 = vpop.permute.xlu0 %6144
        %6146 = vrot.lane.b32.xlu0 %v6126, 56
        %v6147 = vpop.permute.xlu0 %6146
        %6148 = vrot.lane.b32.xlu0 %v6127, 56
        %v6149 = vpop.permute.xlu0 %6148
        %6150 = vrot.lane.b32.xlu0 %v6128, 56
        %v6151 = vpop.permute.xlu0 %6150
        %6152 = vrot.lane.b32.xlu0 %v6129, 56
        %v6153 = vpop.permute.xlu0 %6152
        %vm6154 = vcmask 457728
        %v6155 = vsel %vm6154, %v6131, %v6133
        %v6156 = vsel %vm6154, %v6133, %v6135
        %v6157 = vsel %vm6154, %v6137, %v6139
        %v6158 = vsel %vm6154, %v6139, %v6141
        %v6159 = vsel %vm6154, %v6143, %v6145
        %v6160 = vsel %vm6154, %v6145, %v6147
        %v6161 = vsel %vm6154, %v6149, %v6151
        %v6162 = vsel %vm6154, %v6151, %v6153
        %v6176 = vsel %vm1018, %v6074, 0
        %v6179 = vsel %vm1018, %v6075, 0
        %v6182 = vsel %vm1018, %v6076, 0
        %v6185 = vsel %vm1018, %v6077, 0
        %6187 = vmatprep.subr.bf16.mxu0 0
        %6188 = vmatpush1.bf16.msra.mxu0 0
        %6189 = vmatprep.subr.bf16.mxu0 0
        %6190 = vmatpush1.bf16.msra.mxu0 0
        %6191 = vmatprep.subr.bf16.mxu0 0
        %6192 = vmatpush1.bf16.msra.mxu0 0
        %6193 = vmatprep.subr.bf16.mxu0 0
        %6194 = vmatpush1.bf16.msra.mxu0 0
        %6195 = vmatprep.subr.bf16.mxu0 %v6162
        %6196 = vmatpush1.bf16.msra.mxu0 %v6161
        %6197 = vmatprep.subr.bf16.mxu0 %v6160
        %6198 = vmatpush1.bf16.msra.mxu0 %v6159
        %6199 = vmatprep.subr.bf16.mxu0 %v6158
        %6200 = vmatpush1.bf16.msra.mxu0 %v6157
        %6201 = vmatprep.subr.bf16.mxu0 %v6156
        %6202 = vmatpush1.bf16.msra.mxu0 %v6155
        %6203 = vmatprep.subr.bf16.mxu0 0
        %6204 = vmatpush2.bf16.msra.mxu0 0
        %6205 = vmatprep.subr.bf16.mxu0 0
        %6206 = vmatpush2.bf16.msra.mxu0 0
        %6207 = vmatprep.subr.bf16.mxu0 0
        %6208 = vmatpush2.bf16.msra.mxu0 0
        %6209 = vmatprep.subr.bf16.mxu0 0
        %6210 = vmatpush2.bf16.msra.mxu0 0
        %6211 = vmatprep.subr.bf16.mxu0 0
        %6212 = vmatpush2.bf16.msra.mxu0 0
        %6213 = vmatprep.subr.bf16.mxu0 0
        %6214 = vmatpush2.bf16.msra.mxu0 0
        %6215 = vmatprep.subr.bf16.mxu0 0
        %6216 = vmatpush2.bf16.msra.mxu0 0
        %6217 = vmatprep.subr.bf16.mxu0 0
        %6218 = vmatpush2.bf16.msra.mxu0 0
        %6219 = vmatprep.mubr.bf16.mxu0 0
        %6220 = vmatmul.mubr.bf16.gmra.mxu0 %v6176
        %v6221 = vpop.f32.mrf.mxu0
        %v6222 = vadd.f32 0.0, %v6221
        %v6223 = vpop.f32.mrf.mxu0
        %v6224 = vadd.f32 0.0, %v6223
        %v6225 = vpop.f32.mrf.mxu0
        %v6226 = vadd.f32 0.0, %v6225
        %v6227 = vpop.f32.mrf.mxu0
        %v6228 = vadd.f32 0.0, %v6227
        %6229 = vmatprep.mubr.bf16.mxu0 0
        %6230 = vmatmul.mubr.bf16.gmra.mxu0 %v6179
        %v6231 = vpop.f32.mrf.mxu0
        %v6232 = vadd.f32 0.0, %v6231
        %v6233 = vpop.f32.mrf.mxu0
        %v6234 = vadd.f32 0.0, %v6233
        %v6235 = vpop.f32.mrf.mxu0
        %v6236 = vadd.f32 0.0, %v6235
        %v6237 = vpop.f32.mrf.mxu0
        %v6238 = vadd.f32 0.0, %v6237
        %6239 = vmatprep.mubr.bf16.mxu0 0
        %6240 = vmatmul.mubr.bf16.gmra.mxu0 %v6182
        %v6241 = vpop.f32.mrf.mxu0
        %v6242 = vadd.f32 0.0, %v6241
        %v6243 = vpop.f32.mrf.mxu0
        %v6244 = vadd.f32 0.0, %v6243
        %v6245 = vpop.f32.mrf.mxu0
        %v6246 = vadd.f32 0.0, %v6245
        %v6247 = vpop.f32.mrf.mxu0
        %v6248 = vadd.f32 0.0, %v6247
        %6249 = vmatprep.mubr.bf16.mxu0 0
        %6250 = vmatmul.mubr.bf16.gmra.mxu0 %v6185
        %v6251 = vpop.f32.mrf.mxu0
        %v6252 = vadd.f32 0.0, %v6251
        %v6253 = vpop.f32.mrf.mxu0
        %v6254 = vadd.f32 0.0, %v6253
        %v6255 = vpop.f32.mrf.mxu0
        %v6256 = vadd.f32 0.0, %v6255
        %v6257 = vpop.f32.mrf.mxu0
        %v6258 = vadd.f32 0.0, %v6257
        %6259 = vdwg.mxu0
        %6260 = vmatprep.subr.bf16.mxu0 0
        %6261 = vmatpush1.bf16.msra.mxu0 0
        %6262 = vmatprep.subr.bf16.mxu0 0
        %6263 = vmatpush1.bf16.msra.mxu0 0
        %6264 = vmatprep.subr.bf16.mxu0 0
        %6265 = vmatpush1.bf16.msra.mxu0 0
        %6266 = vmatprep.subr.bf16.mxu0 0
        %6267 = vmatpush1.bf16.msra.mxu0 0
        %6268 = vmatprep.subr.bf16.mxu0 0
        %6269 = vmatpush1.bf16.msra.mxu0 %v6153
        %6270 = vmatprep.subr.bf16.mxu0 0
        %6271 = vmatpush1.bf16.msra.mxu0 %v6147
        %6272 = vmatprep.subr.bf16.mxu0 0
        %6273 = vmatpush1.bf16.msra.mxu0 %v6141
        %6274 = vmatprep.subr.bf16.mxu0 0
        %6275 = vmatpush1.bf16.msra.mxu0 %v6135
        %6276 = vmatprep.subr.bf16.mxu0 0
        %6277 = vmatpush2.bf16.msra.mxu0 0
        %6278 = vmatprep.subr.bf16.mxu0 0
        %6279 = vmatpush2.bf16.msra.mxu0 0
        %6280 = vmatprep.subr.bf16.mxu0 0
        %6281 = vmatpush2.bf16.msra.mxu0 0
        %6282 = vmatprep.subr.bf16.mxu0 0
        %6283 = vmatpush2.bf16.msra.mxu0 0
        %6284 = vmatprep.subr.bf16.mxu0 0
        %6285 = vmatpush2.bf16.msra.mxu0 0
        %6286 = vmatprep.subr.bf16.mxu0 0
        %6287 = vmatpush2.bf16.msra.mxu0 0
        %6288 = vmatprep.subr.bf16.mxu0 0
        %6289 = vmatpush2.bf16.msra.mxu0 0
        %6290 = vmatprep.subr.bf16.mxu0 0
        %6291 = vmatpush2.bf16.msra.mxu0 0
        %6292 = vmatprep.mubr.bf16.mxu0 0
        %6293 = vmatmul.mubr.bf16.gmra.mxu0 %v6176
        %v6294 = vpop.f32.mrf.mxu0
        %v6295 = vadd.f32 0.0, %v6294
        %v6296 = vpop.f32.mrf.mxu0
        %v6297 = vpop.f32.mrf.mxu0
        %v6298 = vadd.f32 0.0, %v6297
        %v6299 = vpop.f32.mrf.mxu0
        %6300 = vmatprep.mubr.bf16.mxu0 0
        %6301 = vmatmul.mubr.bf16.gmra.mxu0 %v6179
        %v6302 = vpop.f32.mrf.mxu0
        %v6303 = vadd.f32 0.0, %v6302
        %v6304 = vpop.f32.mrf.mxu0
        %v6305 = vpop.f32.mrf.mxu0
        %v6306 = vadd.f32 0.0, %v6305
        %v6307 = vpop.f32.mrf.mxu0
        %6308 = vmatprep.mubr.bf16.mxu0 0
        %6309 = vmatmul.mubr.bf16.gmra.mxu0 %v6182
        %v6310 = vpop.f32.mrf.mxu0
        %v6311 = vadd.f32 0.0, %v6310
        %v6312 = vpop.f32.mrf.mxu0
        %v6313 = vpop.f32.mrf.mxu0
        %v6314 = vadd.f32 0.0, %v6313
        %v6315 = vpop.f32.mrf.mxu0
        %6316 = vmatprep.mubr.bf16.mxu0 0
        %6317 = vmatmul.mubr.bf16.gmra.mxu0 %v6185
        %v6318 = vpop.f32.mrf.mxu0
        %v6319 = vadd.f32 0.0, %v6318
        %v6320 = vpop.f32.mrf.mxu0
        %v6321 = vpop.f32.mrf.mxu0
        %v6322 = vadd.f32 0.0, %v6321
        %v6323 = vpop.f32.mrf.mxu0
        %6324 = vdwg.mxu0
        %v6325 = vadd.f32 %v5999, %v6222
        %v6326 = vadd.f32 %v6000, %v6224
        %v6327 = vadd.f32 %v6001, %v6295
        %v6328 = vadd.f32 %v6002, %v6226
        %v6329 = vadd.f32 %v6003, %v6228
        %v6330 = vadd.f32 %v6004, %v6298
        %v6331 = vadd.f32 %v6005, %v6232
        %v6332 = vadd.f32 %v6006, %v6234
        %v6333 = vadd.f32 %v6007, %v6303
        %v6334 = vadd.f32 %v6008, %v6236
        %v6335 = vadd.f32 %v6009, %v6238
        %v6336 = vadd.f32 %v6010, %v6306
        %v6337 = vadd.f32 %v6011, %v6242
        %v6338 = vadd.f32 %v6012, %v6244
        %v6339 = vadd.f32 %v6013, %v6311
        %v6340 = vadd.f32 %v6014, %v6246
        %v6341 = vadd.f32 %v6015, %v6248
        %v6342 = vadd.f32 %v6016, %v6314
        %v6343 = vadd.f32 %v6017, %v6252
        %v6344 = vadd.f32 %v6018, %v6254
        %v6345 = vadd.f32 %v6019, %v6319
        %v6346 = vadd.f32 %v6020, %v6256
        %v6347 = vadd.f32 %v6021, %v6258
        %v6348 = vadd.f32 %v6022, %v6322
        %v6349 = vld [vmem:[%s7] sm:$0xff]
        %v6350 = vld [vmem:[%s7 + $0x8] sm:$0xff]
        %v6351 = vld [vmem:[%s7 + $0x10] sm:$0xff]
        %v6352 = vld [vmem:[%s7 + $0x18] sm:$0xff]
        %v6353 = vld [vmem:[%s7 + $0x20] sm:$0xff]
        %v6354 = vld [vmem:[%s7 + $0x28] sm:$0xff]
        %v6355 = vld [vmem:[%s7 + $0x30] sm:$0xff]
        %v6356 = vld [vmem:[%s7 + $0x38] sm:$0xff]
        %6358 = vset.pattern.permute.xlu0 0
        %6359 = vperm.xlu0 %6358, %v6349
        %v6360 = vpop.permute.xlu0 %6359
        %6363 = vset.pattern.permute.xlu0 0
        %6364 = vperm.xlu0 %6363, %v6350
        %v6365 = vpop.permute.xlu0 %6364
        %6368 = vset.pattern.permute.xlu0 0
        %6369 = vperm.xlu0 %6368, %v6351
        %v6370 = vpop.permute.xlu0 %6369
        %6373 = vset.pattern.permute.xlu0 0
        %6374 = vperm.xlu0 %6373, %v6352
        %v6375 = vpop.permute.xlu0 %6374
        %6378 = vset.pattern.permute.xlu0 0
        %6379 = vperm.xlu0 %6378, %v6353
        %v6380 = vpop.permute.xlu0 %6379
        %6383 = vset.pattern.permute.xlu0 0
        %6384 = vperm.xlu0 %6383, %v6354
        %v6385 = vpop.permute.xlu0 %6384
        %6388 = vset.pattern.permute.xlu0 0
        %6389 = vperm.xlu0 %6388, %v6355
        %v6390 = vpop.permute.xlu0 %6389
        %6393 = vset.pattern.permute.xlu0 0
        %6394 = vperm.xlu0 %6393, %v6356
        %v6395 = vpop.permute.xlu0 %6394
        %v6397 = vadd.f32 %v6325, %v6360
        %v6398 = vadd.f32 %v6326, %v6360
        %v6399 = vadd.f32 %v6327, %v6360
        %v6400 = vadd.f32 %v6328, %v6365
        %v6401 = vadd.f32 %v6329, %v6365
        %v6402 = vadd.f32 %v6330, %v6365
        %v6403 = vadd.f32 %v6331, %v6370
        %v6404 = vadd.f32 %v6332, %v6370
        %v6405 = vadd.f32 %v6333, %v6370
        %v6406 = vadd.f32 %v6334, %v6375
        %v6407 = vadd.f32 %v6335, %v6375
        %v6408 = vadd.f32 %v6336, %v6375
        %v6409 = vadd.f32 %v6337, %v6380
        %v6410 = vadd.f32 %v6338, %v6380
        %v6411 = vadd.f32 %v6339, %v6380
        %v6412 = vadd.f32 %v6340, %v6385
        %v6413 = vadd.f32 %v6341, %v6385
        %v6414 = vadd.f32 %v6342, %v6385
        %v6415 = vadd.f32 %v6343, %v6390
        %v6416 = vadd.f32 %v6344, %v6390
        %v6417 = vadd.f32 %v6345, %v6390
        %v6418 = vadd.f32 %v6346, %v6395
        %v6419 = vadd.f32 %v6347, %v6395
        %v6420 = vadd.f32 %v6348, %v6395
        %v6421 = vmax.f32 %v6397, 0.0
        %v6422 = vmax.f32 %v6398, 0.0
        %v6423 = vmax.f32 %v6399, 0.0
        %v6424 = vmax.f32 %v6400, 0.0
        %v6425 = vmax.f32 %v6401, 0.0
        %v6426 = vmax.f32 %v6402, 0.0
        %v6427 = vmax.f32 %v6403, 0.0
        %v6428 = vmax.f32 %v6404, 0.0
        %v6429 = vmax.f32 %v6405, 0.0
        %v6430 = vmax.f32 %v6406, 0.0
        %v6431 = vmax.f32 %v6407, 0.0
        %v6432 = vmax.f32 %v6408, 0.0
        %v6433 = vmax.f32 %v6409, 0.0
        %v6434 = vmax.f32 %v6410, 0.0
        %v6435 = vmax.f32 %v6411, 0.0
        %v6436 = vmax.f32 %v6412, 0.0
        %v6437 = vmax.f32 %v6413, 0.0
        %v6438 = vmax.f32 %v6414, 0.0
        %v6439 = vmax.f32 %v6415, 0.0
        %v6440 = vmax.f32 %v6416, 0.0
        %v6441 = vmax.f32 %v6417, 0.0
        %v6442 = vmax.f32 %v6418, 0.0
        %v6443 = vmax.f32 %v6419, 0.0
        %v6444 = vmax.f32 %v6420, 0.0
        %v6445 = vld [vmem:[%s10] sm:$0xff]
        %v6446 = vld [vmem:[%s10 + $0x8] sm:$0xff]
        %v6447 = vld [vmem:[%s10 + $0x10] sm:$0xff]
        %v6448 = vld [vmem:[%s10 + $0x18] sm:$0xff]
        %v6449 = vld [vmem:[%s10 + $0x20] sm:$0xff]
        %v6450 = vld [vmem:[%s10 + $0x28] sm:$0xff]
        %v6451 = vld [vmem:[%s10 + $0x30] sm:$0xff]
        %v6452 = vld [vmem:[%s10 + $0x38] sm:$0xff]
        %v6453 = vld [vmem:[%s10 + $0x40] sm:$0xff]
        %v6454 = vld [vmem:[%s10 + $0x48] sm:$0xff]
        %v6455 = vld [vmem:[%s10 + $0x50] sm:$0xff]
        %v6456 = vld [vmem:[%s10 + $0x58] sm:$0xff]
        %v6457 = vld [vmem:[%s10 + $0x60] sm:$0xff]
        %v6458 = vld [vmem:[%s10 + $0x68] sm:$0xff]
        %v6459 = vld [vmem:[%s10 + $0x70] sm:$0xff]
        %v6460 = vld [vmem:[%s10 + $0x78] sm:$0xff]
        %v6461 = vld [vmem:[%s10 + $0x80] sm:$0xff]
        %v6462 = vld [vmem:[%s10 + $0x88] sm:$0xff]
        %v6463 = vld [vmem:[%s10 + $0x90] sm:$0xff]
        %v6464 = vld [vmem:[%s10 + $0x98] sm:$0xff]
        %v6465 = vld [vmem:[%s10 + $0xa0] sm:$0xff]
        %v6466 = vld [vmem:[%s10 + $0xa8] sm:$0xff]
        %v6467 = vld [vmem:[%s10 + $0xb0] sm:$0xff]
        %v6468 = vld [vmem:[%s10 + $0xb8] sm:$0xff]
        %v6469 = vld [vmem:[%s10 + $0xc0] sm:$0xff]
        %v6470 = vld [vmem:[%s10 + $0xc8] sm:$0xff]
        %v6471 = vld [vmem:[%s10 + $0xd0] sm:$0xff]
        %v6472 = vld [vmem:[%s10 + $0xd8] sm:$0xff]
        %v6473 = vld [vmem:[%s10 + $0xe0] sm:$0xff]
        %v6474 = vld [vmem:[%s10 + $0xe8] sm:$0xff]
        %v6475 = vld [vmem:[%s10 + $0xf0] sm:$0xff]
        %v6476 = vld [vmem:[%s10 + $0xf8] sm:$0xff]
        %v6477 = vld [vmem:[%s10 + $0x100] sm:$0xff]
        %v6478 = vld [vmem:[%s10 + $0x108] sm:$0xff]
        %v6479 = vld [vmem:[%s10 + $0x110] sm:$0xff]
        %v6480 = vld [vmem:[%s10 + $0x118] sm:$0xff]
        %v6481 = vld [vmem:[%s10 + $0x120] sm:$0xff]
        %v6482 = vld [vmem:[%s10 + $0x128] sm:$0xff]
        %v6483 = vld [vmem:[%s10 + $0x130] sm:$0xff]
        %v6484 = vld [vmem:[%s10 + $0x138] sm:$0xff]
        %v6485 = vld [vmem:[%s10 + $0x140] sm:$0xff]
        %v6486 = vld [vmem:[%s10 + $0x148] sm:$0xff]
        %v6487 = vld [vmem:[%s10 + $0x150] sm:$0xff]
        %v6488 = vld [vmem:[%s10 + $0x158] sm:$0xff]
        %v6489 = vld [vmem:[%s10 + $0x160] sm:$0xff]
        %v6490 = vld [vmem:[%s10 + $0x168] sm:$0xff]
        %v6491 = vld [vmem:[%s10 + $0x170] sm:$0xff]
        %v6492 = vld [vmem:[%s10 + $0x178] sm:$0xff]
        %v6493 = vld [vmem:[%s10 + $0x180] sm:$0xff]
        %v6494 = vld [vmem:[%s10 + $0x188] sm:$0xff]
        %v6495 = vld [vmem:[%s10 + $0x190] sm:$0xff]
        %v6496 = vld [vmem:[%s10 + $0x198] sm:$0xff]
        %v6497 = vld [vmem:[%s10 + $0x1a0] sm:$0xff]
        %v6498 = vld [vmem:[%s10 + $0x1a8] sm:$0xff]
        %v6499 = vld [vmem:[%s10 + $0x1b0] sm:$0xff]
        %v6500 = vld [vmem:[%s10 + $0x1b8] sm:$0xff]
        %v6501 = vld [vmem:[%s10 + $0x1c0] sm:$0xff]
        %v6502 = vld [vmem:[%s10 + $0x1c8] sm:$0xff]
        %v6503 = vld [vmem:[%s10 + $0x1d0] sm:$0xff]
        %v6504 = vld [vmem:[%s10 + $0x1d8] sm:$0xff]
        %v6505 = vld [vmem:[%s10 + $0x1e0] sm:$0xff]
        %v6506 = vld [vmem:[%s10 + $0x1e8] sm:$0xff]
        %v6507 = vld [vmem:[%s10 + $0x1f0] sm:$0xff]
        %v6508 = vld [vmem:[%s10 + $0x1f8] sm:$0xff]
        %v6509 = vld [vmem:[%s10 + $0x200] sm:$0xff]
        %v6510 = vld [vmem:[%s10 + $0x208] sm:$0xff]
        %v6511 = vld [vmem:[%s10 + $0x210] sm:$0xff]
        %v6512 = vld [vmem:[%s10 + $0x218] sm:$0xff]
        %v6513 = vld [vmem:[%s10 + $0x220] sm:$0xff]
        %v6514 = vld [vmem:[%s10 + $0x228] sm:$0xff]
        %v6515 = vld [vmem:[%s10 + $0x230] sm:$0xff]
        %v6516 = vld [vmem:[%s10 + $0x238] sm:$0xff]
        %v6517 = vld [vmem:[%s10 + $0x240] sm:$0x1]
        %v6518 = vld [vmem:[%s10 + $0x248] sm:$0x1]
        %vm6519 = vcmask 269312
        %v6521 = vsel %vm6519, %v3289, 0
        %v6524 = vsel %vm6519, %v3294, 0
        %v6527 = vsel %vm6519, %v3299, 0
        %v6530 = vsel %vm6519, %v3304, 0
        %v6533 = vsel %vm6519, %v3309, 0
        %v6536 = vsel %vm6519, %v3314, 0
        %v6539 = vsel %vm6519, %v3319, 0
        %v6542 = vsel %vm6519, %v3324, 0
        %vm6544 = vcmask 1040384
        %v6546 = vsel %vm6544, %v6517, 0
        %v6549 = vsel %vm6544, %v6518, 0
        %6551 = vmatprep.subr.mxu0 %v6476
        %6552 = vmatpush1.msra.mxu0 %v6475
        %6553 = vmatprep.subr.mxu0 %v6474
        %6554 = vmatpush1.msra.mxu0 %v6473
        %6555 = vmatprep.subr.mxu0 %v6472
        %6556 = vmatpush1.msra.mxu0 %v6471
        %6557 = vmatprep.subr.mxu0 %v6470
        %6558 = vmatpush1.msra.mxu0 %v6469
        %6559 = vmatprep.subr.mxu0 %v6468
        %6560 = vmatpush1.msra.mxu0 %v6467
        %6561 = vmatprep.subr.mxu0 %v6466
        %6562 = vmatpush1.msra.mxu0 %v6465
        %6563 = vmatprep.subr.mxu0 %v6464
        %6564 = vmatpush1.msra.mxu0 %v6463
        %6565 = vmatprep.subr.mxu0 %v6462
        %6566 = vmatpush1.msra.mxu0 %v6461
        %6567 = vmatprep.subr.mxu0 %v6460
        %6568 = vmatpush1.msra.mxu0 %v6459
        %6569 = vmatprep.subr.mxu0 %v6458
        %6570 = vmatpush1.msra.mxu0 %v6457
        %6571 = vmatprep.subr.mxu0 %v6456
        %6572 = vmatpush1.msra.mxu0 %v6455
        %6573 = vmatprep.subr.mxu0 %v6454
        %6574 = vmatpush1.msra.mxu0 %v6453
        %6575 = vmatprep.subr.mxu0 %v6452
        %6576 = vmatpush1.msra.mxu0 %v6451
        %6577 = vmatprep.subr.mxu0 %v6450
        %6578 = vmatpush1.msra.mxu0 %v6449
        %6579 = vmatprep.subr.mxu0 %v6448
        %6580 = vmatpush1.msra.mxu0 %v6447
        %6581 = vmatprep.subr.mxu0 %v6446
        %6582 = vmatpush1.msra.mxu0 %v6445
        %6583 = vmatprep.subr.mxu0 %v6508
        %6584 = vmatpush2.msra.mxu0 %v6507
        %6585 = vmatprep.subr.mxu0 %v6506
        %6586 = vmatpush2.msra.mxu0 %v6505
        %6587 = vmatprep.subr.mxu0 %v6504
        %6588 = vmatpush2.msra.mxu0 %v6503
        %6589 = vmatprep.subr.mxu0 %v6502
        %6590 = vmatpush2.msra.mxu0 %v6501
        %6591 = vmatprep.subr.mxu0 %v6500
        %6592 = vmatpush2.msra.mxu0 %v6499
        %6593 = vmatprep.subr.mxu0 %v6498
        %6594 = vmatpush2.msra.mxu0 %v6497
        %6595 = vmatprep.subr.mxu0 %v6496
        %6596 = vmatpush2.msra.mxu0 %v6495
        %6597 = vmatprep.subr.mxu0 %v6494
        %6598 = vmatpush2.msra.mxu0 %v6493
        %6599 = vmatprep.subr.mxu0 %v6492
        %6600 = vmatpush2.msra.mxu0 %v6491
        %6601 = vmatprep.subr.mxu0 %v6490
        %6602 = vmatpush2.msra.mxu0 %v6489
        %6603 = vmatprep.subr.mxu0 %v6488
        %6604 = vmatpush2.msra.mxu0 %v6487
        %6605 = vmatprep.subr.mxu0 %v6486
        %6606 = vmatpush2.msra.mxu0 %v6485
        %6607 = vmatprep.subr.mxu0 %v6484
        %6608 = vmatpush2.msra.mxu0 %v6483
        %6609 = vmatprep.subr.mxu0 %v6482
        %6610 = vmatpush2.msra.mxu0 %v6481
        %6611 = vmatprep.subr.mxu0 %v6480
        %6612 = vmatpush2.msra.mxu0 %v6479
        %6613 = vmatprep.subr.mxu0 %v6478
        %6614 = vmatpush2.msra.mxu0 %v6477
        %6615 = vmatprep.mubr.f32.mxu0 %v3178
        %6616 = vmatmul.mubr.f32.gmra.mxu0 %v3176
        %v6617 = vpop.f32.mrf.mxu0
        %v6618 = vadd.f32 0.0, %v6617
        %v6619 = vpop.f32.mrf.mxu0
        %v6620 = vadd.f32 0.0, %v6619
        %6621 = vmatprep.mubr.f32.mxu0 %v3184
        %6622 = vmatmul.mubr.f32.gmra.mxu0 %v3182
        %v6623 = vpop.f32.mrf.mxu0
        %v6624 = vadd.f32 0.0, %v6623
        %v6625 = vpop.f32.mrf.mxu0
        %v6626 = vadd.f32 0.0, %v6625
        %6627 = vmatprep.mubr.f32.mxu0 %v3190
        %6628 = vmatmul.mubr.f32.gmra.mxu0 %v3188
        %v6629 = vpop.f32.mrf.mxu0
        %v6630 = vadd.f32 0.0, %v6629
        %v6631 = vpop.f32.mrf.mxu0
        %v6632 = vadd.f32 0.0, %v6631
        %6633 = vmatprep.mubr.f32.mxu0 %v3196
        %6634 = vmatmul.mubr.f32.gmra.mxu0 %v3194
        %v6635 = vpop.f32.mrf.mxu0
        %v6636 = vadd.f32 0.0, %v6635
        %v6637 = vpop.f32.mrf.mxu0
        %v6638 = vadd.f32 0.0, %v6637
        %6639 = vmatprep.mubr.f32.mxu0 %v3202
        %6640 = vmatmul.mubr.f32.gmra.mxu0 %v3200
        %v6641 = vpop.f32.mrf.mxu0
        %v6642 = vadd.f32 0.0, %v6641
        %v6643 = vpop.f32.mrf.mxu0
        %v6644 = vadd.f32 0.0, %v6643
        %6645 = vmatprep.mubr.f32.mxu0 %v3208
        %6646 = vmatmul.mubr.f32.gmra.mxu0 %v3206
        %v6647 = vpop.f32.mrf.mxu0
        %v6648 = vadd.f32 0.0, %v6647
        %v6649 = vpop.f32.mrf.mxu0
        %v6650 = vadd.f32 0.0, %v6649
        %6651 = vmatprep.mubr.f32.mxu0 %v3214
        %6652 = vmatmul.mubr.f32.gmra.mxu0 %v3212
        %v6653 = vpop.f32.mrf.mxu0
        %v6654 = vadd.f32 0.0, %v6653
        %v6655 = vpop.f32.mrf.mxu0
        %v6656 = vadd.f32 0.0, %v6655
        %6657 = vmatprep.mubr.f32.mxu0 %v3220
        %6658 = vmatmul.mubr.f32.gmra.mxu0 %v3218
        %v6659 = vpop.f32.mrf.mxu0
        %v6660 = vadd.f32 0.0, %v6659
        %v6661 = vpop.f32.mrf.mxu0
        %v6662 = vadd.f32 0.0, %v6661
        %6663 = vdwg.mxu0
        %6664 = vmatprep.subr.mxu0 0.0
        %6665 = vmatpush1.msra.mxu0 0.0
        %6666 = vmatprep.subr.mxu0 0.0
        %6667 = vmatpush1.msra.mxu0 0.0
        %6668 = vmatprep.subr.mxu0 0.0
        %6669 = vmatpush1.msra.mxu0 0.0
        %6670 = vmatprep.subr.mxu0 0.0
        %6671 = vmatpush1.msra.mxu0 0.0
        %6672 = vmatprep.subr.mxu0 0.0
        %6673 = vmatpush1.msra.mxu0 0.0
        %6674 = vmatprep.subr.mxu0 0.0
        %6675 = vmatpush1.msra.mxu0 0.0
        %6676 = vmatprep.subr.mxu0 0.0
        %6677 = vmatpush1.msra.mxu0 0.0
        %6678 = vmatprep.subr.mxu0 0.0
        %6679 = vmatpush1.msra.mxu0 0.0
        %6680 = vmatprep.subr.mxu0 0.0
        %6681 = vmatpush1.msra.mxu0 0.0
        %6682 = vmatprep.subr.mxu0 0.0
        %6683 = vmatpush1.msra.mxu0 0.0
        %6684 = vmatprep.subr.mxu0 0.0
        %6685 = vmatpush1.msra.mxu0 0.0
        %6686 = vmatprep.subr.mxu0 %v6549
        %6687 = vmatpush1.msra.mxu0 %v6546
        %6688 = vmatprep.subr.mxu0 %v6516
        %6689 = vmatpush1.msra.mxu0 %v6515
        %6690 = vmatprep.subr.mxu0 %v6514
        %6691 = vmatpush1.msra.mxu0 %v6513
        %6692 = vmatprep.subr.mxu0 %v6512
        %6693 = vmatpush1.msra.mxu0 %v6511
        %6694 = vmatprep.subr.mxu0 %v6510
        %6695 = vmatpush1.msra.mxu0 %v6509
        %6696 = vmatprep.subr.mxu0 0.0
        %6697 = vmatpush2.msra.mxu0 0.0
        %6698 = vmatprep.subr.mxu0 0.0
        %6699 = vmatpush2.msra.mxu0 0.0
        %6700 = vmatprep.subr.mxu0 0.0
        %6701 = vmatpush2.msra.mxu0 0.0
        %6702 = vmatprep.subr.mxu0 0.0
        %6703 = vmatpush2.msra.mxu0 0.0
        %6704 = vmatprep.subr.mxu0 0.0
        %6705 = vmatpush2.msra.mxu0 0.0
        %6706 = vmatprep.subr.mxu0 0.0
        %6707 = vmatpush2.msra.mxu0 0.0
        %6708 = vmatprep.subr.mxu0 0.0
        %6709 = vmatpush2.msra.mxu0 0.0
        %6710 = vmatprep.subr.mxu0 0.0
        %6711 = vmatpush2.msra.mxu0 0.0
        %6712 = vmatprep.subr.mxu0 0.0
        %6713 = vmatpush2.msra.mxu0 0.0
        %6714 = vmatprep.subr.mxu0 0.0
        %6715 = vmatpush2.msra.mxu0 0.0
        %6716 = vmatprep.subr.mxu0 0.0
        %6717 = vmatpush2.msra.mxu0 0.0
        %6718 = vmatprep.subr.mxu0 0.0
        %6719 = vmatpush2.msra.mxu0 0.0
        %6720 = vmatprep.subr.mxu0 0.0
        %6721 = vmatpush2.msra.mxu0 0.0
        %6722 = vmatprep.subr.mxu0 0.0
        %6723 = vmatpush2.msra.mxu0 0.0
        %6724 = vmatprep.subr.mxu0 0.0
        %6725 = vmatpush2.msra.mxu0 0.0
        %6726 = vmatprep.subr.mxu0 0.0
        %6727 = vmatpush2.msra.mxu0 0.0
        %6728 = vmatprep.mubr.f32.mxu0 0.0
        %6729 = vmatmul.mubr.f32.gmra.mxu0 %v6521
        %v6730 = vpop.f32.mrf.mxu0
        %v6731 = vadd.f32 %v6618, %v6730
        %v6732 = vpop.f32.mrf.mxu0
        %v6733 = vadd.f32 %v6620, %v6732
        %6734 = vmatprep.mubr.f32.mxu0 0.0
        %6735 = vmatmul.mubr.f32.gmra.mxu0 %v6524
        %v6736 = vpop.f32.mrf.mxu0
        %v6737 = vadd.f32 %v6624, %v6736
        %v6738 = vpop.f32.mrf.mxu0
        %v6739 = vadd.f32 %v6626, %v6738
        %6740 = vmatprep.mubr.f32.mxu0 0.0
        %6741 = vmatmul.mubr.f32.gmra.mxu0 %v6527
        %v6742 = vpop.f32.mrf.mxu0
        %v6743 = vadd.f32 %v6630, %v6742
        %v6744 = vpop.f32.mrf.mxu0
        %v6745 = vadd.f32 %v6632, %v6744
        %6746 = vmatprep.mubr.f32.mxu0 0.0
        %6747 = vmatmul.mubr.f32.gmra.mxu0 %v6530
        %v6748 = vpop.f32.mrf.mxu0
        %v6749 = vadd.f32 %v6636, %v6748
        %v6750 = vpop.f32.mrf.mxu0
        %v6751 = vadd.f32 %v6638, %v6750
        %6752 = vmatprep.mubr.f32.mxu0 0.0
        %6753 = vmatmul.mubr.f32.gmra.mxu0 %v6533
        %v6754 = vpop.f32.mrf.mxu0
        %v6755 = vadd.f32 %v6642, %v6754
        %v6756 = vpop.f32.mrf.mxu0
        %v6757 = vadd.f32 %v6644, %v6756
        %6758 = vmatprep.mubr.f32.mxu0 0.0
        %6759 = vmatmul.mubr.f32.gmra.mxu0 %v6536
        %v6760 = vpop.f32.mrf.mxu0
        %v6761 = vadd.f32 %v6648, %v6760
        %v6762 = vpop.f32.mrf.mxu0
        %v6763 = vadd.f32 %v6650, %v6762
        %6764 = vmatprep.mubr.f32.mxu0 0.0
        %6765 = vmatmul.mubr.f32.gmra.mxu0 %v6539
        %v6766 = vpop.f32.mrf.mxu0
        %v6767 = vadd.f32 %v6654, %v6766
        %v6768 = vpop.f32.mrf.mxu0
        %v6769 = vadd.f32 %v6656, %v6768
        %6770 = vmatprep.mubr.f32.mxu0 0.0
        %6771 = vmatmul.mubr.f32.gmra.mxu0 %v6542
        %v6772 = vpop.f32.mrf.mxu0
        %v6773 = vadd.f32 %v6660, %v6772
        %v6774 = vpop.f32.mrf.mxu0
        %v6775 = vadd.f32 %v6662, %v6774
        %6776 = vdwg.mxu0
        %v6777 = vadd.f32 %v678, %v6731
        %v6778 = vadd.f32 %v679, %v6733
        %v6779 = vadd.f32 %v680, %v6737
        %v6780 = vadd.f32 %v681, %v6739
        %v6781 = vadd.f32 %v682, %v6743
        %v6782 = vadd.f32 %v683, %v6745
        %v6783 = vadd.f32 %v684, %v6749
        %v6784 = vadd.f32 %v685, %v6751
        %v6785 = vadd.f32 %v686, %v6755
        %v6786 = vadd.f32 %v687, %v6757
        %v6787 = vadd.f32 %v688, %v6761
        %v6788 = vadd.f32 %v689, %v6763
        %v6789 = vadd.f32 %v690, %v6767
        %v6790 = vadd.f32 %v691, %v6769
        %v6791 = vadd.f32 %v692, %v6773
        %v6792 = vadd.f32 %v693, %v6775
        %v6793 = vld [vmem:[%s11] sm:$0xff]
        %v6794 = vld [vmem:[%s11 + $0x8] sm:$0xff]
        %v6795 = vld [vmem:[%s11 + $0x10] sm:$0xff]
        %v6796 = vld [vmem:[%s11 + $0x18] sm:$0xff]
        %v6797 = vld [vmem:[%s11 + $0x20] sm:$0xff]
        %v6798 = vld [vmem:[%s11 + $0x28] sm:$0xff]
        %v6799 = vld [vmem:[%s11 + $0x30] sm:$0xff]
        %v6800 = vld [vmem:[%s11 + $0x38] sm:$0xff]
        %v6801 = vld [vmem:[%s11 + $0x40] sm:$0xff]
        %v6802 = vld [vmem:[%s11 + $0x48] sm:$0xff]
        %v6803 = vld [vmem:[%s11 + $0x50] sm:$0xff]
        %v6804 = vld [vmem:[%s11 + $0x58] sm:$0xff]
        %v6805 = vld [vmem:[%s11 + $0x60] sm:$0xff]
        %v6806 = vld [vmem:[%s11 + $0x68] sm:$0xff]
        %v6807 = vld [vmem:[%s11 + $0x70] sm:$0xff]
        %v6808 = vld [vmem:[%s11 + $0x78] sm:$0xff]
        %v6809 = vld [vmem:[%s11 + $0x80] sm:$0xff]
        %v6810 = vld [vmem:[%s11 + $0x88] sm:$0xff]
        %v6811 = vld [vmem:[%s11 + $0x90] sm:$0xff]
        %v6812 = vld [vmem:[%s11 + $0x98] sm:$0xff]
        %v6813 = vld [vmem:[%s11 + $0xa0] sm:$0xff]
        %v6814 = vld [vmem:[%s11 + $0xa8] sm:$0xff]
        %v6815 = vld [vmem:[%s11 + $0xb0] sm:$0xff]
        %v6816 = vld [vmem:[%s11 + $0xb8] sm:$0xff]
        %v6817 = vld [vmem:[%s11 + $0xc0] sm:$0xff]
        %v6818 = vld [vmem:[%s11 + $0xc8] sm:$0xff]
        %v6819 = vld [vmem:[%s11 + $0xd0] sm:$0xff]
        %v6820 = vld [vmem:[%s11 + $0xd8] sm:$0xff]
        %v6821 = vld [vmem:[%s11 + $0xe0] sm:$0xff]
        %v6822 = vld [vmem:[%s11 + $0xe8] sm:$0xff]
        %v6823 = vld [vmem:[%s11 + $0xf0] sm:$0xff]
        %v6824 = vld [vmem:[%s11 + $0xf8] sm:$0xff]
        %v6825 = vld [vmem:[%s11 + $0x100] sm:$0xff]
        %v6826 = vld [vmem:[%s11 + $0x108] sm:$0xff]
        %v6827 = vld [vmem:[%s11 + $0x110] sm:$0xff]
        %v6828 = vld [vmem:[%s11 + $0x118] sm:$0xff]
        %v6829 = vld [vmem:[%s11 + $0x120] sm:$0xff]
        %v6830 = vld [vmem:[%s11 + $0x128] sm:$0xff]
        %v6831 = vld [vmem:[%s11 + $0x130] sm:$0xff]
        %v6832 = vld [vmem:[%s11 + $0x138] sm:$0xff]
        %v6833 = vld [vmem:[%s11 + $0x140] sm:$0xff]
        %v6834 = vld [vmem:[%s11 + $0x148] sm:$0xff]
        %v6835 = vld [vmem:[%s11 + $0x150] sm:$0xff]
        %v6836 = vld [vmem:[%s11 + $0x158] sm:$0xff]
        %v6837 = vld [vmem:[%s11 + $0x160] sm:$0xff]
        %v6838 = vld [vmem:[%s11 + $0x168] sm:$0xff]
        %v6839 = vld [vmem:[%s11 + $0x170] sm:$0xff]
        %v6840 = vld [vmem:[%s11 + $0x178] sm:$0xff]
        %v6841 = vld [vmem:[%s11 + $0x180] sm:$0xff]
        %v6842 = vld [vmem:[%s11 + $0x188] sm:$0xff]
        %v6843 = vld [vmem:[%s11 + $0x190] sm:$0xff]
        %v6844 = vld [vmem:[%s11 + $0x198] sm:$0xff]
        %v6845 = vld [vmem:[%s11 + $0x1a0] sm:$0xff]
        %v6846 = vld [vmem:[%s11 + $0x1a8] sm:$0xff]
        %v6847 = vld [vmem:[%s11 + $0x1b0] sm:$0xff]
        %v6848 = vld [vmem:[%s11 + $0x1b8] sm:$0xff]
        %v6849 = vld [vmem:[%s11 + $0x1c0] sm:$0xff]
        %v6850 = vld [vmem:[%s11 + $0x1c8] sm:$0xff]
        %v6851 = vld [vmem:[%s11 + $0x1d0] sm:$0xff]
        %v6852 = vld [vmem:[%s11 + $0x1d8] sm:$0xff]
        %v6853 = vld [vmem:[%s11 + $0x1e0] sm:$0xff]
        %v6854 = vld [vmem:[%s11 + $0x1e8] sm:$0xff]
        %v6855 = vld [vmem:[%s11 + $0x1f0] sm:$0xff]
        %v6856 = vld [vmem:[%s11 + $0x1f8] sm:$0xff]
        %v6857 = vld [vmem:[%s11 + $0x200] sm:$0xff]
        %v6858 = vld [vmem:[%s11 + $0x208] sm:$0xff]
        %v6859 = vld [vmem:[%s11 + $0x210] sm:$0xff]
        %v6860 = vld [vmem:[%s11 + $0x218] sm:$0xff]
        %v6861 = vld [vmem:[%s11 + $0x220] sm:$0xff]
        %v6862 = vld [vmem:[%s11 + $0x228] sm:$0xff]
        %v6863 = vld [vmem:[%s11 + $0x230] sm:$0xff]
        %v6864 = vld [vmem:[%s11 + $0x238] sm:$0xff]
        %v6865 = vld [vmem:[%s11 + $0x240] sm:$0x1]
        %v6866 = vld [vmem:[%s11 + $0x248] sm:$0x1]
        %v6868 = vsel %vm6519, %v6423, 0
        %v6871 = vsel %vm6519, %v6426, 0
        %v6874 = vsel %vm6519, %v6429, 0
        %v6877 = vsel %vm6519, %v6432, 0
        %v6880 = vsel %vm6519, %v6435, 0
        %v6883 = vsel %vm6519, %v6438, 0
        %v6886 = vsel %vm6519, %v6441, 0
        %v6889 = vsel %vm6519, %v6444, 0
        %v6892 = vsel %vm6544, %v6865, 0
        %v6895 = vsel %vm6544, %v6866, 0
        %6897 = vmatprep.subr.mxu0 %v6824
        %6898 = vmatpush1.msra.mxu0 %v6823
        %6899 = vmatprep.subr.mxu0 %v6822
        %6900 = vmatpush1.msra.mxu0 %v6821
        %6901 = vmatprep.subr.mxu0 %v6820
        %6902 = vmatpush1.msra.mxu0 %v6819
        %6903 = vmatprep.subr.mxu0 %v6818
        %6904 = vmatpush1.msra.mxu0 %v6817
        %6905 = vmatprep.subr.mxu0 %v6816
        %6906 = vmatpush1.msra.mxu0 %v6815
        %6907 = vmatprep.subr.mxu0 %v6814
        %6908 = vmatpush1.msra.mxu0 %v6813
        %6909 = vmatprep.subr.mxu0 %v6812
        %6910 = vmatpush1.msra.mxu0 %v6811
        %6911 = vmatprep.subr.mxu0 %v6810
        %6912 = vmatpush1.msra.mxu0 %v6809
        %6913 = vmatprep.subr.mxu0 %v6808
        %6914 = vmatpush1.msra.mxu0 %v6807
        %6915 = vmatprep.subr.mxu0 %v6806
        %6916 = vmatpush1.msra.mxu0 %v6805
        %6917 = vmatprep.subr.mxu0 %v6804
        %6918 = vmatpush1.msra.mxu0 %v6803
        %6919 = vmatprep.subr.mxu0 %v6802
        %6920 = vmatpush1.msra.mxu0 %v6801
        %6921 = vmatprep.subr.mxu0 %v6800
        %6922 = vmatpush1.msra.mxu0 %v6799
        %6923 = vmatprep.subr.mxu0 %v6798
        %6924 = vmatpush1.msra.mxu0 %v6797
        %6925 = vmatprep.subr.mxu0 %v6796
        %6926 = vmatpush1.msra.mxu0 %v6795
        %6927 = vmatprep.subr.mxu0 %v6794
        %6928 = vmatpush1.msra.mxu0 %v6793
        %6929 = vmatprep.subr.mxu0 %v6856
        %6930 = vmatpush2.msra.mxu0 %v6855
        %6931 = vmatprep.subr.mxu0 %v6854
        %6932 = vmatpush2.msra.mxu0 %v6853
        %6933 = vmatprep.subr.mxu0 %v6852
        %6934 = vmatpush2.msra.mxu0 %v6851
        %6935 = vmatprep.subr.mxu0 %v6850
        %6936 = vmatpush2.msra.mxu0 %v6849
        %6937 = vmatprep.subr.mxu0 %v6848
        %6938 = vmatpush2.msra.mxu0 %v6847
        %6939 = vmatprep.subr.mxu0 %v6846
        %6940 = vmatpush2.msra.mxu0 %v6845
        %6941 = vmatprep.subr.mxu0 %v6844
        %6942 = vmatpush2.msra.mxu0 %v6843
        %6943 = vmatprep.subr.mxu0 %v6842
        %6944 = vmatpush2.msra.mxu0 %v6841
        %6945 = vmatprep.subr.mxu0 %v6840
        %6946 = vmatpush2.msra.mxu0 %v6839
        %6947 = vmatprep.subr.mxu0 %v6838
        %6948 = vmatpush2.msra.mxu0 %v6837
        %6949 = vmatprep.subr.mxu0 %v6836
        %6950 = vmatpush2.msra.mxu0 %v6835
        %6951 = vmatprep.subr.mxu0 %v6834
        %6952 = vmatpush2.msra.mxu0 %v6833
        %6953 = vmatprep.subr.mxu0 %v6832
        %6954 = vmatpush2.msra.mxu0 %v6831
        %6955 = vmatprep.subr.mxu0 %v6830
        %6956 = vmatpush2.msra.mxu0 %v6829
        %6957 = vmatprep.subr.mxu0 %v6828
        %6958 = vmatpush2.msra.mxu0 %v6827
        %6959 = vmatprep.subr.mxu0 %v6826
        %6960 = vmatpush2.msra.mxu0 %v6825
        %6961 = vmatprep.mubr.f32.mxu0 %v6422
        %6962 = vmatmul.mubr.f32.gmra.mxu0 %v6421
        %v6963 = vpop.f32.mrf.mxu0
        %v6964 = vadd.f32 0.0, %v6963
        %v6965 = vpop.f32.mrf.mxu0
        %v6966 = vadd.f32 0.0, %v6965
        %6967 = vmatprep.mubr.f32.mxu0 %v6425
        %6968 = vmatmul.mubr.f32.gmra.mxu0 %v6424
        %v6969 = vpop.f32.mrf.mxu0
        %v6970 = vadd.f32 0.0, %v6969
        %v6971 = vpop.f32.mrf.mxu0
        %v6972 = vadd.f32 0.0, %v6971
        %6973 = vmatprep.mubr.f32.mxu0 %v6428
        %6974 = vmatmul.mubr.f32.gmra.mxu0 %v6427
        %v6975 = vpop.f32.mrf.mxu0
        %v6976 = vadd.f32 0.0, %v6975
        %v6977 = vpop.f32.mrf.mxu0
        %v6978 = vadd.f32 0.0, %v6977
        %6979 = vmatprep.mubr.f32.mxu0 %v6431
        %6980 = vmatmul.mubr.f32.gmra.mxu0 %v6430
        %v6981 = vpop.f32.mrf.mxu0
        %v6982 = vadd.f32 0.0, %v6981
        %v6983 = vpop.f32.mrf.mxu0
        %v6984 = vadd.f32 0.0, %v6983
        %6985 = vmatprep.mubr.f32.mxu0 %v6434
        %6986 = vmatmul.mubr.f32.gmra.mxu0 %v6433
        %v6987 = vpop.f32.mrf.mxu0
        %v6988 = vadd.f32 0.0, %v6987
        %v6989 = vpop.f32.mrf.mxu0
        %v6990 = vadd.f32 0.0, %v6989
        %6991 = vmatprep.mubr.f32.mxu0 %v6437
        %6992 = vmatmul.mubr.f32.gmra.mxu0 %v6436
        %v6993 = vpop.f32.mrf.mxu0
        %v6994 = vadd.f32 0.0, %v6993
        %v6995 = vpop.f32.mrf.mxu0
        %v6996 = vadd.f32 0.0, %v6995
        %6997 = vmatprep.mubr.f32.mxu0 %v6440
        %6998 = vmatmul.mubr.f32.gmra.mxu0 %v6439
        %v6999 = vpop.f32.mrf.mxu0
        %v7000 = vadd.f32 0.0, %v6999
        %v7001 = vpop.f32.mrf.mxu0
        %v7002 = vadd.f32 0.0, %v7001
        %7003 = vmatprep.mubr.f32.mxu0 %v6443
        %7004 = vmatmul.mubr.f32.gmra.mxu0 %v6442
        %v7005 = vpop.f32.mrf.mxu0
        %v7006 = vadd.f32 0.0, %v7005
        %v7007 = vpop.f32.mrf.mxu0
        %v7008 = vadd.f32 0.0, %v7007
        %7009 = vdwg.mxu0
        %7010 = vmatprep.subr.mxu0 0.0
        %7011 = vmatpush1.msra.mxu0 0.0
        %7012 = vmatprep.subr.mxu0 0.0
        %7013 = vmatpush1.msra.mxu0 0.0
        %7014 = vmatprep.subr.mxu0 0.0
        %7015 = vmatpush1.msra.mxu0 0.0
        %7016 = vmatprep.subr.mxu0 0.0
        %7017 = vmatpush1.msra.mxu0 0.0
        %7018 = vmatprep.subr.mxu0 0.0
        %7019 = vmatpush1.msra.mxu0 0.0
        %7020 = vmatprep.subr.mxu0 0.0
        %7021 = vmatpush1.msra.mxu0 0.0
        %7022 = vmatprep.subr.mxu0 0.0
        %7023 = vmatpush1.msra.mxu0 0.0
        %7024 = vmatprep.subr.mxu0 0.0
        %7025 = vmatpush1.msra.mxu0 0.0
        %7026 = vmatprep.subr.mxu0 0.0
        %7027 = vmatpush1.msra.mxu0 0.0
        %7028 = vmatprep.subr.mxu0 0.0
        %7029 = vmatpush1.msra.mxu0 0.0
        %7030 = vmatprep.subr.mxu0 0.0
        %7031 = vmatpush1.msra.mxu0 0.0
        %7032 = vmatprep.subr.mxu0 %v6895
        %7033 = vmatpush1.msra.mxu0 %v6892
        %7034 = vmatprep.subr.mxu0 %v6864
        %7035 = vmatpush1.msra.mxu0 %v6863
        %7036 = vmatprep.subr.mxu0 %v6862
        %7037 = vmatpush1.msra.mxu0 %v6861
        %7038 = vmatprep.subr.mxu0 %v6860
        %7039 = vmatpush1.msra.mxu0 %v6859
        %7040 = vmatprep.subr.mxu0 %v6858
        %7041 = vmatpush1.msra.mxu0 %v6857
        %7042 = vmatprep.subr.mxu0 0.0
        %7043 = vmatpush2.msra.mxu0 0.0
        %7044 = vmatprep.subr.mxu0 0.0
        %7045 = vmatpush2.msra.mxu0 0.0
        %7046 = vmatprep.subr.mxu0 0.0
        %7047 = vmatpush2.msra.mxu0 0.0
        %7048 = vmatprep.subr.mxu0 0.0
        %7049 = vmatpush2.msra.mxu0 0.0
        %7050 = vmatprep.subr.mxu0 0.0
        %7051 = vmatpush2.msra.mxu0 0.0
        %7052 = vmatprep.subr.mxu0 0.0
        %7053 = vmatpush2.msra.mxu0 0.0
        %7054 = vmatprep.subr.mxu0 0.0
        %7055 = vmatpush2.msra.mxu0 0.0
        %7056 = vmatprep.subr.mxu0 0.0
        %7057 = vmatpush2.msra.mxu0 0.0
        %7058 = vmatprep.subr.mxu0 0.0
        %7059 = vmatpush2.msra.mxu0 0.0
        %7060 = vmatprep.subr.mxu0 0.0
        %7061 = vmatpush2.msra.mxu0 0.0
        %7062 = vmatprep.subr.mxu0 0.0
        %7063 = vmatpush2.msra.mxu0 0.0
        %7064 = vmatprep.subr.mxu0 0.0
        %7065 = vmatpush2.msra.mxu0 0.0
        %7066 = vmatprep.subr.mxu0 0.0
        %7067 = vmatpush2.msra.mxu0 0.0
        %7068 = vmatprep.subr.mxu0 0.0
        %7069 = vmatpush2.msra.mxu0 0.0
        %7070 = vmatprep.subr.mxu0 0.0
        %7071 = vmatpush2.msra.mxu0 0.0
        %7072 = vmatprep.subr.mxu0 0.0
        %7073 = vmatpush2.msra.mxu0 0.0
        %7074 = vmatprep.mubr.f32.mxu0 0.0
        %7075 = vmatmul.mubr.f32.gmra.mxu0 %v6868
        %v7076 = vpop.f32.mrf.mxu0
        %v7077 = vadd.f32 %v6964, %v7076
        %v7078 = vpop.f32.mrf.mxu0
        %v7079 = vadd.f32 %v6966, %v7078
        %7080 = vmatprep.mubr.f32.mxu0 0.0
        %7081 = vmatmul.mubr.f32.gmra.mxu0 %v6871
        %v7082 = vpop.f32.mrf.mxu0
        %v7083 = vadd.f32 %v6970, %v7082
        %v7084 = vpop.f32.mrf.mxu0
        %v7085 = vadd.f32 %v6972, %v7084
        %7086 = vmatprep.mubr.f32.mxu0 0.0
        %7087 = vmatmul.mubr.f32.gmra.mxu0 %v6874
        %v7088 = vpop.f32.mrf.mxu0
        %v7089 = vadd.f32 %v6976, %v7088
        %v7090 = vpop.f32.mrf.mxu0
        %v7091 = vadd.f32 %v6978, %v7090
        %7092 = vmatprep.mubr.f32.mxu0 0.0
        %7093 = vmatmul.mubr.f32.gmra.mxu0 %v6877
        %v7094 = vpop.f32.mrf.mxu0
        %v7095 = vadd.f32 %v6982, %v7094
        %v7096 = vpop.f32.mrf.mxu0
        %v7097 = vadd.f32 %v6984, %v7096
        %7098 = vmatprep.mubr.f32.mxu0 0.0
        %7099 = vmatmul.mubr.f32.gmra.mxu0 %v6880
        %v7100 = vpop.f32.mrf.mxu0
        %v7101 = vadd.f32 %v6988, %v7100
        %v7102 = vpop.f32.mrf.mxu0
        %v7103 = vadd.f32 %v6990, %v7102
        %7104 = vmatprep.mubr.f32.mxu0 0.0
        %7105 = vmatmul.mubr.f32.gmra.mxu0 %v6883
        %v7106 = vpop.f32.mrf.mxu0
        %v7107 = vadd.f32 %v6994, %v7106
        %v7108 = vpop.f32.mrf.mxu0
        %v7109 = vadd.f32 %v6996, %v7108
        %7110 = vmatprep.mubr.f32.mxu0 0.0
        %7111 = vmatmul.mubr.f32.gmra.mxu0 %v6886
        %v7112 = vpop.f32.mrf.mxu0
        %v7113 = vadd.f32 %v7000, %v7112
        %v7114 = vpop.f32.mrf.mxu0
        %v7115 = vadd.f32 %v7002, %v7114
        %7116 = vmatprep.mubr.f32.mxu0 0.0
        %7117 = vmatmul.mubr.f32.gmra.mxu0 %v6889
        %v7118 = vpop.f32.mrf.mxu0
        %v7119 = vadd.f32 %v7006, %v7118
        %v7120 = vpop.f32.mrf.mxu0
        %v7121 = vadd.f32 %v7008, %v7120
        %7122 = vdwg.mxu0
        %v7123 = vadd.f32 %v6777, %v7077
        %v7124 = vadd.f32 %v6778, %v7079
        %v7125 = vadd.f32 %v6779, %v7083
        %v7126 = vadd.f32 %v6780, %v7085
        %v7127 = vadd.f32 %v6781, %v7089
        %v7128 = vadd.f32 %v6782, %v7091
        %v7129 = vadd.f32 %v6783, %v7095
        %v7130 = vadd.f32 %v6784, %v7097
        %v7131 = vadd.f32 %v6785, %v7101
        %v7132 = vadd.f32 %v6786, %v7103
        %v7133 = vadd.f32 %v6787, %v7107
        %v7134 = vadd.f32 %v6788, %v7109
        %v7135 = vadd.f32 %v6789, %v7113
        %v7136 = vadd.f32 %v6790, %v7115
        %v7137 = vadd.f32 %v6791, %v7119
        %v7138 = vadd.f32 %v6792, %v7121
        %v7139 = vld [vmem:[%s12] sm:$0xff]
        %v7140 = vld [vmem:[%s12 + $0x8] sm:$0xff]
        %v7141 = vld [vmem:[%s13] sm:$0xff]
        %v7142 = vld [vmem:[%s13 + $0x8] sm:$0xff]
        %7144 = vset.pattern.permute.xlu0 0
        %7145 = vperm.xlu0 %7144, %v7141
        %v7146 = vpop.permute.xlu0 %7145
        %7149 = vset.pattern.permute.xlu0 0
        %7150 = vperm.xlu0 %7149, %v7142
        %v7151 = vpop.permute.xlu0 %7150
        %v7154 = vsel %vm1018, %v7139, 0
        %v7157 = vsel %vm1018, %v7140, 0
        %7159 = vmatprep.subr.mxu0 0.0
        %7160 = vmatpush1.msra.mxu0 0.0
        %7161 = vmatprep.subr.mxu0 0.0
        %7162 = vmatpush1.msra.mxu0 0.0
        %7163 = vmatprep.subr.mxu0 0.0
        %7164 = vmatpush1.msra.mxu0 0.0
        %7165 = vmatprep.subr.mxu0 0.0
        %7166 = vmatpush1.msra.mxu0 0.0
        %7167 = vmatprep.subr.mxu0 0.0
        %7168 = vmatpush1.msra.mxu0 0.0
        %7169 = vmatprep.subr.mxu0 0.0
        %7170 = vmatpush1.msra.mxu0 0.0
        %7171 = vmatprep.subr.mxu0 0.0
        %7172 = vmatpush1.msra.mxu0 0.0
        %7173 = vmatprep.subr.mxu0 0.0
        %7174 = vmatpush1.msra.mxu0 0.0
        %7175 = vmatprep.subr.mxu0 %v7138
        %7176 = vmatpush1.msra.mxu0 %v7137
        %7177 = vmatprep.subr.mxu0 %v7136
        %7178 = vmatpush1.msra.mxu0 %v7135
        %7179 = vmatprep.subr.mxu0 %v7134
        %7180 = vmatpush1.msra.mxu0 %v7133
        %7181 = vmatprep.subr.mxu0 %v7132
        %7182 = vmatpush1.msra.mxu0 %v7131
        %7183 = vmatprep.subr.mxu0 %v7130
        %7184 = vmatpush1.msra.mxu0 %v7129
        %7185 = vmatprep.subr.mxu0 %v7128
        %7186 = vmatpush1.msra.mxu0 %v7127
        %7187 = vmatprep.subr.mxu0 %v7126
        %7188 = vmatpush1.msra.mxu0 %v7125
        %7189 = vmatprep.subr.mxu0 %v7124
        %7190 = vmatpush1.msra.mxu0 %v7123
        %7191 = vmatprep.subr.mxu0 0.0
        %7192 = vmatpush2.msra.mxu0 0.0
        %7193 = vmatprep.subr.mxu0 0.0
        %7194 = vmatpush2.msra.mxu0 0.0
        %7195 = vmatprep.subr.mxu0 0.0
        %7196 = vmatpush2.msra.mxu0 0.0
        %7197 = vmatprep.subr.mxu0 0.0
        %7198 = vmatpush2.msra.mxu0 0.0
        %7199 = vmatprep.subr.mxu0 0.0
        %7200 = vmatpush2.msra.mxu0 0.0
        %7201 = vmatprep.subr.mxu0 0.0
        %7202 = vmatpush2.msra.mxu0 0.0
        %7203 = vmatprep.subr.mxu0 0.0
        %7204 = vmatpush2.msra.mxu0 0.0
        %7205 = vmatprep.subr.mxu0 0.0
        %7206 = vmatpush2.msra.mxu0 0.0
        %7207 = vmatprep.subr.mxu0 0.0
        %7208 = vmatpush2.msra.mxu0 0.0
        %7209 = vmatprep.subr.mxu0 0.0
        %7210 = vmatpush2.msra.mxu0 0.0
        %7211 = vmatprep.subr.mxu0 0.0
        %7212 = vmatpush2.msra.mxu0 0.0
        %7213 = vmatprep.subr.mxu0 0.0
        %7214 = vmatpush2.msra.mxu0 0.0
        %7215 = vmatprep.subr.mxu0 0.0
        %7216 = vmatpush2.msra.mxu0 0.0
        %7217 = vmatprep.subr.mxu0 0.0
        %7218 = vmatpush2.msra.mxu0 0.0
        %7219 = vmatprep.subr.mxu0 0.0
        %7220 = vmatpush2.msra.mxu0 0.0
        %7221 = vmatprep.subr.mxu0 0.0
        %7222 = vmatpush2.msra.mxu0 0.0
        %7223 = vmatprep.mubr.f32.mxu0 0.0
        %7224 = vmatmul.mubr.f32.gmra.mxu0 %v7154
        %v7225 = vpop.f32.mrf.mxu0
        %v7226 = vadd.f32 %v7146, %v7225
        %v7227 = vpop.f32.mrf.mxu0
        %v7228 = vadd.f32 %v7146, %v7227
        %7229 = vmatprep.mubr.f32.mxu0 0.0
        %7230 = vmatmul.mubr.f32.gmra.mxu0 %v7157
        %v7231 = vpop.f32.mrf.mxu0
        %v7232 = vadd.f32 %v7151, %v7231
        %v7233 = vpop.f32.mrf.mxu0
        %v7234 = vadd.f32 %v7151, %v7233
        %7235 = vdwg.mxu0
        %7236 = vst [vmem:[%s475] sm:$0xff] %v7226
        %7237 = vst [vmem:[%s475 + $0x8] sm:$0xff] %v7228
        %7238 = vst [vmem:[%s475 + $0x10] sm:$0xff] %v7232
        %7239 = vst [vmem:[%s475 + $0x18] sm:$0xff] %v7234
        %s7240 = sand.u32 %s336, 1
        %s7241 = scalar_lea.sflag [#allocation6], %s7240
        %s7242 = sand.u32 %s336, 1
        %s7243 = smul.addr %s7242, 32
        %s7244 = scalar_lea.vmem [#allocation7], %s7243
        // Predicated region
        $region81: #{tpu_custom_call.1} parent=75 // pred_check
          %p7245 = pneg %p346
        $region82: #{tpu_custom_call.1} parent=75 // pred_check_branch
          %7247 = sbr.rel (%p7245) target = $region84
        $region83: #{tpu_custom_call.1} parent=75 // pred_region
          %s7249 = ssub.s32 512, 512
          %7250 = vsyncadd %s7241, %s7249
          %s7251 = smul.addr %s29, 4
          %s7252 = smul.addr %s7251, 128
          %s7253 = scalar_lea.hbm %s14, %s7252
          %s7254 = sshll.u32 %s7244, 4
          %s7255 = int_to_ptr.vmem [resolvable:$true] %s7254
          %7260 = dma.vmem_to_hbm [thread:$0]  %s7255, 512, %s7253, %s7241, 256, 256, 16
        $region84: #{tpu_custom_call.1} parent=75 // pred_fallthru
          _
      $region76: #{tpu_custom_call.1} parent=5 // pred_fallthru
        _
      %p7261 = scmp.le.s32.totalorder 2, %s24
      // Predicated region
      $region85: #{tpu_custom_call.1} parent=5 // pred_check
        %p7262 = pneg %p7261
      $region86: #{tpu_custom_call.1} parent=5 // pred_check_branch
        %7264 = sbr.rel (%p7262) target = $region88
      $region87: #{tpu_custom_call.1} parent=5 // pred_region
        %s7265 = ssub.s32 %s24, 2
        // Predicated region
        $region89: #{tpu_custom_call.1} parent=87 // pred_check
          %p7266 = pneg %p352
        $region90: #{tpu_custom_call.1} parent=87 // pred_check_branch
          %7268 = sbr.rel (%p7266) target = $region92
        $region91: #{tpu_custom_call.1} parent=87 // pred_region
          %s7269 = sand.u32 %s337, 1
          %s7270 = scalar_lea.sflag [#allocation6], %s7269
          %s7271 = sand.u32 %s337, 1
          %s7272 = smul.addr %s7271, 32
          %s7273 = scalar_lea.vmem [#allocation7], %s7272
          %7274 = dma.done %s7270, 512
        $region92: #{tpu_custom_call.1} parent=87 // pred_fallthru
          _
      $region88: #{tpu_custom_call.1} parent=5 // pred_fallthru
        _
    $region6: #{tpu_custom_call.1} parent=1 // loop_footer
      %s28 = sadd.s32 1, %s24
    $region7: #{tpu_custom_call.1} parent=1 // loop_footer_branch
      %23 = sbr.rel target = $region3
    $region8: #{tpu_custom_call.1} parent=1 // loop_exit
      _
    %7275 = vsyncpa [#allocation5], 1
    %s7276 = scalar_lea.sflag [#allocation5], 1
    %7277 = vsyncpa %s7276, 1
    %7278 = vsyncpa [#allocation6], 1
    %s7279 = scalar_lea.sflag [#allocation6], 1
    %7280 = vsyncpa %s7279, 1

</llo_original>
